<compile_context>
chip_gen: v7x
topology: tpu7x:2x2x1
jax: 0.10.0
libtpu: 0.0.40
codegen_flags: <defaults>
</compile_context>

<pallas_src>
import functools

import jax
import jax.numpy as jnp
from jax.experimental import pallas as pl
from jax.experimental.pallas import tpu as pltpu

BN_EPS = 1e-5


# --------------------------------------------------------------------------
# small helpers
# --------------------------------------------------------------------------

def _round_up(x, m):
    return (x + m - 1) // m * m


def _pick_lane_tile(m, target):
    """Largest divisor of m that is a multiple of 128 and <= target.

    Falls back to the full extent when m is not a multiple of 128 (a block
    equal to the full array dim is always legal)."""
    if m % 128 != 0:
        return m
    n = m // 128
    best, k = 1, 1
    while k <= n and 128 * k <= target:
        if n % k == 0:
            best = k
        k += 1
    return 128 * best


def _plane_order():
    """order[q] = dy*8+dx with q = a2*16 + a1*4 + a0, a_k = 2*bit_k(dy)+bit_k(dx).

    With this ordering each of the three successive 2x2 max-pools reduces
    groups of 4 consecutive planes (lowest base-4 digit first)."""
    order = [0] * 64
    for dy in range(8):
        for dx in range(8):
            a0 = 2 * (dy & 1) + (dx & 1)
            a1 = 2 * ((dy >> 1) & 1) + ((dx >> 1) & 1)
            a2 = 2 * ((dy >> 2) & 1) + ((dx >> 2) & 1)
            order[a2 * 16 + a1 * 4 + a0] = dy * 8 + dx
    return order


def _space_to_depth_planes(x5d):
    """(B, P, C, H, W) f32 -> (P, 64, C, B*(H//8)*(W//8)) bf16, channel-major.

    Pixel rows (last axis) are ordered (b, h//8, w//8); plane q holds the
    pixel at offset (dy, dx) inside each 8x8 superpixel per _plane_order().
    Cast to bf16 BEFORE the transpose so the one-time XLA glue moves half the
    bytes (stage 1 is pure HBM-read bound)."""
    B, P, C, H, W = x5d.shape
    Hb, Wb = H // 8, W // 8
    t = x5d.astype(jnp.bfloat16).reshape(B, P, C, Hb, 8, Wb, 8)
    t = jnp.transpose(t, (1, 4, 6, 2, 0, 3, 5))         # (P, dy, dx, C, B, hb, wb)
    t = t.reshape(P, 64, C, B * Hb * Wb)
    return t[:, jnp.array(_plane_order())]


# --------------------------------------------------------------------------
# fused stage kernel: conv1x1 + BN + (Exchange) + ReLU + MaxPool2d(2,2)
#   channel-major: activations are (C, M) tiles with M on the lane axis.
# --------------------------------------------------------------------------

def _make_stage_kernel(num_parallel, cin, do_exchange):
    P = num_parallel

    def kernel(x_ref, w_ref, shift_ref, mask_ref, o_ref):
        # x_ref:     (P, 4, cin, tm)   4 consecutive source planes per branch
        # w_ref:     (P, cout, cin)    W^T with BN scale folded in, per branch
        # shift_ref: (P, cout, 1) f32  folded BN shift (beta - mean*scale)
        # mask_ref:  (P, cout, 1) f32  1.0 where |gamma| < threshold
        # o_ref:     (P, 1, cout, tm)  pooled output plane (lane-dense store)

        # Hoist per-branch parameter reads / mask arithmetic out of the plane
        # loop (JAX does not CSE broadcasts).
        shifts = [shift_ref[p] for p in range(P)]                    # (cout, 1)
        if do_exchange:
            takes = [mask_ref[p] for p in range(P)]                  # 0/1 f32
            keeps = [1.0 - t for t in takes]
        if cin <= 4:
            ws = [w_ref[p].astype(jnp.float32) for p in range(P)]    # (cout, cin)
        else:
            ws = [w_ref[p] for p in range(P)]

        acc = [None] * P
        for a in range(4):                      # incremental 2x2 max-pool
            z = [None] * P
            for p in range(P):
                x = x_ref[p, a]                                      # (cin, tm)
                if cin <= 4:
                    # K<=3 "matmul" as VPU outer-product MACs: lane-dense x row
                    # times a per-sublane weight column.
                    xf = x.astype(jnp.float32)
                    y = xf[0:1, :] * ws[p][:, 0:1]
                    for c in range(1, cin):
                        y = y + xf[c:c + 1, :] * ws[p][:, c:c + 1]
                else:
                    # MXU dot: N = tm (lane-dense), K = cin, M = cout.
                    y = jnp.dot(ws[p], x, preferred_element_type=jnp.float32)
                z[p] = y + shifts[p]

            # Channel exchange across parallel branches (per plane): masked
            # channels are replaced by the elementwise max over ALL branches
            # (including self), matching the reference Exchange module.
            # 0/1-mask lerp is exact and avoids boolean lane-broadcast selects.
            if do_exchange:
                new = z[0]
                for p in range(1, P):
                    new = jnp.maximum(new, z[p])
                for p in range(P):
                    z[p] = z[p] * keeps[p] + new * takes[p]

            # Fold into running-max pool accumulators (keeps only ~2P tiles live).
            for p in range(P):
                acc[p] = z[p] if a == 0 else jnp.maximum(acc[p], z[p])

        # ReLU commutes with max-pool; apply once, cast on store.
        for p in range(P):
            o_ref[p, 0] = jnp.maximum(acc[p], 0.0).astype(o_ref.dtype)

    return kernel


def fused_stage(x, w_t, shift, mask, *, do_exchange, out_dtype,
                lane_tile_target=1024):
    """One fused CNN stage (channel-major layout).

    x:     (P, Q, Cin, M)  Q source planes (Q % 4 == 0), M pixels per plane
    w_t:   (P, Cout, Cin)  per-branch transposed 1x1 conv weight, BN-scale folded
    shift: (P, Cout, 1)    folded BN shift (f32)
    mask:  (P, Cout, 1)    exchange mask (f32 in {0, 1})
    returns (P, Q // 4, Cout, M) in out_dtype.
    """
    P, Q, Cin, M = x.shape
    Cout = w_t.shape[1]
    assert Q % 4 == 0, Q
    # bf16 into the MXU for real dots; f32 for the Cin<=4 VPU path.
    w_t = w_t.astype(x.dtype if Cin > 4 else jnp.float32)
    shift = shift.astype(jnp.float32)
    mask = mask.astype(jnp.float32)

    tm = _pick_lane_tile(M, lane_tile_target)
    grid = (Q // 4, M // tm)
    kernel = _make_stage_kernel(P, Cin, do_exchange)
    vec_spec = pl.BlockSpec((P, Cout, 1), lambda j, i: (0, 0, 0))

    return pl.pallas_call(
        kernel,
        out_shape=jax.ShapeDtypeStruct((P, Q // 4, Cout, M), out_dtype),
        grid_spec=pltpu.PrefetchScalarGridSpec(
            num_scalar_prefetch=0,
            grid=grid,
            in_specs=[
                pl.BlockSpec((P, 4, Cin, tm), lambda j, i: (0, j, 0, i)),
                pl.BlockSpec((P, Cout, Cin), lambda j, i: (0, 0, 0)),
                vec_spec, vec_spec,
            ],
            out_specs=pl.BlockSpec((P, 1, Cout, tm), lambda j, i: (0, j, 0, i)),
        ),
        compiler_params=pltpu.CompilerParams(
            dimension_semantics=("parallel", "parallel")),
    )(x, w_t, shift, mask)


# --------------------------------------------------------------------------
# classifier: Linear -> ReLU -> Linear -> ReLU -> Linear -> Softmax
# --------------------------------------------------------------------------

def _fc1_kernel(x_ref, w_ref, b_ref, o_ref, acc_ref):
    k = pl.program_id(1)

    @pl.when(k == 0)
    def _():
        acc_ref[...] = jnp.zeros_like(acc_ref)

    # Layer-1 GEMM: K tiled over the (large) flattened feature dim,
    # N (H1 columns) is a parallel grid axis so both v7x TensorCores stream
    # disjoint halves of the weight.
    acc_ref[...] += jnp.dot(x_ref[...], w_ref[...],
                            preferred_element_type=jnp.float32)

    @pl.when(k == pl.num_programs(1) - 1)
    def _():
        # TODO(synk): nn.Dropout after layer1 is eval-mode identity here.
        o_ref[...] = jnp.maximum(acc_ref[...] + b_ref[...], 0.0).astype(o_ref.dtype)


def _head_kernel(h_ref, w2_ref, b2_ref, w3_ref, b3_ref, o_ref):
    # TODO(synk): nn.Dropout after layer2 is eval-mode identity here.
    h = jnp.maximum(jnp.dot(h_ref[...], w2_ref[...],
                            preferred_element_type=jnp.float32) + b2_ref[...], 0.0)
    logits = jnp.dot(h, w3_ref[...],
                     preferred_element_type=jnp.float32) + b3_ref[...]
    z = logits - jnp.max(logits, axis=1, keepdims=True)
    e = jnp.exp(z)
    o_ref[...] = (e / jnp.sum(e, axis=1, keepdims=True)).astype(o_ref.dtype)


def classifier(x, params, *, k_tile_target=2048, n_tile_target=512):
    """x: (B, F) bf16 features -> softmax probabilities (B, n_classes) f32."""
    B, F = x.shape
    w1 = params["cls_w1"]                              # stored bf16: no per-call cast
    b1 = params["cls_b1"].reshape(1, -1).astype(jnp.float32)
    w2 = params["cls_w2"].astype(jnp.float32)
    b2 = params["cls_b2"].reshape(1, -1).astype(jnp.float32)
    w3 = params["cls_w3"].astype(jnp.float32)
    b3 = params["cls_b3"].reshape(1, -1).astype(jnp.float32)
    H1, H2, O = w1.shape[1], w2.shape[1], w3.shape[1]

    x = x.astype(w1.dtype)
    F_pad = _round_up(F, 128)
    if F_pad != F:
        # Zero-pad the reduction dim so K-tiling is always lane-aligned
        # (never try to stage the whole (F, H1) weight in VMEM).
        x = jnp.pad(x, ((0, 0), (0, F_pad - F)))
        w1 = jnp.pad(w1, ((0, F_pad - F), (0, 0)))

    tk = _pick_lane_tile(F_pad, k_tile_target)
    tn = _pick_lane_tile(H1, min(n_tile_target, max(128, H1 // 2)))
    grid = (H1 // tn, F_pad // tk)                     # (parallel N, arbitrary K)

    h1 = pl.pallas_call(
        _fc1_kernel,
        out_shape=jax.ShapeDtypeStruct((B, H1), jnp.float32),
        grid_spec=pltpu.PrefetchScalarGridSpec(
            num_scalar_prefetch=0,
            grid=grid,
            in_specs=[
                pl.BlockSpec((B, tk), lambda n, k: (0, k)),
                pl.BlockSpec((tk, tn), lambda n, k: (k, n)),
                pl.BlockSpec((1, tn), lambda n, k: (0, n)),
            ],
            out_specs=pl.BlockSpec((B, tn), lambda n, k: (0, n)),
            scratch_shapes=[pltpu.VMEM((B, tn), jnp.float32)],
        ),
        compiler_params=pltpu.CompilerParams(
            dimension_semantics=("parallel", "arbitrary")),
    )(x, w1, b1)

    def full2(shape):
        return pl.BlockSpec(shape, lambda i: (0, 0))

    return pl.pallas_call(
        _head_kernel,
        out_shape=jax.ShapeDtypeStruct((B, O), jnp.float32),
        grid_spec=pltpu.PrefetchScalarGridSpec(
            num_scalar_prefetch=0,
            grid=(1,),
            in_specs=[full2((B, H1)), full2((H1, H2)), full2((1, H2)),
                      full2((H2, O)), full2((1, O))],
            out_specs=full2((B, O)),
        ),
        compiler_params=pltpu.CompilerParams(dimension_semantics=("arbitrary",)),
    )(h1, w2, b2, w3, b3)


# --------------------------------------------------------------------------
# forward pass
# --------------------------------------------------------------------------

def cen_cnn_forward(b_x, a_x, params, threshold):
    """b_x, a_x: (B, P, 3, H, W) float32.  Returns (B, n_classes) softmax."""
    B, P, _, H, W = b_x.shape
    assert H % 8 == 0 and W % 8 == 0, "three 2x2 max-pools need H, W % 8 == 0"
    Hb, Wb = H // 8, W // 8

    # One-time space-to-depth + stream batching (channel-major, bf16): both
    # streams and all parallel branches then share every subsequent call.
    x = jnp.concatenate(
        [_space_to_depth_planes(b_x), _space_to_depth_planes(a_x)], axis=3)
    # x: (P, 64, 3, M) with M = 2*B*Hb*Wb rows ordered (stream, b, h//8, w//8)

    def stage_params(w, g, b, m, v):
        # Inference BatchNorm folded: scale goes into the per-branch weight,
        # shift stays as an in-kernel add.
        # TODO(synk): training-mode BatchNorm (batch statistics) not implemented.
        scale = g / jnp.sqrt(v + BN_EPS)                           # (P, Cout)
        shift = (b - m * scale)[:, :, None]                        # (P, Cout, 1)
        w_t = scale[:, :, None] * jnp.transpose(w)[None]           # (P, Cout, Cin)
        msk = (jnp.abs(g) < threshold).astype(jnp.float32)[:, :, None]
        return w_t, shift, msk

    wt1, sh1, m1 = stage_params(params["w1"], params["bn1_g"], params["bn1_b"],
                                params["bn1_m"], params["bn1_v"])
    x = fused_stage(x, wt1, sh1, m1, do_exchange=True,
                    out_dtype=jnp.bfloat16)                        # (P, 16, 32, M)

    wt2, sh2, m2 = stage_params(params["w2"], params["bn2_g"], params["bn2_b"],
                                params["bn2_m"], params["bn2_v"])
    x = fused_stage(x, wt2, sh2, m2, do_exchange=True,
                    out_dtype=jnp.bfloat16)                        # (P, 4, 64, M)

    wt3, sh3, m3 = stage_params(params["w3"], params["bn3_g"], params["bn3_b"],
                                params["bn3_m"], params["bn3_v"])
    x = fused_stage(x, wt3, sh3, m3, do_exchange=False,
                    out_dtype=jnp.bfloat16)                        # (P, 1, 128, M)
    # TODO(synk): Dropout(p=0.3) after stage 3 is eval-mode identity.

    # Reassemble exactly torch's cat(branches, C), cat(streams, C), flatten(1):
    # per-sample ordering [stream][branch][channel][h][w].
    C3 = x.shape[2]
    y = x[:, 0].reshape(P, C3, 2, B, Hb * Wb)           # (p, c, s, b, hw)
    feats = jnp.transpose(y, (3, 2, 0, 1, 4)).reshape(B, 2 * P * C3 * Hb * Wb)
    return classifier(feats, params)


# --------------------------------------------------------------------------
# parameters
# --------------------------------------------------------------------------

def init_params(key, cin=3, c1=32, c2=64, c3=128, num_parallel=3,
                feat=3072, hidden=256, out=4):
    ks = iter(jax.random.split(key, 16))

    def conv_w(k, ci, co):
        return jax.random.normal(k, (ci, co), jnp.float32) / jnp.sqrt(ci)

    def bn(k, c, g_lo, g_hi):
        kg, kb, km, kv = jax.random.split(k, 4)
        return (
            jax.random.uniform(kg, (num_parallel, c), jnp.float32, g_lo, g_hi),
            jax.random.normal(kb, (num_parallel, c), jnp.float32) * 0.05,
            jax.random.normal(km, (num_parallel, c), jnp.float32) * 0.05,
            jax.random.uniform(kv, (num_parallel, c), jnp.float32, 0.5, 1.5),
        )

    def lin(k, ci, co, dtype=jnp.float32):
        kw, kb = jax.random.split(k)
        w = (jax.random.normal(kw, (ci, co), jnp.float32) / jnp.sqrt(ci)).astype(dtype)
        return w, jax.random.normal(kb, (co,), jnp.float32) * 0.01

    p = {"w1": conv_w(next(ks), cin, c1),
         "w2": conv_w(next(ks), c1, c2),
         "w3": conv_w(next(ks), c2, c3)}
    p["bn1_g"], p["bn1_b"], p["bn1_m"], p["bn1_v"] = bn(next(ks), c1, 0.0, 0.3)
    p["bn2_g"], p["bn2_b"], p["bn2_m"], p["bn2_v"] = bn(next(ks), c2, 0.0, 0.3)
    p["bn3_g"], p["bn3_b"], p["bn3_m"], p["bn3_v"] = bn(next(ks), c3, 0.5, 1.5)
    # The big layer-1 weight is stored bf16 so inference never re-reads an
    # f32 copy just to downcast it.
    p["cls_w1"], p["cls_b1"] = lin(next(ks), feat, hidden, dtype=jnp.bfloat16)
    p["cls_w2"], p["cls_b2"] = lin(next(ks), hidden, hidden // 2)
    p["cls_w3"], p["cls_b3"] = lin(next(ks), hidden // 2, out)
    return p


# --------------------------------------------------------------------------
# main
# --------------------------------------------------------------------------

if __name__ == "__main__":
    key = jax.random.PRNGKey(0)
    B, P, Cin, H, W = 2, 3, 3, 16, 16        # small shapes (PyTorch default is 224)
    Hb, Wb = H // 8, W // 8                  # spatial size after three 2x2 pools
    feat = 2 * P * 128 * Hb * Wb             # == 768 * (H//8) * (W//8)

    kp, kb, ka = jax.random.split(key, 3)
    params = init_params(kp, feat=feat, hidden=256, out=4)
    b_x = jax.random.normal(kb, (B, P, Cin, H, W), jnp.float32)
    a_x = jax.random.normal(ka, (B, P, Cin, H, W), jnp.float32)

    fwd = jax.jit(functools.partial(cen_cnn_forward, threshold=0.1))
    out = jax.block_until_ready(fwd(b_x, a_x, params))

    assert out.shape == (B, 4), out.shape
    assert bool(jnp.all(jnp.isfinite(out)))
    assert bool(jnp.allclose(jnp.sum(out, axis=1), 1.0, atol=1e-3))
    print("KERNEL_OK")
</pallas_src>

<mosaic_0001>
module attributes {stable_mosaic.version = 11 : i64} {
  func.func @kernel(%arg0: i32, %arg1: i32, %arg2: memref<3x4x3x16xbf16, #tpu.memory_space<vmem>>, %arg3: memref<3x32x3xf32, #tpu.memory_space<vmem>>, %arg4: memref<3x32x1xf32, #tpu.memory_space<vmem>>, %arg5: memref<3x32x1xf32, #tpu.memory_space<vmem>>, %arg6: memref<3x1x32x16xbf16, #tpu.memory_space<vmem>>) attributes {dimension_semantics = [#tpu.dimension_semantics<parallel>, #tpu.dimension_semantics<parallel>], iteration_bounds = array<i64: 16, 1>, scalar_prefetch = 0 : i64, scratch_operands = 0 : i64, tpu.core_type = #tpu.core_type<tc>, window_params = [{transform_indices = @transform_0, window_bounds = array<i64: 3, 4, 3, 16>}, {pipeline_mode = #tpu.pipeline_mode<synchronous>, transform_indices = @transform_1, window_bounds = array<i64: 3, 32, 3>}, {pipeline_mode = #tpu.pipeline_mode<synchronous>, transform_indices = @transform_2, window_bounds = array<i64: 3, 32, 1>}, {pipeline_mode = #tpu.pipeline_mode<synchronous>, transform_indices = @transform_3, window_bounds = array<i64: 3, 32, 1>}, {transform_indices = @transform_4, window_bounds = array<i64: 3, 1, 32, 16>}]} {
    %c0 = arith.constant 0 : index
    %c0_0 = arith.constant 0 : index
    %c0_1 = arith.constant 0 : index
    %0 = vector.load %arg4[%c0, %c0_0, %c0_1] : memref<3x32x1xf32, #tpu.memory_space<vmem>>, vector<1x32x1xf32>
    %1 = vector.shape_cast %0 : vector<1x32x1xf32> to vector<32x1xf32>
    %c1 = arith.constant 1 : index
    %c0_2 = arith.constant 0 : index
    %c0_3 = arith.constant 0 : index
    %2 = vector.load %arg4[%c1, %c0_2, %c0_3] : memref<3x32x1xf32, #tpu.memory_space<vmem>>, vector<1x32x1xf32>
    %3 = vector.shape_cast %2 : vector<1x32x1xf32> to vector<32x1xf32>
    %c2 = arith.constant 2 : index
    %c0_4 = arith.constant 0 : index
    %c0_5 = arith.constant 0 : index
    %4 = vector.load %arg4[%c2, %c0_4, %c0_5] : memref<3x32x1xf32, #tpu.memory_space<vmem>>, vector<1x32x1xf32>
    %5 = vector.shape_cast %4 : vector<1x32x1xf32> to vector<32x1xf32>
    %c0_6 = arith.constant 0 : index
    %c0_7 = arith.constant 0 : index
    %c0_8 = arith.constant 0 : index
    %6 = vector.load %arg5[%c0_6, %c0_7, %c0_8] : memref<3x32x1xf32, #tpu.memory_space<vmem>>, vector<1x32x1xf32>
    %7 = vector.shape_cast %6 : vector<1x32x1xf32> to vector<32x1xf32>
    %c1_9 = arith.constant 1 : index
    %c0_10 = arith.constant 0 : index
    %c0_11 = arith.constant 0 : index
    %8 = vector.load %arg5[%c1_9, %c0_10, %c0_11] : memref<3x32x1xf32, #tpu.memory_space<vmem>>, vector<1x32x1xf32>
    %9 = vector.shape_cast %8 : vector<1x32x1xf32> to vector<32x1xf32>
    %c2_12 = arith.constant 2 : index
    %c0_13 = arith.constant 0 : index
    %c0_14 = arith.constant 0 : index
    %10 = vector.load %arg5[%c2_12, %c0_13, %c0_14] : memref<3x32x1xf32, #tpu.memory_space<vmem>>, vector<1x32x1xf32>
    %11 = vector.shape_cast %10 : vector<1x32x1xf32> to vector<32x1xf32>
    %cst = arith.constant 1.000000e+00 : f32
    %12 = vector.broadcast %cst : f32 to vector<32x1xf32>
    %13 = arith.subf %12, %7 : vector<32x1xf32>
    %cst_15 = arith.constant 1.000000e+00 : f32
    %14 = vector.broadcast %cst_15 : f32 to vector<32x1xf32>
    %15 = arith.subf %14, %9 : vector<32x1xf32>
    %cst_16 = arith.constant 1.000000e+00 : f32
    %16 = vector.broadcast %cst_16 : f32 to vector<32x1xf32>
    %17 = arith.subf %16, %11 : vector<32x1xf32>
    %c0_17 = arith.constant 0 : index
    %c0_18 = arith.constant 0 : index
    %c0_19 = arith.constant 0 : index
    %18 = vector.load %arg3[%c0_17, %c0_18, %c0_19] : memref<3x32x3xf32, #tpu.memory_space<vmem>>, vector<1x32x3xf32>
    %19 = vector.shape_cast %18 : vector<1x32x3xf32> to vector<32x3xf32>
    %c1_20 = arith.constant 1 : index
    %c0_21 = arith.constant 0 : index
    %c0_22 = arith.constant 0 : index
    %20 = vector.load %arg3[%c1_20, %c0_21, %c0_22] : memref<3x32x3xf32, #tpu.memory_space<vmem>>, vector<1x32x3xf32>
    %21 = vector.shape_cast %20 : vector<1x32x3xf32> to vector<32x3xf32>
    %c2_23 = arith.constant 2 : index
    %c0_24 = arith.constant 0 : index
    %c0_25 = arith.constant 0 : index
    %22 = vector.load %arg3[%c2_23, %c0_24, %c0_25] : memref<3x32x3xf32, #tpu.memory_space<vmem>>, vector<1x32x3xf32>
    %23 = vector.shape_cast %22 : vector<1x32x3xf32> to vector<32x3xf32>
    %c0_26 = arith.constant 0 : index
    %c0_27 = arith.constant 0 : index
    %c0_28 = arith.constant 0 : index
    %c0_29 = arith.constant 0 : index
    %24 = vector.load %arg2[%c0_26, %c0_27, %c0_28, %c0_29] : memref<3x4x3x16xbf16, #tpu.memory_space<vmem>>, vector<1x1x3x16xbf16>
    %25 = vector.shape_cast %24 : vector<1x1x3x16xbf16> to vector<3x16xbf16>
    %26 = arith.extf %25 : vector<3x16xbf16> to vector<3x16xf32>
    %27 = vector.extract_strided_slice %26 {offsets = [0, 0], sizes = [1, 16], strides = [1, 1]} : vector<3x16xf32> to vector<1x16xf32>
    %28 = vector.extract_strided_slice %19 {offsets = [0, 0], sizes = [32, 1], strides = [1, 1]} : vector<32x3xf32> to vector<32x1xf32>
    %29 = vector.broadcast %27 : vector<1x16xf32> to vector<32x16xf32>
    %30 = vector.broadcast %28 : vector<32x1xf32> to vector<32x16xf32>
    %31 = arith.mulf %29, %30 : vector<32x16xf32>
    %32 = vector.extract_strided_slice %26 {offsets = [1, 0], sizes = [1, 16], strides = [1, 1]} : vector<3x16xf32> to vector<1x16xf32>
    %33 = vector.extract_strided_slice %19 {offsets = [0, 1], sizes = [32, 1], strides = [1, 1]} : vector<32x3xf32> to vector<32x1xf32>
    %34 = vector.broadcast %32 : vector<1x16xf32> to vector<32x16xf32>
    %35 = vector.broadcast %33 : vector<32x1xf32> to vector<32x16xf32>
    %36 = arith.mulf %34, %35 : vector<32x16xf32>
    %37 = arith.addf %31, %36 : vector<32x16xf32>
    %38 = vector.extract_strided_slice %26 {offsets = [2, 0], sizes = [1, 16], strides = [1, 1]} : vector<3x16xf32> to vector<1x16xf32>
    %39 = vector.extract_strided_slice %19 {offsets = [0, 2], sizes = [32, 1], strides = [1, 1]} : vector<32x3xf32> to vector<32x1xf32>
    %40 = vector.broadcast %38 : vector<1x16xf32> to vector<32x16xf32>
    %41 = vector.broadcast %39 : vector<32x1xf32> to vector<32x16xf32>
    %42 = arith.mulf %40, %41 : vector<32x16xf32>
    %43 = arith.addf %37, %42 : vector<32x16xf32>
    %44 = vector.broadcast %1 : vector<32x1xf32> to vector<32x16xf32>
    %45 = arith.addf %43, %44 : vector<32x16xf32>
    %c1_30 = arith.constant 1 : index
    %c0_31 = arith.constant 0 : index
    %c0_32 = arith.constant 0 : index
    %c0_33 = arith.constant 0 : index
    %46 = vector.load %arg2[%c1_30, %c0_31, %c0_32, %c0_33] : memref<3x4x3x16xbf16, #tpu.memory_space<vmem>>, vector<1x1x3x16xbf16>
    %47 = vector.shape_cast %46 : vector<1x1x3x16xbf16> to vector<3x16xbf16>
    %48 = arith.extf %47 : vector<3x16xbf16> to vector<3x16xf32>
    %49 = vector.extract_strided_slice %48 {offsets = [0, 0], sizes = [1, 16], strides = [1, 1]} : vector<3x16xf32> to vector<1x16xf32>
    %50 = vector.extract_strided_slice %21 {offsets = [0, 0], sizes = [32, 1], strides = [1, 1]} : vector<32x3xf32> to vector<32x1xf32>
    %51 = vector.broadcast %49 : vector<1x16xf32> to vector<32x16xf32>
    %52 = vector.broadcast %50 : vector<32x1xf32> to vector<32x16xf32>
    %53 = arith.mulf %51, %52 : vector<32x16xf32>
    %54 = vector.extract_strided_slice %48 {offsets = [1, 0], sizes = [1, 16], strides = [1, 1]} : vector<3x16xf32> to vector<1x16xf32>
    %55 = vector.extract_strided_slice %21 {offsets = [0, 1], sizes = [32, 1], strides = [1, 1]} : vector<32x3xf32> to vector<32x1xf32>
    %56 = vector.broadcast %54 : vector<1x16xf32> to vector<32x16xf32>
    %57 = vector.broadcast %55 : vector<32x1xf32> to vector<32x16xf32>
    %58 = arith.mulf %56, %57 : vector<32x16xf32>
    %59 = arith.addf %53, %58 : vector<32x16xf32>
    %60 = vector.extract_strided_slice %48 {offsets = [2, 0], sizes = [1, 16], strides = [1, 1]} : vector<3x16xf32> to vector<1x16xf32>
    %61 = vector.extract_strided_slice %21 {offsets = [0, 2], sizes = [32, 1], strides = [1, 1]} : vector<32x3xf32> to vector<32x1xf32>
    %62 = vector.broadcast %60 : vector<1x16xf32> to vector<32x16xf32>
    %63 = vector.broadcast %61 : vector<32x1xf32> to vector<32x16xf32>
    %64 = arith.mulf %62, %63 : vector<32x16xf32>
    %65 = arith.addf %59, %64 : vector<32x16xf32>
    %66 = vector.broadcast %3 : vector<32x1xf32> to vector<32x16xf32>
    %67 = arith.addf %65, %66 : vector<32x16xf32>
    %c2_34 = arith.constant 2 : index
    %c0_35 = arith.constant 0 : index
    %c0_36 = arith.constant 0 : index
    %c0_37 = arith.constant 0 : index
    %68 = vector.load %arg2[%c2_34, %c0_35, %c0_36, %c0_37] : memref<3x4x3x16xbf16, #tpu.memory_space<vmem>>, vector<1x1x3x16xbf16>
    %69 = vector.shape_cast %68 : vector<1x1x3x16xbf16> to vector<3x16xbf16>
    %70 = arith.extf %69 : vector<3x16xbf16> to vector<3x16xf32>
    %71 = vector.extract_strided_slice %70 {offsets = [0, 0], sizes = [1, 16], strides = [1, 1]} : vector<3x16xf32> to vector<1x16xf32>
    %72 = vector.extract_strided_slice %23 {offsets = [0, 0], sizes = [32, 1], strides = [1, 1]} : vector<32x3xf32> to vector<32x1xf32>
    %73 = vector.broadcast %71 : vector<1x16xf32> to vector<32x16xf32>
    %74 = vector.broadcast %72 : vector<32x1xf32> to vector<32x16xf32>
    %75 = arith.mulf %73, %74 : vector<32x16xf32>
    %76 = vector.extract_strided_slice %70 {offsets = [1, 0], sizes = [1, 16], strides = [1, 1]} : vector<3x16xf32> to vector<1x16xf32>
    %77 = vector.extract_strided_slice %23 {offsets = [0, 1], sizes = [32, 1], strides = [1, 1]} : vector<32x3xf32> to vector<32x1xf32>
    %78 = vector.broadcast %76 : vector<1x16xf32> to vector<32x16xf32>
    %79 = vector.broadcast %77 : vector<32x1xf32> to vector<32x16xf32>
    %80 = arith.mulf %78, %79 : vector<32x16xf32>
    %81 = arith.addf %75, %80 : vector<32x16xf32>
    %82 = vector.extract_strided_slice %70 {offsets = [2, 0], sizes = [1, 16], strides = [1, 1]} : vector<3x16xf32> to vector<1x16xf32>
    %83 = vector.extract_strided_slice %23 {offsets = [0, 2], sizes = [32, 1], strides = [1, 1]} : vector<32x3xf32> to vector<32x1xf32>
    %84 = vector.broadcast %82 : vector<1x16xf32> to vector<32x16xf32>
    %85 = vector.broadcast %83 : vector<32x1xf32> to vector<32x16xf32>
    %86 = arith.mulf %84, %85 : vector<32x16xf32>
    %87 = arith.addf %81, %86 : vector<32x16xf32>
    %88 = vector.broadcast %5 : vector<32x1xf32> to vector<32x16xf32>
    %89 = arith.addf %87, %88 : vector<32x16xf32>
    %90 = arith.maximumf %45, %67 : vector<32x16xf32>
    %91 = arith.maximumf %90, %89 : vector<32x16xf32>
    %92 = vector.broadcast %13 : vector<32x1xf32> to vector<32x16xf32>
    %93 = arith.mulf %45, %92 : vector<32x16xf32>
    %94 = vector.broadcast %7 : vector<32x1xf32> to vector<32x16xf32>
    %95 = arith.mulf %91, %94 : vector<32x16xf32>
    %96 = arith.addf %93, %95 : vector<32x16xf32>
    %97 = vector.broadcast %15 : vector<32x1xf32> to vector<32x16xf32>
    %98 = arith.mulf %67, %97 : vector<32x16xf32>
    %99 = vector.broadcast %9 : vector<32x1xf32> to vector<32x16xf32>
    %100 = arith.mulf %91, %99 : vector<32x16xf32>
    %101 = arith.addf %98, %100 : vector<32x16xf32>
    %102 = vector.broadcast %17 : vector<32x1xf32> to vector<32x16xf32>
    %103 = arith.mulf %89, %102 : vector<32x16xf32>
    %104 = vector.broadcast %11 : vector<32x1xf32> to vector<32x16xf32>
    %105 = arith.mulf %91, %104 : vector<32x16xf32>
    %106 = arith.addf %103, %105 : vector<32x16xf32>
    %c0_38 = arith.constant 0 : index
    %c1_39 = arith.constant 1 : index
    %c0_40 = arith.constant 0 : index
    %c0_41 = arith.constant 0 : index
    %107 = vector.load %arg2[%c0_38, %c1_39, %c0_40, %c0_41] : memref<3x4x3x16xbf16, #tpu.memory_space<vmem>>, vector<1x1x3x16xbf16>
    %108 = vector.shape_cast %107 : vector<1x1x3x16xbf16> to vector<3x16xbf16>
    %109 = arith.extf %108 : vector<3x16xbf16> to vector<3x16xf32>
    %110 = vector.extract_strided_slice %109 {offsets = [0, 0], sizes = [1, 16], strides = [1, 1]} : vector<3x16xf32> to vector<1x16xf32>
    %111 = vector.extract_strided_slice %19 {offsets = [0, 0], sizes = [32, 1], strides = [1, 1]} : vector<32x3xf32> to vector<32x1xf32>
    %112 = vector.broadcast %110 : vector<1x16xf32> to vector<32x16xf32>
    %113 = vector.broadcast %111 : vector<32x1xf32> to vector<32x16xf32>
    %114 = arith.mulf %112, %113 : vector<32x16xf32>
    %115 = vector.extract_strided_slice %109 {offsets = [1, 0], sizes = [1, 16], strides = [1, 1]} : vector<3x16xf32> to vector<1x16xf32>
    %116 = vector.extract_strided_slice %19 {offsets = [0, 1], sizes = [32, 1], strides = [1, 1]} : vector<32x3xf32> to vector<32x1xf32>
    %117 = vector.broadcast %115 : vector<1x16xf32> to vector<32x16xf32>
    %118 = vector.broadcast %116 : vector<32x1xf32> to vector<32x16xf32>
    %119 = arith.mulf %117, %118 : vector<32x16xf32>
    %120 = arith.addf %114, %119 : vector<32x16xf32>
    %121 = vector.extract_strided_slice %109 {offsets = [2, 0], sizes = [1, 16], strides = [1, 1]} : vector<3x16xf32> to vector<1x16xf32>
    %122 = vector.extract_strided_slice %19 {offsets = [0, 2], sizes = [32, 1], strides = [1, 1]} : vector<32x3xf32> to vector<32x1xf32>
    %123 = vector.broadcast %121 : vector<1x16xf32> to vector<32x16xf32>
    %124 = vector.broadcast %122 : vector<32x1xf32> to vector<32x16xf32>
    %125 = arith.mulf %123, %124 : vector<32x16xf32>
    %126 = arith.addf %120, %125 : vector<32x16xf32>
    %127 = vector.broadcast %1 : vector<32x1xf32> to vector<32x16xf32>
    %128 = arith.addf %126, %127 : vector<32x16xf32>
    %c1_42 = arith.constant 1 : index
    %c1_43 = arith.constant 1 : index
    %c0_44 = arith.constant 0 : index
    %c0_45 = arith.constant 0 : index
    %129 = vector.load %arg2[%c1_42, %c1_43, %c0_44, %c0_45] : memref<3x4x3x16xbf16, #tpu.memory_space<vmem>>, vector<1x1x3x16xbf16>
    %130 = vector.shape_cast %129 : vector<1x1x3x16xbf16> to vector<3x16xbf16>
    %131 = arith.extf %130 : vector<3x16xbf16> to vector<3x16xf32>
    %132 = vector.extract_strided_slice %131 {offsets = [0, 0], sizes = [1, 16], strides = [1, 1]} : vector<3x16xf32> to vector<1x16xf32>
    %133 = vector.extract_strided_slice %21 {offsets = [0, 0], sizes = [32, 1], strides = [1, 1]} : vector<32x3xf32> to vector<32x1xf32>
    %134 = vector.broadcast %132 : vector<1x16xf32> to vector<32x16xf32>
    %135 = vector.broadcast %133 : vector<32x1xf32> to vector<32x16xf32>
    %136 = arith.mulf %134, %135 : vector<32x16xf32>
    %137 = vector.extract_strided_slice %131 {offsets = [1, 0], sizes = [1, 16], strides = [1, 1]} : vector<3x16xf32> to vector<1x16xf32>
    %138 = vector.extract_strided_slice %21 {offsets = [0, 1], sizes = [32, 1], strides = [1, 1]} : vector<32x3xf32> to vector<32x1xf32>
    %139 = vector.broadcast %137 : vector<1x16xf32> to vector<32x16xf32>
    %140 = vector.broadcast %138 : vector<32x1xf32> to vector<32x16xf32>
    %141 = arith.mulf %139, %140 : vector<32x16xf32>
    %142 = arith.addf %136, %141 : vector<32x16xf32>
    %143 = vector.extract_strided_slice %131 {offsets = [2, 0], sizes = [1, 16], strides = [1, 1]} : vector<3x16xf32> to vector<1x16xf32>
    %144 = vector.extract_strided_slice %21 {offsets = [0, 2], sizes = [32, 1], strides = [1, 1]} : vector<32x3xf32> to vector<32x1xf32>
    %145 = vector.broadcast %143 : vector<1x16xf32> to vector<32x16xf32>
    %146 = vector.broadcast %144 : vector<32x1xf32> to vector<32x16xf32>
    %147 = arith.mulf %145, %146 : vector<32x16xf32>
    %148 = arith.addf %142, %147 : vector<32x16xf32>
    %149 = vector.broadcast %3 : vector<32x1xf32> to vector<32x16xf32>
    %150 = arith.addf %148, %149 : vector<32x16xf32>
    %c2_46 = arith.constant 2 : index
    %c1_47 = arith.constant 1 : index
    %c0_48 = arith.constant 0 : index
    %c0_49 = arith.constant 0 : index
    %151 = vector.load %arg2[%c2_46, %c1_47, %c0_48, %c0_49] : memref<3x4x3x16xbf16, #tpu.memory_space<vmem>>, vector<1x1x3x16xbf16>
    %152 = vector.shape_cast %151 : vector<1x1x3x16xbf16> to vector<3x16xbf16>
    %153 = arith.extf %152 : vector<3x16xbf16> to vector<3x16xf32>
    %154 = vector.extract_strided_slice %153 {offsets = [0, 0], sizes = [1, 16], strides = [1, 1]} : vector<3x16xf32> to vector<1x16xf32>
    %155 = vector.extract_strided_slice %23 {offsets = [0, 0], sizes = [32, 1], strides = [1, 1]} : vector<32x3xf32> to vector<32x1xf32>
    %156 = vector.broadcast %154 : vector<1x16xf32> to vector<32x16xf32>
    %157 = vector.broadcast %155 : vector<32x1xf32> to vector<32x16xf32>
    %158 = arith.mulf %156, %157 : vector<32x16xf32>
    %159 = vector.extract_strided_slice %153 {offsets = [1, 0], sizes = [1, 16], strides = [1, 1]} : vector<3x16xf32> to vector<1x16xf32>
    %160 = vector.extract_strided_slice %23 {offsets = [0, 1], sizes = [32, 1], strides = [1, 1]} : vector<32x3xf32> to vector<32x1xf32>
    %161 = vector.broadcast %159 : vector<1x16xf32> to vector<32x16xf32>
    %162 = vector.broadcast %160 : vector<32x1xf32> to vector<32x16xf32>
    %163 = arith.mulf %161, %162 : vector<32x16xf32>
    %164 = arith.addf %158, %163 : vector<32x16xf32>
    %165 = vector.extract_strided_slice %153 {offsets = [2, 0], sizes = [1, 16], strides = [1, 1]} : vector<3x16xf32> to vector<1x16xf32>
    %166 = vector.extract_strided_slice %23 {offsets = [0, 2], sizes = [32, 1], strides = [1, 1]} : vector<32x3xf32> to vector<32x1xf32>
    %167 = vector.broadcast %165 : vector<1x16xf32> to vector<32x16xf32>
    %168 = vector.broadcast %166 : vector<32x1xf32> to vector<32x16xf32>
    %169 = arith.mulf %167, %168 : vector<32x16xf32>
    %170 = arith.addf %164, %169 : vector<32x16xf32>
    %171 = vector.broadcast %5 : vector<32x1xf32> to vector<32x16xf32>
    %172 = arith.addf %170, %171 : vector<32x16xf32>
    %173 = arith.maximumf %128, %150 : vector<32x16xf32>
    %174 = arith.maximumf %173, %172 : vector<32x16xf32>
    %175 = vector.broadcast %13 : vector<32x1xf32> to vector<32x16xf32>
    %176 = arith.mulf %128, %175 : vector<32x16xf32>
    %177 = vector.broadcast %7 : vector<32x1xf32> to vector<32x16xf32>
    %178 = arith.mulf %174, %177 : vector<32x16xf32>
    %179 = arith.addf %176, %178 : vector<32x16xf32>
    %180 = vector.broadcast %15 : vector<32x1xf32> to vector<32x16xf32>
    %181 = arith.mulf %150, %180 : vector<32x16xf32>
    %182 = vector.broadcast %9 : vector<32x1xf32> to vector<32x16xf32>
    %183 = arith.mulf %174, %182 : vector<32x16xf32>
    %184 = arith.addf %181, %183 : vector<32x16xf32>
    %185 = vector.broadcast %17 : vector<32x1xf32> to vector<32x16xf32>
    %186 = arith.mulf %172, %185 : vector<32x16xf32>
    %187 = vector.broadcast %11 : vector<32x1xf32> to vector<32x16xf32>
    %188 = arith.mulf %174, %187 : vector<32x16xf32>
    %189 = arith.addf %186, %188 : vector<32x16xf32>
    %190 = arith.maximumf %96, %179 : vector<32x16xf32>
    %191 = arith.maximumf %101, %184 : vector<32x16xf32>
    %192 = arith.maximumf %106, %189 : vector<32x16xf32>
    %c0_50 = arith.constant 0 : index
    %c2_51 = arith.constant 2 : index
    %c0_52 = arith.constant 0 : index
    %c0_53 = arith.constant 0 : index
    %193 = vector.load %arg2[%c0_50, %c2_51, %c0_52, %c0_53] : memref<3x4x3x16xbf16, #tpu.memory_space<vmem>>, vector<1x1x3x16xbf16>
    %194 = vector.shape_cast %193 : vector<1x1x3x16xbf16> to vector<3x16xbf16>
    %195 = arith.extf %194 : vector<3x16xbf16> to vector<3x16xf32>
    %196 = vector.extract_strided_slice %195 {offsets = [0, 0], sizes = [1, 16], strides = [1, 1]} : vector<3x16xf32> to vector<1x16xf32>
    %197 = vector.extract_strided_slice %19 {offsets = [0, 0], sizes = [32, 1], strides = [1, 1]} : vector<32x3xf32> to vector<32x1xf32>
    %198 = vector.broadcast %196 : vector<1x16xf32> to vector<32x16xf32>
    %199 = vector.broadcast %197 : vector<32x1xf32> to vector<32x16xf32>
    %200 = arith.mulf %198, %199 : vector<32x16xf32>
    %201 = vector.extract_strided_slice %195 {offsets = [1, 0], sizes = [1, 16], strides = [1, 1]} : vector<3x16xf32> to vector<1x16xf32>
    %202 = vector.extract_strided_slice %19 {offsets = [0, 1], sizes = [32, 1], strides = [1, 1]} : vector<32x3xf32> to vector<32x1xf32>
    %203 = vector.broadcast %201 : vector<1x16xf32> to vector<32x16xf32>
    %204 = vector.broadcast %202 : vector<32x1xf32> to vector<32x16xf32>
    %205 = arith.mulf %203, %204 : vector<32x16xf32>
    %206 = arith.addf %200, %205 : vector<32x16xf32>
    %207 = vector.extract_strided_slice %195 {offsets = [2, 0], sizes = [1, 16], strides = [1, 1]} : vector<3x16xf32> to vector<1x16xf32>
    %208 = vector.extract_strided_slice %19 {offsets = [0, 2], sizes = [32, 1], strides = [1, 1]} : vector<32x3xf32> to vector<32x1xf32>
    %209 = vector.broadcast %207 : vector<1x16xf32> to vector<32x16xf32>
    %210 = vector.broadcast %208 : vector<32x1xf32> to vector<32x16xf32>
    %211 = arith.mulf %209, %210 : vector<32x16xf32>
    %212 = arith.addf %206, %211 : vector<32x16xf32>
    %213 = vector.broadcast %1 : vector<32x1xf32> to vector<32x16xf32>
    %214 = arith.addf %212, %213 : vector<32x16xf32>
    %c1_54 = arith.constant 1 : index
    %c2_55 = arith.constant 2 : index
    %c0_56 = arith.constant 0 : index
    %c0_57 = arith.constant 0 : index
    %215 = vector.load %arg2[%c1_54, %c2_55, %c0_56, %c0_57] : memref<3x4x3x16xbf16, #tpu.memory_space<vmem>>, vector<1x1x3x16xbf16>
    %216 = vector.shape_cast %215 : vector<1x1x3x16xbf16> to vector<3x16xbf16>
    %217 = arith.extf %216 : vector<3x16xbf16> to vector<3x16xf32>
    %218 = vector.extract_strided_slice %217 {offsets = [0, 0], sizes = [1, 16], strides = [1, 1]} : vector<3x16xf32> to vector<1x16xf32>
    %219 = vector.extract_strided_slice %21 {offsets = [0, 0], sizes = [32, 1], strides = [1, 1]} : vector<32x3xf32> to vector<32x1xf32>
    %220 = vector.broadcast %218 : vector<1x16xf32> to vector<32x16xf32>
    %221 = vector.broadcast %219 : vector<32x1xf32> to vector<32x16xf32>
    %222 = arith.mulf %220, %221 : vector<32x16xf32>
    %223 = vector.extract_strided_slice %217 {offsets = [1, 0], sizes = [1, 16], strides = [1, 1]} : vector<3x16xf32> to vector<1x16xf32>
    %224 = vector.extract_strided_slice %21 {offsets = [0, 1], sizes = [32, 1], strides = [1, 1]} : vector<32x3xf32> to vector<32x1xf32>
    %225 = vector.broadcast %223 : vector<1x16xf32> to vector<32x16xf32>
    %226 = vector.broadcast %224 : vector<32x1xf32> to vector<32x16xf32>
    %227 = arith.mulf %225, %226 : vector<32x16xf32>
    %228 = arith.addf %222, %227 : vector<32x16xf32>
    %229 = vector.extract_strided_slice %217 {offsets = [2, 0], sizes = [1, 16], strides = [1, 1]} : vector<3x16xf32> to vector<1x16xf32>
    %230 = vector.extract_strided_slice %21 {offsets = [0, 2], sizes = [32, 1], strides = [1, 1]} : vector<32x3xf32> to vector<32x1xf32>
    %231 = vector.broadcast %229 : vector<1x16xf32> to vector<32x16xf32>
    %232 = vector.broadcast %230 : vector<32x1xf32> to vector<32x16xf32>
    %233 = arith.mulf %231, %232 : vector<32x16xf32>
    %234 = arith.addf %228, %233 : vector<32x16xf32>
    %235 = vector.broadcast %3 : vector<32x1xf32> to vector<32x16xf32>
    %236 = arith.addf %234, %235 : vector<32x16xf32>
    %c2_58 = arith.constant 2 : index
    %c2_59 = arith.constant 2 : index
    %c0_60 = arith.constant 0 : index
    %c0_61 = arith.constant 0 : index
    %237 = vector.load %arg2[%c2_58, %c2_59, %c0_60, %c0_61] : memref<3x4x3x16xbf16, #tpu.memory_space<vmem>>, vector<1x1x3x16xbf16>
    %238 = vector.shape_cast %237 : vector<1x1x3x16xbf16> to vector<3x16xbf16>
    %239 = arith.extf %238 : vector<3x16xbf16> to vector<3x16xf32>
    %240 = vector.extract_strided_slice %239 {offsets = [0, 0], sizes = [1, 16], strides = [1, 1]} : vector<3x16xf32> to vector<1x16xf32>
    %241 = vector.extract_strided_slice %23 {offsets = [0, 0], sizes = [32, 1], strides = [1, 1]} : vector<32x3xf32> to vector<32x1xf32>
    %242 = vector.broadcast %240 : vector<1x16xf32> to vector<32x16xf32>
    %243 = vector.broadcast %241 : vector<32x1xf32> to vector<32x16xf32>
    %244 = arith.mulf %242, %243 : vector<32x16xf32>
    %245 = vector.extract_strided_slice %239 {offsets = [1, 0], sizes = [1, 16], strides = [1, 1]} : vector<3x16xf32> to vector<1x16xf32>
    %246 = vector.extract_strided_slice %23 {offsets = [0, 1], sizes = [32, 1], strides = [1, 1]} : vector<32x3xf32> to vector<32x1xf32>
    %247 = vector.broadcast %245 : vector<1x16xf32> to vector<32x16xf32>
    %248 = vector.broadcast %246 : vector<32x1xf32> to vector<32x16xf32>
    %249 = arith.mulf %247, %248 : vector<32x16xf32>
    %250 = arith.addf %244, %249 : vector<32x16xf32>
    %251 = vector.extract_strided_slice %239 {offsets = [2, 0], sizes = [1, 16], strides = [1, 1]} : vector<3x16xf32> to vector<1x16xf32>
    %252 = vector.extract_strided_slice %23 {offsets = [0, 2], sizes = [32, 1], strides = [1, 1]} : vector<32x3xf32> to vector<32x1xf32>
    %253 = vector.broadcast %251 : vector<1x16xf32> to vector<32x16xf32>
    %254 = vector.broadcast %252 : vector<32x1xf32> to vector<32x16xf32>
    %255 = arith.mulf %253, %254 : vector<32x16xf32>
    %256 = arith.addf %250, %255 : vector<32x16xf32>
    %257 = vector.broadcast %5 : vector<32x1xf32> to vector<32x16xf32>
    %258 = arith.addf %256, %257 : vector<32x16xf32>
    %259 = arith.maximumf %214, %236 : vector<32x16xf32>
    %260 = arith.maximumf %259, %258 : vector<32x16xf32>
    %261 = vector.broadcast %13 : vector<32x1xf32> to vector<32x16xf32>
    %262 = arith.mulf %214, %261 : vector<32x16xf32>
    %263 = vector.broadcast %7 : vector<32x1xf32> to vector<32x16xf32>
    %264 = arith.mulf %260, %263 : vector<32x16xf32>
    %265 = arith.addf %262, %264 : vector<32x16xf32>
    %266 = vector.broadcast %15 : vector<32x1xf32> to vector<32x16xf32>
    %267 = arith.mulf %236, %266 : vector<32x16xf32>
    %268 = vector.broadcast %9 : vector<32x1xf32> to vector<32x16xf32>
    %269 = arith.mulf %260, %268 : vector<32x16xf32>
    %270 = arith.addf %267, %269 : vector<32x16xf32>
    %271 = vector.broadcast %17 : vector<32x1xf32> to vector<32x16xf32>
    %272 = arith.mulf %258, %271 : vector<32x16xf32>
    %273 = vector.broadcast %11 : vector<32x1xf32> to vector<32x16xf32>
    %274 = arith.mulf %260, %273 : vector<32x16xf32>
    %275 = arith.addf %272, %274 : vector<32x16xf32>
    %276 = arith.maximumf %190, %265 : vector<32x16xf32>
    %277 = arith.maximumf %191, %270 : vector<32x16xf32>
    %278 = arith.maximumf %192, %275 : vector<32x16xf32>
    %c0_62 = arith.constant 0 : index
    %c3 = arith.constant 3 : index
    %c0_63 = arith.constant 0 : index
    %c0_64 = arith.constant 0 : index
    %279 = vector.load %arg2[%c0_62, %c3, %c0_63, %c0_64] : memref<3x4x3x16xbf16, #tpu.memory_space<vmem>>, vector<1x1x3x16xbf16>
    %280 = vector.shape_cast %279 : vector<1x1x3x16xbf16> to vector<3x16xbf16>
    %281 = arith.extf %280 : vector<3x16xbf16> to vector<3x16xf32>
    %282 = vector.extract_strided_slice %281 {offsets = [0, 0], sizes = [1, 16], strides = [1, 1]} : vector<3x16xf32> to vector<1x16xf32>
    %283 = vector.extract_strided_slice %19 {offsets = [0, 0], sizes = [32, 1], strides = [1, 1]} : vector<32x3xf32> to vector<32x1xf32>
    %284 = vector.broadcast %282 : vector<1x16xf32> to vector<32x16xf32>
    %285 = vector.broadcast %283 : vector<32x1xf32> to vector<32x16xf32>
    %286 = arith.mulf %284, %285 : vector<32x16xf32>
    %287 = vector.extract_strided_slice %281 {offsets = [1, 0], sizes = [1, 16], strides = [1, 1]} : vector<3x16xf32> to vector<1x16xf32>
    %288 = vector.extract_strided_slice %19 {offsets = [0, 1], sizes = [32, 1], strides = [1, 1]} : vector<32x3xf32> to vector<32x1xf32>
    %289 = vector.broadcast %287 : vector<1x16xf32> to vector<32x16xf32>
    %290 = vector.broadcast %288 : vector<32x1xf32> to vector<32x16xf32>
    %291 = arith.mulf %289, %290 : vector<32x16xf32>
    %292 = arith.addf %286, %291 : vector<32x16xf32>
    %293 = vector.extract_strided_slice %281 {offsets = [2, 0], sizes = [1, 16], strides = [1, 1]} : vector<3x16xf32> to vector<1x16xf32>
    %294 = vector.extract_strided_slice %19 {offsets = [0, 2], sizes = [32, 1], strides = [1, 1]} : vector<32x3xf32> to vector<32x1xf32>
    %295 = vector.broadcast %293 : vector<1x16xf32> to vector<32x16xf32>
    %296 = vector.broadcast %294 : vector<32x1xf32> to vector<32x16xf32>
    %297 = arith.mulf %295, %296 : vector<32x16xf32>
    %298 = arith.addf %292, %297 : vector<32x16xf32>
    %299 = vector.broadcast %1 : vector<32x1xf32> to vector<32x16xf32>
    %300 = arith.addf %298, %299 : vector<32x16xf32>
    %c1_65 = arith.constant 1 : index
    %c3_66 = arith.constant 3 : index
    %c0_67 = arith.constant 0 : index
    %c0_68 = arith.constant 0 : index
    %301 = vector.load %arg2[%c1_65, %c3_66, %c0_67, %c0_68] : memref<3x4x3x16xbf16, #tpu.memory_space<vmem>>, vector<1x1x3x16xbf16>
    %302 = vector.shape_cast %301 : vector<1x1x3x16xbf16> to vector<3x16xbf16>
    %303 = arith.extf %302 : vector<3x16xbf16> to vector<3x16xf32>
    %304 = vector.extract_strided_slice %303 {offsets = [0, 0], sizes = [1, 16], strides = [1, 1]} : vector<3x16xf32> to vector<1x16xf32>
    %305 = vector.extract_strided_slice %21 {offsets = [0, 0], sizes = [32, 1], strides = [1, 1]} : vector<32x3xf32> to vector<32x1xf32>
    %306 = vector.broadcast %304 : vector<1x16xf32> to vector<32x16xf32>
    %307 = vector.broadcast %305 : vector<32x1xf32> to vector<32x16xf32>
    %308 = arith.mulf %306, %307 : vector<32x16xf32>
    %309 = vector.extract_strided_slice %303 {offsets = [1, 0], sizes = [1, 16], strides = [1, 1]} : vector<3x16xf32> to vector<1x16xf32>
    %310 = vector.extract_strided_slice %21 {offsets = [0, 1], sizes = [32, 1], strides = [1, 1]} : vector<32x3xf32> to vector<32x1xf32>
    %311 = vector.broadcast %309 : vector<1x16xf32> to vector<32x16xf32>
    %312 = vector.broadcast %310 : vector<32x1xf32> to vector<32x16xf32>
    %313 = arith.mulf %311, %312 : vector<32x16xf32>
    %314 = arith.addf %308, %313 : vector<32x16xf32>
    %315 = vector.extract_strided_slice %303 {offsets = [2, 0], sizes = [1, 16], strides = [1, 1]} : vector<3x16xf32> to vector<1x16xf32>
    %316 = vector.extract_strided_slice %21 {offsets = [0, 2], sizes = [32, 1], strides = [1, 1]} : vector<32x3xf32> to vector<32x1xf32>
    %317 = vector.broadcast %315 : vector<1x16xf32> to vector<32x16xf32>
    %318 = vector.broadcast %316 : vector<32x1xf32> to vector<32x16xf32>
    %319 = arith.mulf %317, %318 : vector<32x16xf32>
    %320 = arith.addf %314, %319 : vector<32x16xf32>
    %321 = vector.broadcast %3 : vector<32x1xf32> to vector<32x16xf32>
    %322 = arith.addf %320, %321 : vector<32x16xf32>
    %c2_69 = arith.constant 2 : index
    %c3_70 = arith.constant 3 : index
    %c0_71 = arith.constant 0 : index
    %c0_72 = arith.constant 0 : index
    %323 = vector.load %arg2[%c2_69, %c3_70, %c0_71, %c0_72] : memref<3x4x3x16xbf16, #tpu.memory_space<vmem>>, vector<1x1x3x16xbf16>
    %324 = vector.shape_cast %323 : vector<1x1x3x16xbf16> to vector<3x16xbf16>
    %325 = arith.extf %324 : vector<3x16xbf16> to vector<3x16xf32>
    %326 = vector.extract_strided_slice %325 {offsets = [0, 0], sizes = [1, 16], strides = [1, 1]} : vector<3x16xf32> to vector<1x16xf32>
    %327 = vector.extract_strided_slice %23 {offsets = [0, 0], sizes = [32, 1], strides = [1, 1]} : vector<32x3xf32> to vector<32x1xf32>
    %328 = vector.broadcast %326 : vector<1x16xf32> to vector<32x16xf32>
    %329 = vector.broadcast %327 : vector<32x1xf32> to vector<32x16xf32>
    %330 = arith.mulf %328, %329 : vector<32x16xf32>
    %331 = vector.extract_strided_slice %325 {offsets = [1, 0], sizes = [1, 16], strides = [1, 1]} : vector<3x16xf32> to vector<1x16xf32>
    %332 = vector.extract_strided_slice %23 {offsets = [0, 1], sizes = [32, 1], strides = [1, 1]} : vector<32x3xf32> to vector<32x1xf32>
    %333 = vector.broadcast %331 : vector<1x16xf32> to vector<32x16xf32>
    %334 = vector.broadcast %332 : vector<32x1xf32> to vector<32x16xf32>
    %335 = arith.mulf %333, %334 : vector<32x16xf32>
    %336 = arith.addf %330, %335 : vector<32x16xf32>
    %337 = vector.extract_strided_slice %325 {offsets = [2, 0], sizes = [1, 16], strides = [1, 1]} : vector<3x16xf32> to vector<1x16xf32>
    %338 = vector.extract_strided_slice %23 {offsets = [0, 2], sizes = [32, 1], strides = [1, 1]} : vector<32x3xf32> to vector<32x1xf32>
    %339 = vector.broadcast %337 : vector<1x16xf32> to vector<32x16xf32>
    %340 = vector.broadcast %338 : vector<32x1xf32> to vector<32x16xf32>
    %341 = arith.mulf %339, %340 : vector<32x16xf32>
    %342 = arith.addf %336, %341 : vector<32x16xf32>
    %343 = vector.broadcast %5 : vector<32x1xf32> to vector<32x16xf32>
    %344 = arith.addf %342, %343 : vector<32x16xf32>
    %345 = arith.maximumf %300, %322 : vector<32x16xf32>
    %346 = arith.maximumf %345, %344 : vector<32x16xf32>
    %347 = vector.broadcast %13 : vector<32x1xf32> to vector<32x16xf32>
    %348 = arith.mulf %300, %347 : vector<32x16xf32>
    %349 = vector.broadcast %7 : vector<32x1xf32> to vector<32x16xf32>
    %350 = arith.mulf %346, %349 : vector<32x16xf32>
    %351 = arith.addf %348, %350 : vector<32x16xf32>
    %352 = vector.broadcast %15 : vector<32x1xf32> to vector<32x16xf32>
    %353 = arith.mulf %322, %352 : vector<32x16xf32>
    %354 = vector.broadcast %9 : vector<32x1xf32> to vector<32x16xf32>
    %355 = arith.mulf %346, %354 : vector<32x16xf32>
    %356 = arith.addf %353, %355 : vector<32x16xf32>
    %357 = vector.broadcast %17 : vector<32x1xf32> to vector<32x16xf32>
    %358 = arith.mulf %344, %357 : vector<32x16xf32>
    %359 = vector.broadcast %11 : vector<32x1xf32> to vector<32x16xf32>
    %360 = arith.mulf %346, %359 : vector<32x16xf32>
    %361 = arith.addf %358, %360 : vector<32x16xf32>
    %362 = arith.maximumf %276, %351 : vector<32x16xf32>
    %363 = arith.maximumf %277, %356 : vector<32x16xf32>
    %364 = arith.maximumf %278, %361 : vector<32x16xf32>
    %cst_73 = arith.constant 0.000000e+00 : f32
    %365 = vector.broadcast %cst_73 : f32 to vector<32x16xf32>
    %366 = arith.maximumf %362, %365 : vector<32x16xf32>
    %367 = arith.truncf %366 : vector<32x16xf32> to vector<32x16xbf16>
    %c0_74 = arith.constant 0 : index
    %c0_75 = arith.constant 0 : index
    %c0_76 = arith.constant 0 : index
    %c0_77 = arith.constant 0 : index
    %368 = vector.load %arg6[%c0_74, %c0_75, %c0_76, %c0_77] : memref<3x1x32x16xbf16, #tpu.memory_space<vmem>>, vector<1x1x32x16xbf16>
    %369 = vector.shape_cast %368 : vector<1x1x32x16xbf16> to vector<32x16xbf16>
    %370 = vector.shape_cast %367 : vector<32x16xbf16> to vector<1x1x32x16xbf16>
    tpu.vector_store %arg6[%c0_74, %c0_75, %c0_76, %c0_77], %370 {strides = array<i32>} : memref<3x1x32x16xbf16, #tpu.memory_space<vmem>>, vector<1x1x32x16xbf16>,
    %cst_78 = arith.constant 0.000000e+00 : f32
    %371 = vector.broadcast %cst_78 : f32 to vector<32x16xf32>
    %372 = arith.maximumf %363, %371 : vector<32x16xf32>
    %373 = arith.truncf %372 : vector<32x16xf32> to vector<32x16xbf16>
    %c1_79 = arith.constant 1 : index
    %c0_80 = arith.constant 0 : index
    %c0_81 = arith.constant 0 : index
    %c0_82 = arith.constant 0 : index
    %374 = vector.load %arg6[%c1_79, %c0_80, %c0_81, %c0_82] : memref<3x1x32x16xbf16, #tpu.memory_space<vmem>>, vector<1x1x32x16xbf16>
    %375 = vector.shape_cast %374 : vector<1x1x32x16xbf16> to vector<32x16xbf16>
    %376 = vector.shape_cast %373 : vector<32x16xbf16> to vector<1x1x32x16xbf16>
    tpu.vector_store %arg6[%c1_79, %c0_80, %c0_81, %c0_82], %376 {strides = array<i32>} : memref<3x1x32x16xbf16, #tpu.memory_space<vmem>>, vector<1x1x32x16xbf16>,
    %cst_83 = arith.constant 0.000000e+00 : f32
    %377 = vector.broadcast %cst_83 : f32 to vector<32x16xf32>
    %378 = arith.maximumf %364, %377 : vector<32x16xf32>
    %379 = arith.truncf %378 : vector<32x16xf32> to vector<32x16xbf16>
    %c2_84 = arith.constant 2 : index
    %c0_85 = arith.constant 0 : index
    %c0_86 = arith.constant 0 : index
    %c0_87 = arith.constant 0 : index
    %380 = vector.load %arg6[%c2_84, %c0_85, %c0_86, %c0_87] : memref<3x1x32x16xbf16, #tpu.memory_space<vmem>>, vector<1x1x32x16xbf16>
    %381 = vector.shape_cast %380 : vector<1x1x32x16xbf16> to vector<32x16xbf16>
    %382 = vector.shape_cast %379 : vector<32x16xbf16> to vector<1x1x32x16xbf16>
    tpu.vector_store %arg6[%c2_84, %c0_85, %c0_86, %c0_87], %382 {strides = array<i32>} : memref<3x1x32x16xbf16, #tpu.memory_space<vmem>>, vector<1x1x32x16xbf16>,
    return
  }
  func.func @transform_0(%arg0: i32, %arg1: i32) -> (i32, i32, i32, i32) {
    %c0_i32 = arith.constant 0 : i32
    %c0_i32_0 = arith.constant 0 : i32
    %c0_i32_1 = arith.constant 0 : i32
    return %c0_i32, %arg0, %c0_i32_0, %arg1 : i32, i32, i32, i32
  }
  func.func @transform_1(%arg0: i32, %arg1: i32) -> (i32, i32, i32) {
    %c0_i32 = arith.constant 0 : i32
    %c0_i32_0 = arith.constant 0 : i32
    %c0_i32_1 = arith.constant 0 : i32
    %c0_i32_2 = arith.constant 0 : i32
    return %c0_i32, %c0_i32_0, %c0_i32_1 : i32, i32, i32
  }
  func.func @transform_2(%arg0: i32, %arg1: i32) -> (i32, i32, i32) {
    %c0_i32 = arith.constant 0 : i32
    %c0_i32_0 = arith.constant 0 : i32
    %c0_i32_1 = arith.constant 0 : i32
    %c0_i32_2 = arith.constant 0 : i32
    return %c0_i32, %c0_i32_0, %c0_i32_1 : i32, i32, i32
  }
  func.func @transform_3(%arg0: i32, %arg1: i32) -> (i32, i32, i32) {
    %c0_i32 = arith.constant 0 : i32
    %c0_i32_0 = arith.constant 0 : i32
    %c0_i32_1 = arith.constant 0 : i32
    %c0_i32_2 = arith.constant 0 : i32
    return %c0_i32, %c0_i32_0, %c0_i32_1 : i32, i32, i32
  }
  func.func @transform_4(%arg0: i32, %arg1: i32) -> (i32, i32, i32, i32) {
    %c0_i32 = arith.constant 0 : i32
    %c0_i32_0 = arith.constant 0 : i32
    %c0_i32_1 = arith.constant 0 : i32
    return %c0_i32, %arg0, %c0_i32_0, %arg1 : i32, i32, i32, i32
  }
}

module attributes {stable_mosaic.version = 11 : i64} {
  func.func @kernel(%arg0: i32, %arg1: i32, %arg2: memref<3x4x32x16xbf16, #tpu.memory_space<vmem>>, %arg3: memref<3x64x32xbf16, #tpu.memory_space<vmem>>, %arg4: memref<3x64x1xf32, #tpu.memory_space<vmem>>, %arg5: memref<3x64x1xf32, #tpu.memory_space<vmem>>, %arg6: memref<3x1x64x16xbf16, #tpu.memory_space<vmem>>) attributes {dimension_semantics = [#tpu.dimension_semantics<parallel>, #tpu.dimension_semantics<parallel>], iteration_bounds = array<i64: 4, 1>, scalar_prefetch = 0 : i64, scratch_operands = 0 : i64, tpu.core_type = #tpu.core_type<tc>, window_params = [{transform_indices = @transform_0, window_bounds = array<i64: 3, 4, 32, 16>}, {pipeline_mode = #tpu.pipeline_mode<synchronous>, transform_indices = @transform_1, window_bounds = array<i64: 3, 64, 32>}, {pipeline_mode = #tpu.pipeline_mode<synchronous>, transform_indices = @transform_2, window_bounds = array<i64: 3, 64, 1>}, {pipeline_mode = #tpu.pipeline_mode<synchronous>, transform_indices = @transform_3, window_bounds = array<i64: 3, 64, 1>}, {transform_indices = @transform_4, window_bounds = array<i64: 3, 1, 64, 16>}]} {
    %c0 = arith.constant 0 : index
    %c0_0 = arith.constant 0 : index
    %c0_1 = arith.constant 0 : index
    %0 = vector.load %arg4[%c0, %c0_0, %c0_1] : memref<3x64x1xf32, #tpu.memory_space<vmem>>, vector<1x64x1xf32>
    %1 = vector.shape_cast %0 : vector<1x64x1xf32> to vector<64x1xf32>
    %c1 = arith.constant 1 : index
    %c0_2 = arith.constant 0 : index
    %c0_3 = arith.constant 0 : index
    %2 = vector.load %arg4[%c1, %c0_2, %c0_3] : memref<3x64x1xf32, #tpu.memory_space<vmem>>, vector<1x64x1xf32>
    %3 = vector.shape_cast %2 : vector<1x64x1xf32> to vector<64x1xf32>
    %c2 = arith.constant 2 : index
    %c0_4 = arith.constant 0 : index
    %c0_5 = arith.constant 0 : index
    %4 = vector.load %arg4[%c2, %c0_4, %c0_5] : memref<3x64x1xf32, #tpu.memory_space<vmem>>, vector<1x64x1xf32>
    %5 = vector.shape_cast %4 : vector<1x64x1xf32> to vector<64x1xf32>
    %c0_6 = arith.constant 0 : index
    %c0_7 = arith.constant 0 : index
    %c0_8 = arith.constant 0 : index
    %6 = vector.load %arg5[%c0_6, %c0_7, %c0_8] : memref<3x64x1xf32, #tpu.memory_space<vmem>>, vector<1x64x1xf32>
    %7 = vector.shape_cast %6 : vector<1x64x1xf32> to vector<64x1xf32>
    %c1_9 = arith.constant 1 : index
    %c0_10 = arith.constant 0 : index
    %c0_11 = arith.constant 0 : index
    %8 = vector.load %arg5[%c1_9, %c0_10, %c0_11] : memref<3x64x1xf32, #tpu.memory_space<vmem>>, vector<1x64x1xf32>
    %9 = vector.shape_cast %8 : vector<1x64x1xf32> to vector<64x1xf32>
    %c2_12 = arith.constant 2 : index
    %c0_13 = arith.constant 0 : index
    %c0_14 = arith.constant 0 : index
    %10 = vector.load %arg5[%c2_12, %c0_13, %c0_14] : memref<3x64x1xf32, #tpu.memory_space<vmem>>, vector<1x64x1xf32>
    %11 = vector.shape_cast %10 : vector<1x64x1xf32> to vector<64x1xf32>
    %cst = arith.constant 1.000000e+00 : f32
    %12 = vector.broadcast %cst : f32 to vector<64x1xf32>
    %13 = arith.subf %12, %7 : vector<64x1xf32>
    %cst_15 = arith.constant 1.000000e+00 : f32
    %14 = vector.broadcast %cst_15 : f32 to vector<64x1xf32>
    %15 = arith.subf %14, %9 : vector<64x1xf32>
    %cst_16 = arith.constant 1.000000e+00 : f32
    %16 = vector.broadcast %cst_16 : f32 to vector<64x1xf32>
    %17 = arith.subf %16, %11 : vector<64x1xf32>
    %c0_17 = arith.constant 0 : index
    %c0_18 = arith.constant 0 : index
    %c0_19 = arith.constant 0 : index
    %18 = vector.load %arg3[%c0_17, %c0_18, %c0_19] : memref<3x64x32xbf16, #tpu.memory_space<vmem>>, vector<1x64x32xbf16>
    %19 = vector.shape_cast %18 : vector<1x64x32xbf16> to vector<64x32xbf16>
    %c1_20 = arith.constant 1 : index
    %c0_21 = arith.constant 0 : index
    %c0_22 = arith.constant 0 : index
    %20 = vector.load %arg3[%c1_20, %c0_21, %c0_22] : memref<3x64x32xbf16, #tpu.memory_space<vmem>>, vector<1x64x32xbf16>
    %21 = vector.shape_cast %20 : vector<1x64x32xbf16> to vector<64x32xbf16>
    %c2_23 = arith.constant 2 : index
    %c0_24 = arith.constant 0 : index
    %c0_25 = arith.constant 0 : index
    %22 = vector.load %arg3[%c2_23, %c0_24, %c0_25] : memref<3x64x32xbf16, #tpu.memory_space<vmem>>, vector<1x64x32xbf16>
    %23 = vector.shape_cast %22 : vector<1x64x32xbf16> to vector<64x32xbf16>
    %c0_26 = arith.constant 0 : index
    %c0_27 = arith.constant 0 : index
    %c0_28 = arith.constant 0 : index
    %c0_29 = arith.constant 0 : index
    %24 = vector.load %arg2[%c0_26, %c0_27, %c0_28, %c0_29] : memref<3x4x32x16xbf16, #tpu.memory_space<vmem>>, vector<1x1x32x16xbf16>
    %25 = vector.shape_cast %24 : vector<1x1x32x16xbf16> to vector<32x16xbf16>
    %cst_30 = arith.constant dense<0.000000e+00> : vector<64x16xf32>
    %26 = tpu.matmul %19, %25, %cst_30 {dimension_numbers = #tpu.dot_dimension_numbers<[1], [0], [0], [1], [0, 0, 1, 1], [], []>} : vector<64x32xbf16>, vector<32x16xbf16>, vector<64x16xf32> -> vector<64x16xf32>
    %27 = vector.broadcast %1 : vector<64x1xf32> to vector<64x16xf32>
    %28 = arith.addf %26, %27 : vector<64x16xf32>
    %c1_31 = arith.constant 1 : index
    %c0_32 = arith.constant 0 : index
    %c0_33 = arith.constant 0 : index
    %c0_34 = arith.constant 0 : index
    %29 = vector.load %arg2[%c1_31, %c0_32, %c0_33, %c0_34] : memref<3x4x32x16xbf16, #tpu.memory_space<vmem>>, vector<1x1x32x16xbf16>
    %30 = vector.shape_cast %29 : vector<1x1x32x16xbf16> to vector<32x16xbf16>
    %cst_35 = arith.constant dense<0.000000e+00> : vector<64x16xf32>
    %31 = tpu.matmul %21, %30, %cst_35 {dimension_numbers = #tpu.dot_dimension_numbers<[1], [0], [0], [1], [0, 0, 1, 1], [], []>} : vector<64x32xbf16>, vector<32x16xbf16>, vector<64x16xf32> -> vector<64x16xf32>
    %32 = vector.broadcast %3 : vector<64x1xf32> to vector<64x16xf32>
    %33 = arith.addf %31, %32 : vector<64x16xf32>
    %c2_36 = arith.constant 2 : index
    %c0_37 = arith.constant 0 : index
    %c0_38 = arith.constant 0 : index
    %c0_39 = arith.constant 0 : index
    %34 = vector.load %arg2[%c2_36, %c0_37, %c0_38, %c0_39] : memref<3x4x32x16xbf16, #tpu.memory_space<vmem>>, vector<1x1x32x16xbf16>
    %35 = vector.shape_cast %34 : vector<1x1x32x16xbf16> to vector<32x16xbf16>
    %cst_40 = arith.constant dense<0.000000e+00> : vector<64x16xf32>
    %36 = tpu.matmul %23, %35, %cst_40 {dimension_numbers = #tpu.dot_dimension_numbers<[1], [0], [0], [1], [0, 0, 1, 1], [], []>} : vector<64x32xbf16>, vector<32x16xbf16>, vector<64x16xf32> -> vector<64x16xf32>
    %37 = vector.broadcast %5 : vector<64x1xf32> to vector<64x16xf32>
    %38 = arith.addf %36, %37 : vector<64x16xf32>
    %39 = arith.maximumf %28, %33 : vector<64x16xf32>
    %40 = arith.maximumf %39, %38 : vector<64x16xf32>
    %41 = vector.broadcast %13 : vector<64x1xf32> to vector<64x16xf32>
    %42 = arith.mulf %28, %41 : vector<64x16xf32>
    %43 = vector.broadcast %7 : vector<64x1xf32> to vector<64x16xf32>
    %44 = arith.mulf %40, %43 : vector<64x16xf32>
    %45 = arith.addf %42, %44 : vector<64x16xf32>
    %46 = vector.broadcast %15 : vector<64x1xf32> to vector<64x16xf32>
    %47 = arith.mulf %33, %46 : vector<64x16xf32>
    %48 = vector.broadcast %9 : vector<64x1xf32> to vector<64x16xf32>
    %49 = arith.mulf %40, %48 : vector<64x16xf32>
    %50 = arith.addf %47, %49 : vector<64x16xf32>
    %51 = vector.broadcast %17 : vector<64x1xf32> to vector<64x16xf32>
    %52 = arith.mulf %38, %51 : vector<64x16xf32>
    %53 = vector.broadcast %11 : vector<64x1xf32> to vector<64x16xf32>
    %54 = arith.mulf %40, %53 : vector<64x16xf32>
    %55 = arith.addf %52, %54 : vector<64x16xf32>
    %c0_41 = arith.constant 0 : index
    %c1_42 = arith.constant 1 : index
    %c0_43 = arith.constant 0 : index
    %c0_44 = arith.constant 0 : index
    %56 = vector.load %arg2[%c0_41, %c1_42, %c0_43, %c0_44] : memref<3x4x32x16xbf16, #tpu.memory_space<vmem>>, vector<1x1x32x16xbf16>
    %57 = vector.shape_cast %56 : vector<1x1x32x16xbf16> to vector<32x16xbf16>
    %cst_45 = arith.constant dense<0.000000e+00> : vector<64x16xf32>
    %58 = tpu.matmul %19, %57, %cst_45 {dimension_numbers = #tpu.dot_dimension_numbers<[1], [0], [0], [1], [0, 0, 1, 1], [], []>} : vector<64x32xbf16>, vector<32x16xbf16>, vector<64x16xf32> -> vector<64x16xf32>
    %59 = vector.broadcast %1 : vector<64x1xf32> to vector<64x16xf32>
    %60 = arith.addf %58, %59 : vector<64x16xf32>
    %c1_46 = arith.constant 1 : index
    %c1_47 = arith.constant 1 : index
    %c0_48 = arith.constant 0 : index
    %c0_49 = arith.constant 0 : index
    %61 = vector.load %arg2[%c1_46, %c1_47, %c0_48, %c0_49] : memref<3x4x32x16xbf16, #tpu.memory_space<vmem>>, vector<1x1x32x16xbf16>
    %62 = vector.shape_cast %61 : vector<1x1x32x16xbf16> to vector<32x16xbf16>
    %cst_50 = arith.constant dense<0.000000e+00> : vector<64x16xf32>
    %63 = tpu.matmul %21, %62, %cst_50 {dimension_numbers = #tpu.dot_dimension_numbers<[1], [0], [0], [1], [0, 0, 1, 1], [], []>} : vector<64x32xbf16>, vector<32x16xbf16>, vector<64x16xf32> -> vector<64x16xf32>
    %64 = vector.broadcast %3 : vector<64x1xf32> to vector<64x16xf32>
    %65 = arith.addf %63, %64 : vector<64x16xf32>
    %c2_51 = arith.constant 2 : index
    %c1_52 = arith.constant 1 : index
    %c0_53 = arith.constant 0 : index
    %c0_54 = arith.constant 0 : index
    %66 = vector.load %arg2[%c2_51, %c1_52, %c0_53, %c0_54] : memref<3x4x32x16xbf16, #tpu.memory_space<vmem>>, vector<1x1x32x16xbf16>
    %67 = vector.shape_cast %66 : vector<1x1x32x16xbf16> to vector<32x16xbf16>
    %cst_55 = arith.constant dense<0.000000e+00> : vector<64x16xf32>
    %68 = tpu.matmul %23, %67, %cst_55 {dimension_numbers = #tpu.dot_dimension_numbers<[1], [0], [0], [1], [0, 0, 1, 1], [], []>} : vector<64x32xbf16>, vector<32x16xbf16>, vector<64x16xf32> -> vector<64x16xf32>
    %69 = vector.broadcast %5 : vector<64x1xf32> to vector<64x16xf32>
    %70 = arith.addf %68, %69 : vector<64x16xf32>
    %71 = arith.maximumf %60, %65 : vector<64x16xf32>
    %72 = arith.maximumf %71, %70 : vector<64x16xf32>
    %73 = vector.broadcast %13 : vector<64x1xf32> to vector<64x16xf32>
    %74 = arith.mulf %60, %73 : vector<64x16xf32>
    %75 = vector.broadcast %7 : vector<64x1xf32> to vector<64x16xf32>
    %76 = arith.mulf %72, %75 : vector<64x16xf32>
    %77 = arith.addf %74, %76 : vector<64x16xf32>
    %78 = vector.broadcast %15 : vector<64x1xf32> to vector<64x16xf32>
    %79 = arith.mulf %65, %78 : vector<64x16xf32>
    %80 = vector.broadcast %9 : vector<64x1xf32> to vector<64x16xf32>
    %81 = arith.mulf %72, %80 : vector<64x16xf32>
    %82 = arith.addf %79, %81 : vector<64x16xf32>
    %83 = vector.broadcast %17 : vector<64x1xf32> to vector<64x16xf32>
    %84 = arith.mulf %70, %83 : vector<64x16xf32>
    %85 = vector.broadcast %11 : vector<64x1xf32> to vector<64x16xf32>
    %86 = arith.mulf %72, %85 : vector<64x16xf32>
    %87 = arith.addf %84, %86 : vector<64x16xf32>
    %88 = arith.maximumf %45, %77 : vector<64x16xf32>
    %89 = arith.maximumf %50, %82 : vector<64x16xf32>
    %90 = arith.maximumf %55, %87 : vector<64x16xf32>
    %c0_56 = arith.constant 0 : index
    %c2_57 = arith.constant 2 : index
    %c0_58 = arith.constant 0 : index
    %c0_59 = arith.constant 0 : index
    %91 = vector.load %arg2[%c0_56, %c2_57, %c0_58, %c0_59] : memref<3x4x32x16xbf16, #tpu.memory_space<vmem>>, vector<1x1x32x16xbf16>
    %92 = vector.shape_cast %91 : vector<1x1x32x16xbf16> to vector<32x16xbf16>
    %cst_60 = arith.constant dense<0.000000e+00> : vector<64x16xf32>
    %93 = tpu.matmul %19, %92, %cst_60 {dimension_numbers = #tpu.dot_dimension_numbers<[1], [0], [0], [1], [0, 0, 1, 1], [], []>} : vector<64x32xbf16>, vector<32x16xbf16>, vector<64x16xf32> -> vector<64x16xf32>
    %94 = vector.broadcast %1 : vector<64x1xf32> to vector<64x16xf32>
    %95 = arith.addf %93, %94 : vector<64x16xf32>
    %c1_61 = arith.constant 1 : index
    %c2_62 = arith.constant 2 : index
    %c0_63 = arith.constant 0 : index
    %c0_64 = arith.constant 0 : index
    %96 = vector.load %arg2[%c1_61, %c2_62, %c0_63, %c0_64] : memref<3x4x32x16xbf16, #tpu.memory_space<vmem>>, vector<1x1x32x16xbf16>
    %97 = vector.shape_cast %96 : vector<1x1x32x16xbf16> to vector<32x16xbf16>
    %cst_65 = arith.constant dense<0.000000e+00> : vector<64x16xf32>
    %98 = tpu.matmul %21, %97, %cst_65 {dimension_numbers = #tpu.dot_dimension_numbers<[1], [0], [0], [1], [0, 0, 1, 1], [], []>} : vector<64x32xbf16>, vector<32x16xbf16>, vector<64x16xf32> -> vector<64x16xf32>
    %99 = vector.broadcast %3 : vector<64x1xf32> to vector<64x16xf32>
    %100 = arith.addf %98, %99 : vector<64x16xf32>
    %c2_66 = arith.constant 2 : index
    %c2_67 = arith.constant 2 : index
    %c0_68 = arith.constant 0 : index
    %c0_69 = arith.constant 0 : index
    %101 = vector.load %arg2[%c2_66, %c2_67, %c0_68, %c0_69] : memref<3x4x32x16xbf16, #tpu.memory_space<vmem>>, vector<1x1x32x16xbf16>
    %102 = vector.shape_cast %101 : vector<1x1x32x16xbf16> to vector<32x16xbf16>
    %cst_70 = arith.constant dense<0.000000e+00> : vector<64x16xf32>
    %103 = tpu.matmul %23, %102, %cst_70 {dimension_numbers = #tpu.dot_dimension_numbers<[1], [0], [0], [1], [0, 0, 1, 1], [], []>} : vector<64x32xbf16>, vector<32x16xbf16>, vector<64x16xf32> -> vector<64x16xf32>
    %104 = vector.broadcast %5 : vector<64x1xf32> to vector<64x16xf32>
    %105 = arith.addf %103, %104 : vector<64x16xf32>
    %106 = arith.maximumf %95, %100 : vector<64x16xf32>
    %107 = arith.maximumf %106, %105 : vector<64x16xf32>
    %108 = vector.broadcast %13 : vector<64x1xf32> to vector<64x16xf32>
    %109 = arith.mulf %95, %108 : vector<64x16xf32>
    %110 = vector.broadcast %7 : vector<64x1xf32> to vector<64x16xf32>
    %111 = arith.mulf %107, %110 : vector<64x16xf32>
    %112 = arith.addf %109, %111 : vector<64x16xf32>
    %113 = vector.broadcast %15 : vector<64x1xf32> to vector<64x16xf32>
    %114 = arith.mulf %100, %113 : vector<64x16xf32>
    %115 = vector.broadcast %9 : vector<64x1xf32> to vector<64x16xf32>
    %116 = arith.mulf %107, %115 : vector<64x16xf32>
    %117 = arith.addf %114, %116 : vector<64x16xf32>
    %118 = vector.broadcast %17 : vector<64x1xf32> to vector<64x16xf32>
    %119 = arith.mulf %105, %118 : vector<64x16xf32>
    %120 = vector.broadcast %11 : vector<64x1xf32> to vector<64x16xf32>
    %121 = arith.mulf %107, %120 : vector<64x16xf32>
    %122 = arith.addf %119, %121 : vector<64x16xf32>
    %123 = arith.maximumf %88, %112 : vector<64x16xf32>
    %124 = arith.maximumf %89, %117 : vector<64x16xf32>
    %125 = arith.maximumf %90, %122 : vector<64x16xf32>
    %c0_71 = arith.constant 0 : index
    %c3 = arith.constant 3 : index
    %c0_72 = arith.constant 0 : index
    %c0_73 = arith.constant 0 : index
    %126 = vector.load %arg2[%c0_71, %c3, %c0_72, %c0_73] : memref<3x4x32x16xbf16, #tpu.memory_space<vmem>>, vector<1x1x32x16xbf16>
    %127 = vector.shape_cast %126 : vector<1x1x32x16xbf16> to vector<32x16xbf16>
    %cst_74 = arith.constant dense<0.000000e+00> : vector<64x16xf32>
    %128 = tpu.matmul %19, %127, %cst_74 {dimension_numbers = #tpu.dot_dimension_numbers<[1], [0], [0], [1], [0, 0, 1, 1], [], []>} : vector<64x32xbf16>, vector<32x16xbf16>, vector<64x16xf32> -> vector<64x16xf32>
    %129 = vector.broadcast %1 : vector<64x1xf32> to vector<64x16xf32>
    %130 = arith.addf %128, %129 : vector<64x16xf32>
    %c1_75 = arith.constant 1 : index
    %c3_76 = arith.constant 3 : index
    %c0_77 = arith.constant 0 : index
    %c0_78 = arith.constant 0 : index
    %131 = vector.load %arg2[%c1_75, %c3_76, %c0_77, %c0_78] : memref<3x4x32x16xbf16, #tpu.memory_space<vmem>>, vector<1x1x32x16xbf16>
    %132 = vector.shape_cast %131 : vector<1x1x32x16xbf16> to vector<32x16xbf16>
    %cst_79 = arith.constant dense<0.000000e+00> : vector<64x16xf32>
    %133 = tpu.matmul %21, %132, %cst_79 {dimension_numbers = #tpu.dot_dimension_numbers<[1], [0], [0], [1], [0, 0, 1, 1], [], []>} : vector<64x32xbf16>, vector<32x16xbf16>, vector<64x16xf32> -> vector<64x16xf32>
    %134 = vector.broadcast %3 : vector<64x1xf32> to vector<64x16xf32>
    %135 = arith.addf %133, %134 : vector<64x16xf32>
    %c2_80 = arith.constant 2 : index
    %c3_81 = arith.constant 3 : index
    %c0_82 = arith.constant 0 : index
    %c0_83 = arith.constant 0 : index
    %136 = vector.load %arg2[%c2_80, %c3_81, %c0_82, %c0_83] : memref<3x4x32x16xbf16, #tpu.memory_space<vmem>>, vector<1x1x32x16xbf16>
    %137 = vector.shape_cast %136 : vector<1x1x32x16xbf16> to vector<32x16xbf16>
    %cst_84 = arith.constant dense<0.000000e+00> : vector<64x16xf32>
    %138 = tpu.matmul %23, %137, %cst_84 {dimension_numbers = #tpu.dot_dimension_numbers<[1], [0], [0], [1], [0, 0, 1, 1], [], []>} : vector<64x32xbf16>, vector<32x16xbf16>, vector<64x16xf32> -> vector<64x16xf32>
    %139 = vector.broadcast %5 : vector<64x1xf32> to vector<64x16xf32>
    %140 = arith.addf %138, %139 : vector<64x16xf32>
    %141 = arith.maximumf %130, %135 : vector<64x16xf32>
    %142 = arith.maximumf %141, %140 : vector<64x16xf32>
    %143 = vector.broadcast %13 : vector<64x1xf32> to vector<64x16xf32>
    %144 = arith.mulf %130, %143 : vector<64x16xf32>
    %145 = vector.broadcast %7 : vector<64x1xf32> to vector<64x16xf32>
    %146 = arith.mulf %142, %145 : vector<64x16xf32>
    %147 = arith.addf %144, %146 : vector<64x16xf32>
    %148 = vector.broadcast %15 : vector<64x1xf32> to vector<64x16xf32>
    %149 = arith.mulf %135, %148 : vector<64x16xf32>
    %150 = vector.broadcast %9 : vector<64x1xf32> to vector<64x16xf32>
    %151 = arith.mulf %142, %150 : vector<64x16xf32>
    %152 = arith.addf %149, %151 : vector<64x16xf32>
    %153 = vector.broadcast %17 : vector<64x1xf32> to vector<64x16xf32>
    %154 = arith.mulf %140, %153 : vector<64x16xf32>
    %155 = vector.broadcast %11 : vector<64x1xf32> to vector<64x16xf32>
    %156 = arith.mulf %142, %155 : vector<64x16xf32>
    %157 = arith.addf %154, %156 : vector<64x16xf32>
    %158 = arith.maximumf %123, %147 : vector<64x16xf32>
    %159 = arith.maximumf %124, %152 : vector<64x16xf32>
    %160 = arith.maximumf %125, %157 : vector<64x16xf32>
    %cst_85 = arith.constant 0.000000e+00 : f32
    %161 = vector.broadcast %cst_85 : f32 to vector<64x16xf32>
    %162 = arith.maximumf %158, %161 : vector<64x16xf32>
    %163 = arith.truncf %162 : vector<64x16xf32> to vector<64x16xbf16>
    %c0_86 = arith.constant 0 : index
    %c0_87 = arith.constant 0 : index
    %c0_88 = arith.constant 0 : index
    %c0_89 = arith.constant 0 : index
    %164 = vector.load %arg6[%c0_86, %c0_87, %c0_88, %c0_89] : memref<3x1x64x16xbf16, #tpu.memory_space<vmem>>, vector<1x1x64x16xbf16>
    %165 = vector.shape_cast %164 : vector<1x1x64x16xbf16> to vector<64x16xbf16>
    %166 = vector.shape_cast %163 : vector<64x16xbf16> to vector<1x1x64x16xbf16>
    tpu.vector_store %arg6[%c0_86, %c0_87, %c0_88, %c0_89], %166 {strides = array<i32>} : memref<3x1x64x16xbf16, #tpu.memory_space<vmem>>, vector<1x1x64x16xbf16>,
    %cst_90 = arith.constant 0.000000e+00 : f32
    %167 = vector.broadcast %cst_90 : f32 to vector<64x16xf32>
    %168 = arith.maximumf %159, %167 : vector<64x16xf32>
    %169 = arith.truncf %168 : vector<64x16xf32> to vector<64x16xbf16>
    %c1_91 = arith.constant 1 : index
    %c0_92 = arith.constant 0 : index
    %c0_93 = arith.constant 0 : index
    %c0_94 = arith.constant 0 : index
    %170 = vector.load %arg6[%c1_91, %c0_92, %c0_93, %c0_94] : memref<3x1x64x16xbf16, #tpu.memory_space<vmem>>, vector<1x1x64x16xbf16>
    %171 = vector.shape_cast %170 : vector<1x1x64x16xbf16> to vector<64x16xbf16>
    %172 = vector.shape_cast %169 : vector<64x16xbf16> to vector<1x1x64x16xbf16>
    tpu.vector_store %arg6[%c1_91, %c0_92, %c0_93, %c0_94], %172 {strides = array<i32>} : memref<3x1x64x16xbf16, #tpu.memory_space<vmem>>, vector<1x1x64x16xbf16>,
    %cst_95 = arith.constant 0.000000e+00 : f32
    %173 = vector.broadcast %cst_95 : f32 to vector<64x16xf32>
    %174 = arith.maximumf %160, %173 : vector<64x16xf32>
    %175 = arith.truncf %174 : vector<64x16xf32> to vector<64x16xbf16>
    %c2_96 = arith.constant 2 : index
    %c0_97 = arith.constant 0 : index
    %c0_98 = arith.constant 0 : index
    %c0_99 = arith.constant 0 : index
    %176 = vector.load %arg6[%c2_96, %c0_97, %c0_98, %c0_99] : memref<3x1x64x16xbf16, #tpu.memory_space<vmem>>, vector<1x1x64x16xbf16>
    %177 = vector.shape_cast %176 : vector<1x1x64x16xbf16> to vector<64x16xbf16>
    %178 = vector.shape_cast %175 : vector<64x16xbf16> to vector<1x1x64x16xbf16>
    tpu.vector_store %arg6[%c2_96, %c0_97, %c0_98, %c0_99], %178 {strides = array<i32>} : memref<3x1x64x16xbf16, #tpu.memory_space<vmem>>, vector<1x1x64x16xbf16>,
    return
  }
  func.func @transform_0(%arg0: i32, %arg1: i32) -> (i32, i32, i32, i32) {
    %c0_i32 = arith.constant 0 : i32
    %c0_i32_0 = arith.constant 0 : i32
    %c0_i32_1 = arith.constant 0 : i32
    return %c0_i32, %arg0, %c0_i32_0, %arg1 : i32, i32, i32, i32
  }
  func.func @transform_1(%arg0: i32, %arg1: i32) -> (i32, i32, i32) {
    %c0_i32 = arith.constant 0 : i32
    %c0_i32_0 = arith.constant 0 : i32
    %c0_i32_1 = arith.constant 0 : i32
    %c0_i32_2 = arith.constant 0 : i32
    return %c0_i32, %c0_i32_0, %c0_i32_1 : i32, i32, i32
  }
  func.func @transform_2(%arg0: i32, %arg1: i32) -> (i32, i32, i32) {
    %c0_i32 = arith.constant 0 : i32
    %c0_i32_0 = arith.constant 0 : i32
    %c0_i32_1 = arith.constant 0 : i32
    %c0_i32_2 = arith.constant 0 : i32
    return %c0_i32, %c0_i32_0, %c0_i32_1 : i32, i32, i32
  }
  func.func @transform_3(%arg0: i32, %arg1: i32) -> (i32, i32, i32) {
    %c0_i32 = arith.constant 0 : i32
    %c0_i32_0 = arith.constant 0 : i32
    %c0_i32_1 = arith.constant 0 : i32
    %c0_i32_2 = arith.constant 0 : i32
    return %c0_i32, %c0_i32_0, %c0_i32_1 : i32, i32, i32
  }
  func.func @transform_4(%arg0: i32, %arg1: i32) -> (i32, i32, i32, i32) {
    %c0_i32 = arith.constant 0 : i32
    %c0_i32_0 = arith.constant 0 : i32
    %c0_i32_1 = arith.constant 0 : i32
    return %c0_i32, %arg0, %c0_i32_0, %arg1 : i32, i32, i32, i32
  }
}

module attributes {stable_mosaic.version = 11 : i64} {
  func.func @kernel(%arg0: i32, %arg1: i32, %arg2: memref<3x4x64x16xbf16, #tpu.memory_space<vmem>>, %arg3: memref<3x128x64xbf16, #tpu.memory_space<vmem>>, %arg4: memref<3x128x1xf32, #tpu.memory_space<vmem>>, %arg5: memref<3x128x1xf32, #tpu.memory_space<vmem>>, %arg6: memref<3x1x128x16xbf16, #tpu.memory_space<vmem>>) attributes {dimension_semantics = [#tpu.dimension_semantics<parallel>, #tpu.dimension_semantics<parallel>], iteration_bounds = array<i64: 1, 1>, scalar_prefetch = 0 : i64, scratch_operands = 0 : i64, tpu.core_type = #tpu.core_type<tc>, window_params = [{transform_indices = @transform_0, window_bounds = array<i64: 3, 4, 64, 16>}, {pipeline_mode = #tpu.pipeline_mode<synchronous>, transform_indices = @transform_1, window_bounds = array<i64: 3, 128, 64>}, {pipeline_mode = #tpu.pipeline_mode<synchronous>, transform_indices = @transform_2, window_bounds = array<i64: 3, 128, 1>}, {pipeline_mode = #tpu.pipeline_mode<synchronous>, transform_indices = @transform_3, window_bounds = array<i64: 3, 128, 1>}, {transform_indices = @transform_4, window_bounds = array<i64: 3, 1, 128, 16>}]} {
    %c0 = arith.constant 0 : index
    %c0_0 = arith.constant 0 : index
    %c0_1 = arith.constant 0 : index
    %0 = vector.load %arg4[%c0, %c0_0, %c0_1] : memref<3x128x1xf32, #tpu.memory_space<vmem>>, vector<1x128x1xf32>
    %1 = vector.shape_cast %0 : vector<1x128x1xf32> to vector<128x1xf32>
    %c1 = arith.constant 1 : index
    %c0_2 = arith.constant 0 : index
    %c0_3 = arith.constant 0 : index
    %2 = vector.load %arg4[%c1, %c0_2, %c0_3] : memref<3x128x1xf32, #tpu.memory_space<vmem>>, vector<1x128x1xf32>
    %3 = vector.shape_cast %2 : vector<1x128x1xf32> to vector<128x1xf32>
    %c2 = arith.constant 2 : index
    %c0_4 = arith.constant 0 : index
    %c0_5 = arith.constant 0 : index
    %4 = vector.load %arg4[%c2, %c0_4, %c0_5] : memref<3x128x1xf32, #tpu.memory_space<vmem>>, vector<1x128x1xf32>
    %5 = vector.shape_cast %4 : vector<1x128x1xf32> to vector<128x1xf32>
    %c0_6 = arith.constant 0 : index
    %c0_7 = arith.constant 0 : index
    %c0_8 = arith.constant 0 : index
    %6 = vector.load %arg3[%c0_6, %c0_7, %c0_8] : memref<3x128x64xbf16, #tpu.memory_space<vmem>>, vector<1x128x64xbf16>
    %7 = vector.shape_cast %6 : vector<1x128x64xbf16> to vector<128x64xbf16>
    %c1_9 = arith.constant 1 : index
    %c0_10 = arith.constant 0 : index
    %c0_11 = arith.constant 0 : index
    %8 = vector.load %arg3[%c1_9, %c0_10, %c0_11] : memref<3x128x64xbf16, #tpu.memory_space<vmem>>, vector<1x128x64xbf16>
    %9 = vector.shape_cast %8 : vector<1x128x64xbf16> to vector<128x64xbf16>
    %c2_12 = arith.constant 2 : index
    %c0_13 = arith.constant 0 : index
    %c0_14 = arith.constant 0 : index
    %10 = vector.load %arg3[%c2_12, %c0_13, %c0_14] : memref<3x128x64xbf16, #tpu.memory_space<vmem>>, vector<1x128x64xbf16>
    %11 = vector.shape_cast %10 : vector<1x128x64xbf16> to vector<128x64xbf16>
    %c0_15 = arith.constant 0 : index
    %c0_16 = arith.constant 0 : index
    %c0_17 = arith.constant 0 : index
    %c0_18 = arith.constant 0 : index
    %12 = vector.load %arg2[%c0_15, %c0_16, %c0_17, %c0_18] : memref<3x4x64x16xbf16, #tpu.memory_space<vmem>>, vector<1x1x64x16xbf16>
    %13 = vector.shape_cast %12 : vector<1x1x64x16xbf16> to vector<64x16xbf16>
    %cst = arith.constant dense<0.000000e+00> : vector<128x16xf32>
    %14 = tpu.matmul %7, %13, %cst {dimension_numbers = #tpu.dot_dimension_numbers<[1], [0], [0], [1], [0, 0, 1, 1], [], []>} : vector<128x64xbf16>, vector<64x16xbf16>, vector<128x16xf32> -> vector<128x16xf32>
    %15 = vector.broadcast %1 : vector<128x1xf32> to vector<128x16xf32>
    %16 = arith.addf %14, %15 : vector<128x16xf32>
    %c1_19 = arith.constant 1 : index
    %c0_20 = arith.constant 0 : index
    %c0_21 = arith.constant 0 : index
    %c0_22 = arith.constant 0 : index
    %17 = vector.load %arg2[%c1_19, %c0_20, %c0_21, %c0_22] : memref<3x4x64x16xbf16, #tpu.memory_space<vmem>>, vector<1x1x64x16xbf16>
    %18 = vector.shape_cast %17 : vector<1x1x64x16xbf16> to vector<64x16xbf16>
    %cst_23 = arith.constant dense<0.000000e+00> : vector<128x16xf32>
    %19 = tpu.matmul %9, %18, %cst_23 {dimension_numbers = #tpu.dot_dimension_numbers<[1], [0], [0], [1], [0, 0, 1, 1], [], []>} : vector<128x64xbf16>, vector<64x16xbf16>, vector<128x16xf32> -> vector<128x16xf32>
    %20 = vector.broadcast %3 : vector<128x1xf32> to vector<128x16xf32>
    %21 = arith.addf %19, %20 : vector<128x16xf32>
    %c2_24 = arith.constant 2 : index
    %c0_25 = arith.constant 0 : index
    %c0_26 = arith.constant 0 : index
    %c0_27 = arith.constant 0 : index
    %22 = vector.load %arg2[%c2_24, %c0_25, %c0_26, %c0_27] : memref<3x4x64x16xbf16, #tpu.memory_space<vmem>>, vector<1x1x64x16xbf16>
    %23 = vector.shape_cast %22 : vector<1x1x64x16xbf16> to vector<64x16xbf16>
    %cst_28 = arith.constant dense<0.000000e+00> : vector<128x16xf32>
    %24 = tpu.matmul %11, %23, %cst_28 {dimension_numbers = #tpu.dot_dimension_numbers<[1], [0], [0], [1], [0, 0, 1, 1], [], []>} : vector<128x64xbf16>, vector<64x16xbf16>, vector<128x16xf32> -> vector<128x16xf32>
    %25 = vector.broadcast %5 : vector<128x1xf32> to vector<128x16xf32>
    %26 = arith.addf %24, %25 : vector<128x16xf32>
    %c0_29 = arith.constant 0 : index
    %c1_30 = arith.constant 1 : index
    %c0_31 = arith.constant 0 : index
    %c0_32 = arith.constant 0 : index
    %27 = vector.load %arg2[%c0_29, %c1_30, %c0_31, %c0_32] : memref<3x4x64x16xbf16, #tpu.memory_space<vmem>>, vector<1x1x64x16xbf16>
    %28 = vector.shape_cast %27 : vector<1x1x64x16xbf16> to vector<64x16xbf16>
    %cst_33 = arith.constant dense<0.000000e+00> : vector<128x16xf32>
    %29 = tpu.matmul %7, %28, %cst_33 {dimension_numbers = #tpu.dot_dimension_numbers<[1], [0], [0], [1], [0, 0, 1, 1], [], []>} : vector<128x64xbf16>, vector<64x16xbf16>, vector<128x16xf32> -> vector<128x16xf32>
    %30 = vector.broadcast %1 : vector<128x1xf32> to vector<128x16xf32>
    %31 = arith.addf %29, %30 : vector<128x16xf32>
    %c1_34 = arith.constant 1 : index
    %c1_35 = arith.constant 1 : index
    %c0_36 = arith.constant 0 : index
    %c0_37 = arith.constant 0 : index
    %32 = vector.load %arg2[%c1_34, %c1_35, %c0_36, %c0_37] : memref<3x4x64x16xbf16, #tpu.memory_space<vmem>>, vector<1x1x64x16xbf16>
    %33 = vector.shape_cast %32 : vector<1x1x64x16xbf16> to vector<64x16xbf16>
    %cst_38 = arith.constant dense<0.000000e+00> : vector<128x16xf32>
    %34 = tpu.matmul %9, %33, %cst_38 {dimension_numbers = #tpu.dot_dimension_numbers<[1], [0], [0], [1], [0, 0, 1, 1], [], []>} : vector<128x64xbf16>, vector<64x16xbf16>, vector<128x16xf32> -> vector<128x16xf32>
    %35 = vector.broadcast %3 : vector<128x1xf32> to vector<128x16xf32>
    %36 = arith.addf %34, %35 : vector<128x16xf32>
    %c2_39 = arith.constant 2 : index
    %c1_40 = arith.constant 1 : index
    %c0_41 = arith.constant 0 : index
    %c0_42 = arith.constant 0 : index
    %37 = vector.load %arg2[%c2_39, %c1_40, %c0_41, %c0_42] : memref<3x4x64x16xbf16, #tpu.memory_space<vmem>>, vector<1x1x64x16xbf16>
    %38 = vector.shape_cast %37 : vector<1x1x64x16xbf16> to vector<64x16xbf16>
    %cst_43 = arith.constant dense<0.000000e+00> : vector<128x16xf32>
    %39 = tpu.matmul %11, %38, %cst_43 {dimension_numbers = #tpu.dot_dimension_numbers<[1], [0], [0], [1], [0, 0, 1, 1], [], []>} : vector<128x64xbf16>, vector<64x16xbf16>, vector<128x16xf32> -> vector<128x16xf32>
    %40 = vector.broadcast %5 : vector<128x1xf32> to vector<128x16xf32>
    %41 = arith.addf %39, %40 : vector<128x16xf32>
    %42 = arith.maximumf %16, %31 : vector<128x16xf32>
    %43 = arith.maximumf %21, %36 : vector<128x16xf32>
    %44 = arith.maximumf %26, %41 : vector<128x16xf32>
    %c0_44 = arith.constant 0 : index
    %c2_45 = arith.constant 2 : index
    %c0_46 = arith.constant 0 : index
    %c0_47 = arith.constant 0 : index
    %45 = vector.load %arg2[%c0_44, %c2_45, %c0_46, %c0_47] : memref<3x4x64x16xbf16, #tpu.memory_space<vmem>>, vector<1x1x64x16xbf16>
    %46 = vector.shape_cast %45 : vector<1x1x64x16xbf16> to vector<64x16xbf16>
    %cst_48 = arith.constant dense<0.000000e+00> : vector<128x16xf32>
    %47 = tpu.matmul %7, %46, %cst_48 {dimension_numbers = #tpu.dot_dimension_numbers<[1], [0], [0], [1], [0, 0, 1, 1], [], []>} : vector<128x64xbf16>, vector<64x16xbf16>, vector<128x16xf32> -> vector<128x16xf32>
    %48 = vector.broadcast %1 : vector<128x1xf32> to vector<128x16xf32>
    %49 = arith.addf %47, %48 : vector<128x16xf32>
    %c1_49 = arith.constant 1 : index
    %c2_50 = arith.constant 2 : index
    %c0_51 = arith.constant 0 : index
    %c0_52 = arith.constant 0 : index
    %50 = vector.load %arg2[%c1_49, %c2_50, %c0_51, %c0_52] : memref<3x4x64x16xbf16, #tpu.memory_space<vmem>>, vector<1x1x64x16xbf16>
    %51 = vector.shape_cast %50 : vector<1x1x64x16xbf16> to vector<64x16xbf16>
    %cst_53 = arith.constant dense<0.000000e+00> : vector<128x16xf32>
    %52 = tpu.matmul %9, %51, %cst_53 {dimension_numbers = #tpu.dot_dimension_numbers<[1], [0], [0], [1], [0, 0, 1, 1], [], []>} : vector<128x64xbf16>, vector<64x16xbf16>, vector<128x16xf32> -> vector<128x16xf32>
    %53 = vector.broadcast %3 : vector<128x1xf32> to vector<128x16xf32>
    %54 = arith.addf %52, %53 : vector<128x16xf32>
    %c2_54 = arith.constant 2 : index
    %c2_55 = arith.constant 2 : index
    %c0_56 = arith.constant 0 : index
    %c0_57 = arith.constant 0 : index
    %55 = vector.load %arg2[%c2_54, %c2_55, %c0_56, %c0_57] : memref<3x4x64x16xbf16, #tpu.memory_space<vmem>>, vector<1x1x64x16xbf16>
    %56 = vector.shape_cast %55 : vector<1x1x64x16xbf16> to vector<64x16xbf16>
    %cst_58 = arith.constant dense<0.000000e+00> : vector<128x16xf32>
    %57 = tpu.matmul %11, %56, %cst_58 {dimension_numbers = #tpu.dot_dimension_numbers<[1], [0], [0], [1], [0, 0, 1, 1], [], []>} : vector<128x64xbf16>, vector<64x16xbf16>, vector<128x16xf32> -> vector<128x16xf32>
    %58 = vector.broadcast %5 : vector<128x1xf32> to vector<128x16xf32>
    %59 = arith.addf %57, %58 : vector<128x16xf32>
    %60 = arith.maximumf %42, %49 : vector<128x16xf32>
    %61 = arith.maximumf %43, %54 : vector<128x16xf32>
    %62 = arith.maximumf %44, %59 : vector<128x16xf32>
    %c0_59 = arith.constant 0 : index
    %c3 = arith.constant 3 : index
    %c0_60 = arith.constant 0 : index
    %c0_61 = arith.constant 0 : index
    %63 = vector.load %arg2[%c0_59, %c3, %c0_60, %c0_61] : memref<3x4x64x16xbf16, #tpu.memory_space<vmem>>, vector<1x1x64x16xbf16>
    %64 = vector.shape_cast %63 : vector<1x1x64x16xbf16> to vector<64x16xbf16>
    %cst_62 = arith.constant dense<0.000000e+00> : vector<128x16xf32>
    %65 = tpu.matmul %7, %64, %cst_62 {dimension_numbers = #tpu.dot_dimension_numbers<[1], [0], [0], [1], [0, 0, 1, 1], [], []>} : vector<128x64xbf16>, vector<64x16xbf16>, vector<128x16xf32> -> vector<128x16xf32>
    %66 = vector.broadcast %1 : vector<128x1xf32> to vector<128x16xf32>
    %67 = arith.addf %65, %66 : vector<128x16xf32>
    %c1_63 = arith.constant 1 : index
    %c3_64 = arith.constant 3 : index
    %c0_65 = arith.constant 0 : index
    %c0_66 = arith.constant 0 : index
    %68 = vector.load %arg2[%c1_63, %c3_64, %c0_65, %c0_66] : memref<3x4x64x16xbf16, #tpu.memory_space<vmem>>, vector<1x1x64x16xbf16>
    %69 = vector.shape_cast %68 : vector<1x1x64x16xbf16> to vector<64x16xbf16>
    %cst_67 = arith.constant dense<0.000000e+00> : vector<128x16xf32>
    %70 = tpu.matmul %9, %69, %cst_67 {dimension_numbers = #tpu.dot_dimension_numbers<[1], [0], [0], [1], [0, 0, 1, 1], [], []>} : vector<128x64xbf16>, vector<64x16xbf16>, vector<128x16xf32> -> vector<128x16xf32>
    %71 = vector.broadcast %3 : vector<128x1xf32> to vector<128x16xf32>
    %72 = arith.addf %70, %71 : vector<128x16xf32>
    %c2_68 = arith.constant 2 : index
    %c3_69 = arith.constant 3 : index
    %c0_70 = arith.constant 0 : index
    %c0_71 = arith.constant 0 : index
    %73 = vector.load %arg2[%c2_68, %c3_69, %c0_70, %c0_71] : memref<3x4x64x16xbf16, #tpu.memory_space<vmem>>, vector<1x1x64x16xbf16>
    %74 = vector.shape_cast %73 : vector<1x1x64x16xbf16> to vector<64x16xbf16>
    %cst_72 = arith.constant dense<0.000000e+00> : vector<128x16xf32>
    %75 = tpu.matmul %11, %74, %cst_72 {dimension_numbers = #tpu.dot_dimension_numbers<[1], [0], [0], [1], [0, 0, 1, 1], [], []>} : vector<128x64xbf16>, vector<64x16xbf16>, vector<128x16xf32> -> vector<128x16xf32>
    %76 = vector.broadcast %5 : vector<128x1xf32> to vector<128x16xf32>
    %77 = arith.addf %75, %76 : vector<128x16xf32>
    %78 = arith.maximumf %60, %67 : vector<128x16xf32>
    %79 = arith.maximumf %61, %72 : vector<128x16xf32>
    %80 = arith.maximumf %62, %77 : vector<128x16xf32>
    %cst_73 = arith.constant 0.000000e+00 : f32
    %81 = vector.broadcast %cst_73 : f32 to vector<128x16xf32>
    %82 = arith.maximumf %78, %81 : vector<128x16xf32>
    %83 = arith.truncf %82 : vector<128x16xf32> to vector<128x16xbf16>
    %c0_74 = arith.constant 0 : index
    %c0_75 = arith.constant 0 : index
    %c0_76 = arith.constant 0 : index
    %c0_77 = arith.constant 0 : index
    %84 = vector.load %arg6[%c0_74, %c0_75, %c0_76, %c0_77] : memref<3x1x128x16xbf16, #tpu.memory_space<vmem>>, vector<1x1x128x16xbf16>
    %85 = vector.shape_cast %84 : vector<1x1x128x16xbf16> to vector<128x16xbf16>
    %86 = vector.shape_cast %83 : vector<128x16xbf16> to vector<1x1x128x16xbf16>
    tpu.vector_store %arg6[%c0_74, %c0_75, %c0_76, %c0_77], %86 {strides = array<i32>} : memref<3x1x128x16xbf16, #tpu.memory_space<vmem>>, vector<1x1x128x16xbf16>,
    %cst_78 = arith.constant 0.000000e+00 : f32
    %87 = vector.broadcast %cst_78 : f32 to vector<128x16xf32>
    %88 = arith.maximumf %79, %87 : vector<128x16xf32>
    %89 = arith.truncf %88 : vector<128x16xf32> to vector<128x16xbf16>
    %c1_79 = arith.constant 1 : index
    %c0_80 = arith.constant 0 : index
    %c0_81 = arith.constant 0 : index
    %c0_82 = arith.constant 0 : index
    %90 = vector.load %arg6[%c1_79, %c0_80, %c0_81, %c0_82] : memref<3x1x128x16xbf16, #tpu.memory_space<vmem>>, vector<1x1x128x16xbf16>
    %91 = vector.shape_cast %90 : vector<1x1x128x16xbf16> to vector<128x16xbf16>
    %92 = vector.shape_cast %89 : vector<128x16xbf16> to vector<1x1x128x16xbf16>
    tpu.vector_store %arg6[%c1_79, %c0_80, %c0_81, %c0_82], %92 {strides = array<i32>} : memref<3x1x128x16xbf16, #tpu.memory_space<vmem>>, vector<1x1x128x16xbf16>,
    %cst_83 = arith.constant 0.000000e+00 : f32
    %93 = vector.broadcast %cst_83 : f32 to vector<128x16xf32>
    %94 = arith.maximumf %80, %93 : vector<128x16xf32>
    %95 = arith.truncf %94 : vector<128x16xf32> to vector<128x16xbf16>
    %c2_84 = arith.constant 2 : index
    %c0_85 = arith.constant 0 : index
    %c0_86 = arith.constant 0 : index
    %c0_87 = arith.constant 0 : index
    %96 = vector.load %arg6[%c2_84, %c0_85, %c0_86, %c0_87] : memref<3x1x128x16xbf16, #tpu.memory_space<vmem>>, vector<1x1x128x16xbf16>
    %97 = vector.shape_cast %96 : vector<1x1x128x16xbf16> to vector<128x16xbf16>
    %98 = vector.shape_cast %95 : vector<128x16xbf16> to vector<1x1x128x16xbf16>
    tpu.vector_store %arg6[%c2_84, %c0_85, %c0_86, %c0_87], %98 {strides = array<i32>} : memref<3x1x128x16xbf16, #tpu.memory_space<vmem>>, vector<1x1x128x16xbf16>,
    return
  }
  func.func @transform_0(%arg0: i32, %arg1: i32) -> (i32, i32, i32, i32) {
    %c0_i32 = arith.constant 0 : i32
    %c0_i32_0 = arith.constant 0 : i32
    %c0_i32_1 = arith.constant 0 : i32
    return %c0_i32, %arg0, %c0_i32_0, %arg1 : i32, i32, i32, i32
  }
  func.func @transform_1(%arg0: i32, %arg1: i32) -> (i32, i32, i32) {
    %c0_i32 = arith.constant 0 : i32
    %c0_i32_0 = arith.constant 0 : i32
    %c0_i32_1 = arith.constant 0 : i32
    %c0_i32_2 = arith.constant 0 : i32
    return %c0_i32, %c0_i32_0, %c0_i32_1 : i32, i32, i32
  }
  func.func @transform_2(%arg0: i32, %arg1: i32) -> (i32, i32, i32) {
    %c0_i32 = arith.constant 0 : i32
    %c0_i32_0 = arith.constant 0 : i32
    %c0_i32_1 = arith.constant 0 : i32
    %c0_i32_2 = arith.constant 0 : i32
    return %c0_i32, %c0_i32_0, %c0_i32_1 : i32, i32, i32
  }
  func.func @transform_3(%arg0: i32, %arg1: i32) -> (i32, i32, i32) {
    %c0_i32 = arith.constant 0 : i32
    %c0_i32_0 = arith.constant 0 : i32
    %c0_i32_1 = arith.constant 0 : i32
    %c0_i32_2 = arith.constant 0 : i32
    return %c0_i32, %c0_i32_0, %c0_i32_1 : i32, i32, i32
  }
  func.func @transform_4(%arg0: i32, %arg1: i32) -> (i32, i32, i32, i32) {
    %c0_i32 = arith.constant 0 : i32
    %c0_i32_0 = arith.constant 0 : i32
    %c0_i32_1 = arith.constant 0 : i32
    return %c0_i32, %arg0, %c0_i32_0, %arg1 : i32, i32, i32, i32
  }
}

module attributes {stable_mosaic.version = 11 : i64} {
  func.func @_fc1_kernel(%arg0: i32, %arg1: i32, %arg2: memref<2x1536xbf16, #tpu.memory_space<vmem>>, %arg3: memref<1536x128xbf16, #tpu.memory_space<vmem>>, %arg4: memref<1x128xf32, #tpu.memory_space<vmem>>, %arg5: memref<2x128xf32, #tpu.memory_space<vmem>>, %arg6: memref<2x128xf32, #tpu.memory_space<vmem>>) attributes {dimension_semantics = [#tpu.dimension_semantics<parallel>, #tpu.dimension_semantics<arbitrary>], iteration_bounds = array<i64: 2, 2>, scalar_prefetch = 0 : i64, scratch_operands = 1 : i64, tpu.core_type = #tpu.core_type<tc>, window_params = [{transform_indices = @transform_0, window_bounds = array<i64: 2, 1536>}, {transform_indices = @transform_1, window_bounds = array<i64: 1536, 128>}, {transform_indices = @transform_2, window_bounds = array<i64: 1, 128>}, {transform_indices = @transform_3, window_bounds = array<i64: 2, 128>}]} {
    %c0_i32 = arith.constant 0 : i32
    %0 = arith.cmpi eq, %arg1, %c0_i32 : i32
    %1 = arith.extui %0 : i1 to i32
    %c0_i32_0 = arith.constant 0 : i32
    %2 = arith.cmpi ne, %1, %c0_i32_0 : i32
    scf.if %2 {
      %cst_9 = arith.constant 0.000000e+00 : f32
      %12 = vector.broadcast %cst_9 : f32 to vector<2x128xf32>
      %c0_10 = arith.constant 0 : index
      %c0_11 = arith.constant 0 : index
      %13 = vector.load %arg6[%c0_10, %c0_11] : memref<2x128xf32, #tpu.memory_space<vmem>>, vector<2x128xf32>
      tpu.vector_store %arg6[%c0_10, %c0_11], %12 {strides = array<i32>} : memref<2x128xf32, #tpu.memory_space<vmem>>, vector<2x128xf32>,
    } else {
    }
    %c0 = arith.constant 0 : index
    %c0_1 = arith.constant 0 : index
    %3 = vector.load %arg6[%c0, %c0_1] : memref<2x128xf32, #tpu.memory_space<vmem>>, vector<2x128xf32>
    %c0_2 = arith.constant 0 : index
    %c0_3 = arith.constant 0 : index
    %4 = vector.load %arg2[%c0_2, %c0_3] : memref<2x1536xbf16, #tpu.memory_space<vmem>>, vector<2x1536xbf16>
    %c0_4 = arith.constant 0 : index
    %c0_5 = arith.constant 0 : index
    %5 = vector.load %arg3[%c0_4, %c0_5] : memref<1536x128xbf16, #tpu.memory_space<vmem>>, vector<1536x128xbf16>
    %cst = arith.constant dense<0.000000e+00> : vector<2x128xf32>
    %6 = tpu.matmul %4, %5, %cst {dimension_numbers = #tpu.dot_dimension_numbers<[1], [0], [0], [1], [0, 0, 1, 1], [], []>} : vector<2x1536xbf16>, vector<1536x128xbf16>, vector<2x128xf32> -> vector<2x128xf32>
    %7 = arith.addf %3, %6 : vector<2x128xf32>
    %c0_6 = arith.constant 0 : index
    %c0_7 = arith.constant 0 : index
    %8 = vector.load %arg6[%c0_6, %c0_7] : memref<2x128xf32, #tpu.memory_space<vmem>>, vector<2x128xf32>
    tpu.vector_store %arg6[%c0_6, %c0_7], %7 {strides = array<i32>} : memref<2x128xf32, #tpu.memory_space<vmem>>, vector<2x128xf32>,
    %c1_i32 = arith.constant 1 : i32
    %9 = arith.cmpi eq, %arg1, %c1_i32 : i32
    %10 = arith.extui %9 : i1 to i32
    %c0_i32_8 = arith.constant 0 : i32
    %11 = arith.cmpi ne, %10, %c0_i32_8 : i32
    scf.if %11 {
      %c0_9 = arith.constant 0 : index
      %c0_10 = arith.constant 0 : index
      %12 = vector.load %arg6[%c0_9, %c0_10] : memref<2x128xf32, #tpu.memory_space<vmem>>, vector<2x128xf32>
      %c0_11 = arith.constant 0 : index
      %c0_12 = arith.constant 0 : index
      %13 = vector.load %arg4[%c0_11, %c0_12] : memref<1x128xf32, #tpu.memory_space<vmem>>, vector<1x128xf32>
      %14 = vector.broadcast %13 : vector<1x128xf32> to vector<2x128xf32>
      %15 = arith.addf %12, %14 : vector<2x128xf32>
      %cst_13 = arith.constant 0.000000e+00 : f32
      %16 = vector.broadcast %cst_13 : f32 to vector<2x128xf32>
      %17 = arith.maximumf %15, %16 : vector<2x128xf32>
      %c0_14 = arith.constant 0 : index
      %c0_15 = arith.constant 0 : index
      %18 = vector.load %arg5[%c0_14, %c0_15] : memref<2x128xf32, #tpu.memory_space<vmem>>, vector<2x128xf32>
      tpu.vector_store %arg5[%c0_14, %c0_15], %17 {strides = array<i32>} : memref<2x128xf32, #tpu.memory_space<vmem>>, vector<2x128xf32>,
    } else {
    }
    return
  }
  func.func @transform_0(%arg0: i32, %arg1: i32) -> (i32, i32) {
    %c0_i32 = arith.constant 0 : i32
    %c0_i32_0 = arith.constant 0 : i32
    return %c0_i32, %arg1 : i32, i32
  }
  func.func @transform_1(%arg0: i32, %arg1: i32) -> (i32, i32) {
    %c0_i32 = arith.constant 0 : i32
    return %arg1, %arg0 : i32, i32
  }
  func.func @transform_2(%arg0: i32, %arg1: i32) -> (i32, i32) {
    %c0_i32 = arith.constant 0 : i32
    %c0_i32_0 = arith.constant 0 : i32
    return %c0_i32, %arg0 : i32, i32
  }
  func.func @transform_3(%arg0: i32, %arg1: i32) -> (i32, i32) {
    %c0_i32 = arith.constant 0 : i32
    %c0_i32_0 = arith.constant 0 : i32
    return %c0_i32, %arg0 : i32, i32
  }
}

module attributes {stable_mosaic.version = 11 : i64} {
  func.func @_head_kernel(%arg0: i32, %arg1: memref<2x256xf32, #tpu.memory_space<vmem>>, %arg2: memref<256x128xf32, #tpu.memory_space<vmem>>, %arg3: memref<1x128xf32, #tpu.memory_space<vmem>>, %arg4: memref<128x4xf32, #tpu.memory_space<vmem>>, %arg5: memref<1x4xf32, #tpu.memory_space<vmem>>, %arg6: memref<2x4xf32, #tpu.memory_space<vmem>>) attributes {dimension_semantics = [#tpu.dimension_semantics<arbitrary>], iteration_bounds = array<i64: 1>, scalar_prefetch = 0 : i64, scratch_operands = 0 : i64, tpu.core_type = #tpu.core_type<tc>, window_params = [{pipeline_mode = #tpu.pipeline_mode<synchronous>, transform_indices = @transform_0, window_bounds = array<i64: 2, 256>}, {pipeline_mode = #tpu.pipeline_mode<synchronous>, transform_indices = @transform_1, window_bounds = array<i64: 256, 128>}, {pipeline_mode = #tpu.pipeline_mode<synchronous>, transform_indices = @transform_2, window_bounds = array<i64: 1, 128>}, {pipeline_mode = #tpu.pipeline_mode<synchronous>, transform_indices = @transform_3, window_bounds = array<i64: 128, 4>}, {pipeline_mode = #tpu.pipeline_mode<synchronous>, transform_indices = @transform_4, window_bounds = array<i64: 1, 4>}, {pipeline_mode = #tpu.pipeline_mode<synchronous>, transform_indices = @transform_5, window_bounds = array<i64: 2, 4>}]} {
    %c0 = arith.constant 0 : index
    %c0_0 = arith.constant 0 : index
    %0 = vector.load %arg1[%c0, %c0_0] : memref<2x256xf32, #tpu.memory_space<vmem>>, vector<2x256xf32>
    %c0_1 = arith.constant 0 : index
    %c0_2 = arith.constant 0 : index
    %1 = vector.load %arg2[%c0_1, %c0_2] : memref<256x128xf32, #tpu.memory_space<vmem>>, vector<256x128xf32>
    %cst = arith.constant dense<0.000000e+00> : vector<2x128xf32>
    %2 = tpu.matmul %0, %1, %cst {dimension_numbers = #tpu.dot_dimension_numbers<[1], [0], [0], [1], [0, 0, 1, 1], [], []>} : vector<2x256xf32>, vector<256x128xf32>, vector<2x128xf32> -> vector<2x128xf32>
    %c0_3 = arith.constant 0 : index
    %c0_4 = arith.constant 0 : index
    %3 = vector.load %arg3[%c0_3, %c0_4] : memref<1x128xf32, #tpu.memory_space<vmem>>, vector<1x128xf32>
    %4 = vector.broadcast %3 : vector<1x128xf32> to vector<2x128xf32>
    %5 = arith.addf %2, %4 : vector<2x128xf32>
    %cst_5 = arith.constant 0.000000e+00 : f32
    %6 = vector.broadcast %cst_5 : f32 to vector<2x128xf32>
    %7 = arith.maximumf %5, %6 : vector<2x128xf32>
    %c0_6 = arith.constant 0 : index
    %c0_7 = arith.constant 0 : index
    %8 = vector.load %arg4[%c0_6, %c0_7] : memref<128x4xf32, #tpu.memory_space<vmem>>, vector<128x4xf32>
    %cst_8 = arith.constant dense<0.000000e+00> : vector<2x4xf32>
    %9 = tpu.matmul %7, %8, %cst_8 {dimension_numbers = #tpu.dot_dimension_numbers<[1], [0], [0], [1], [0, 0, 1, 1], [], []>} : vector<2x128xf32>, vector<128x4xf32>, vector<2x4xf32> -> vector<2x4xf32>
    %c0_9 = arith.constant 0 : index
    %c0_10 = arith.constant 0 : index
    %10 = vector.load %arg5[%c0_9, %c0_10] : memref<1x4xf32, #tpu.memory_space<vmem>>, vector<1x4xf32>
    %11 = vector.broadcast %10 : vector<1x4xf32> to vector<2x4xf32>
    %12 = arith.addf %9, %11 : vector<2x4xf32>
    %cst_11 = arith.constant dense<0xFF800000> : vector<2xf32>
    %13 = vector.multi_reduction <maximumf>, %12, %cst_11 [1] : vector<2x4xf32> to vector<2xf32>
    %14 = vector.shape_cast %13 : vector<2xf32> to vector<2x1xf32>
    %15 = vector.broadcast %14 : vector<2x1xf32> to vector<2x4xf32>
    %16 = arith.subf %12, %15 : vector<2x4xf32>
    %17 = math.exp %16 : vector<2x4xf32>
    %cst_12 = arith.constant dense<0.000000e+00> : vector<2xf32>
    %18 = vector.multi_reduction <add>, %17, %cst_12 [1] : vector<2x4xf32> to vector<2xf32>
    %19 = vector.shape_cast %18 : vector<2xf32> to vector<2x1xf32>
    %20 = vector.broadcast %19 : vector<2x1xf32> to vector<2x4xf32>
    %21 = arith.divf %17, %20 : vector<2x4xf32>
    %c0_13 = arith.constant 0 : index
    %c0_14 = arith.constant 0 : index
    %22 = vector.load %arg6[%c0_13, %c0_14] : memref<2x4xf32, #tpu.memory_space<vmem>>, vector<2x4xf32>
    tpu.vector_store %arg6[%c0_13, %c0_14], %21 {strides = array<i32>} : memref<2x4xf32, #tpu.memory_space<vmem>>, vector<2x4xf32>,
    return
  }
  func.func @transform_0(%arg0: i32) -> (i32, i32) {
    %c0_i32 = arith.constant 0 : i32
    %c0_i32_0 = arith.constant 0 : i32
    %c0_i32_1 = arith.constant 0 : i32
    return %c0_i32, %c0_i32_0 : i32, i32
  }
  func.func @transform_1(%arg0: i32) -> (i32, i32) {
    %c0_i32 = arith.constant 0 : i32
    %c0_i32_0 = arith.constant 0 : i32
    %c0_i32_1 = arith.constant 0 : i32
    return %c0_i32, %c0_i32_0 : i32, i32
  }
  func.func @transform_2(%arg0: i32) -> (i32, i32) {
    %c0_i32 = arith.constant 0 : i32
    %c0_i32_0 = arith.constant 0 : i32
    %c0_i32_1 = arith.constant 0 : i32
    return %c0_i32, %c0_i32_0 : i32, i32
  }
  func.func @transform_3(%arg0: i32) -> (i32, i32) {
    %c0_i32 = arith.constant 0 : i32
    %c0_i32_0 = arith.constant 0 : i32
    %c0_i32_1 = arith.constant 0 : i32
    return %c0_i32, %c0_i32_0 : i32, i32
  }
  func.func @transform_4(%arg0: i32) -> (i32, i32) {
    %c0_i32 = arith.constant 0 : i32
    %c0_i32_0 = arith.constant 0 : i32
    %c0_i32_1 = arith.constant 0 : i32
    return %c0_i32, %c0_i32_0 : i32, i32
  }
  func.func @transform_5(%arg0: i32) -> (i32, i32) {
    %c0_i32 = arith.constant 0 : i32
    %c0_i32_0 = arith.constant 0 : i32
    %c0_i32_1 = arith.constant 0 : i32
    return %c0_i32, %c0_i32_0 : i32, i32
  }
}

</mosaic_0001>

<llo_original>
// kernel: cen_cnn_forward.5
$region0: #{cen_cnn_forward.5}
  #allocation0 [shape = 'u32[]', space=smem, size = 0x4, offset = 0x4, fixed_abs, tag = 'smem constant byte address 0x4 - core index']
  #allocation1 [shape = 'u32[144,128]{1,0:T(1,128)}', space=vmem, size = 0x12000, scoped, tag = 'internal scratch']
  %s0 = inlined_call_operand.vmem [shape: bf16[3,64,3,16], index: 0, kind: input, shape index: {}]
  %s1 = inlined_call_operand.vmem [shape: f32[3,32,3], index: 1, kind: input, shape index: {}]
  %s2 = inlined_call_operand.vmem [shape: f32[3,32,1], index: 2, kind: input, shape index: {}]
  %s3 = inlined_call_operand.vmem [shape: f32[3,32,1], index: 3, kind: input, shape index: {}]
  %s4 = inlined_call_operand.vmem [shape: bf16[3,16,32,16], index: 4, kind: output, shape index: {}]
  %s5 = sld [smem:[#allocation0]]
  $region127: #{cen_cnn_forward.5} parent=0
    _
  %s7 = ssub.s32 1, %s5
  %s8 = scalar_select 0, %s7, %s5
  $region1: #{cen_cnn_forward.5} parent=0
    #allocation2 [shape = 'u8[24576]{0}', space=vmem, size = 0x6000, scoped, tag = 'input window, operand 0']
    #allocation3 [shape = 'u8[49152]{0}', space=vmem, size = 0xc000, scoped, tag = 'output window, operand 0']
    loop: start=0, step=1, limit=18
    $region2: #{cen_cnn_forward.5} parent=1 // loop_pre_header
      _
    $region3: #{cen_cnn_forward.5} parent=1 // loop_header
      %s10 = sphi 0, %s14
      %p11 = scmp.ge.s32.totalorder %s10, 18
      %s17 = sphi 0, %s29
      %s18 = sphi 0, %s25
      %s19 = sphi 0, %s17
      %s20 = sphi 0, %s18
      %s21 = sphi 0, %s19
      %s22 = sphi 0, %s20
      %s34 = sphi 0, %s36
      %s37 = sphi 0, %s34
      %s38 = sphi 0, %s37
      %s54 = sphi 0, %s38
      %s58 = sphi 0, %s58
      %s60 = sphi 0, %s58
      %s61 = sphi 0, %s60
      %s75 = sphi 0, %s61
      %s79 = sphi 0, %s79
      %s81 = sphi 0, %s79
      %s82 = sphi 0, %s81
      %s96 = sphi 0, %s82
      %s100 = sphi 0, %s100
      %s102 = sphi 0, %s100
      %s103 = sphi 0, %s102
      %s117 = sphi 0, %s103
      %s125 = sphi 0, %s127
      %s128 = sphi 0, %s125
      %s129 = sphi 0, %s128
      %s145 = sphi 0, %s129
    $region4: #{cen_cnn_forward.5} parent=1 // loop_header_branch
      %13 = sbr.rel (%p11) target = $region8
    $region5: #{cen_cnn_forward.5} parent=1 // loop_body
      %s15 = ssub.s32 %s10, 1
      %s16 = ssub.s32 %s10, 2
      %s23 = sadd.s32 1, %s18
      %p24 = scmp.ge.s32.totalorder %s23, 1
      %s25 = scalar_select %p24, 0, %s23
      %s26 = sadd.s32 1, %s17
      %s27 = scalar_select %p24, %s26, %s17
      %p28 = scmp.ge.s32.totalorder %s27, 16
      %s29 = scalar_select %p28, 0, %s27
      %s30 = ssub.s32 %s17, %s29
      %s31 = ssub.s32 %s18, %s25
      %s32 = sor.u32 %s30, %s31
      %p33 = scmp.eq.s32.totalorder %s32, 0
      %s35 = sadd.s32 %s34, 1
      %s36 = scalar_select %p33, %s34, %s35
      %p39 = pneg %p33
      %p40 = scmp.eq.s32.totalorder %s10, 15
      %p41 = por %p39, %p40
      %p42 = scmp.ne.s32.totalorder %s34, %s37
      %p43 = scmp.eq.s32.totalorder %s10, 0
      %p44 = por %p42, %p43
      %p45 = scmp.ne.s32.totalorder %s34, %s37
      %p46 = scmp.eq.s32.totalorder %s15, 15
      %p47 = por %p45, %p46
      %p48 = scmp.ne.s32.totalorder %s37, %s38
      %p49 = scmp.eq.s32.totalorder %s15, 0
      %p50 = por %p48, %p49
      %p51 = scmp.ne.s32.totalorder %s37, %s38
      %p52 = scmp.eq.s32.totalorder %s16, 15
      %p53 = por %p51, %p52
      %p55 = scmp.ne.s32.totalorder %s38, %s54
      %p56 = scmp.eq.s32.totalorder %s16, 0
      %p57 = por %p55, %p56
      %s59 = sadd.s32 %s58, 1
      %p62 = scmp.eq.s32.totalorder %s10, 15
      %p63 = scmp.ne.s32.totalorder %s58, %s60
      %p64 = scmp.eq.s32.totalorder %s10, 0
      %p65 = por %p63, %p64
      %p66 = scmp.ne.s32.totalorder %s58, %s60
      %p67 = scmp.eq.s32.totalorder %s15, 15
      %p68 = por %p66, %p67
      %p69 = scmp.ne.s32.totalorder %s60, %s61
      %p70 = scmp.eq.s32.totalorder %s15, 0
      %p71 = por %p69, %p70
      %p72 = scmp.ne.s32.totalorder %s60, %s61
      %p73 = scmp.eq.s32.totalorder %s16, 15
      %p74 = por %p72, %p73
      %p76 = scmp.ne.s32.totalorder %s61, %s75
      %p77 = scmp.eq.s32.totalorder %s16, 0
      %p78 = por %p76, %p77
      %s80 = sadd.s32 %s79, 1
      %p83 = scmp.eq.s32.totalorder %s10, 15
      %p84 = scmp.ne.s32.totalorder %s79, %s81
      %p85 = scmp.eq.s32.totalorder %s10, 0
      %p86 = por %p84, %p85
      %p87 = scmp.ne.s32.totalorder %s79, %s81
      %p88 = scmp.eq.s32.totalorder %s15, 15
      %p89 = por %p87, %p88
      %p90 = scmp.ne.s32.totalorder %s81, %s82
      %p91 = scmp.eq.s32.totalorder %s15, 0
      %p92 = por %p90, %p91
      %p93 = scmp.ne.s32.totalorder %s81, %s82
      %p94 = scmp.eq.s32.totalorder %s16, 15
      %p95 = por %p93, %p94
      %p97 = scmp.ne.s32.totalorder %s82, %s96
      %p98 = scmp.eq.s32.totalorder %s16, 0
      %p99 = por %p97, %p98
      %s101 = sadd.s32 %s100, 1
      %p104 = scmp.eq.s32.totalorder %s10, 15
      %p105 = scmp.ne.s32.totalorder %s100, %s102
      %p106 = scmp.eq.s32.totalorder %s10, 0
      %p107 = por %p105, %p106
      %p108 = scmp.ne.s32.totalorder %s100, %s102
      %p109 = scmp.eq.s32.totalorder %s15, 15
      %p110 = por %p108, %p109
      %p111 = scmp.ne.s32.totalorder %s102, %s103
      %p112 = scmp.eq.s32.totalorder %s15, 0
      %p113 = por %p111, %p112
      %p114 = scmp.ne.s32.totalorder %s102, %s103
      %p115 = scmp.eq.s32.totalorder %s16, 15
      %p116 = por %p114, %p115
      %p118 = scmp.ne.s32.totalorder %s103, %s117
      %p119 = scmp.eq.s32.totalorder %s16, 0
      %p120 = por %p118, %p119
      %s121 = ssub.s32 %s17, %s29
      %s122 = ssub.s32 %s18, %s25
      %s123 = sor.u32 %s121, %s122
      %p124 = scmp.eq.s32.totalorder %s123, 0
      %s126 = sadd.s32 %s125, 1
      %s127 = scalar_select %p124, %s125, %s126
      %p130 = pneg %p124
      %p131 = scmp.eq.s32.totalorder %s10, 15
      %p132 = por %p130, %p131
      %p133 = scmp.ne.s32.totalorder %s125, %s128
      %p134 = scmp.eq.s32.totalorder %s10, 0
      %p135 = por %p133, %p134
      %p136 = scmp.ne.s32.totalorder %s125, %s128
      %p137 = scmp.eq.s32.totalorder %s15, 15
      %p138 = por %p136, %p137
      %p139 = scmp.ne.s32.totalorder %s128, %s129
      %p140 = scmp.eq.s32.totalorder %s15, 0
      %p141 = por %p139, %p140
      %p142 = scmp.ne.s32.totalorder %s128, %s129
      %p143 = scmp.eq.s32.totalorder %s16, 15
      %p144 = por %p142, %p143
      %p146 = scmp.ne.s32.totalorder %s129, %s145
      %p147 = scmp.eq.s32.totalorder %s16, 0
      %p148 = por %p146, %p147
      %p149 = scmp.le.s32.totalorder 1, %s10
      %p150 = scmp.lt.s32.totalorder %s10, 17
      %p151 = pnand %p149, %p150
      %p152 = pneg %p151
      // Predicated region
      $region9: #{cen_cnn_forward.5} parent=5 // pred_check
        _
      $region10: #{cen_cnn_forward.5} parent=5 // pred_check_branch
        %154 = sbr.rel (%p151) target = $region12
      $region11: #{cen_cnn_forward.5} parent=5 // pred_region
        %s155 = ssub.s32 %s10, 1
        // Predicated region
        $region13: #{cen_cnn_forward.5} parent=11 // pred_check
          %p156 = pneg %p71
        $region14: #{cen_cnn_forward.5} parent=11 // pred_check_branch
          %158 = sbr.rel (%p156) target = $region16
        $region15: #{cen_cnn_forward.5} parent=11 // pred_region
          _
        $region16: #{cen_cnn_forward.5} parent=11 // pred_fallthru
          _
        // Predicated region
        $region17: #{cen_cnn_forward.5} parent=11 // pred_check
          %p159 = pneg %p92
        $region18: #{cen_cnn_forward.5} parent=11 // pred_check_branch
          %161 = sbr.rel (%p159) target = $region20
        $region19: #{cen_cnn_forward.5} parent=11 // pred_region
          _
        $region20: #{cen_cnn_forward.5} parent=11 // pred_fallthru
          _
        // Predicated region
        $region21: #{cen_cnn_forward.5} parent=11 // pred_check
          %p162 = pneg %p113
        $region22: #{cen_cnn_forward.5} parent=11 // pred_check_branch
          %164 = sbr.rel (%p162) target = $region24
        $region23: #{cen_cnn_forward.5} parent=11 // pred_region
          _
        $region24: #{cen_cnn_forward.5} parent=11 // pred_fallthru
          _
      $region12: #{cen_cnn_forward.5} parent=5 // pred_fallthru
        _
      %p165 = scmp.lt.s32.totalorder %s10, 16
      // Predicated region
      $region25: #{cen_cnn_forward.5} parent=5 // pred_check
        %p166 = pneg %p165
      $region26: #{cen_cnn_forward.5} parent=5 // pred_check_branch
        %168 = sbr.rel (%p166) target = $region28
      $region27: #{cen_cnn_forward.5} parent=5 // pred_region
        // Predicated region
        $region29: #{cen_cnn_forward.5} parent=27 // pred_check
          %p169 = pneg %p44
        $region30: #{cen_cnn_forward.5} parent=27 // pred_check_branch
          %171 = sbr.rel (%p169) target = $region32
        $region31: #{cen_cnn_forward.5} parent=27 // pred_region
          %s172 = sand.u32 %s34, 1
          %s173 = sand.u32 %s34, 1
          %s174 = smul.addr %s173, 24
          %s175 = scalar_lea.vmem [#allocation2], %s174
          %s176 = smul.u32 4, %s17
          %s177 = sadd.s32 %s18, %s176
          %s178 = smul.addr %s177, 2
          %s179 = scalar_lea.vmem %s0, %s178
          // Predicated region
          $region33: #{cen_cnn_forward.5} parent=31 // pred_check
            _
          $region34: #{cen_cnn_forward.5} parent=31 // pred_check_branch
            %181 = sbr.rel (0) target = $region36
          $region35: #{cen_cnn_forward.5} parent=31 // pred_region
            // Predicated region
            $region37: #{cen_cnn_forward.5} parent=35 // pred_check
              _
            $region38: #{cen_cnn_forward.5} parent=35 // pred_check_branch
              %183 = sbr.rel target = $region40
            $region39: #{cen_cnn_forward.5} parent=35 // pred_region
              // Predicated region
              $region52: #{cen_cnn_forward.5} parent=39 // pred_check
                _
              $region53: #{cen_cnn_forward.5} parent=39 // pred_check_branch
                %220 = sbr.rel (0) target = $region55
              $region54: #{cen_cnn_forward.5} parent=39 // pred_region
                loop: start=0, step=1, limit=1
                $region56: #{cen_cnn_forward.5} parent=54 // loop_pre_header
                  _
                $region57: #{cen_cnn_forward.5} parent=54 // loop_header
                  %s222 = sphi 0, %s226
                  %p223 = scmp.ge.s32.totalorder %s222, 1
                  %s227 = sphi %s179, %s179
                  %s228 = sphi %s175, %s175
                $region58: #{cen_cnn_forward.5} parent=54 // loop_header_branch
                  %225 = sbr.rel (%p223) target = $region62
                $region59: #{cen_cnn_forward.5} parent=54 // loop_body
                  _
                $region60: #{cen_cnn_forward.5} parent=54 // loop_footer
                  %s226 = sadd.s32 1, %s222
                $region61: #{cen_cnn_forward.5} parent=54 // loop_footer_branch
                  %221 = sbr.rel target = $region57
                $region62: #{cen_cnn_forward.5} parent=54 // loop_exit
                  _
                loop: start=0, step=1, limit=1
                $region63: #{cen_cnn_forward.5} parent=54 // loop_pre_header
                  _
                $region64: #{cen_cnn_forward.5} parent=54 // loop_header
                  %s231 = sphi 0, %s235
                  %p232 = scmp.ge.s32.totalorder %s231, 1
                  %s236 = sphi %s179, %s179
                  %s237 = sphi %s175, %s175
                $region65: #{cen_cnn_forward.5} parent=54 // loop_header_branch
                  %234 = sbr.rel (%p232) target = $region69
                $region66: #{cen_cnn_forward.5} parent=54 // loop_body
                  %v238 = vld [vmem:[%s236] sm:$0x3]
                  %239 = vst [vmem:[%s237] sm:$0x3] %v238
                  %v240 = vld [vmem:[%s236 + $0x2] sm:$0x3]
                  %241 = vst [vmem:[%s237 + $0x2] sm:$0x3] %v240
                  %v242 = vld [vmem:[%s236 + $0x4] sm:$0x3]
                  %243 = vst [vmem:[%s237 + $0x4] sm:$0x3] %v242
                  %v244 = vld [vmem:[%s236 + $0x6] sm:$0x3]
                  %245 = vst [vmem:[%s237 + $0x6] sm:$0x3] %v244
                  %v246 = vld [vmem:[%s236 + $0x80] sm:$0x3]
                  %247 = vst [vmem:[%s237 + $0x8] sm:$0x3] %v246
                  %v248 = vld [vmem:[%s236 + $0x82] sm:$0x3]
                  %249 = vst [vmem:[%s237 + $0xa] sm:$0x3] %v248
                  %v250 = vld [vmem:[%s236 + $0x84] sm:$0x3]
                  %251 = vst [vmem:[%s237 + $0xc] sm:$0x3] %v250
                  %v252 = vld [vmem:[%s236 + $0x86] sm:$0x3]
                  %253 = vst [vmem:[%s237 + $0xe] sm:$0x3] %v252
                  %v254 = vld [vmem:[%s236 + $0x100] sm:$0x3]
                  %255 = vst [vmem:[%s237 + $0x10] sm:$0x3] %v254
                  %v256 = vld [vmem:[%s236 + $0x102] sm:$0x3]
                  %257 = vst [vmem:[%s237 + $0x12] sm:$0x3] %v256
                  %v258 = vld [vmem:[%s236 + $0x104] sm:$0x3]
                  %259 = vst [vmem:[%s237 + $0x14] sm:$0x3] %v258
                  %v260 = vld [vmem:[%s236 + $0x106] sm:$0x3]
                  %261 = vst [vmem:[%s237 + $0x16] sm:$0x3] %v260
                $region67: #{cen_cnn_forward.5} parent=54 // loop_footer
                  %s235 = sadd.s32 1, %s231
                $region68: #{cen_cnn_forward.5} parent=54 // loop_footer_branch
                  %230 = sbr.rel target = $region64
                $region69: #{cen_cnn_forward.5} parent=54 // loop_exit
                  _
              $region55: #{cen_cnn_forward.5} parent=39 // pred_fallthru
                _
            $region40: #{cen_cnn_forward.5} parent=35 // pred_fallthru
              _
            // Predicated region
            $region41: #{cen_cnn_forward.5} parent=35 // pred_check
              _
            $region42: #{cen_cnn_forward.5} parent=35 // pred_check_branch
              %185 = sbr.rel (0) target = $region44
            $region43: #{cen_cnn_forward.5} parent=35 // pred_region
              loop: start=0, step=1, limit=1
              $region45: #{cen_cnn_forward.5} parent=43 // loop_pre_header
                _
              $region46: #{cen_cnn_forward.5} parent=43 // loop_header
                %s188 = sphi 0, %s192
                %p189 = scmp.ge.s32.totalorder %s188, 1
                %s193 = sphi %s179, %s179
                %s194 = sphi %s175, %s175
              $region47: #{cen_cnn_forward.5} parent=43 // loop_header_branch
                %191 = sbr.rel (%p189) target = $region51
              $region48: #{cen_cnn_forward.5} parent=43 // loop_body
                %v195 = vld [vmem:[%s193] sm:$0x3]
                %196 = vst [vmem:[%s194] sm:$0x3] %v195
                %v197 = vld [vmem:[%s193 + $0x2] sm:$0x3]
                %198 = vst [vmem:[%s194 + $0x2] sm:$0x3] %v197
                %v199 = vld [vmem:[%s193 + $0x4] sm:$0x3]
                %200 = vst [vmem:[%s194 + $0x4] sm:$0x3] %v199
                %v201 = vld [vmem:[%s193 + $0x6] sm:$0x3]
                %202 = vst [vmem:[%s194 + $0x6] sm:$0x3] %v201
                %v203 = vld [vmem:[%s193 + $0x80] sm:$0x3]
                %204 = vst [vmem:[%s194 + $0x8] sm:$0x3] %v203
                %v205 = vld [vmem:[%s193 + $0x82] sm:$0x3]
                %206 = vst [vmem:[%s194 + $0xa] sm:$0x3] %v205
                %v207 = vld [vmem:[%s193 + $0x84] sm:$0x3]
                %208 = vst [vmem:[%s194 + $0xc] sm:$0x3] %v207
                %v209 = vld [vmem:[%s193 + $0x86] sm:$0x3]
                %210 = vst [vmem:[%s194 + $0xe] sm:$0x3] %v209
                %v211 = vld [vmem:[%s193 + $0x100] sm:$0x3]
                %212 = vst [vmem:[%s194 + $0x10] sm:$0x3] %v211
                %v213 = vld [vmem:[%s193 + $0x102] sm:$0x3]
                %214 = vst [vmem:[%s194 + $0x12] sm:$0x3] %v213
                %v215 = vld [vmem:[%s193 + $0x104] sm:$0x3]
                %216 = vst [vmem:[%s194 + $0x14] sm:$0x3] %v215
                %v217 = vld [vmem:[%s193 + $0x106] sm:$0x3]
                %218 = vst [vmem:[%s194 + $0x16] sm:$0x3] %v217
              $region49: #{cen_cnn_forward.5} parent=43 // loop_footer
                %s192 = sadd.s32 1, %s188
              $region50: #{cen_cnn_forward.5} parent=43 // loop_footer_branch
                %187 = sbr.rel target = $region46
              $region51: #{cen_cnn_forward.5} parent=43 // loop_exit
                _
            $region44: #{cen_cnn_forward.5} parent=35 // pred_fallthru
              _
          $region36: #{cen_cnn_forward.5} parent=31 // pred_fallthru
            _
          %262 = vnop
        $region32: #{cen_cnn_forward.5} parent=27 // pred_fallthru
          _
      $region28: #{cen_cnn_forward.5} parent=5 // pred_fallthru
        _
      %p263 = scmp.le.s32.totalorder 1, %s10
      %p264 = scmp.lt.s32.totalorder %s10, 17
      %p265 = pnand %p263, %p264
      %p266 = pneg %p265
      // Predicated region
      $region70: #{cen_cnn_forward.5} parent=5 // pred_check
        _
      $region71: #{cen_cnn_forward.5} parent=5 // pred_check_branch
        %268 = sbr.rel (%p265) target = $region73
      $region72: #{cen_cnn_forward.5} parent=5 // pred_region
        %s269 = ssub.s32 %s10, 1
        %s270 = sand.u32 %s37, 1
        %s271 = sand.u32 %s37, 1
        %s272 = smul.addr %s271, 24
        %s273 = scalar_lea.vmem [#allocation2], %s272
        // Predicated region
        $region74: #{cen_cnn_forward.5} parent=72 // pred_check
          %p274 = pneg %p50
        $region75: #{cen_cnn_forward.5} parent=72 // pred_check_branch
          %276 = sbr.rel (%p274) target = $region77
        $region76: #{cen_cnn_forward.5} parent=72 // pred_region
          _
        $region77: #{cen_cnn_forward.5} parent=72 // pred_fallthru
          _
        %s277 = sand.u32 %s37, 1
        %s278 = sand.u32 %s37, 1
        %s279 = smul.addr %s278, 24
        %s280 = scalar_lea.vmem [#allocation2], %s279
        %p281 = pneg %p50
        %p282 = pneg %p47
        %p283 = pneg %p71
        %p284 = pneg %p68
        %p285 = pneg %p92
        %p286 = pneg %p89
        %p287 = pneg %p113
        %p288 = pneg %p110
        %p289 = pneg %p141
        %p290 = pneg %p138
        %s291 = sand.u32 %s128, 1
        %s292 = sand.u32 %s128, 1
        %s293 = smul.addr %s292, 48
        %s294 = scalar_lea.vmem [#allocation3], %s293
        %s295 = smul.u32 4, %s19
        %v296 = vld [vmem:[%s2] sm:$0xff]
        %v297 = vld [vmem:[%s2 + $0x8] sm:$0xff]
        %v298 = vld [vmem:[%s2 + $0x10] sm:$0xff]
        %v299 = vld [vmem:[%s2 + $0x18] sm:$0xff]
        %s300 = scalar_lea.vmem %s2, 32
        %v301 = vld [vmem:[%s300] sm:$0xff]
        %v302 = vld [vmem:[%s300 + $0x8] sm:$0xff]
        %v303 = vld [vmem:[%s300 + $0x10] sm:$0xff]
        %v304 = vld [vmem:[%s300 + $0x18] sm:$0xff]
        %s305 = scalar_lea.vmem %s2, 64
        %v306 = vld [vmem:[%s305] sm:$0xff]
        %v307 = vld [vmem:[%s305 + $0x8] sm:$0xff]
        %v308 = vld [vmem:[%s305 + $0x10] sm:$0xff]
        %v309 = vld [vmem:[%s305 + $0x18] sm:$0xff]
        %v310 = vld [vmem:[%s3] sm:$0xff]
        %v311 = vld [vmem:[%s3 + $0x8] sm:$0xff]
        %v312 = vld [vmem:[%s3 + $0x10] sm:$0xff]
        %v313 = vld [vmem:[%s3 + $0x18] sm:$0xff]
        %s314 = scalar_lea.vmem %s3, 32
        %v315 = vld [vmem:[%s314] sm:$0xff]
        %v316 = vld [vmem:[%s314 + $0x8] sm:$0xff]
        %v317 = vld [vmem:[%s314 + $0x10] sm:$0xff]
        %v318 = vld [vmem:[%s314 + $0x18] sm:$0xff]
        %s319 = scalar_lea.vmem %s3, 64
        %v320 = vld [vmem:[%s319] sm:$0xff]
        %v321 = vld [vmem:[%s319 + $0x8] sm:$0xff]
        %v322 = vld [vmem:[%s319 + $0x10] sm:$0xff]
        %v323 = vld [vmem:[%s319 + $0x18] sm:$0xff]
        %v324 = vsub.f32 1.0, %v310
        %v325 = vsub.f32 1.0, %v311
        %v326 = vsub.f32 1.0, %v312
        %v327 = vsub.f32 1.0, %v313
        %v328 = vsub.f32 1.0, %v315
        %v329 = vsub.f32 1.0, %v316
        %v330 = vsub.f32 1.0, %v317
        %v331 = vsub.f32 1.0, %v318
        %v332 = vsub.f32 1.0, %v320
        %v333 = vsub.f32 1.0, %v321
        %v334 = vsub.f32 1.0, %v322
        %v335 = vsub.f32 1.0, %v323
        %v336 = vld [vmem:[%s1] sm:$0xff]
        %v337 = vld [vmem:[%s1 + $0x8] sm:$0xff]
        %v338 = vld [vmem:[%s1 + $0x10] sm:$0xff]
        %v339 = vld [vmem:[%s1 + $0x18] sm:$0xff]
        %s340 = scalar_lea.vmem %s1, 32
        %v341 = vld [vmem:[%s340] sm:$0xff]
        %v342 = vld [vmem:[%s340 + $0x8] sm:$0xff]
        %v343 = vld [vmem:[%s340 + $0x10] sm:$0xff]
        %v344 = vld [vmem:[%s340 + $0x18] sm:$0xff]
        %s345 = scalar_lea.vmem %s1, 64
        %v346 = vld [vmem:[%s345] sm:$0xff]
        %v347 = vld [vmem:[%s345 + $0x8] sm:$0xff]
        %v348 = vld [vmem:[%s345 + $0x10] sm:$0xff]
        %v349 = vld [vmem:[%s345 + $0x18] sm:$0xff]
        %v350 = vld [vmem:[%s273] sm:$0x3]
        %v351 = vunpack.c.l.bf16 %v350
        %v352 = vlaneseq
        %v353 = vshrl.u32 %v352, 7
        %v354 = vsub.s32 0, %v353
        %v355 = vrot.slane %v351, %v354
        %357 = vset.pattern.permute.xlu0 0
        %358 = vperm.xlu0 %357, %v336
        %v359 = vpop.permute.xlu0 %358
        %362 = vset.pattern.permute.xlu0 0
        %363 = vperm.xlu0 %362, %v337
        %v364 = vpop.permute.xlu0 %363
        %367 = vset.pattern.permute.xlu0 0
        %368 = vperm.xlu0 %367, %v338
        %v369 = vpop.permute.xlu0 %368
        %372 = vset.pattern.permute.xlu0 0
        %373 = vperm.xlu0 %372, %v339
        %v374 = vpop.permute.xlu0 %373
        %v376 = vmul.f32 %v355, %v359
        %v377 = vmul.f32 %v355, %v364
        %v378 = vmul.f32 %v355, %v369
        %v379 = vmul.f32 %v355, %v374
        %v380 = vlaneseq
        %v381 = vshrl.u32 %v380, 7
        %v382 = vsub.s32 1, %v381
        %v383 = vrot.slane %v351, %v382
        %384 = vset.pattern.permute.xlu0 1
        %385 = vperm.xlu0 %384, %v336
        %v386 = vpop.permute.xlu0 %385
        %388 = vset.pattern.permute.xlu0 1
        %389 = vperm.xlu0 %388, %v337
        %v390 = vpop.permute.xlu0 %389
        %392 = vset.pattern.permute.xlu0 1
        %393 = vperm.xlu0 %392, %v338
        %v394 = vpop.permute.xlu0 %393
        %396 = vset.pattern.permute.xlu0 1
        %397 = vperm.xlu0 %396, %v339
        %v398 = vpop.permute.xlu0 %397
        %v400 = vmul.f32 %v383, %v386
        %v401 = vmul.f32 %v383, %v390
        %v402 = vmul.f32 %v383, %v394
        %v403 = vmul.f32 %v383, %v398
        %v404 = vadd.f32 %v376, %v400
        %v405 = vadd.f32 %v377, %v401
        %v406 = vadd.f32 %v378, %v402
        %v407 = vadd.f32 %v379, %v403
        %v408 = vlaneseq
        %v409 = vshrl.u32 %v408, 7
        %v410 = vsub.s32 2, %v409
        %v411 = vrot.slane %v351, %v410
        %412 = vset.pattern.permute.xlu0 2
        %413 = vperm.xlu0 %412, %v336
        %v414 = vpop.permute.xlu0 %413
        %416 = vset.pattern.permute.xlu0 2
        %417 = vperm.xlu0 %416, %v337
        %v418 = vpop.permute.xlu0 %417
        %420 = vset.pattern.permute.xlu0 2
        %421 = vperm.xlu0 %420, %v338
        %v422 = vpop.permute.xlu0 %421
        %424 = vset.pattern.permute.xlu0 2
        %425 = vperm.xlu0 %424, %v339
        %v426 = vpop.permute.xlu0 %425
        %v428 = vmul.f32 %v411, %v414
        %v429 = vmul.f32 %v411, %v418
        %v430 = vmul.f32 %v411, %v422
        %v431 = vmul.f32 %v411, %v426
        %v432 = vadd.f32 %v404, %v428
        %v433 = vadd.f32 %v405, %v429
        %v434 = vadd.f32 %v406, %v430
        %v435 = vadd.f32 %v407, %v431
        %437 = vset.pattern.permute.xlu0 0
        %438 = vperm.xlu0 %437, %v296
        %v439 = vpop.permute.xlu0 %438
        %442 = vset.pattern.permute.xlu0 0
        %443 = vperm.xlu0 %442, %v297
        %v444 = vpop.permute.xlu0 %443
        %447 = vset.pattern.permute.xlu0 0
        %448 = vperm.xlu0 %447, %v298
        %v449 = vpop.permute.xlu0 %448
        %452 = vset.pattern.permute.xlu0 0
        %453 = vperm.xlu0 %452, %v299
        %v454 = vpop.permute.xlu0 %453
        %v456 = vadd.f32 %v432, %v439
        %v457 = vadd.f32 %v433, %v444
        %v458 = vadd.f32 %v434, %v449
        %v459 = vadd.f32 %v435, %v454
        %s460 = scalar_lea.vmem %s273, 8 [#allocation2]
        %v461 = vld [vmem:[%s460] sm:$0x3]
        %v462 = vunpack.c.l.bf16 %v461
        %v463 = vlaneseq
        %v464 = vshrl.u32 %v463, 7
        %v465 = vsub.s32 0, %v464
        %v466 = vrot.slane %v462, %v465
        %468 = vset.pattern.permute.xlu0 0
        %469 = vperm.xlu0 %468, %v341
        %v470 = vpop.permute.xlu0 %469
        %473 = vset.pattern.permute.xlu0 0
        %474 = vperm.xlu0 %473, %v342
        %v475 = vpop.permute.xlu0 %474
        %478 = vset.pattern.permute.xlu0 0
        %479 = vperm.xlu0 %478, %v343
        %v480 = vpop.permute.xlu0 %479
        %483 = vset.pattern.permute.xlu0 0
        %484 = vperm.xlu0 %483, %v344
        %v485 = vpop.permute.xlu0 %484
        %v487 = vmul.f32 %v466, %v470
        %v488 = vmul.f32 %v466, %v475
        %v489 = vmul.f32 %v466, %v480
        %v490 = vmul.f32 %v466, %v485
        %v491 = vlaneseq
        %v492 = vshrl.u32 %v491, 7
        %v493 = vsub.s32 1, %v492
        %v494 = vrot.slane %v462, %v493
        %495 = vset.pattern.permute.xlu0 1
        %496 = vperm.xlu0 %495, %v341
        %v497 = vpop.permute.xlu0 %496
        %499 = vset.pattern.permute.xlu0 1
        %500 = vperm.xlu0 %499, %v342
        %v501 = vpop.permute.xlu0 %500
        %503 = vset.pattern.permute.xlu0 1
        %504 = vperm.xlu0 %503, %v343
        %v505 = vpop.permute.xlu0 %504
        %507 = vset.pattern.permute.xlu0 1
        %508 = vperm.xlu0 %507, %v344
        %v509 = vpop.permute.xlu0 %508
        %v511 = vmul.f32 %v494, %v497
        %v512 = vmul.f32 %v494, %v501
        %v513 = vmul.f32 %v494, %v505
        %v514 = vmul.f32 %v494, %v509
        %v515 = vadd.f32 %v487, %v511
        %v516 = vadd.f32 %v488, %v512
        %v517 = vadd.f32 %v489, %v513
        %v518 = vadd.f32 %v490, %v514
        %v519 = vlaneseq
        %v520 = vshrl.u32 %v519, 7
        %v521 = vsub.s32 2, %v520
        %v522 = vrot.slane %v462, %v521
        %523 = vset.pattern.permute.xlu0 2
        %524 = vperm.xlu0 %523, %v341
        %v525 = vpop.permute.xlu0 %524
        %527 = vset.pattern.permute.xlu0 2
        %528 = vperm.xlu0 %527, %v342
        %v529 = vpop.permute.xlu0 %528
        %531 = vset.pattern.permute.xlu0 2
        %532 = vperm.xlu0 %531, %v343
        %v533 = vpop.permute.xlu0 %532
        %535 = vset.pattern.permute.xlu0 2
        %536 = vperm.xlu0 %535, %v344
        %v537 = vpop.permute.xlu0 %536
        %v539 = vmul.f32 %v522, %v525
        %v540 = vmul.f32 %v522, %v529
        %v541 = vmul.f32 %v522, %v533
        %v542 = vmul.f32 %v522, %v537
        %v543 = vadd.f32 %v515, %v539
        %v544 = vadd.f32 %v516, %v540
        %v545 = vadd.f32 %v517, %v541
        %v546 = vadd.f32 %v518, %v542
        %548 = vset.pattern.permute.xlu0 0
        %549 = vperm.xlu0 %548, %v301
        %v550 = vpop.permute.xlu0 %549
        %553 = vset.pattern.permute.xlu0 0
        %554 = vperm.xlu0 %553, %v302
        %v555 = vpop.permute.xlu0 %554
        %558 = vset.pattern.permute.xlu0 0
        %559 = vperm.xlu0 %558, %v303
        %v560 = vpop.permute.xlu0 %559
        %563 = vset.pattern.permute.xlu0 0
        %564 = vperm.xlu0 %563, %v304
        %v565 = vpop.permute.xlu0 %564
        %v567 = vadd.f32 %v543, %v550
        %v568 = vadd.f32 %v544, %v555
        %v569 = vadd.f32 %v545, %v560
        %v570 = vadd.f32 %v546, %v565
        %s571 = scalar_lea.vmem %s273, 16 [#allocation2]
        %v572 = vld [vmem:[%s571] sm:$0x3]
        %v573 = vunpack.c.l.bf16 %v572
        %v574 = vlaneseq
        %v575 = vshrl.u32 %v574, 7
        %v576 = vsub.s32 0, %v575
        %v577 = vrot.slane %v573, %v576
        %579 = vset.pattern.permute.xlu0 0
        %580 = vperm.xlu0 %579, %v346
        %v581 = vpop.permute.xlu0 %580
        %584 = vset.pattern.permute.xlu0 0
        %585 = vperm.xlu0 %584, %v347
        %v586 = vpop.permute.xlu0 %585
        %589 = vset.pattern.permute.xlu0 0
        %590 = vperm.xlu0 %589, %v348
        %v591 = vpop.permute.xlu0 %590
        %594 = vset.pattern.permute.xlu0 0
        %595 = vperm.xlu0 %594, %v349
        %v596 = vpop.permute.xlu0 %595
        %v598 = vmul.f32 %v577, %v581
        %v599 = vmul.f32 %v577, %v586
        %v600 = vmul.f32 %v577, %v591
        %v601 = vmul.f32 %v577, %v596
        %v602 = vlaneseq
        %v603 = vshrl.u32 %v602, 7
        %v604 = vsub.s32 1, %v603
        %v605 = vrot.slane %v573, %v604
        %606 = vset.pattern.permute.xlu0 1
        %607 = vperm.xlu0 %606, %v346
        %v608 = vpop.permute.xlu0 %607
        %610 = vset.pattern.permute.xlu0 1
        %611 = vperm.xlu0 %610, %v347
        %v612 = vpop.permute.xlu0 %611
        %614 = vset.pattern.permute.xlu0 1
        %615 = vperm.xlu0 %614, %v348
        %v616 = vpop.permute.xlu0 %615
        %618 = vset.pattern.permute.xlu0 1
        %619 = vperm.xlu0 %618, %v349
        %v620 = vpop.permute.xlu0 %619
        %v622 = vmul.f32 %v605, %v608
        %v623 = vmul.f32 %v605, %v612
        %v624 = vmul.f32 %v605, %v616
        %v625 = vmul.f32 %v605, %v620
        %v626 = vadd.f32 %v598, %v622
        %v627 = vadd.f32 %v599, %v623
        %v628 = vadd.f32 %v600, %v624
        %v629 = vadd.f32 %v601, %v625
        %v630 = vlaneseq
        %v631 = vshrl.u32 %v630, 7
        %v632 = vsub.s32 2, %v631
        %v633 = vrot.slane %v573, %v632
        %634 = vset.pattern.permute.xlu0 2
        %635 = vperm.xlu0 %634, %v346
        %v636 = vpop.permute.xlu0 %635
        %638 = vset.pattern.permute.xlu0 2
        %639 = vperm.xlu0 %638, %v347
        %v640 = vpop.permute.xlu0 %639
        %642 = vset.pattern.permute.xlu0 2
        %643 = vperm.xlu0 %642, %v348
        %v644 = vpop.permute.xlu0 %643
        %646 = vset.pattern.permute.xlu0 2
        %647 = vperm.xlu0 %646, %v349
        %v648 = vpop.permute.xlu0 %647
        %v650 = vmul.f32 %v633, %v636
        %v651 = vmul.f32 %v633, %v640
        %v652 = vmul.f32 %v633, %v644
        %v653 = vmul.f32 %v633, %v648
        %v654 = vadd.f32 %v626, %v650
        %v655 = vadd.f32 %v627, %v651
        %v656 = vadd.f32 %v628, %v652
        %v657 = vadd.f32 %v629, %v653
        %659 = vset.pattern.permute.xlu0 0
        %660 = vperm.xlu0 %659, %v306
        %v661 = vpop.permute.xlu0 %660
        %664 = vset.pattern.permute.xlu0 0
        %665 = vperm.xlu0 %664, %v307
        %v666 = vpop.permute.xlu0 %665
        %669 = vset.pattern.permute.xlu0 0
        %670 = vperm.xlu0 %669, %v308
        %v671 = vpop.permute.xlu0 %670
        %674 = vset.pattern.permute.xlu0 0
        %675 = vperm.xlu0 %674, %v309
        %v676 = vpop.permute.xlu0 %675
        %v678 = vadd.f32 %v654, %v661
        %v679 = vadd.f32 %v655, %v666
        %v680 = vadd.f32 %v656, %v671
        %v681 = vadd.f32 %v657, %v676
        %v682 = vmax.f32 %v456, %v567
        %v683 = vmax.f32 %v457, %v568
        %v684 = vmax.f32 %v458, %v569
        %v685 = vmax.f32 %v459, %v570
        %v686 = vmax.f32 %v682, %v678
        %v687 = vmax.f32 %v683, %v679
        %v688 = vmax.f32 %v684, %v680
        %v689 = vmax.f32 %v685, %v681
        %691 = vset.pattern.permute.xlu0 0
        %692 = vperm.xlu0 %691, %v324
        %v693 = vpop.permute.xlu0 %692
        %696 = vset.pattern.permute.xlu0 0
        %697 = vperm.xlu0 %696, %v325
        %v698 = vpop.permute.xlu0 %697
        %701 = vset.pattern.permute.xlu0 0
        %702 = vperm.xlu0 %701, %v326
        %v703 = vpop.permute.xlu0 %702
        %706 = vset.pattern.permute.xlu0 0
        %707 = vperm.xlu0 %706, %v327
        %v708 = vpop.permute.xlu0 %707
        %v710 = vmul.f32 %v456, %v693
        %v711 = vmul.f32 %v457, %v698
        %v712 = vmul.f32 %v458, %v703
        %v713 = vmul.f32 %v459, %v708
        %715 = vset.pattern.permute.xlu0 0
        %716 = vperm.xlu0 %715, %v310
        %v717 = vpop.permute.xlu0 %716
        %720 = vset.pattern.permute.xlu0 0
        %721 = vperm.xlu0 %720, %v311
        %v722 = vpop.permute.xlu0 %721
        %725 = vset.pattern.permute.xlu0 0
        %726 = vperm.xlu0 %725, %v312
        %v727 = vpop.permute.xlu0 %726
        %730 = vset.pattern.permute.xlu0 0
        %731 = vperm.xlu0 %730, %v313
        %v732 = vpop.permute.xlu0 %731
        %v734 = vmul.f32 %v686, %v717
        %v735 = vmul.f32 %v687, %v722
        %v736 = vmul.f32 %v688, %v727
        %v737 = vmul.f32 %v689, %v732
        %v738 = vadd.f32 %v710, %v734
        %v739 = vadd.f32 %v711, %v735
        %v740 = vadd.f32 %v712, %v736
        %v741 = vadd.f32 %v713, %v737
        %743 = vset.pattern.permute.xlu0 0
        %744 = vperm.xlu0 %743, %v328
        %v745 = vpop.permute.xlu0 %744
        %748 = vset.pattern.permute.xlu0 0
        %749 = vperm.xlu0 %748, %v329
        %v750 = vpop.permute.xlu0 %749
        %753 = vset.pattern.permute.xlu0 0
        %754 = vperm.xlu0 %753, %v330
        %v755 = vpop.permute.xlu0 %754
        %758 = vset.pattern.permute.xlu0 0
        %759 = vperm.xlu0 %758, %v331
        %v760 = vpop.permute.xlu0 %759
        %v762 = vmul.f32 %v567, %v745
        %v763 = vmul.f32 %v568, %v750
        %v764 = vmul.f32 %v569, %v755
        %v765 = vmul.f32 %v570, %v760
        %767 = vset.pattern.permute.xlu0 0
        %768 = vperm.xlu0 %767, %v315
        %v769 = vpop.permute.xlu0 %768
        %772 = vset.pattern.permute.xlu0 0
        %773 = vperm.xlu0 %772, %v316
        %v774 = vpop.permute.xlu0 %773
        %777 = vset.pattern.permute.xlu0 0
        %778 = vperm.xlu0 %777, %v317
        %v779 = vpop.permute.xlu0 %778
        %782 = vset.pattern.permute.xlu0 0
        %783 = vperm.xlu0 %782, %v318
        %v784 = vpop.permute.xlu0 %783
        %v786 = vmul.f32 %v686, %v769
        %v787 = vmul.f32 %v687, %v774
        %v788 = vmul.f32 %v688, %v779
        %v789 = vmul.f32 %v689, %v784
        %v790 = vadd.f32 %v762, %v786
        %v791 = vadd.f32 %v763, %v787
        %v792 = vadd.f32 %v764, %v788
        %v793 = vadd.f32 %v765, %v789
        %795 = vset.pattern.permute.xlu0 0
        %796 = vperm.xlu0 %795, %v332
        %v797 = vpop.permute.xlu0 %796
        %800 = vset.pattern.permute.xlu0 0
        %801 = vperm.xlu0 %800, %v333
        %v802 = vpop.permute.xlu0 %801
        %805 = vset.pattern.permute.xlu0 0
        %806 = vperm.xlu0 %805, %v334
        %v807 = vpop.permute.xlu0 %806
        %810 = vset.pattern.permute.xlu0 0
        %811 = vperm.xlu0 %810, %v335
        %v812 = vpop.permute.xlu0 %811
        %v814 = vmul.f32 %v678, %v797
        %v815 = vmul.f32 %v679, %v802
        %v816 = vmul.f32 %v680, %v807
        %v817 = vmul.f32 %v681, %v812
        %819 = vset.pattern.permute.xlu0 0
        %820 = vperm.xlu0 %819, %v320
        %v821 = vpop.permute.xlu0 %820
        %824 = vset.pattern.permute.xlu0 0
        %825 = vperm.xlu0 %824, %v321
        %v826 = vpop.permute.xlu0 %825
        %829 = vset.pattern.permute.xlu0 0
        %830 = vperm.xlu0 %829, %v322
        %v831 = vpop.permute.xlu0 %830
        %834 = vset.pattern.permute.xlu0 0
        %835 = vperm.xlu0 %834, %v323
        %v836 = vpop.permute.xlu0 %835
        %v838 = vmul.f32 %v686, %v821
        %v839 = vmul.f32 %v687, %v826
        %v840 = vmul.f32 %v688, %v831
        %v841 = vmul.f32 %v689, %v836
        %v842 = vadd.f32 %v814, %v838
        %v843 = vadd.f32 %v815, %v839
        %v844 = vadd.f32 %v816, %v840
        %v845 = vadd.f32 %v817, %v841
        %s846 = scalar_lea.vmem %s273, 2 [#allocation2]
        %v847 = vld [vmem:[%s846] sm:$0x3]
        %v848 = vunpack.c.l.bf16 %v847
        %v849 = vlaneseq
        %v850 = vshrl.u32 %v849, 7
        %v851 = vsub.s32 0, %v850
        %v852 = vrot.slane %v848, %v851
        %v853 = vmul.f32 %v852, %v359
        %v854 = vmul.f32 %v852, %v364
        %v855 = vmul.f32 %v852, %v369
        %v856 = vmul.f32 %v852, %v374
        %v857 = vlaneseq
        %v858 = vshrl.u32 %v857, 7
        %v859 = vsub.s32 1, %v858
        %v860 = vrot.slane %v848, %v859
        %v861 = vmul.f32 %v860, %v386
        %v862 = vmul.f32 %v860, %v390
        %v863 = vmul.f32 %v860, %v394
        %v864 = vmul.f32 %v860, %v398
        %v865 = vadd.f32 %v853, %v861
        %v866 = vadd.f32 %v854, %v862
        %v867 = vadd.f32 %v855, %v863
        %v868 = vadd.f32 %v856, %v864
        %v869 = vlaneseq
        %v870 = vshrl.u32 %v869, 7
        %v871 = vsub.s32 2, %v870
        %v872 = vrot.slane %v848, %v871
        %v873 = vmul.f32 %v872, %v414
        %v874 = vmul.f32 %v872, %v418
        %v875 = vmul.f32 %v872, %v422
        %v876 = vmul.f32 %v872, %v426
        %v877 = vadd.f32 %v865, %v873
        %v878 = vadd.f32 %v866, %v874
        %v879 = vadd.f32 %v867, %v875
        %v880 = vadd.f32 %v868, %v876
        %v881 = vadd.f32 %v877, %v439
        %v882 = vadd.f32 %v878, %v444
        %v883 = vadd.f32 %v879, %v449
        %v884 = vadd.f32 %v880, %v454
        %s885 = scalar_lea.vmem %s273, 10 [#allocation2]
        %v886 = vld [vmem:[%s885] sm:$0x3]
        %v887 = vunpack.c.l.bf16 %v886
        %v888 = vlaneseq
        %v889 = vshrl.u32 %v888, 7
        %v890 = vsub.s32 0, %v889
        %v891 = vrot.slane %v887, %v890
        %v892 = vmul.f32 %v891, %v470
        %v893 = vmul.f32 %v891, %v475
        %v894 = vmul.f32 %v891, %v480
        %v895 = vmul.f32 %v891, %v485
        %v896 = vlaneseq
        %v897 = vshrl.u32 %v896, 7
        %v898 = vsub.s32 1, %v897
        %v899 = vrot.slane %v887, %v898
        %v900 = vmul.f32 %v899, %v497
        %v901 = vmul.f32 %v899, %v501
        %v902 = vmul.f32 %v899, %v505
        %v903 = vmul.f32 %v899, %v509
        %v904 = vadd.f32 %v892, %v900
        %v905 = vadd.f32 %v893, %v901
        %v906 = vadd.f32 %v894, %v902
        %v907 = vadd.f32 %v895, %v903
        %v908 = vlaneseq
        %v909 = vshrl.u32 %v908, 7
        %v910 = vsub.s32 2, %v909
        %v911 = vrot.slane %v887, %v910
        %v912 = vmul.f32 %v911, %v525
        %v913 = vmul.f32 %v911, %v529
        %v914 = vmul.f32 %v911, %v533
        %v915 = vmul.f32 %v911, %v537
        %v916 = vadd.f32 %v904, %v912
        %v917 = vadd.f32 %v905, %v913
        %v918 = vadd.f32 %v906, %v914
        %v919 = vadd.f32 %v907, %v915
        %v920 = vadd.f32 %v916, %v550
        %v921 = vadd.f32 %v917, %v555
        %v922 = vadd.f32 %v918, %v560
        %v923 = vadd.f32 %v919, %v565
        %s924 = scalar_lea.vmem %s273, 18 [#allocation2]
        %v925 = vld [vmem:[%s924] sm:$0x3]
        %v926 = vunpack.c.l.bf16 %v925
        %v927 = vlaneseq
        %v928 = vshrl.u32 %v927, 7
        %v929 = vsub.s32 0, %v928
        %v930 = vrot.slane %v926, %v929
        %v931 = vmul.f32 %v930, %v581
        %v932 = vmul.f32 %v930, %v586
        %v933 = vmul.f32 %v930, %v591
        %v934 = vmul.f32 %v930, %v596
        %v935 = vlaneseq
        %v936 = vshrl.u32 %v935, 7
        %v937 = vsub.s32 1, %v936
        %v938 = vrot.slane %v926, %v937
        %v939 = vmul.f32 %v938, %v608
        %v940 = vmul.f32 %v938, %v612
        %v941 = vmul.f32 %v938, %v616
        %v942 = vmul.f32 %v938, %v620
        %v943 = vadd.f32 %v931, %v939
        %v944 = vadd.f32 %v932, %v940
        %v945 = vadd.f32 %v933, %v941
        %v946 = vadd.f32 %v934, %v942
        %v947 = vlaneseq
        %v948 = vshrl.u32 %v947, 7
        %v949 = vsub.s32 2, %v948
        %v950 = vrot.slane %v926, %v949
        %v951 = vmul.f32 %v950, %v636
        %v952 = vmul.f32 %v950, %v640
        %v953 = vmul.f32 %v950, %v644
        %v954 = vmul.f32 %v950, %v648
        %v955 = vadd.f32 %v943, %v951
        %v956 = vadd.f32 %v944, %v952
        %v957 = vadd.f32 %v945, %v953
        %v958 = vadd.f32 %v946, %v954
        %v959 = vadd.f32 %v955, %v661
        %v960 = vadd.f32 %v956, %v666
        %v961 = vadd.f32 %v957, %v671
        %v962 = vadd.f32 %v958, %v676
        %v963 = vmax.f32 %v881, %v920
        %v964 = vmax.f32 %v882, %v921
        %v965 = vmax.f32 %v883, %v922
        %v966 = vmax.f32 %v884, %v923
        %v967 = vmax.f32 %v963, %v959
        %v968 = vmax.f32 %v964, %v960
        %v969 = vmax.f32 %v965, %v961
        %v970 = vmax.f32 %v966, %v962
        %v971 = vmul.f32 %v881, %v693
        %v972 = vmul.f32 %v882, %v698
        %v973 = vmul.f32 %v883, %v703
        %v974 = vmul.f32 %v884, %v708
        %v975 = vmul.f32 %v967, %v717
        %v976 = vmul.f32 %v968, %v722
        %v977 = vmul.f32 %v969, %v727
        %v978 = vmul.f32 %v970, %v732
        %v979 = vadd.f32 %v971, %v975
        %v980 = vadd.f32 %v972, %v976
        %v981 = vadd.f32 %v973, %v977
        %v982 = vadd.f32 %v974, %v978
        %v983 = vmul.f32 %v920, %v745
        %v984 = vmul.f32 %v921, %v750
        %v985 = vmul.f32 %v922, %v755
        %v986 = vmul.f32 %v923, %v760
        %v987 = vmul.f32 %v967, %v769
        %v988 = vmul.f32 %v968, %v774
        %v989 = vmul.f32 %v969, %v779
        %v990 = vmul.f32 %v970, %v784
        %v991 = vadd.f32 %v983, %v987
        %v992 = vadd.f32 %v984, %v988
        %v993 = vadd.f32 %v985, %v989
        %v994 = vadd.f32 %v986, %v990
        %v995 = vmul.f32 %v959, %v797
        %v996 = vmul.f32 %v960, %v802
        %v997 = vmul.f32 %v961, %v807
        %v998 = vmul.f32 %v962, %v812
        %v999 = vmul.f32 %v967, %v821
        %v1000 = vmul.f32 %v968, %v826
        %v1001 = vmul.f32 %v969, %v831
        %v1002 = vmul.f32 %v970, %v836
        %v1003 = vadd.f32 %v995, %v999
        %v1004 = vadd.f32 %v996, %v1000
        %v1005 = vadd.f32 %v997, %v1001
        %v1006 = vadd.f32 %v998, %v1002
        %v1007 = vmax.f32 %v738, %v979
        %v1008 = vmax.f32 %v739, %v980
        %v1009 = vmax.f32 %v740, %v981
        %v1010 = vmax.f32 %v741, %v982
        %v1011 = vmax.f32 %v790, %v991
        %v1012 = vmax.f32 %v791, %v992
        %v1013 = vmax.f32 %v792, %v993
        %v1014 = vmax.f32 %v793, %v994
        %v1015 = vmax.f32 %v842, %v1003
        %v1016 = vmax.f32 %v843, %v1004
        %v1017 = vmax.f32 %v844, %v1005
        %v1018 = vmax.f32 %v845, %v1006
        %s1019 = scalar_lea.vmem %s273, 4 [#allocation2]
        %v1020 = vld [vmem:[%s1019] sm:$0x3]
        %v1021 = vunpack.c.l.bf16 %v1020
        %v1022 = vlaneseq
        %v1023 = vshrl.u32 %v1022, 7
        %v1024 = vsub.s32 0, %v1023
        %v1025 = vrot.slane %v1021, %v1024
        %v1026 = vmul.f32 %v1025, %v359
        %v1027 = vmul.f32 %v1025, %v364
        %v1028 = vmul.f32 %v1025, %v369
        %v1029 = vmul.f32 %v1025, %v374
        %v1030 = vlaneseq
        %v1031 = vshrl.u32 %v1030, 7
        %v1032 = vsub.s32 1, %v1031
        %v1033 = vrot.slane %v1021, %v1032
        %v1034 = vmul.f32 %v1033, %v386
        %v1035 = vmul.f32 %v1033, %v390
        %v1036 = vmul.f32 %v1033, %v394
        %v1037 = vmul.f32 %v1033, %v398
        %v1038 = vadd.f32 %v1026, %v1034
        %v1039 = vadd.f32 %v1027, %v1035
        %v1040 = vadd.f32 %v1028, %v1036
        %v1041 = vadd.f32 %v1029, %v1037
        %v1042 = vlaneseq
        %v1043 = vshrl.u32 %v1042, 7
        %v1044 = vsub.s32 2, %v1043
        %v1045 = vrot.slane %v1021, %v1044
        %v1046 = vmul.f32 %v1045, %v414
        %v1047 = vmul.f32 %v1045, %v418
        %v1048 = vmul.f32 %v1045, %v422
        %v1049 = vmul.f32 %v1045, %v426
        %v1050 = vadd.f32 %v1038, %v1046
        %v1051 = vadd.f32 %v1039, %v1047
        %v1052 = vadd.f32 %v1040, %v1048
        %v1053 = vadd.f32 %v1041, %v1049
        %v1054 = vadd.f32 %v1050, %v439
        %v1055 = vadd.f32 %v1051, %v444
        %v1056 = vadd.f32 %v1052, %v449
        %v1057 = vadd.f32 %v1053, %v454
        %s1058 = scalar_lea.vmem %s273, 12 [#allocation2]
        %v1059 = vld [vmem:[%s1058] sm:$0x3]
        %v1060 = vunpack.c.l.bf16 %v1059
        %v1061 = vlaneseq
        %v1062 = vshrl.u32 %v1061, 7
        %v1063 = vsub.s32 0, %v1062
        %v1064 = vrot.slane %v1060, %v1063
        %v1065 = vmul.f32 %v1064, %v470
        %v1066 = vmul.f32 %v1064, %v475
        %v1067 = vmul.f32 %v1064, %v480
        %v1068 = vmul.f32 %v1064, %v485
        %v1069 = vlaneseq
        %v1070 = vshrl.u32 %v1069, 7
        %v1071 = vsub.s32 1, %v1070
        %v1072 = vrot.slane %v1060, %v1071
        %v1073 = vmul.f32 %v1072, %v497
        %v1074 = vmul.f32 %v1072, %v501
        %v1075 = vmul.f32 %v1072, %v505
        %v1076 = vmul.f32 %v1072, %v509
        %v1077 = vadd.f32 %v1065, %v1073
        %v1078 = vadd.f32 %v1066, %v1074
        %v1079 = vadd.f32 %v1067, %v1075
        %v1080 = vadd.f32 %v1068, %v1076
        %v1081 = vlaneseq
        %v1082 = vshrl.u32 %v1081, 7
        %v1083 = vsub.s32 2, %v1082
        %v1084 = vrot.slane %v1060, %v1083
        %v1085 = vmul.f32 %v1084, %v525
        %v1086 = vmul.f32 %v1084, %v529
        %v1087 = vmul.f32 %v1084, %v533
        %v1088 = vmul.f32 %v1084, %v537
        %v1089 = vadd.f32 %v1077, %v1085
        %v1090 = vadd.f32 %v1078, %v1086
        %v1091 = vadd.f32 %v1079, %v1087
        %v1092 = vadd.f32 %v1080, %v1088
        %v1093 = vadd.f32 %v1089, %v550
        %v1094 = vadd.f32 %v1090, %v555
        %v1095 = vadd.f32 %v1091, %v560
        %v1096 = vadd.f32 %v1092, %v565
        %s1097 = scalar_lea.vmem %s273, 20 [#allocation2]
        %v1098 = vld [vmem:[%s1097] sm:$0x3]
        %v1099 = vunpack.c.l.bf16 %v1098
        %v1100 = vlaneseq
        %v1101 = vshrl.u32 %v1100, 7
        %v1102 = vsub.s32 0, %v1101
        %v1103 = vrot.slane %v1099, %v1102
        %v1104 = vmul.f32 %v1103, %v581
        %v1105 = vmul.f32 %v1103, %v586
        %v1106 = vmul.f32 %v1103, %v591
        %v1107 = vmul.f32 %v1103, %v596
        %v1108 = vlaneseq
        %v1109 = vshrl.u32 %v1108, 7
        %v1110 = vsub.s32 1, %v1109
        %v1111 = vrot.slane %v1099, %v1110
        %v1112 = vmul.f32 %v1111, %v608
        %v1113 = vmul.f32 %v1111, %v612
        %v1114 = vmul.f32 %v1111, %v616
        %v1115 = vmul.f32 %v1111, %v620
        %v1116 = vadd.f32 %v1104, %v1112
        %v1117 = vadd.f32 %v1105, %v1113
        %v1118 = vadd.f32 %v1106, %v1114
        %v1119 = vadd.f32 %v1107, %v1115
        %v1120 = vlaneseq
        %v1121 = vshrl.u32 %v1120, 7
        %v1122 = vsub.s32 2, %v1121
        %v1123 = vrot.slane %v1099, %v1122
        %v1124 = vmul.f32 %v1123, %v636
        %v1125 = vmul.f32 %v1123, %v640
        %v1126 = vmul.f32 %v1123, %v644
        %v1127 = vmul.f32 %v1123, %v648
        %v1128 = vadd.f32 %v1116, %v1124
        %v1129 = vadd.f32 %v1117, %v1125
        %v1130 = vadd.f32 %v1118, %v1126
        %v1131 = vadd.f32 %v1119, %v1127
        %v1132 = vadd.f32 %v1128, %v661
        %v1133 = vadd.f32 %v1129, %v666
        %v1134 = vadd.f32 %v1130, %v671
        %v1135 = vadd.f32 %v1131, %v676
        %v1136 = vmax.f32 %v1054, %v1093
        %v1137 = vmax.f32 %v1055, %v1094
        %v1138 = vmax.f32 %v1056, %v1095
        %v1139 = vmax.f32 %v1057, %v1096
        %v1140 = vmax.f32 %v1136, %v1132
        %v1141 = vmax.f32 %v1137, %v1133
        %v1142 = vmax.f32 %v1138, %v1134
        %v1143 = vmax.f32 %v1139, %v1135
        %v1144 = vmul.f32 %v1054, %v693
        %v1145 = vmul.f32 %v1055, %v698
        %v1146 = vmul.f32 %v1056, %v703
        %v1147 = vmul.f32 %v1057, %v708
        %v1148 = vmul.f32 %v1140, %v717
        %v1149 = vmul.f32 %v1141, %v722
        %v1150 = vmul.f32 %v1142, %v727
        %v1151 = vmul.f32 %v1143, %v732
        %v1152 = vadd.f32 %v1144, %v1148
        %v1153 = vadd.f32 %v1145, %v1149
        %v1154 = vadd.f32 %v1146, %v1150
        %v1155 = vadd.f32 %v1147, %v1151
        %v1156 = vmul.f32 %v1093, %v745
        %v1157 = vmul.f32 %v1094, %v750
        %v1158 = vmul.f32 %v1095, %v755
        %v1159 = vmul.f32 %v1096, %v760
        %v1160 = vmul.f32 %v1140, %v769
        %v1161 = vmul.f32 %v1141, %v774
        %v1162 = vmul.f32 %v1142, %v779
        %v1163 = vmul.f32 %v1143, %v784
        %v1164 = vadd.f32 %v1156, %v1160
        %v1165 = vadd.f32 %v1157, %v1161
        %v1166 = vadd.f32 %v1158, %v1162
        %v1167 = vadd.f32 %v1159, %v1163
        %v1168 = vmul.f32 %v1132, %v797
        %v1169 = vmul.f32 %v1133, %v802
        %v1170 = vmul.f32 %v1134, %v807
        %v1171 = vmul.f32 %v1135, %v812
        %v1172 = vmul.f32 %v1140, %v821
        %v1173 = vmul.f32 %v1141, %v826
        %v1174 = vmul.f32 %v1142, %v831
        %v1175 = vmul.f32 %v1143, %v836
        %v1176 = vadd.f32 %v1168, %v1172
        %v1177 = vadd.f32 %v1169, %v1173
        %v1178 = vadd.f32 %v1170, %v1174
        %v1179 = vadd.f32 %v1171, %v1175
        %v1180 = vmax.f32 %v1007, %v1152
        %v1181 = vmax.f32 %v1008, %v1153
        %v1182 = vmax.f32 %v1009, %v1154
        %v1183 = vmax.f32 %v1010, %v1155
        %v1184 = vmax.f32 %v1011, %v1164
        %v1185 = vmax.f32 %v1012, %v1165
        %v1186 = vmax.f32 %v1013, %v1166
        %v1187 = vmax.f32 %v1014, %v1167
        %v1188 = vmax.f32 %v1015, %v1176
        %v1189 = vmax.f32 %v1016, %v1177
        %v1190 = vmax.f32 %v1017, %v1178
        %v1191 = vmax.f32 %v1018, %v1179
        %s1192 = scalar_lea.vmem %s273, 6 [#allocation2]
        %v1193 = vld [vmem:[%s1192] sm:$0x3]
        %v1194 = vunpack.c.l.bf16 %v1193
        %v1195 = vlaneseq
        %v1196 = vshrl.u32 %v1195, 7
        %v1197 = vsub.s32 0, %v1196
        %v1198 = vrot.slane %v1194, %v1197
        %v1199 = vmul.f32 %v1198, %v359
        %v1200 = vmul.f32 %v1198, %v364
        %v1201 = vmul.f32 %v1198, %v369
        %v1202 = vmul.f32 %v1198, %v374
        %v1203 = vlaneseq
        %v1204 = vshrl.u32 %v1203, 7
        %v1205 = vsub.s32 1, %v1204
        %v1206 = vrot.slane %v1194, %v1205
        %v1207 = vmul.f32 %v1206, %v386
        %v1208 = vmul.f32 %v1206, %v390
        %v1209 = vmul.f32 %v1206, %v394
        %v1210 = vmul.f32 %v1206, %v398
        %v1211 = vadd.f32 %v1199, %v1207
        %v1212 = vadd.f32 %v1200, %v1208
        %v1213 = vadd.f32 %v1201, %v1209
        %v1214 = vadd.f32 %v1202, %v1210
        %v1215 = vlaneseq
        %v1216 = vshrl.u32 %v1215, 7
        %v1217 = vsub.s32 2, %v1216
        %v1218 = vrot.slane %v1194, %v1217
        %v1219 = vmul.f32 %v1218, %v414
        %v1220 = vmul.f32 %v1218, %v418
        %v1221 = vmul.f32 %v1218, %v422
        %v1222 = vmul.f32 %v1218, %v426
        %v1223 = vadd.f32 %v1211, %v1219
        %v1224 = vadd.f32 %v1212, %v1220
        %v1225 = vadd.f32 %v1213, %v1221
        %v1226 = vadd.f32 %v1214, %v1222
        %v1227 = vadd.f32 %v1223, %v439
        %v1228 = vadd.f32 %v1224, %v444
        %v1229 = vadd.f32 %v1225, %v449
        %v1230 = vadd.f32 %v1226, %v454
        %s1231 = scalar_lea.vmem %s273, 14 [#allocation2]
        %v1232 = vld [vmem:[%s1231] sm:$0x3]
        %v1233 = vunpack.c.l.bf16 %v1232
        %v1234 = vlaneseq
        %v1235 = vshrl.u32 %v1234, 7
        %v1236 = vsub.s32 0, %v1235
        %v1237 = vrot.slane %v1233, %v1236
        %v1238 = vmul.f32 %v1237, %v470
        %v1239 = vmul.f32 %v1237, %v475
        %v1240 = vmul.f32 %v1237, %v480
        %v1241 = vmul.f32 %v1237, %v485
        %v1242 = vlaneseq
        %v1243 = vshrl.u32 %v1242, 7
        %v1244 = vsub.s32 1, %v1243
        %v1245 = vrot.slane %v1233, %v1244
        %v1246 = vmul.f32 %v1245, %v497
        %v1247 = vmul.f32 %v1245, %v501
        %v1248 = vmul.f32 %v1245, %v505
        %v1249 = vmul.f32 %v1245, %v509
        %v1250 = vadd.f32 %v1238, %v1246
        %v1251 = vadd.f32 %v1239, %v1247
        %v1252 = vadd.f32 %v1240, %v1248
        %v1253 = vadd.f32 %v1241, %v1249
        %v1254 = vlaneseq
        %v1255 = vshrl.u32 %v1254, 7
        %v1256 = vsub.s32 2, %v1255
        %v1257 = vrot.slane %v1233, %v1256
        %v1258 = vmul.f32 %v1257, %v525
        %v1259 = vmul.f32 %v1257, %v529
        %v1260 = vmul.f32 %v1257, %v533
        %v1261 = vmul.f32 %v1257, %v537
        %v1262 = vadd.f32 %v1250, %v1258
        %v1263 = vadd.f32 %v1251, %v1259
        %v1264 = vadd.f32 %v1252, %v1260
        %v1265 = vadd.f32 %v1253, %v1261
        %v1266 = vadd.f32 %v1262, %v550
        %v1267 = vadd.f32 %v1263, %v555
        %v1268 = vadd.f32 %v1264, %v560
        %v1269 = vadd.f32 %v1265, %v565
        %s1270 = scalar_lea.vmem %s273, 22 [#allocation2]
        %v1271 = vld [vmem:[%s1270] sm:$0x3]
        %v1272 = vunpack.c.l.bf16 %v1271
        %v1273 = vlaneseq
        %v1274 = vshrl.u32 %v1273, 7
        %v1275 = vsub.s32 0, %v1274
        %v1276 = vrot.slane %v1272, %v1275
        %v1277 = vmul.f32 %v1276, %v581
        %v1278 = vmul.f32 %v1276, %v586
        %v1279 = vmul.f32 %v1276, %v591
        %v1280 = vmul.f32 %v1276, %v596
        %v1281 = vlaneseq
        %v1282 = vshrl.u32 %v1281, 7
        %v1283 = vsub.s32 1, %v1282
        %v1284 = vrot.slane %v1272, %v1283
        %v1285 = vmul.f32 %v1284, %v608
        %v1286 = vmul.f32 %v1284, %v612
        %v1287 = vmul.f32 %v1284, %v616
        %v1288 = vmul.f32 %v1284, %v620
        %v1289 = vadd.f32 %v1277, %v1285
        %v1290 = vadd.f32 %v1278, %v1286
        %v1291 = vadd.f32 %v1279, %v1287
        %v1292 = vadd.f32 %v1280, %v1288
        %v1293 = vlaneseq
        %v1294 = vshrl.u32 %v1293, 7
        %v1295 = vsub.s32 2, %v1294
        %v1296 = vrot.slane %v1272, %v1295
        %v1297 = vmul.f32 %v1296, %v636
        %v1298 = vmul.f32 %v1296, %v640
        %v1299 = vmul.f32 %v1296, %v644
        %v1300 = vmul.f32 %v1296, %v648
        %v1301 = vadd.f32 %v1289, %v1297
        %v1302 = vadd.f32 %v1290, %v1298
        %v1303 = vadd.f32 %v1291, %v1299
        %v1304 = vadd.f32 %v1292, %v1300
        %v1305 = vadd.f32 %v1301, %v661
        %v1306 = vadd.f32 %v1302, %v666
        %v1307 = vadd.f32 %v1303, %v671
        %v1308 = vadd.f32 %v1304, %v676
        %v1309 = vmax.f32 %v1227, %v1266
        %v1310 = vmax.f32 %v1228, %v1267
        %v1311 = vmax.f32 %v1229, %v1268
        %v1312 = vmax.f32 %v1230, %v1269
        %v1313 = vmax.f32 %v1309, %v1305
        %v1314 = vmax.f32 %v1310, %v1306
        %v1315 = vmax.f32 %v1311, %v1307
        %v1316 = vmax.f32 %v1312, %v1308
        %v1317 = vmul.f32 %v1227, %v693
        %v1318 = vmul.f32 %v1228, %v698
        %v1319 = vmul.f32 %v1229, %v703
        %v1320 = vmul.f32 %v1230, %v708
        %v1321 = vmul.f32 %v1313, %v717
        %v1322 = vmul.f32 %v1314, %v722
        %v1323 = vmul.f32 %v1315, %v727
        %v1324 = vmul.f32 %v1316, %v732
        %v1325 = vadd.f32 %v1317, %v1321
        %v1326 = vadd.f32 %v1318, %v1322
        %v1327 = vadd.f32 %v1319, %v1323
        %v1328 = vadd.f32 %v1320, %v1324
        %v1329 = vmul.f32 %v1266, %v745
        %v1330 = vmul.f32 %v1267, %v750
        %v1331 = vmul.f32 %v1268, %v755
        %v1332 = vmul.f32 %v1269, %v760
        %v1333 = vmul.f32 %v1313, %v769
        %v1334 = vmul.f32 %v1314, %v774
        %v1335 = vmul.f32 %v1315, %v779
        %v1336 = vmul.f32 %v1316, %v784
        %v1337 = vadd.f32 %v1329, %v1333
        %v1338 = vadd.f32 %v1330, %v1334
        %v1339 = vadd.f32 %v1331, %v1335
        %v1340 = vadd.f32 %v1332, %v1336
        %v1341 = vmul.f32 %v1305, %v797
        %v1342 = vmul.f32 %v1306, %v802
        %v1343 = vmul.f32 %v1307, %v807
        %v1344 = vmul.f32 %v1308, %v812
        %v1345 = vmul.f32 %v1313, %v821
        %v1346 = vmul.f32 %v1314, %v826
        %v1347 = vmul.f32 %v1315, %v831
        %v1348 = vmul.f32 %v1316, %v836
        %v1349 = vadd.f32 %v1341, %v1345
        %v1350 = vadd.f32 %v1342, %v1346
        %v1351 = vadd.f32 %v1343, %v1347
        %v1352 = vadd.f32 %v1344, %v1348
        %v1353 = vmax.f32 %v1180, %v1325
        %v1354 = vmax.f32 %v1181, %v1326
        %v1355 = vmax.f32 %v1182, %v1327
        %v1356 = vmax.f32 %v1183, %v1328
        %v1357 = vmax.f32 %v1184, %v1337
        %v1358 = vmax.f32 %v1185, %v1338
        %v1359 = vmax.f32 %v1186, %v1339
        %v1360 = vmax.f32 %v1187, %v1340
        %v1361 = vmax.f32 %v1188, %v1349
        %v1362 = vmax.f32 %v1189, %v1350
        %v1363 = vmax.f32 %v1190, %v1351
        %v1364 = vmax.f32 %v1191, %v1352
        %v1365 = vmax.f32 %v1353, 0.0
        %v1366 = vmax.f32 %v1354, 0.0
        %v1367 = vmax.f32 %v1355, 0.0
        %v1368 = vmax.f32 %v1356, 0.0
        %v1369 = vpack.c.bf16 %v1366, %v1365
        %v1370 = vpack.c.bf16 %v1368, %v1367
        %v1373 = vunpack.c.l.b16 %v1369
        %v1374 = vunpack.c.h.b16 %v1369
        %v1375 = vunpack.c.l.b16 %v1370
        %v1376 = vunpack.c.h.b16 %v1370
        %v1377 = vpack.c.b16 %v1373, %v1373
        %v1378 = vpack.c.b16 %v1374, %v1374
        %v1379 = vpack.c.b16 %v1375, %v1375
        %v1380 = vpack.c.b16 %v1376, %v1376
        %vm1385 = vcmask 125952
        %1386 = vst.msk [vmem:[%s294] sm:$0xf] %vm1385, %v1377
        %1387 = vst.msk [vmem:[%s294 + $0x4] sm:$0xf] %vm1385, %v1378
        %1388 = vst.msk [vmem:[%s294 + $0x8] sm:$0xf] %vm1385, %v1379
        %1389 = vst.msk [vmem:[%s294 + $0xc] sm:$0xf] %vm1385, %v1380
        %v1390 = vmax.f32 %v1357, 0.0
        %v1391 = vmax.f32 %v1358, 0.0
        %v1392 = vmax.f32 %v1359, 0.0
        %v1393 = vmax.f32 %v1360, 0.0
        %v1394 = vpack.c.bf16 %v1391, %v1390
        %v1395 = vpack.c.bf16 %v1393, %v1392
        %v1398 = vunpack.c.l.b16 %v1394
        %v1399 = vunpack.c.h.b16 %v1394
        %v1400 = vunpack.c.l.b16 %v1395
        %v1401 = vunpack.c.h.b16 %v1395
        %v1402 = vpack.c.b16 %v1398, %v1398
        %v1403 = vpack.c.b16 %v1399, %v1399
        %v1404 = vpack.c.b16 %v1400, %v1400
        %v1405 = vpack.c.b16 %v1401, %v1401
        %s1410 = scalar_lea.vmem %s294, 16 [#allocation3]
        %1411 = vst.msk [vmem:[%s1410] sm:$0xf] %vm1385, %v1402
        %1412 = vst.msk [vmem:[%s1410 + $0x4] sm:$0xf] %vm1385, %v1403
        %1413 = vst.msk [vmem:[%s1410 + $0x8] sm:$0xf] %vm1385, %v1404
        %1414 = vst.msk [vmem:[%s1410 + $0xc] sm:$0xf] %vm1385, %v1405
        %v1415 = vmax.f32 %v1361, 0.0
        %v1416 = vmax.f32 %v1362, 0.0
        %v1417 = vmax.f32 %v1363, 0.0
        %v1418 = vmax.f32 %v1364, 0.0
        %v1419 = vpack.c.bf16 %v1416, %v1415
        %v1420 = vpack.c.bf16 %v1418, %v1417
        %v1423 = vunpack.c.l.b16 %v1419
        %v1424 = vunpack.c.h.b16 %v1419
        %v1425 = vunpack.c.l.b16 %v1420
        %v1426 = vunpack.c.h.b16 %v1420
        %v1427 = vpack.c.b16 %v1423, %v1423
        %v1428 = vpack.c.b16 %v1424, %v1424
        %v1429 = vpack.c.b16 %v1425, %v1425
        %v1430 = vpack.c.b16 %v1426, %v1426
        %s1435 = scalar_lea.vmem %s294, 32 [#allocation3]
        %1436 = vst.msk [vmem:[%s1435] sm:$0xf] %vm1385, %v1427
        %1437 = vst.msk [vmem:[%s1435 + $0x4] sm:$0xf] %vm1385, %v1428
        %1438 = vst.msk [vmem:[%s1435 + $0x8] sm:$0xf] %vm1385, %v1429
        %1439 = vst.msk [vmem:[%s1435 + $0xc] sm:$0xf] %vm1385, %v1430
        %s1440 = sand.u32 %s128, 1
        %s1441 = sand.u32 %s128, 1
        %s1442 = smul.addr %s1441, 48
        %s1443 = scalar_lea.vmem [#allocation3], %s1442
        // Predicated region
        $region78: #{cen_cnn_forward.5} parent=72 // pred_check
          %p1444 = pneg %p138
        $region79: #{cen_cnn_forward.5} parent=72 // pred_check_branch
          %1446 = sbr.rel (%p1444) target = $region81
        $region80: #{cen_cnn_forward.5} parent=72 // pred_region
          %s1447 = smul.addr %s19, 4
          %s1448 = sadd.s32 %s20, %s1447
          %s1449 = smul.addr %s1448, 4
          %s1450 = scalar_lea.vmem %s4, %s1449
          // Predicated region
          $region82: #{cen_cnn_forward.5} parent=80 // pred_check
            _
          $region83: #{cen_cnn_forward.5} parent=80 // pred_check_branch
            %1452 = sbr.rel (0) target = $region85
          $region84: #{cen_cnn_forward.5} parent=80 // pred_region
            // Predicated region
            $region86: #{cen_cnn_forward.5} parent=84 // pred_check
              _
            $region87: #{cen_cnn_forward.5} parent=84 // pred_check_branch
              %1454 = sbr.rel target = $region89
            $region88: #{cen_cnn_forward.5} parent=84 // pred_region
              // Predicated region
              $region101: #{cen_cnn_forward.5} parent=88 // pred_check
                _
              $region102: #{cen_cnn_forward.5} parent=88 // pred_check_branch
                %1491 = sbr.rel (0) target = $region104
              $region103: #{cen_cnn_forward.5} parent=88 // pred_region
                loop: start=0, step=1, limit=1
                $region105: #{cen_cnn_forward.5} parent=103 // loop_pre_header
                  _
                $region106: #{cen_cnn_forward.5} parent=103 // loop_header
                  %s1493 = sphi 0, %s1497
                  %p1494 = scmp.ge.s32.totalorder %s1493, 1
                  %s1498 = sphi %s1443, %s1443
                  %s1499 = sphi %s1450, %s1450
                $region107: #{cen_cnn_forward.5} parent=103 // loop_header_branch
                  %1496 = sbr.rel (%p1494) target = $region111
                $region108: #{cen_cnn_forward.5} parent=103 // loop_body
                  _
                $region109: #{cen_cnn_forward.5} parent=103 // loop_footer
                  %s1497 = sadd.s32 1, %s1493
                $region110: #{cen_cnn_forward.5} parent=103 // loop_footer_branch
                  %1492 = sbr.rel target = $region106
                $region111: #{cen_cnn_forward.5} parent=103 // loop_exit
                  _
                loop: start=0, step=1, limit=1
                $region112: #{cen_cnn_forward.5} parent=103 // loop_pre_header
                  _
                $region113: #{cen_cnn_forward.5} parent=103 // loop_header
                  %s1502 = sphi 0, %s1506
                  %p1503 = scmp.ge.s32.totalorder %s1502, 1
                  %s1507 = sphi %s1443, %s1443
                  %s1508 = sphi %s1450, %s1450
                $region114: #{cen_cnn_forward.5} parent=103 // loop_header_branch
                  %1505 = sbr.rel (%p1503) target = $region118
                $region115: #{cen_cnn_forward.5} parent=103 // loop_body
                  %v1509 = vld [vmem:[%s1507] sm:$0xf]
                  %1510 = vst [vmem:[%s1508] sm:$0xf] %v1509
                  %v1511 = vld [vmem:[%s1507 + $0x4] sm:$0xf]
                  %1512 = vst [vmem:[%s1508 + $0x4] sm:$0xf] %v1511
                  %v1513 = vld [vmem:[%s1507 + $0x8] sm:$0xf]
                  %1514 = vst [vmem:[%s1508 + $0x8] sm:$0xf] %v1513
                  %v1515 = vld [vmem:[%s1507 + $0xc] sm:$0xf]
                  %1516 = vst [vmem:[%s1508 + $0xc] sm:$0xf] %v1515
                  %v1517 = vld [vmem:[%s1507 + $0x10] sm:$0xf]
                  %1518 = vst [vmem:[%s1508 + $0x100] sm:$0xf] %v1517
                  %v1519 = vld [vmem:[%s1507 + $0x14] sm:$0xf]
                  %1520 = vst [vmem:[%s1508 + $0x104] sm:$0xf] %v1519
                  %v1521 = vld [vmem:[%s1507 + $0x18] sm:$0xf]
                  %1522 = vst [vmem:[%s1508 + $0x108] sm:$0xf] %v1521
                  %v1523 = vld [vmem:[%s1507 + $0x1c] sm:$0xf]
                  %1524 = vst [vmem:[%s1508 + $0x10c] sm:$0xf] %v1523
                  %v1525 = vld [vmem:[%s1507 + $0x20] sm:$0xf]
                  %1526 = vst [vmem:[%s1508 + $0x200] sm:$0xf] %v1525
                  %v1527 = vld [vmem:[%s1507 + $0x24] sm:$0xf]
                  %1528 = vst [vmem:[%s1508 + $0x204] sm:$0xf] %v1527
                  %v1529 = vld [vmem:[%s1507 + $0x28] sm:$0xf]
                  %1530 = vst [vmem:[%s1508 + $0x208] sm:$0xf] %v1529
                  %v1531 = vld [vmem:[%s1507 + $0x2c] sm:$0xf]
                  %1532 = vst [vmem:[%s1508 + $0x20c] sm:$0xf] %v1531
                $region116: #{cen_cnn_forward.5} parent=103 // loop_footer
                  %s1506 = sadd.s32 1, %s1502
                $region117: #{cen_cnn_forward.5} parent=103 // loop_footer_branch
                  %1501 = sbr.rel target = $region113
                $region118: #{cen_cnn_forward.5} parent=103 // loop_exit
                  _
              $region104: #{cen_cnn_forward.5} parent=88 // pred_fallthru
                _
            $region89: #{cen_cnn_forward.5} parent=84 // pred_fallthru
              _
            // Predicated region
            $region90: #{cen_cnn_forward.5} parent=84 // pred_check
              _
            $region91: #{cen_cnn_forward.5} parent=84 // pred_check_branch
              %1456 = sbr.rel (0) target = $region93
            $region92: #{cen_cnn_forward.5} parent=84 // pred_region
              loop: start=0, step=1, limit=1
              $region94: #{cen_cnn_forward.5} parent=92 // loop_pre_header
                _
              $region95: #{cen_cnn_forward.5} parent=92 // loop_header
                %s1459 = sphi 0, %s1463
                %p1460 = scmp.ge.s32.totalorder %s1459, 1
                %s1464 = sphi %s1443, %s1443
                %s1465 = sphi %s1450, %s1450
              $region96: #{cen_cnn_forward.5} parent=92 // loop_header_branch
                %1462 = sbr.rel (%p1460) target = $region100
              $region97: #{cen_cnn_forward.5} parent=92 // loop_body
                %v1466 = vld [vmem:[%s1464] sm:$0xf]
                %1467 = vst [vmem:[%s1465] sm:$0xf] %v1466
                %v1468 = vld [vmem:[%s1464 + $0x4] sm:$0xf]
                %1469 = vst [vmem:[%s1465 + $0x4] sm:$0xf] %v1468
                %v1470 = vld [vmem:[%s1464 + $0x8] sm:$0xf]
                %1471 = vst [vmem:[%s1465 + $0x8] sm:$0xf] %v1470
                %v1472 = vld [vmem:[%s1464 + $0xc] sm:$0xf]
                %1473 = vst [vmem:[%s1465 + $0xc] sm:$0xf] %v1472
                %v1474 = vld [vmem:[%s1464 + $0x10] sm:$0xf]
                %1475 = vst [vmem:[%s1465 + $0x100] sm:$0xf] %v1474
                %v1476 = vld [vmem:[%s1464 + $0x14] sm:$0xf]
                %1477 = vst [vmem:[%s1465 + $0x104] sm:$0xf] %v1476
                %v1478 = vld [vmem:[%s1464 + $0x18] sm:$0xf]
                %1479 = vst [vmem:[%s1465 + $0x108] sm:$0xf] %v1478
                %v1480 = vld [vmem:[%s1464 + $0x1c] sm:$0xf]
                %1481 = vst [vmem:[%s1465 + $0x10c] sm:$0xf] %v1480
                %v1482 = vld [vmem:[%s1464 + $0x20] sm:$0xf]
                %1483 = vst [vmem:[%s1465 + $0x200] sm:$0xf] %v1482
                %v1484 = vld [vmem:[%s1464 + $0x24] sm:$0xf]
                %1485 = vst [vmem:[%s1465 + $0x204] sm:$0xf] %v1484
                %v1486 = vld [vmem:[%s1464 + $0x28] sm:$0xf]
                %1487 = vst [vmem:[%s1465 + $0x208] sm:$0xf] %v1486
                %v1488 = vld [vmem:[%s1464 + $0x2c] sm:$0xf]
                %1489 = vst [vmem:[%s1465 + $0x20c] sm:$0xf] %v1488
              $region98: #{cen_cnn_forward.5} parent=92 // loop_footer
                %s1463 = sadd.s32 1, %s1459
              $region99: #{cen_cnn_forward.5} parent=92 // loop_footer_branch
                %1458 = sbr.rel target = $region95
              $region100: #{cen_cnn_forward.5} parent=92 // loop_exit
                _
            $region93: #{cen_cnn_forward.5} parent=84 // pred_fallthru
              _
          $region85: #{cen_cnn_forward.5} parent=80 // pred_fallthru
            _
          %1533 = vnop
        $region81: #{cen_cnn_forward.5} parent=72 // pred_fallthru
          _
      $region73: #{cen_cnn_forward.5} parent=5 // pred_fallthru
        _
      %p1534 = scmp.le.s32.totalorder 2, %s10
      // Predicated region
      $region119: #{cen_cnn_forward.5} parent=5 // pred_check
        %p1535 = pneg %p1534
      $region120: #{cen_cnn_forward.5} parent=5 // pred_check_branch
        %1537 = sbr.rel (%p1535) target = $region122
      $region121: #{cen_cnn_forward.5} parent=5 // pred_region
        %s1538 = ssub.s32 %s10, 2
        // Predicated region
        $region123: #{cen_cnn_forward.5} parent=121 // pred_check
          %p1539 = pneg %p144
        $region124: #{cen_cnn_forward.5} parent=121 // pred_check_branch
          %1541 = sbr.rel (%p1539) target = $region126
        $region125: #{cen_cnn_forward.5} parent=121 // pred_region
          %s1542 = sand.u32 %s129, 1
          %s1543 = sand.u32 %s129, 1
          %s1544 = smul.addr %s1543, 48
          %s1545 = scalar_lea.vmem [#allocation3], %s1544
        $region126: #{cen_cnn_forward.5} parent=121 // pred_fallthru
          _
      $region122: #{cen_cnn_forward.5} parent=5 // pred_fallthru
        _
    $region6: #{cen_cnn_forward.5} parent=1 // loop_footer
      %s14 = sadd.s32 1, %s10
    $region7: #{cen_cnn_forward.5} parent=1 // loop_footer_branch
      %9 = sbr.rel target = $region3
    $region8: #{cen_cnn_forward.5} parent=1 // loop_exit
      _

// kernel: cen_cnn_forward.6
$region0: #{cen_cnn_forward.6}
  #allocation0 [shape = 'u32[]', space=smem, size = 0x4, offset = 0x4, fixed_abs, tag = 'smem constant byte address 0x4 - core index']
  #allocation1 [shape = 'u32[144,128]{1,0:T(1,128)}', space=vmem, size = 0x12000, scoped, tag = 'internal scratch']
  %s0 = inlined_call_operand.vmem [shape: bf16[3,16,32,16], index: 0, kind: input, shape index: {}]
  %s1 = inlined_call_operand.vmem [shape: bf16[3,64,32], index: 1, kind: input, shape index: {}]
  %s2 = inlined_call_operand.vmem [shape: f32[3,64,1], index: 2, kind: input, shape index: {}]
  %s3 = inlined_call_operand.vmem [shape: f32[3,64,1], index: 3, kind: input, shape index: {}]
  %s4 = inlined_call_operand.vmem [shape: bf16[3,4,64,16], index: 4, kind: output, shape index: {}]
  %s5 = sld [smem:[#allocation0]]
  $region127: #{cen_cnn_forward.6} parent=0
    _
  %s7 = ssub.s32 1, %s5
  %s8 = scalar_select 0, %s7, %s5
  $region1: #{cen_cnn_forward.6} parent=0
    #allocation2 [shape = 'u8[196608]{0}', space=vmem, size = 0x30000, scoped, tag = 'input window, operand 0']
    #allocation3 [shape = 'u8[98304]{0}', space=vmem, size = 0x18000, scoped, tag = 'output window, operand 0']
    loop: start=0, step=1, limit=6
    $region2: #{cen_cnn_forward.6} parent=1 // loop_pre_header
      _
    $region3: #{cen_cnn_forward.6} parent=1 // loop_header
      %s10 = sphi 0, %s14
      %p11 = scmp.ge.s32.totalorder %s10, 6
      %s17 = sphi 0, %s29
      %s18 = sphi 0, %s25
      %s19 = sphi 0, %s17
      %s20 = sphi 0, %s18
      %s21 = sphi 0, %s19
      %s22 = sphi 0, %s20
      %s34 = sphi 0, %s36
      %s37 = sphi 0, %s34
      %s38 = sphi 0, %s37
      %s54 = sphi 0, %s38
      %s58 = sphi 0, %s58
      %s60 = sphi 0, %s58
      %s61 = sphi 0, %s60
      %s75 = sphi 0, %s61
      %s79 = sphi 0, %s79
      %s81 = sphi 0, %s79
      %s82 = sphi 0, %s81
      %s96 = sphi 0, %s82
      %s100 = sphi 0, %s100
      %s102 = sphi 0, %s100
      %s103 = sphi 0, %s102
      %s117 = sphi 0, %s103
      %s125 = sphi 0, %s127
      %s128 = sphi 0, %s125
      %s129 = sphi 0, %s128
      %s145 = sphi 0, %s129
    $region4: #{cen_cnn_forward.6} parent=1 // loop_header_branch
      %13 = sbr.rel (%p11) target = $region8
    $region5: #{cen_cnn_forward.6} parent=1 // loop_body
      %s15 = ssub.s32 %s10, 1
      %s16 = ssub.s32 %s10, 2
      %s23 = sadd.s32 1, %s18
      %p24 = scmp.ge.s32.totalorder %s23, 1
      %s25 = scalar_select %p24, 0, %s23
      %s26 = sadd.s32 1, %s17
      %s27 = scalar_select %p24, %s26, %s17
      %p28 = scmp.ge.s32.totalorder %s27, 4
      %s29 = scalar_select %p28, 0, %s27
      %s30 = ssub.s32 %s17, %s29
      %s31 = ssub.s32 %s18, %s25
      %s32 = sor.u32 %s30, %s31
      %p33 = scmp.eq.s32.totalorder %s32, 0
      %s35 = sadd.s32 %s34, 1
      %s36 = scalar_select %p33, %s34, %s35
      %p39 = pneg %p33
      %p40 = scmp.eq.s32.totalorder %s10, 3
      %p41 = por %p39, %p40
      %p42 = scmp.ne.s32.totalorder %s34, %s37
      %p43 = scmp.eq.s32.totalorder %s10, 0
      %p44 = por %p42, %p43
      %p45 = scmp.ne.s32.totalorder %s34, %s37
      %p46 = scmp.eq.s32.totalorder %s15, 3
      %p47 = por %p45, %p46
      %p48 = scmp.ne.s32.totalorder %s37, %s38
      %p49 = scmp.eq.s32.totalorder %s15, 0
      %p50 = por %p48, %p49
      %p51 = scmp.ne.s32.totalorder %s37, %s38
      %p52 = scmp.eq.s32.totalorder %s16, 3
      %p53 = por %p51, %p52
      %p55 = scmp.ne.s32.totalorder %s38, %s54
      %p56 = scmp.eq.s32.totalorder %s16, 0
      %p57 = por %p55, %p56
      %s59 = sadd.s32 %s58, 1
      %p62 = scmp.eq.s32.totalorder %s10, 3
      %p63 = scmp.ne.s32.totalorder %s58, %s60
      %p64 = scmp.eq.s32.totalorder %s10, 0
      %p65 = por %p63, %p64
      %p66 = scmp.ne.s32.totalorder %s58, %s60
      %p67 = scmp.eq.s32.totalorder %s15, 3
      %p68 = por %p66, %p67
      %p69 = scmp.ne.s32.totalorder %s60, %s61
      %p70 = scmp.eq.s32.totalorder %s15, 0
      %p71 = por %p69, %p70
      %p72 = scmp.ne.s32.totalorder %s60, %s61
      %p73 = scmp.eq.s32.totalorder %s16, 3
      %p74 = por %p72, %p73
      %p76 = scmp.ne.s32.totalorder %s61, %s75
      %p77 = scmp.eq.s32.totalorder %s16, 0
      %p78 = por %p76, %p77
      %s80 = sadd.s32 %s79, 1
      %p83 = scmp.eq.s32.totalorder %s10, 3
      %p84 = scmp.ne.s32.totalorder %s79, %s81
      %p85 = scmp.eq.s32.totalorder %s10, 0
      %p86 = por %p84, %p85
      %p87 = scmp.ne.s32.totalorder %s79, %s81
      %p88 = scmp.eq.s32.totalorder %s15, 3
      %p89 = por %p87, %p88
      %p90 = scmp.ne.s32.totalorder %s81, %s82
      %p91 = scmp.eq.s32.totalorder %s15, 0
      %p92 = por %p90, %p91
      %p93 = scmp.ne.s32.totalorder %s81, %s82
      %p94 = scmp.eq.s32.totalorder %s16, 3
      %p95 = por %p93, %p94
      %p97 = scmp.ne.s32.totalorder %s82, %s96
      %p98 = scmp.eq.s32.totalorder %s16, 0
      %p99 = por %p97, %p98
      %s101 = sadd.s32 %s100, 1
      %p104 = scmp.eq.s32.totalorder %s10, 3
      %p105 = scmp.ne.s32.totalorder %s100, %s102
      %p106 = scmp.eq.s32.totalorder %s10, 0
      %p107 = por %p105, %p106
      %p108 = scmp.ne.s32.totalorder %s100, %s102
      %p109 = scmp.eq.s32.totalorder %s15, 3
      %p110 = por %p108, %p109
      %p111 = scmp.ne.s32.totalorder %s102, %s103
      %p112 = scmp.eq.s32.totalorder %s15, 0
      %p113 = por %p111, %p112
      %p114 = scmp.ne.s32.totalorder %s102, %s103
      %p115 = scmp.eq.s32.totalorder %s16, 3
      %p116 = por %p114, %p115
      %p118 = scmp.ne.s32.totalorder %s103, %s117
      %p119 = scmp.eq.s32.totalorder %s16, 0
      %p120 = por %p118, %p119
      %s121 = ssub.s32 %s17, %s29
      %s122 = ssub.s32 %s18, %s25
      %s123 = sor.u32 %s121, %s122
      %p124 = scmp.eq.s32.totalorder %s123, 0
      %s126 = sadd.s32 %s125, 1
      %s127 = scalar_select %p124, %s125, %s126
      %p130 = pneg %p124
      %p131 = scmp.eq.s32.totalorder %s10, 3
      %p132 = por %p130, %p131
      %p133 = scmp.ne.s32.totalorder %s125, %s128
      %p134 = scmp.eq.s32.totalorder %s10, 0
      %p135 = por %p133, %p134
      %p136 = scmp.ne.s32.totalorder %s125, %s128
      %p137 = scmp.eq.s32.totalorder %s15, 3
      %p138 = por %p136, %p137
      %p139 = scmp.ne.s32.totalorder %s128, %s129
      %p140 = scmp.eq.s32.totalorder %s15, 0
      %p141 = por %p139, %p140
      %p142 = scmp.ne.s32.totalorder %s128, %s129
      %p143 = scmp.eq.s32.totalorder %s16, 3
      %p144 = por %p142, %p143
      %p146 = scmp.ne.s32.totalorder %s129, %s145
      %p147 = scmp.eq.s32.totalorder %s16, 0
      %p148 = por %p146, %p147
      %p149 = scmp.le.s32.totalorder 1, %s10
      %p150 = scmp.lt.s32.totalorder %s10, 5
      %p151 = pnand %p149, %p150
      %p152 = pneg %p151
      // Predicated region
      $region9: #{cen_cnn_forward.6} parent=5 // pred_check
        _
      $region10: #{cen_cnn_forward.6} parent=5 // pred_check_branch
        %154 = sbr.rel (%p151) target = $region12
      $region11: #{cen_cnn_forward.6} parent=5 // pred_region
        %s155 = ssub.s32 %s10, 1
        // Predicated region
        $region13: #{cen_cnn_forward.6} parent=11 // pred_check
          %p156 = pneg %p71
        $region14: #{cen_cnn_forward.6} parent=11 // pred_check_branch
          %158 = sbr.rel (%p156) target = $region16
        $region15: #{cen_cnn_forward.6} parent=11 // pred_region
          _
        $region16: #{cen_cnn_forward.6} parent=11 // pred_fallthru
          _
        // Predicated region
        $region17: #{cen_cnn_forward.6} parent=11 // pred_check
          %p159 = pneg %p92
        $region18: #{cen_cnn_forward.6} parent=11 // pred_check_branch
          %161 = sbr.rel (%p159) target = $region20
        $region19: #{cen_cnn_forward.6} parent=11 // pred_region
          _
        $region20: #{cen_cnn_forward.6} parent=11 // pred_fallthru
          _
        // Predicated region
        $region21: #{cen_cnn_forward.6} parent=11 // pred_check
          %p162 = pneg %p113
        $region22: #{cen_cnn_forward.6} parent=11 // pred_check_branch
          %164 = sbr.rel (%p162) target = $region24
        $region23: #{cen_cnn_forward.6} parent=11 // pred_region
          _
        $region24: #{cen_cnn_forward.6} parent=11 // pred_fallthru
          _
      $region12: #{cen_cnn_forward.6} parent=5 // pred_fallthru
        _
      %p165 = scmp.lt.s32.totalorder %s10, 4
      // Predicated region
      $region25: #{cen_cnn_forward.6} parent=5 // pred_check
        %p166 = pneg %p165
      $region26: #{cen_cnn_forward.6} parent=5 // pred_check_branch
        %168 = sbr.rel (%p166) target = $region28
      $region27: #{cen_cnn_forward.6} parent=5 // pred_region
        // Predicated region
        $region29: #{cen_cnn_forward.6} parent=27 // pred_check
          %p169 = pneg %p44
        $region30: #{cen_cnn_forward.6} parent=27 // pred_check_branch
          %171 = sbr.rel (%p169) target = $region32
        $region31: #{cen_cnn_forward.6} parent=27 // pred_region
          %s172 = sand.u32 %s34, 1
          %s173 = sand.u32 %s34, 1
          %s174 = smul.addr %s173, 192
          %s175 = scalar_lea.vmem [#allocation2], %s174
          %s176 = smul.u32 4, %s17
          %s177 = smul.addr %s176, 4
          %s178 = sadd.s32 %s18, %s177
          %s179 = smul.addr %s178, 4
          %s180 = scalar_lea.vmem %s0, %s179
          // Predicated region
          $region33: #{cen_cnn_forward.6} parent=31 // pred_check
            _
          $region34: #{cen_cnn_forward.6} parent=31 // pred_check_branch
            %182 = sbr.rel (0) target = $region36
          $region35: #{cen_cnn_forward.6} parent=31 // pred_region
            // Predicated region
            $region37: #{cen_cnn_forward.6} parent=35 // pred_check
              _
            $region38: #{cen_cnn_forward.6} parent=35 // pred_check_branch
              %184 = sbr.rel target = $region40
            $region39: #{cen_cnn_forward.6} parent=35 // pred_region
              // Predicated region
              $region52: #{cen_cnn_forward.6} parent=39 // pred_check
                _
              $region53: #{cen_cnn_forward.6} parent=39 // pred_check_branch
                %293 = sbr.rel (0) target = $region55
              $region54: #{cen_cnn_forward.6} parent=39 // pred_region
                loop: start=0, step=1, limit=1
                $region56: #{cen_cnn_forward.6} parent=54 // loop_pre_header
                  _
                $region57: #{cen_cnn_forward.6} parent=54 // loop_header
                  %s295 = sphi 0, %s299
                  %p296 = scmp.ge.s32.totalorder %s295, 1
                  %s300 = sphi %s180, %s180
                  %s301 = sphi %s175, %s175
                $region58: #{cen_cnn_forward.6} parent=54 // loop_header_branch
                  %298 = sbr.rel (%p296) target = $region62
                $region59: #{cen_cnn_forward.6} parent=54 // loop_body
                  _
                $region60: #{cen_cnn_forward.6} parent=54 // loop_footer
                  %s299 = sadd.s32 1, %s295
                $region61: #{cen_cnn_forward.6} parent=54 // loop_footer_branch
                  %294 = sbr.rel target = $region57
                $region62: #{cen_cnn_forward.6} parent=54 // loop_exit
                  _
                loop: start=0, step=1, limit=1
                $region63: #{cen_cnn_forward.6} parent=54 // loop_pre_header
                  _
                $region64: #{cen_cnn_forward.6} parent=54 // loop_header
                  %s304 = sphi 0, %s308
                  %p305 = scmp.ge.s32.totalorder %s304, 1
                  %s309 = sphi %s180, %s180
                  %s310 = sphi %s175, %s175
                $region65: #{cen_cnn_forward.6} parent=54 // loop_header_branch
                  %307 = sbr.rel (%p305) target = $region69
                $region66: #{cen_cnn_forward.6} parent=54 // loop_body
                  %v311 = vld [vmem:[%s309] sm:$0xf]
                  %312 = vst [vmem:[%s310] sm:$0xf] %v311
                  %v313 = vld [vmem:[%s309 + $0x4] sm:$0xf]
                  %314 = vst [vmem:[%s310 + $0x4] sm:$0xf] %v313
                  %v315 = vld [vmem:[%s309 + $0x8] sm:$0xf]
                  %316 = vst [vmem:[%s310 + $0x8] sm:$0xf] %v315
                  %v317 = vld [vmem:[%s309 + $0xc] sm:$0xf]
                  %318 = vst [vmem:[%s310 + $0xc] sm:$0xf] %v317
                  %v319 = vld [vmem:[%s309 + $0x10] sm:$0xf]
                  %320 = vst [vmem:[%s310 + $0x10] sm:$0xf] %v319
                  %v321 = vld [vmem:[%s309 + $0x14] sm:$0xf]
                  %322 = vst [vmem:[%s310 + $0x14] sm:$0xf] %v321
                  %v323 = vld [vmem:[%s309 + $0x18] sm:$0xf]
                  %324 = vst [vmem:[%s310 + $0x18] sm:$0xf] %v323
                  %v325 = vld [vmem:[%s309 + $0x1c] sm:$0xf]
                  %326 = vst [vmem:[%s310 + $0x1c] sm:$0xf] %v325
                  %v327 = vld [vmem:[%s309 + $0x20] sm:$0xf]
                  %328 = vst [vmem:[%s310 + $0x20] sm:$0xf] %v327
                  %v329 = vld [vmem:[%s309 + $0x24] sm:$0xf]
                  %330 = vst [vmem:[%s310 + $0x24] sm:$0xf] %v329
                  %v331 = vld [vmem:[%s309 + $0x28] sm:$0xf]
                  %332 = vst [vmem:[%s310 + $0x28] sm:$0xf] %v331
                  %v333 = vld [vmem:[%s309 + $0x2c] sm:$0xf]
                  %334 = vst [vmem:[%s310 + $0x2c] sm:$0xf] %v333
                  %v335 = vld [vmem:[%s309 + $0x30] sm:$0xf]
                  %336 = vst [vmem:[%s310 + $0x30] sm:$0xf] %v335
                  %v337 = vld [vmem:[%s309 + $0x34] sm:$0xf]
                  %338 = vst [vmem:[%s310 + $0x34] sm:$0xf] %v337
                  %v339 = vld [vmem:[%s309 + $0x38] sm:$0xf]
                  %340 = vst [vmem:[%s310 + $0x38] sm:$0xf] %v339
                  %v341 = vld [vmem:[%s309 + $0x3c] sm:$0xf]
                  %342 = vst [vmem:[%s310 + $0x3c] sm:$0xf] %v341
                  %v343 = vld [vmem:[%s309 + $0x100] sm:$0xf]
                  %344 = vst [vmem:[%s310 + $0x40] sm:$0xf] %v343
                  %v345 = vld [vmem:[%s309 + $0x104] sm:$0xf]
                  %346 = vst [vmem:[%s310 + $0x44] sm:$0xf] %v345
                  %v347 = vld [vmem:[%s309 + $0x108] sm:$0xf]
                  %348 = vst [vmem:[%s310 + $0x48] sm:$0xf] %v347
                  %v349 = vld [vmem:[%s309 + $0x10c] sm:$0xf]
                  %350 = vst [vmem:[%s310 + $0x4c] sm:$0xf] %v349
                  %v351 = vld [vmem:[%s309 + $0x110] sm:$0xf]
                  %352 = vst [vmem:[%s310 + $0x50] sm:$0xf] %v351
                  %v353 = vld [vmem:[%s309 + $0x114] sm:$0xf]
                  %354 = vst [vmem:[%s310 + $0x54] sm:$0xf] %v353
                  %v355 = vld [vmem:[%s309 + $0x118] sm:$0xf]
                  %356 = vst [vmem:[%s310 + $0x58] sm:$0xf] %v355
                  %v357 = vld [vmem:[%s309 + $0x11c] sm:$0xf]
                  %358 = vst [vmem:[%s310 + $0x5c] sm:$0xf] %v357
                  %v359 = vld [vmem:[%s309 + $0x120] sm:$0xf]
                  %360 = vst [vmem:[%s310 + $0x60] sm:$0xf] %v359
                  %v361 = vld [vmem:[%s309 + $0x124] sm:$0xf]
                  %362 = vst [vmem:[%s310 + $0x64] sm:$0xf] %v361
                  %v363 = vld [vmem:[%s309 + $0x128] sm:$0xf]
                  %364 = vst [vmem:[%s310 + $0x68] sm:$0xf] %v363
                  %v365 = vld [vmem:[%s309 + $0x12c] sm:$0xf]
                  %366 = vst [vmem:[%s310 + $0x6c] sm:$0xf] %v365
                  %v367 = vld [vmem:[%s309 + $0x130] sm:$0xf]
                  %368 = vst [vmem:[%s310 + $0x70] sm:$0xf] %v367
                  %v369 = vld [vmem:[%s309 + $0x134] sm:$0xf]
                  %370 = vst [vmem:[%s310 + $0x74] sm:$0xf] %v369
                  %v371 = vld [vmem:[%s309 + $0x138] sm:$0xf]
                  %372 = vst [vmem:[%s310 + $0x78] sm:$0xf] %v371
                  %v373 = vld [vmem:[%s309 + $0x13c] sm:$0xf]
                  %374 = vst [vmem:[%s310 + $0x7c] sm:$0xf] %v373
                  %v375 = vld [vmem:[%s309 + $0x200] sm:$0xf]
                  %376 = vst [vmem:[%s310 + $0x80] sm:$0xf] %v375
                  %v377 = vld [vmem:[%s309 + $0x204] sm:$0xf]
                  %378 = vst [vmem:[%s310 + $0x84] sm:$0xf] %v377
                  %v379 = vld [vmem:[%s309 + $0x208] sm:$0xf]
                  %380 = vst [vmem:[%s310 + $0x88] sm:$0xf] %v379
                  %v381 = vld [vmem:[%s309 + $0x20c] sm:$0xf]
                  %382 = vst [vmem:[%s310 + $0x8c] sm:$0xf] %v381
                  %v383 = vld [vmem:[%s309 + $0x210] sm:$0xf]
                  %384 = vst [vmem:[%s310 + $0x90] sm:$0xf] %v383
                  %v385 = vld [vmem:[%s309 + $0x214] sm:$0xf]
                  %386 = vst [vmem:[%s310 + $0x94] sm:$0xf] %v385
                  %v387 = vld [vmem:[%s309 + $0x218] sm:$0xf]
                  %388 = vst [vmem:[%s310 + $0x98] sm:$0xf] %v387
                  %v389 = vld [vmem:[%s309 + $0x21c] sm:$0xf]
                  %390 = vst [vmem:[%s310 + $0x9c] sm:$0xf] %v389
                  %v391 = vld [vmem:[%s309 + $0x220] sm:$0xf]
                  %392 = vst [vmem:[%s310 + $0xa0] sm:$0xf] %v391
                  %v393 = vld [vmem:[%s309 + $0x224] sm:$0xf]
                  %394 = vst [vmem:[%s310 + $0xa4] sm:$0xf] %v393
                  %v395 = vld [vmem:[%s309 + $0x228] sm:$0xf]
                  %396 = vst [vmem:[%s310 + $0xa8] sm:$0xf] %v395
                  %v397 = vld [vmem:[%s309 + $0x22c] sm:$0xf]
                  %398 = vst [vmem:[%s310 + $0xac] sm:$0xf] %v397
                  %v399 = vld [vmem:[%s309 + $0x230] sm:$0xf]
                  %400 = vst [vmem:[%s310 + $0xb0] sm:$0xf] %v399
                  %v401 = vld [vmem:[%s309 + $0x234] sm:$0xf]
                  %402 = vst [vmem:[%s310 + $0xb4] sm:$0xf] %v401
                  %v403 = vld [vmem:[%s309 + $0x238] sm:$0xf]
                  %404 = vst [vmem:[%s310 + $0xb8] sm:$0xf] %v403
                  %v405 = vld [vmem:[%s309 + $0x23c] sm:$0xf]
                  %406 = vst [vmem:[%s310 + $0xbc] sm:$0xf] %v405
                $region67: #{cen_cnn_forward.6} parent=54 // loop_footer
                  %s308 = sadd.s32 1, %s304
                $region68: #{cen_cnn_forward.6} parent=54 // loop_footer_branch
                  %303 = sbr.rel target = $region64
                $region69: #{cen_cnn_forward.6} parent=54 // loop_exit
                  _
              $region55: #{cen_cnn_forward.6} parent=39 // pred_fallthru
                _
            $region40: #{cen_cnn_forward.6} parent=35 // pred_fallthru
              _
            // Predicated region
            $region41: #{cen_cnn_forward.6} parent=35 // pred_check
              _
            $region42: #{cen_cnn_forward.6} parent=35 // pred_check_branch
              %186 = sbr.rel (0) target = $region44
            $region43: #{cen_cnn_forward.6} parent=35 // pred_region
              loop: start=0, step=1, limit=1
              $region45: #{cen_cnn_forward.6} parent=43 // loop_pre_header
                _
              $region46: #{cen_cnn_forward.6} parent=43 // loop_header
                %s189 = sphi 0, %s193
                %p190 = scmp.ge.s32.totalorder %s189, 1
                %s194 = sphi %s180, %s180
                %s195 = sphi %s175, %s175
              $region47: #{cen_cnn_forward.6} parent=43 // loop_header_branch
                %192 = sbr.rel (%p190) target = $region51
              $region48: #{cen_cnn_forward.6} parent=43 // loop_body
                %v196 = vld [vmem:[%s194] sm:$0xf]
                %197 = vst [vmem:[%s195] sm:$0xf] %v196
                %v198 = vld [vmem:[%s194 + $0x4] sm:$0xf]
                %199 = vst [vmem:[%s195 + $0x4] sm:$0xf] %v198
                %v200 = vld [vmem:[%s194 + $0x8] sm:$0xf]
                %201 = vst [vmem:[%s195 + $0x8] sm:$0xf] %v200
                %v202 = vld [vmem:[%s194 + $0xc] sm:$0xf]
                %203 = vst [vmem:[%s195 + $0xc] sm:$0xf] %v202
                %v204 = vld [vmem:[%s194 + $0x10] sm:$0xf]
                %205 = vst [vmem:[%s195 + $0x10] sm:$0xf] %v204
                %v206 = vld [vmem:[%s194 + $0x14] sm:$0xf]
                %207 = vst [vmem:[%s195 + $0x14] sm:$0xf] %v206
                %v208 = vld [vmem:[%s194 + $0x18] sm:$0xf]
                %209 = vst [vmem:[%s195 + $0x18] sm:$0xf] %v208
                %v210 = vld [vmem:[%s194 + $0x1c] sm:$0xf]
                %211 = vst [vmem:[%s195 + $0x1c] sm:$0xf] %v210
                %v212 = vld [vmem:[%s194 + $0x20] sm:$0xf]
                %213 = vst [vmem:[%s195 + $0x20] sm:$0xf] %v212
                %v214 = vld [vmem:[%s194 + $0x24] sm:$0xf]
                %215 = vst [vmem:[%s195 + $0x24] sm:$0xf] %v214
                %v216 = vld [vmem:[%s194 + $0x28] sm:$0xf]
                %217 = vst [vmem:[%s195 + $0x28] sm:$0xf] %v216
                %v218 = vld [vmem:[%s194 + $0x2c] sm:$0xf]
                %219 = vst [vmem:[%s195 + $0x2c] sm:$0xf] %v218
                %v220 = vld [vmem:[%s194 + $0x30] sm:$0xf]
                %221 = vst [vmem:[%s195 + $0x30] sm:$0xf] %v220
                %v222 = vld [vmem:[%s194 + $0x34] sm:$0xf]
                %223 = vst [vmem:[%s195 + $0x34] sm:$0xf] %v222
                %v224 = vld [vmem:[%s194 + $0x38] sm:$0xf]
                %225 = vst [vmem:[%s195 + $0x38] sm:$0xf] %v224
                %v226 = vld [vmem:[%s194 + $0x3c] sm:$0xf]
                %227 = vst [vmem:[%s195 + $0x3c] sm:$0xf] %v226
                %v228 = vld [vmem:[%s194 + $0x100] sm:$0xf]
                %229 = vst [vmem:[%s195 + $0x40] sm:$0xf] %v228
                %v230 = vld [vmem:[%s194 + $0x104] sm:$0xf]
                %231 = vst [vmem:[%s195 + $0x44] sm:$0xf] %v230
                %v232 = vld [vmem:[%s194 + $0x108] sm:$0xf]
                %233 = vst [vmem:[%s195 + $0x48] sm:$0xf] %v232
                %v234 = vld [vmem:[%s194 + $0x10c] sm:$0xf]
                %235 = vst [vmem:[%s195 + $0x4c] sm:$0xf] %v234
                %v236 = vld [vmem:[%s194 + $0x110] sm:$0xf]
                %237 = vst [vmem:[%s195 + $0x50] sm:$0xf] %v236
                %v238 = vld [vmem:[%s194 + $0x114] sm:$0xf]
                %239 = vst [vmem:[%s195 + $0x54] sm:$0xf] %v238
                %v240 = vld [vmem:[%s194 + $0x118] sm:$0xf]
                %241 = vst [vmem:[%s195 + $0x58] sm:$0xf] %v240
                %v242 = vld [vmem:[%s194 + $0x11c] sm:$0xf]
                %243 = vst [vmem:[%s195 + $0x5c] sm:$0xf] %v242
                %v244 = vld [vmem:[%s194 + $0x120] sm:$0xf]
                %245 = vst [vmem:[%s195 + $0x60] sm:$0xf] %v244
                %v246 = vld [vmem:[%s194 + $0x124] sm:$0xf]
                %247 = vst [vmem:[%s195 + $0x64] sm:$0xf] %v246
                %v248 = vld [vmem:[%s194 + $0x128] sm:$0xf]
                %249 = vst [vmem:[%s195 + $0x68] sm:$0xf] %v248
                %v250 = vld [vmem:[%s194 + $0x12c] sm:$0xf]
                %251 = vst [vmem:[%s195 + $0x6c] sm:$0xf] %v250
                %v252 = vld [vmem:[%s194 + $0x130] sm:$0xf]
                %253 = vst [vmem:[%s195 + $0x70] sm:$0xf] %v252
                %v254 = vld [vmem:[%s194 + $0x134] sm:$0xf]
                %255 = vst [vmem:[%s195 + $0x74] sm:$0xf] %v254
                %v256 = vld [vmem:[%s194 + $0x138] sm:$0xf]
                %257 = vst [vmem:[%s195 + $0x78] sm:$0xf] %v256
                %v258 = vld [vmem:[%s194 + $0x13c] sm:$0xf]
                %259 = vst [vmem:[%s195 + $0x7c] sm:$0xf] %v258
                %v260 = vld [vmem:[%s194 + $0x200] sm:$0xf]
                %261 = vst [vmem:[%s195 + $0x80] sm:$0xf] %v260
                %v262 = vld [vmem:[%s194 + $0x204] sm:$0xf]
                %263 = vst [vmem:[%s195 + $0x84] sm:$0xf] %v262
                %v264 = vld [vmem:[%s194 + $0x208] sm:$0xf]
                %265 = vst [vmem:[%s195 + $0x88] sm:$0xf] %v264
                %v266 = vld [vmem:[%s194 + $0x20c] sm:$0xf]
                %267 = vst [vmem:[%s195 + $0x8c] sm:$0xf] %v266
                %v268 = vld [vmem:[%s194 + $0x210] sm:$0xf]
                %269 = vst [vmem:[%s195 + $0x90] sm:$0xf] %v268
                %v270 = vld [vmem:[%s194 + $0x214] sm:$0xf]
                %271 = vst [vmem:[%s195 + $0x94] sm:$0xf] %v270
                %v272 = vld [vmem:[%s194 + $0x218] sm:$0xf]
                %273 = vst [vmem:[%s195 + $0x98] sm:$0xf] %v272
                %v274 = vld [vmem:[%s194 + $0x21c] sm:$0xf]
                %275 = vst [vmem:[%s195 + $0x9c] sm:$0xf] %v274
                %v276 = vld [vmem:[%s194 + $0x220] sm:$0xf]
                %277 = vst [vmem:[%s195 + $0xa0] sm:$0xf] %v276
                %v278 = vld [vmem:[%s194 + $0x224] sm:$0xf]
                %279 = vst [vmem:[%s195 + $0xa4] sm:$0xf] %v278
                %v280 = vld [vmem:[%s194 + $0x228] sm:$0xf]
                %281 = vst [vmem:[%s195 + $0xa8] sm:$0xf] %v280
                %v282 = vld [vmem:[%s194 + $0x22c] sm:$0xf]
                %283 = vst [vmem:[%s195 + $0xac] sm:$0xf] %v282
                %v284 = vld [vmem:[%s194 + $0x230] sm:$0xf]
                %285 = vst [vmem:[%s195 + $0xb0] sm:$0xf] %v284
                %v286 = vld [vmem:[%s194 + $0x234] sm:$0xf]
                %287 = vst [vmem:[%s195 + $0xb4] sm:$0xf] %v286
                %v288 = vld [vmem:[%s194 + $0x238] sm:$0xf]
                %289 = vst [vmem:[%s195 + $0xb8] sm:$0xf] %v288
                %v290 = vld [vmem:[%s194 + $0x23c] sm:$0xf]
                %291 = vst [vmem:[%s195 + $0xbc] sm:$0xf] %v290
              $region49: #{cen_cnn_forward.6} parent=43 // loop_footer
                %s193 = sadd.s32 1, %s189
              $region50: #{cen_cnn_forward.6} parent=43 // loop_footer_branch
                %188 = sbr.rel target = $region46
              $region51: #{cen_cnn_forward.6} parent=43 // loop_exit
                _
            $region44: #{cen_cnn_forward.6} parent=35 // pred_fallthru
              _
          $region36: #{cen_cnn_forward.6} parent=31 // pred_fallthru
            _
          %407 = vnop
        $region32: #{cen_cnn_forward.6} parent=27 // pred_fallthru
          _
      $region28: #{cen_cnn_forward.6} parent=5 // pred_fallthru
        _
      %p408 = scmp.le.s32.totalorder 1, %s10
      %p409 = scmp.lt.s32.totalorder %s10, 5
      %p410 = pnand %p408, %p409
      %p411 = pneg %p410
      // Predicated region
      $region70: #{cen_cnn_forward.6} parent=5 // pred_check
        _
      $region71: #{cen_cnn_forward.6} parent=5 // pred_check_branch
        %413 = sbr.rel (%p410) target = $region73
      $region72: #{cen_cnn_forward.6} parent=5 // pred_region
        %s414 = ssub.s32 %s10, 1
        %s415 = sand.u32 %s37, 1
        %s416 = sand.u32 %s37, 1
        %s417 = smul.addr %s416, 192
        %s418 = scalar_lea.vmem [#allocation2], %s417
        // Predicated region
        $region74: #{cen_cnn_forward.6} parent=72 // pred_check
          %p419 = pneg %p50
        $region75: #{cen_cnn_forward.6} parent=72 // pred_check_branch
          %421 = sbr.rel (%p419) target = $region77
        $region76: #{cen_cnn_forward.6} parent=72 // pred_region
          _
        $region77: #{cen_cnn_forward.6} parent=72 // pred_fallthru
          _
        %s422 = sand.u32 %s37, 1
        %s423 = sand.u32 %s37, 1
        %s424 = smul.addr %s423, 192
        %s425 = scalar_lea.vmem [#allocation2], %s424
        %p426 = pneg %p50
        %p427 = pneg %p47
        %p428 = pneg %p71
        %p429 = pneg %p68
        %p430 = pneg %p92
        %p431 = pneg %p89
        %p432 = pneg %p113
        %p433 = pneg %p110
        %p434 = pneg %p141
        %p435 = pneg %p138
        %s436 = sand.u32 %s128, 1
        %s437 = sand.u32 %s128, 1
        %s438 = smul.addr %s437, 96
        %s439 = scalar_lea.vmem [#allocation3], %s438
        %s440 = smul.u32 4, %s19
        %v442 = vld [vmem:[%s2] sm:$0xff]
        %v443 = vld [vmem:[%s2 + $0x8] sm:$0xff]
        %v444 = vld [vmem:[%s2 + $0x10] sm:$0xff]
        %v445 = vld [vmem:[%s2 + $0x18] sm:$0xff]
        %v446 = vld [vmem:[%s2 + $0x20] sm:$0xff]
        %v447 = vld [vmem:[%s2 + $0x28] sm:$0xff]
        %v448 = vld [vmem:[%s2 + $0x30] sm:$0xff]
        %v449 = vld [vmem:[%s2 + $0x38] sm:$0xff]
        %s450 = scalar_lea.vmem %s2, 64
        %v451 = vld [vmem:[%s450] sm:$0xff]
        %v452 = vld [vmem:[%s450 + $0x8] sm:$0xff]
        %v453 = vld [vmem:[%s450 + $0x10] sm:$0xff]
        %v454 = vld [vmem:[%s450 + $0x18] sm:$0xff]
        %v455 = vld [vmem:[%s450 + $0x20] sm:$0xff]
        %v456 = vld [vmem:[%s450 + $0x28] sm:$0xff]
        %v457 = vld [vmem:[%s450 + $0x30] sm:$0xff]
        %v458 = vld [vmem:[%s450 + $0x38] sm:$0xff]
        %s459 = scalar_lea.vmem %s2, 128
        %v460 = vld [vmem:[%s459] sm:$0xff]
        %v461 = vld [vmem:[%s459 + $0x8] sm:$0xff]
        %v462 = vld [vmem:[%s459 + $0x10] sm:$0xff]
        %v463 = vld [vmem:[%s459 + $0x18] sm:$0xff]
        %v464 = vld [vmem:[%s459 + $0x20] sm:$0xff]
        %v465 = vld [vmem:[%s459 + $0x28] sm:$0xff]
        %v466 = vld [vmem:[%s459 + $0x30] sm:$0xff]
        %v467 = vld [vmem:[%s459 + $0x38] sm:$0xff]
        %v468 = vld [vmem:[%s3] sm:$0xff]
        %v469 = vld [vmem:[%s3 + $0x8] sm:$0xff]
        %v470 = vld [vmem:[%s3 + $0x10] sm:$0xff]
        %v471 = vld [vmem:[%s3 + $0x18] sm:$0xff]
        %v472 = vld [vmem:[%s3 + $0x20] sm:$0xff]
        %v473 = vld [vmem:[%s3 + $0x28] sm:$0xff]
        %v474 = vld [vmem:[%s3 + $0x30] sm:$0xff]
        %v475 = vld [vmem:[%s3 + $0x38] sm:$0xff]
        %s476 = scalar_lea.vmem %s3, 64
        %v477 = vld [vmem:[%s476] sm:$0xff]
        %v478 = vld [vmem:[%s476 + $0x8] sm:$0xff]
        %v479 = vld [vmem:[%s476 + $0x10] sm:$0xff]
        %v480 = vld [vmem:[%s476 + $0x18] sm:$0xff]
        %v481 = vld [vmem:[%s476 + $0x20] sm:$0xff]
        %v482 = vld [vmem:[%s476 + $0x28] sm:$0xff]
        %v483 = vld [vmem:[%s476 + $0x30] sm:$0xff]
        %v484 = vld [vmem:[%s476 + $0x38] sm:$0xff]
        %s485 = scalar_lea.vmem %s3, 128
        %v486 = vld [vmem:[%s485] sm:$0xff]
        %v487 = vld [vmem:[%s485 + $0x8] sm:$0xff]
        %v488 = vld [vmem:[%s485 + $0x10] sm:$0xff]
        %v489 = vld [vmem:[%s485 + $0x18] sm:$0xff]
        %v490 = vld [vmem:[%s485 + $0x20] sm:$0xff]
        %v491 = vld [vmem:[%s485 + $0x28] sm:$0xff]
        %v492 = vld [vmem:[%s485 + $0x30] sm:$0xff]
        %v493 = vld [vmem:[%s485 + $0x38] sm:$0xff]
        %v494 = vsub.f32 1.0, %v468
        %v495 = vsub.f32 1.0, %v469
        %v496 = vsub.f32 1.0, %v470
        %v497 = vsub.f32 1.0, %v471
        %v498 = vsub.f32 1.0, %v472
        %v499 = vsub.f32 1.0, %v473
        %v500 = vsub.f32 1.0, %v474
        %v501 = vsub.f32 1.0, %v475
        %v502 = vsub.f32 1.0, %v477
        %v503 = vsub.f32 1.0, %v478
        %v504 = vsub.f32 1.0, %v479
        %v505 = vsub.f32 1.0, %v480
        %v506 = vsub.f32 1.0, %v481
        %v507 = vsub.f32 1.0, %v482
        %v508 = vsub.f32 1.0, %v483
        %v509 = vsub.f32 1.0, %v484
        %v510 = vsub.f32 1.0, %v486
        %v511 = vsub.f32 1.0, %v487
        %v512 = vsub.f32 1.0, %v488
        %v513 = vsub.f32 1.0, %v489
        %v514 = vsub.f32 1.0, %v490
        %v515 = vsub.f32 1.0, %v491
        %v516 = vsub.f32 1.0, %v492
        %v517 = vsub.f32 1.0, %v493
        %v518 = vld [vmem:[%s1] sm:$0xf]
        %v519 = vld [vmem:[%s1 + $0x4] sm:$0xf]
        %v520 = vld [vmem:[%s1 + $0x8] sm:$0xf]
        %v521 = vld [vmem:[%s1 + $0xc] sm:$0xf]
        %v522 = vld [vmem:[%s1 + $0x10] sm:$0xf]
        %v523 = vld [vmem:[%s1 + $0x14] sm:$0xf]
        %v524 = vld [vmem:[%s1 + $0x18] sm:$0xf]
        %v525 = vld [vmem:[%s1 + $0x1c] sm:$0xf]
        %s526 = scalar_lea.vmem %s1, 32
        %v527 = vld [vmem:[%s526] sm:$0xf]
        %v528 = vld [vmem:[%s526 + $0x4] sm:$0xf]
        %v529 = vld [vmem:[%s526 + $0x8] sm:$0xf]
        %v530 = vld [vmem:[%s526 + $0xc] sm:$0xf]
        %v531 = vld [vmem:[%s526 + $0x10] sm:$0xf]
        %v532 = vld [vmem:[%s526 + $0x14] sm:$0xf]
        %v533 = vld [vmem:[%s526 + $0x18] sm:$0xf]
        %v534 = vld [vmem:[%s526 + $0x1c] sm:$0xf]
        %s535 = scalar_lea.vmem %s1, 64
        %v536 = vld [vmem:[%s535] sm:$0xf]
        %v537 = vld [vmem:[%s535 + $0x4] sm:$0xf]
        %v538 = vld [vmem:[%s535 + $0x8] sm:$0xf]
        %v539 = vld [vmem:[%s535 + $0xc] sm:$0xf]
        %v540 = vld [vmem:[%s535 + $0x10] sm:$0xf]
        %v541 = vld [vmem:[%s535 + $0x14] sm:$0xf]
        %v542 = vld [vmem:[%s535 + $0x18] sm:$0xf]
        %v543 = vld [vmem:[%s535 + $0x1c] sm:$0xf]
        %v544 = vld [vmem:[%s418] sm:$0xf]
        %v545 = vld [vmem:[%s418 + $0x4] sm:$0xf]
        %v546 = vld [vmem:[%s418 + $0x8] sm:$0xf]
        %v547 = vld [vmem:[%s418 + $0xc] sm:$0xf]
        %549 = vset.pattern.permute.xlu0 0
        %550 = vperm.xlu0 %549, %v442
        %v551 = vpop.permute.xlu0 %550
        %554 = vset.pattern.permute.xlu0 0
        %555 = vperm.xlu0 %554, %v443
        %v556 = vpop.permute.xlu0 %555
        %559 = vset.pattern.permute.xlu0 0
        %560 = vperm.xlu0 %559, %v444
        %v561 = vpop.permute.xlu0 %560
        %564 = vset.pattern.permute.xlu0 0
        %565 = vperm.xlu0 %564, %v445
        %v566 = vpop.permute.xlu0 %565
        %569 = vset.pattern.permute.xlu0 0
        %570 = vperm.xlu0 %569, %v446
        %v571 = vpop.permute.xlu0 %570
        %574 = vset.pattern.permute.xlu0 0
        %575 = vperm.xlu0 %574, %v447
        %v576 = vpop.permute.xlu0 %575
        %579 = vset.pattern.permute.xlu0 0
        %580 = vperm.xlu0 %579, %v448
        %v581 = vpop.permute.xlu0 %580
        %584 = vset.pattern.permute.xlu0 0
        %585 = vperm.xlu0 %584, %v449
        %v586 = vpop.permute.xlu0 %585
        %v596 = vunpack.c.l.b16 %v518
        %v597 = vunpack.c.l.b16 %v519
        %v598 = vunpack.c.l.b16 %v520
        %v599 = vunpack.c.l.b16 %v521
        %v600 = vunpack.c.l.b16 %v522
        %v601 = vunpack.c.l.b16 %v523
        %v602 = vunpack.c.l.b16 %v524
        %v603 = vunpack.c.l.b16 %v525
        %v604 = vpack.c.b16 %v597, %v596
        %v605 = vpack.c.b16 %v599, %v598
        %v606 = vpack.c.b16 %v601, %v600
        %v607 = vpack.c.b16 %v603, %v602
        %v612 = vunpack.c.l.b16 %v544
        %v613 = vunpack.c.l.b16 %v545
        %v614 = vunpack.c.l.b16 %v546
        %v615 = vunpack.c.l.b16 %v547
        %v616 = vpack.c.b16 %v613, %v612
        %v617 = vpack.c.b16 %v615, %v614
        %vm620 = vcmask 261120
        %v622 = vsel %vm620, %v604, 0
        %v625 = vsel %vm620, %v605, 0
        %v628 = vsel %vm620, %v606, 0
        %v631 = vsel %vm620, %v607, 0
        %633 = vmatprep.subr.bf16.mxu0 0
        %634 = vmatpush1.bf16.msra.mxu0 %v616
        %635 = vmatprep.subr.bf16.mxu0 0
        %636 = vmatpush1.bf16.msra.mxu0 %v617
        %637 = vmatprep.subr.bf16.mxu0 0
        %638 = vmatpush1.bf16.msra.mxu0 0
        %639 = vmatprep.subr.bf16.mxu0 0
        %640 = vmatpush1.bf16.msra.mxu0 0
        %641 = vmatprep.subr.bf16.mxu0 0
        %642 = vmatpush1.bf16.msra.mxu0 0
        %643 = vmatprep.subr.bf16.mxu0 0
        %644 = vmatpush1.bf16.msra.mxu0 0
        %645 = vmatprep.subr.bf16.mxu0 0
        %646 = vmatpush1.bf16.msra.mxu0 0
        %647 = vmatprep.subr.bf16.mxu0 0
        %648 = vmatpush1.bf16.msra.mxu0 0
        %649 = vmatprep.subr.bf16.mxu0 0
        %650 = vmatpush1.bf16.msra.mxu0 0
        %651 = vmatprep.subr.bf16.mxu0 0
        %652 = vmatpush1.bf16.msra.mxu0 0
        %653 = vmatprep.subr.bf16.mxu0 0
        %654 = vmatpush1.bf16.msra.mxu0 0
        %655 = vmatprep.subr.bf16.mxu0 0
        %656 = vmatpush1.bf16.msra.mxu0 0
        %657 = vmatprep.subr.bf16.mxu0 0
        %658 = vmatpush1.bf16.msra.mxu0 0
        %659 = vmatprep.subr.bf16.mxu0 0
        %660 = vmatpush1.bf16.msra.mxu0 0
        %661 = vmatprep.subr.bf16.mxu0 0
        %662 = vmatpush1.bf16.msra.mxu0 0
        %663 = vmatprep.subr.bf16.mxu0 0
        %664 = vmatpush1.bf16.msra.mxu0 0
        %665 = vmatprep.mubr.bf16.mxu0 0
        %666 = vmatmul.mubr.bf16.gmra.mrb[0].mxu0 %v622
        %v667 = vpop.f32.mrb[0].mxu0
        %v668 = vadd.f32 %v551, %v667
        %v669 = vpop.f32.mrb[0].mxu0
        %v670 = vpop.f32.mrb[0].mxu0
        %v671 = vadd.f32 %v556, %v670
        %v672 = vpop.f32.mrb[0].mxu0
        %673 = vmatprep.mubr.bf16.mxu0 0
        %674 = vmatmul.mubr.bf16.gmra.mrb[0].mxu0 %v625
        %v675 = vpop.f32.mrb[0].mxu0
        %v676 = vadd.f32 %v561, %v675
        %v677 = vpop.f32.mrb[0].mxu0
        %v678 = vpop.f32.mrb[0].mxu0
        %v679 = vadd.f32 %v566, %v678
        %v680 = vpop.f32.mrb[0].mxu0
        %681 = vmatprep.mubr.bf16.mxu0 0
        %682 = vmatmul.mubr.bf16.gmra.mrb[0].mxu0 %v628
        %v683 = vpop.f32.mrb[0].mxu0
        %v684 = vadd.f32 %v571, %v683
        %v685 = vpop.f32.mrb[0].mxu0
        %v686 = vpop.f32.mrb[0].mxu0
        %v687 = vadd.f32 %v576, %v686
        %v688 = vpop.f32.mrb[0].mxu0
        %689 = vmatprep.mubr.bf16.mxu0 0
        %690 = vmatmul.mubr.bf16.gmra.mrb[0].mxu0 %v631
        %v691 = vpop.f32.mrb[0].mxu0
        %v692 = vadd.f32 %v581, %v691
        %v693 = vpop.f32.mrb[0].mxu0
        %v694 = vpop.f32.mrb[0].mxu0
        %v695 = vadd.f32 %v586, %v694
        %v696 = vpop.f32.mrb[0].mxu0
        %697 = vdwg.mxu0
        %s698 = scalar_lea.vmem %s418, 64 [#allocation2]
        %v699 = vld [vmem:[%s698] sm:$0xf]
        %v700 = vld [vmem:[%s698 + $0x4] sm:$0xf]
        %v701 = vld [vmem:[%s698 + $0x8] sm:$0xf]
        %v702 = vld [vmem:[%s698 + $0xc] sm:$0xf]
        %704 = vset.pattern.permute.xlu0 0
        %705 = vperm.xlu0 %704, %v451
        %v706 = vpop.permute.xlu0 %705
        %709 = vset.pattern.permute.xlu0 0
        %710 = vperm.xlu0 %709, %v452
        %v711 = vpop.permute.xlu0 %710
        %714 = vset.pattern.permute.xlu0 0
        %715 = vperm.xlu0 %714, %v453
        %v716 = vpop.permute.xlu0 %715
        %719 = vset.pattern.permute.xlu0 0
        %720 = vperm.xlu0 %719, %v454
        %v721 = vpop.permute.xlu0 %720
        %724 = vset.pattern.permute.xlu0 0
        %725 = vperm.xlu0 %724, %v455
        %v726 = vpop.permute.xlu0 %725
        %729 = vset.pattern.permute.xlu0 0
        %730 = vperm.xlu0 %729, %v456
        %v731 = vpop.permute.xlu0 %730
        %734 = vset.pattern.permute.xlu0 0
        %735 = vperm.xlu0 %734, %v457
        %v736 = vpop.permute.xlu0 %735
        %739 = vset.pattern.permute.xlu0 0
        %740 = vperm.xlu0 %739, %v458
        %v741 = vpop.permute.xlu0 %740
        %v751 = vunpack.c.l.b16 %v527
        %v752 = vunpack.c.l.b16 %v528
        %v753 = vunpack.c.l.b16 %v529
        %v754 = vunpack.c.l.b16 %v530
        %v755 = vunpack.c.l.b16 %v531
        %v756 = vunpack.c.l.b16 %v532
        %v757 = vunpack.c.l.b16 %v533
        %v758 = vunpack.c.l.b16 %v534
        %v759 = vpack.c.b16 %v752, %v751
        %v760 = vpack.c.b16 %v754, %v753
        %v761 = vpack.c.b16 %v756, %v755
        %v762 = vpack.c.b16 %v758, %v757
        %v767 = vunpack.c.l.b16 %v699
        %v768 = vunpack.c.l.b16 %v700
        %v769 = vunpack.c.l.b16 %v701
        %v770 = vunpack.c.l.b16 %v702
        %v771 = vpack.c.b16 %v768, %v767
        %v772 = vpack.c.b16 %v770, %v769
        %v776 = vsel %vm620, %v759, 0
        %v779 = vsel %vm620, %v760, 0
        %v782 = vsel %vm620, %v761, 0
        %v785 = vsel %vm620, %v762, 0
        %787 = vmatprep.subr.bf16.mxu0 0
        %788 = vmatpush1.bf16.msra.mxu0 %v771
        %789 = vmatprep.subr.bf16.mxu0 0
        %790 = vmatpush1.bf16.msra.mxu0 %v772
        %791 = vmatprep.subr.bf16.mxu0 0
        %792 = vmatpush1.bf16.msra.mxu0 0
        %793 = vmatprep.subr.bf16.mxu0 0
        %794 = vmatpush1.bf16.msra.mxu0 0
        %795 = vmatprep.subr.bf16.mxu0 0
        %796 = vmatpush1.bf16.msra.mxu0 0
        %797 = vmatprep.subr.bf16.mxu0 0
        %798 = vmatpush1.bf16.msra.mxu0 0
        %799 = vmatprep.subr.bf16.mxu0 0
        %800 = vmatpush1.bf16.msra.mxu0 0
        %801 = vmatprep.subr.bf16.mxu0 0
        %802 = vmatpush1.bf16.msra.mxu0 0
        %803 = vmatprep.subr.bf16.mxu0 0
        %804 = vmatpush1.bf16.msra.mxu0 0
        %805 = vmatprep.subr.bf16.mxu0 0
        %806 = vmatpush1.bf16.msra.mxu0 0
        %807 = vmatprep.subr.bf16.mxu0 0
        %808 = vmatpush1.bf16.msra.mxu0 0
        %809 = vmatprep.subr.bf16.mxu0 0
        %810 = vmatpush1.bf16.msra.mxu0 0
        %811 = vmatprep.subr.bf16.mxu0 0
        %812 = vmatpush1.bf16.msra.mxu0 0
        %813 = vmatprep.subr.bf16.mxu0 0
        %814 = vmatpush1.bf16.msra.mxu0 0
        %815 = vmatprep.subr.bf16.mxu0 0
        %816 = vmatpush1.bf16.msra.mxu0 0
        %817 = vmatprep.subr.bf16.mxu0 0
        %818 = vmatpush1.bf16.msra.mxu0 0
        %819 = vmatprep.mubr.bf16.mxu0 0
        %820 = vmatmul.mubr.bf16.gmra.mrb[0].mxu0 %v776
        %v821 = vpop.f32.mrb[0].mxu0
        %v822 = vadd.f32 %v706, %v821
        %v823 = vpop.f32.mrb[0].mxu0
        %v824 = vpop.f32.mrb[0].mxu0
        %v825 = vadd.f32 %v711, %v824
        %v826 = vpop.f32.mrb[0].mxu0
        %827 = vmatprep.mubr.bf16.mxu0 0
        %828 = vmatmul.mubr.bf16.gmra.mrb[0].mxu0 %v779
        %v829 = vpop.f32.mrb[0].mxu0
        %v830 = vadd.f32 %v716, %v829
        %v831 = vpop.f32.mrb[0].mxu0
        %v832 = vpop.f32.mrb[0].mxu0
        %v833 = vadd.f32 %v721, %v832
        %v834 = vpop.f32.mrb[0].mxu0
        %835 = vmatprep.mubr.bf16.mxu0 0
        %836 = vmatmul.mubr.bf16.gmra.mrb[0].mxu0 %v782
        %v837 = vpop.f32.mrb[0].mxu0
        %v838 = vadd.f32 %v726, %v837
        %v839 = vpop.f32.mrb[0].mxu0
        %v840 = vpop.f32.mrb[0].mxu0
        %v841 = vadd.f32 %v731, %v840
        %v842 = vpop.f32.mrb[0].mxu0
        %843 = vmatprep.mubr.bf16.mxu0 0
        %844 = vmatmul.mubr.bf16.gmra.mrb[0].mxu0 %v785
        %v845 = vpop.f32.mrb[0].mxu0
        %v846 = vadd.f32 %v736, %v845
        %v847 = vpop.f32.mrb[0].mxu0
        %v848 = vpop.f32.mrb[0].mxu0
        %v849 = vadd.f32 %v741, %v848
        %v850 = vpop.f32.mrb[0].mxu0
        %851 = vdwg.mxu0
        %s852 = scalar_lea.vmem %s418, 128 [#allocation2]
        %v853 = vld [vmem:[%s852] sm:$0xf]
        %v854 = vld [vmem:[%s852 + $0x4] sm:$0xf]
        %v855 = vld [vmem:[%s852 + $0x8] sm:$0xf]
        %v856 = vld [vmem:[%s852 + $0xc] sm:$0xf]
        %858 = vset.pattern.permute.xlu0 0
        %859 = vperm.xlu0 %858, %v460
        %v860 = vpop.permute.xlu0 %859
        %863 = vset.pattern.permute.xlu0 0
        %864 = vperm.xlu0 %863, %v461
        %v865 = vpop.permute.xlu0 %864
        %868 = vset.pattern.permute.xlu0 0
        %869 = vperm.xlu0 %868, %v462
        %v870 = vpop.permute.xlu0 %869
        %873 = vset.pattern.permute.xlu0 0
        %874 = vperm.xlu0 %873, %v463
        %v875 = vpop.permute.xlu0 %874
        %878 = vset.pattern.permute.xlu0 0
        %879 = vperm.xlu0 %878, %v464
        %v880 = vpop.permute.xlu0 %879
        %883 = vset.pattern.permute.xlu0 0
        %884 = vperm.xlu0 %883, %v465
        %v885 = vpop.permute.xlu0 %884
        %888 = vset.pattern.permute.xlu0 0
        %889 = vperm.xlu0 %888, %v466
        %v890 = vpop.permute.xlu0 %889
        %893 = vset.pattern.permute.xlu0 0
        %894 = vperm.xlu0 %893, %v467
        %v895 = vpop.permute.xlu0 %894
        %v905 = vunpack.c.l.b16 %v536
        %v906 = vunpack.c.l.b16 %v537
        %v907 = vunpack.c.l.b16 %v538
        %v908 = vunpack.c.l.b16 %v539
        %v909 = vunpack.c.l.b16 %v540
        %v910 = vunpack.c.l.b16 %v541
        %v911 = vunpack.c.l.b16 %v542
        %v912 = vunpack.c.l.b16 %v543
        %v913 = vpack.c.b16 %v906, %v905
        %v914 = vpack.c.b16 %v908, %v907
        %v915 = vpack.c.b16 %v910, %v909
        %v916 = vpack.c.b16 %v912, %v911
        %v921 = vunpack.c.l.b16 %v853
        %v922 = vunpack.c.l.b16 %v854
        %v923 = vunpack.c.l.b16 %v855
        %v924 = vunpack.c.l.b16 %v856
        %v925 = vpack.c.b16 %v922, %v921
        %v926 = vpack.c.b16 %v924, %v923
        %v930 = vsel %vm620, %v913, 0
        %v933 = vsel %vm620, %v914, 0
        %v936 = vsel %vm620, %v915, 0
        %v939 = vsel %vm620, %v916, 0
        %941 = vmatprep.subr.bf16.mxu0 0
        %942 = vmatpush1.bf16.msra.mxu0 %v925
        %943 = vmatprep.subr.bf16.mxu0 0
        %944 = vmatpush1.bf16.msra.mxu0 %v926
        %945 = vmatprep.subr.bf16.mxu0 0
        %946 = vmatpush1.bf16.msra.mxu0 0
        %947 = vmatprep.subr.bf16.mxu0 0
        %948 = vmatpush1.bf16.msra.mxu0 0
        %949 = vmatprep.subr.bf16.mxu0 0
        %950 = vmatpush1.bf16.msra.mxu0 0
        %951 = vmatprep.subr.bf16.mxu0 0
        %952 = vmatpush1.bf16.msra.mxu0 0
        %953 = vmatprep.subr.bf16.mxu0 0
        %954 = vmatpush1.bf16.msra.mxu0 0
        %955 = vmatprep.subr.bf16.mxu0 0
        %956 = vmatpush1.bf16.msra.mxu0 0
        %957 = vmatprep.subr.bf16.mxu0 0
        %958 = vmatpush1.bf16.msra.mxu0 0
        %959 = vmatprep.subr.bf16.mxu0 0
        %960 = vmatpush1.bf16.msra.mxu0 0
        %961 = vmatprep.subr.bf16.mxu0 0
        %962 = vmatpush1.bf16.msra.mxu0 0
        %963 = vmatprep.subr.bf16.mxu0 0
        %964 = vmatpush1.bf16.msra.mxu0 0
        %965 = vmatprep.subr.bf16.mxu0 0
        %966 = vmatpush1.bf16.msra.mxu0 0
        %967 = vmatprep.subr.bf16.mxu0 0
        %968 = vmatpush1.bf16.msra.mxu0 0
        %969 = vmatprep.subr.bf16.mxu0 0
        %970 = vmatpush1.bf16.msra.mxu0 0
        %971 = vmatprep.subr.bf16.mxu0 0
        %972 = vmatpush1.bf16.msra.mxu0 0
        %973 = vmatprep.mubr.bf16.mxu0 0
        %974 = vmatmul.mubr.bf16.gmra.mrb[0].mxu0 %v930
        %v975 = vpop.f32.mrb[0].mxu0
        %v976 = vadd.f32 %v860, %v975
        %v977 = vpop.f32.mrb[0].mxu0
        %v978 = vpop.f32.mrb[0].mxu0
        %v979 = vadd.f32 %v865, %v978
        %v980 = vpop.f32.mrb[0].mxu0
        %981 = vmatprep.mubr.bf16.mxu0 0
        %982 = vmatmul.mubr.bf16.gmra.mrb[0].mxu0 %v933
        %v983 = vpop.f32.mrb[0].mxu0
        %v984 = vadd.f32 %v870, %v983
        %v985 = vpop.f32.mrb[0].mxu0
        %v986 = vpop.f32.mrb[0].mxu0
        %v987 = vadd.f32 %v875, %v986
        %v988 = vpop.f32.mrb[0].mxu0
        %989 = vmatprep.mubr.bf16.mxu0 0
        %990 = vmatmul.mubr.bf16.gmra.mrb[0].mxu0 %v936
        %v991 = vpop.f32.mrb[0].mxu0
        %v992 = vadd.f32 %v880, %v991
        %v993 = vpop.f32.mrb[0].mxu0
        %v994 = vpop.f32.mrb[0].mxu0
        %v995 = vadd.f32 %v885, %v994
        %v996 = vpop.f32.mrb[0].mxu0
        %997 = vmatprep.mubr.bf16.mxu0 0
        %998 = vmatmul.mubr.bf16.gmra.mrb[0].mxu0 %v939
        %v999 = vpop.f32.mrb[0].mxu0
        %v1000 = vadd.f32 %v890, %v999
        %v1001 = vpop.f32.mrb[0].mxu0
        %v1002 = vpop.f32.mrb[0].mxu0
        %v1003 = vadd.f32 %v895, %v1002
        %v1004 = vpop.f32.mrb[0].mxu0
        %1005 = vdwg.mxu0
        %v1006 = vmax.f32 %v668, %v822
        %v1007 = vmax.f32 %v671, %v825
        %v1008 = vmax.f32 %v676, %v830
        %v1009 = vmax.f32 %v679, %v833
        %v1010 = vmax.f32 %v684, %v838
        %v1011 = vmax.f32 %v687, %v841
        %v1012 = vmax.f32 %v692, %v846
        %v1013 = vmax.f32 %v695, %v849
        %v1014 = vmax.f32 %v1006, %v976
        %v1015 = vmax.f32 %v1007, %v979
        %v1016 = vmax.f32 %v1008, %v984
        %v1017 = vmax.f32 %v1009, %v987
        %v1018 = vmax.f32 %v1010, %v992
        %v1019 = vmax.f32 %v1011, %v995
        %v1020 = vmax.f32 %v1012, %v1000
        %v1021 = vmax.f32 %v1013, %v1003
        %1023 = vset.pattern.permute.xlu0 0
        %1024 = vperm.xlu0 %1023, %v494
        %v1025 = vpop.permute.xlu0 %1024
        %1028 = vset.pattern.permute.xlu0 0
        %1029 = vperm.xlu0 %1028, %v495
        %v1030 = vpop.permute.xlu0 %1029
        %1033 = vset.pattern.permute.xlu0 0
        %1034 = vperm.xlu0 %1033, %v496
        %v1035 = vpop.permute.xlu0 %1034
        %1038 = vset.pattern.permute.xlu0 0
        %1039 = vperm.xlu0 %1038, %v497
        %v1040 = vpop.permute.xlu0 %1039
        %1043 = vset.pattern.permute.xlu0 0
        %1044 = vperm.xlu0 %1043, %v498
        %v1045 = vpop.permute.xlu0 %1044
        %1048 = vset.pattern.permute.xlu0 0
        %1049 = vperm.xlu0 %1048, %v499
        %v1050 = vpop.permute.xlu0 %1049
        %1053 = vset.pattern.permute.xlu0 0
        %1054 = vperm.xlu0 %1053, %v500
        %v1055 = vpop.permute.xlu0 %1054
        %1058 = vset.pattern.permute.xlu0 0
        %1059 = vperm.xlu0 %1058, %v501
        %v1060 = vpop.permute.xlu0 %1059
        %v1062 = vmul.f32 %v668, %v1025
        %v1063 = vmul.f32 %v671, %v1030
        %v1064 = vmul.f32 %v676, %v1035
        %v1065 = vmul.f32 %v679, %v1040
        %v1066 = vmul.f32 %v684, %v1045
        %v1067 = vmul.f32 %v687, %v1050
        %v1068 = vmul.f32 %v692, %v1055
        %v1069 = vmul.f32 %v695, %v1060
        %1071 = vset.pattern.permute.xlu0 0
        %1072 = vperm.xlu0 %1071, %v468
        %v1073 = vpop.permute.xlu0 %1072
        %1076 = vset.pattern.permute.xlu0 0
        %1077 = vperm.xlu0 %1076, %v469
        %v1078 = vpop.permute.xlu0 %1077
        %1081 = vset.pattern.permute.xlu0 0
        %1082 = vperm.xlu0 %1081, %v470
        %v1083 = vpop.permute.xlu0 %1082
        %1086 = vset.pattern.permute.xlu0 0
        %1087 = vperm.xlu0 %1086, %v471
        %v1088 = vpop.permute.xlu0 %1087
        %1091 = vset.pattern.permute.xlu0 0
        %1092 = vperm.xlu0 %1091, %v472
        %v1093 = vpop.permute.xlu0 %1092
        %1096 = vset.pattern.permute.xlu0 0
        %1097 = vperm.xlu0 %1096, %v473
        %v1098 = vpop.permute.xlu0 %1097
        %1101 = vset.pattern.permute.xlu0 0
        %1102 = vperm.xlu0 %1101, %v474
        %v1103 = vpop.permute.xlu0 %1102
        %1106 = vset.pattern.permute.xlu0 0
        %1107 = vperm.xlu0 %1106, %v475
        %v1108 = vpop.permute.xlu0 %1107
        %v1110 = vmul.f32 %v1014, %v1073
        %v1111 = vmul.f32 %v1015, %v1078
        %v1112 = vmul.f32 %v1016, %v1083
        %v1113 = vmul.f32 %v1017, %v1088
        %v1114 = vmul.f32 %v1018, %v1093
        %v1115 = vmul.f32 %v1019, %v1098
        %v1116 = vmul.f32 %v1020, %v1103
        %v1117 = vmul.f32 %v1021, %v1108
        %v1118 = vadd.f32 %v1062, %v1110
        %v1119 = vadd.f32 %v1063, %v1111
        %v1120 = vadd.f32 %v1064, %v1112
        %v1121 = vadd.f32 %v1065, %v1113
        %v1122 = vadd.f32 %v1066, %v1114
        %v1123 = vadd.f32 %v1067, %v1115
        %v1124 = vadd.f32 %v1068, %v1116
        %v1125 = vadd.f32 %v1069, %v1117
        %1127 = vset.pattern.permute.xlu0 0
        %1128 = vperm.xlu0 %1127, %v502
        %v1129 = vpop.permute.xlu0 %1128
        %1132 = vset.pattern.permute.xlu0 0
        %1133 = vperm.xlu0 %1132, %v503
        %v1134 = vpop.permute.xlu0 %1133
        %1137 = vset.pattern.permute.xlu0 0
        %1138 = vperm.xlu0 %1137, %v504
        %v1139 = vpop.permute.xlu0 %1138
        %1142 = vset.pattern.permute.xlu0 0
        %1143 = vperm.xlu0 %1142, %v505
        %v1144 = vpop.permute.xlu0 %1143
        %1147 = vset.pattern.permute.xlu0 0
        %1148 = vperm.xlu0 %1147, %v506
        %v1149 = vpop.permute.xlu0 %1148
        %1152 = vset.pattern.permute.xlu0 0
        %1153 = vperm.xlu0 %1152, %v507
        %v1154 = vpop.permute.xlu0 %1153
        %1157 = vset.pattern.permute.xlu0 0
        %1158 = vperm.xlu0 %1157, %v508
        %v1159 = vpop.permute.xlu0 %1158
        %1162 = vset.pattern.permute.xlu0 0
        %1163 = vperm.xlu0 %1162, %v509
        %v1164 = vpop.permute.xlu0 %1163
        %v1166 = vmul.f32 %v822, %v1129
        %v1167 = vmul.f32 %v825, %v1134
        %v1168 = vmul.f32 %v830, %v1139
        %v1169 = vmul.f32 %v833, %v1144
        %v1170 = vmul.f32 %v838, %v1149
        %v1171 = vmul.f32 %v841, %v1154
        %v1172 = vmul.f32 %v846, %v1159
        %v1173 = vmul.f32 %v849, %v1164
        %1175 = vset.pattern.permute.xlu0 0
        %1176 = vperm.xlu0 %1175, %v477
        %v1177 = vpop.permute.xlu0 %1176
        %1180 = vset.pattern.permute.xlu0 0
        %1181 = vperm.xlu0 %1180, %v478
        %v1182 = vpop.permute.xlu0 %1181
        %1185 = vset.pattern.permute.xlu0 0
        %1186 = vperm.xlu0 %1185, %v479
        %v1187 = vpop.permute.xlu0 %1186
        %1190 = vset.pattern.permute.xlu0 0
        %1191 = vperm.xlu0 %1190, %v480
        %v1192 = vpop.permute.xlu0 %1191
        %1195 = vset.pattern.permute.xlu0 0
        %1196 = vperm.xlu0 %1195, %v481
        %v1197 = vpop.permute.xlu0 %1196
        %1200 = vset.pattern.permute.xlu0 0
        %1201 = vperm.xlu0 %1200, %v482
        %v1202 = vpop.permute.xlu0 %1201
        %1205 = vset.pattern.permute.xlu0 0
        %1206 = vperm.xlu0 %1205, %v483
        %v1207 = vpop.permute.xlu0 %1206
        %1210 = vset.pattern.permute.xlu0 0
        %1211 = vperm.xlu0 %1210, %v484
        %v1212 = vpop.permute.xlu0 %1211
        %v1214 = vmul.f32 %v1014, %v1177
        %v1215 = vmul.f32 %v1015, %v1182
        %v1216 = vmul.f32 %v1016, %v1187
        %v1217 = vmul.f32 %v1017, %v1192
        %v1218 = vmul.f32 %v1018, %v1197
        %v1219 = vmul.f32 %v1019, %v1202
        %v1220 = vmul.f32 %v1020, %v1207
        %v1221 = vmul.f32 %v1021, %v1212
        %v1222 = vadd.f32 %v1166, %v1214
        %v1223 = vadd.f32 %v1167, %v1215
        %v1224 = vadd.f32 %v1168, %v1216
        %v1225 = vadd.f32 %v1169, %v1217
        %v1226 = vadd.f32 %v1170, %v1218
        %v1227 = vadd.f32 %v1171, %v1219
        %v1228 = vadd.f32 %v1172, %v1220
        %v1229 = vadd.f32 %v1173, %v1221
        %1231 = vset.pattern.permute.xlu0 0
        %1232 = vperm.xlu0 %1231, %v510
        %v1233 = vpop.permute.xlu0 %1232
        %1236 = vset.pattern.permute.xlu0 0
        %1237 = vperm.xlu0 %1236, %v511
        %v1238 = vpop.permute.xlu0 %1237
        %1241 = vset.pattern.permute.xlu0 0
        %1242 = vperm.xlu0 %1241, %v512
        %v1243 = vpop.permute.xlu0 %1242
        %1246 = vset.pattern.permute.xlu0 0
        %1247 = vperm.xlu0 %1246, %v513
        %v1248 = vpop.permute.xlu0 %1247
        %1251 = vset.pattern.permute.xlu0 0
        %1252 = vperm.xlu0 %1251, %v514
        %v1253 = vpop.permute.xlu0 %1252
        %1256 = vset.pattern.permute.xlu0 0
        %1257 = vperm.xlu0 %1256, %v515
        %v1258 = vpop.permute.xlu0 %1257
        %1261 = vset.pattern.permute.xlu0 0
        %1262 = vperm.xlu0 %1261, %v516
        %v1263 = vpop.permute.xlu0 %1262
        %1266 = vset.pattern.permute.xlu0 0
        %1267 = vperm.xlu0 %1266, %v517
        %v1268 = vpop.permute.xlu0 %1267
        %v1270 = vmul.f32 %v976, %v1233
        %v1271 = vmul.f32 %v979, %v1238
        %v1272 = vmul.f32 %v984, %v1243
        %v1273 = vmul.f32 %v987, %v1248
        %v1274 = vmul.f32 %v992, %v1253
        %v1275 = vmul.f32 %v995, %v1258
        %v1276 = vmul.f32 %v1000, %v1263
        %v1277 = vmul.f32 %v1003, %v1268
        %1279 = vset.pattern.permute.xlu0 0
        %1280 = vperm.xlu0 %1279, %v486
        %v1281 = vpop.permute.xlu0 %1280
        %1284 = vset.pattern.permute.xlu0 0
        %1285 = vperm.xlu0 %1284, %v487
        %v1286 = vpop.permute.xlu0 %1285
        %1289 = vset.pattern.permute.xlu0 0
        %1290 = vperm.xlu0 %1289, %v488
        %v1291 = vpop.permute.xlu0 %1290
        %1294 = vset.pattern.permute.xlu0 0
        %1295 = vperm.xlu0 %1294, %v489
        %v1296 = vpop.permute.xlu0 %1295
        %1299 = vset.pattern.permute.xlu0 0
        %1300 = vperm.xlu0 %1299, %v490
        %v1301 = vpop.permute.xlu0 %1300
        %1304 = vset.pattern.permute.xlu0 0
        %1305 = vperm.xlu0 %1304, %v491
        %v1306 = vpop.permute.xlu0 %1305
        %1309 = vset.pattern.permute.xlu0 0
        %1310 = vperm.xlu0 %1309, %v492
        %v1311 = vpop.permute.xlu0 %1310
        %1314 = vset.pattern.permute.xlu0 0
        %1315 = vperm.xlu0 %1314, %v493
        %v1316 = vpop.permute.xlu0 %1315
        %v1318 = vmul.f32 %v1014, %v1281
        %v1319 = vmul.f32 %v1015, %v1286
        %v1320 = vmul.f32 %v1016, %v1291
        %v1321 = vmul.f32 %v1017, %v1296
        %v1322 = vmul.f32 %v1018, %v1301
        %v1323 = vmul.f32 %v1019, %v1306
        %v1324 = vmul.f32 %v1020, %v1311
        %v1325 = vmul.f32 %v1021, %v1316
        %v1326 = vadd.f32 %v1270, %v1318
        %v1327 = vadd.f32 %v1271, %v1319
        %v1328 = vadd.f32 %v1272, %v1320
        %v1329 = vadd.f32 %v1273, %v1321
        %v1330 = vadd.f32 %v1274, %v1322
        %v1331 = vadd.f32 %v1275, %v1323
        %v1332 = vadd.f32 %v1276, %v1324
        %v1333 = vadd.f32 %v1277, %v1325
        %s1334 = scalar_lea.vmem %s418, 16 [#allocation2]
        %v1335 = vld [vmem:[%s1334] sm:$0xf]
        %v1336 = vld [vmem:[%s1334 + $0x4] sm:$0xf]
        %v1337 = vld [vmem:[%s1334 + $0x8] sm:$0xf]
        %v1338 = vld [vmem:[%s1334 + $0xc] sm:$0xf]
        %v1343 = vunpack.c.l.b16 %v1335
        %v1344 = vunpack.c.l.b16 %v1336
        %v1345 = vunpack.c.l.b16 %v1337
        %v1346 = vunpack.c.l.b16 %v1338
        %v1347 = vpack.c.b16 %v1344, %v1343
        %v1348 = vpack.c.b16 %v1346, %v1345
        %1351 = vmatprep.subr.bf16.mxu0 0
        %1352 = vmatpush1.bf16.msra.mxu0 %v1347
        %1353 = vmatprep.subr.bf16.mxu0 0
        %1354 = vmatpush1.bf16.msra.mxu0 %v1348
        %1355 = vmatprep.subr.bf16.mxu0 0
        %1356 = vmatpush1.bf16.msra.mxu0 0
        %1357 = vmatprep.subr.bf16.mxu0 0
        %1358 = vmatpush1.bf16.msra.mxu0 0
        %1359 = vmatprep.subr.bf16.mxu0 0
        %1360 = vmatpush1.bf16.msra.mxu0 0
        %1361 = vmatprep.subr.bf16.mxu0 0
        %1362 = vmatpush1.bf16.msra.mxu0 0
        %1363 = vmatprep.subr.bf16.mxu0 0
        %1364 = vmatpush1.bf16.msra.mxu0 0
        %1365 = vmatprep.subr.bf16.mxu0 0
        %1366 = vmatpush1.bf16.msra.mxu0 0
        %1367 = vmatprep.subr.bf16.mxu0 0
        %1368 = vmatpush1.bf16.msra.mxu0 0
        %1369 = vmatprep.subr.bf16.mxu0 0
        %1370 = vmatpush1.bf16.msra.mxu0 0
        %1371 = vmatprep.subr.bf16.mxu0 0
        %1372 = vmatpush1.bf16.msra.mxu0 0
        %1373 = vmatprep.subr.bf16.mxu0 0
        %1374 = vmatpush1.bf16.msra.mxu0 0
        %1375 = vmatprep.subr.bf16.mxu0 0
        %1376 = vmatpush1.bf16.msra.mxu0 0
        %1377 = vmatprep.subr.bf16.mxu0 0
        %1378 = vmatpush1.bf16.msra.mxu0 0
        %1379 = vmatprep.subr.bf16.mxu0 0
        %1380 = vmatpush1.bf16.msra.mxu0 0
        %1381 = vmatprep.subr.bf16.mxu0 0
        %1382 = vmatpush1.bf16.msra.mxu0 0
        %1383 = vmatprep.mubr.bf16.mxu0 0
        %1384 = vmatmul.mubr.bf16.gmra.mrb[0].mxu0 %v622
        %v1385 = vpop.f32.mrb[0].mxu0
        %v1386 = vadd.f32 %v551, %v1385
        %v1387 = vpop.f32.mrb[0].mxu0
        %v1388 = vpop.f32.mrb[0].mxu0
        %v1389 = vadd.f32 %v556, %v1388
        %v1390 = vpop.f32.mrb[0].mxu0
        %1391 = vmatprep.mubr.bf16.mxu0 0
        %1392 = vmatmul.mubr.bf16.gmra.mrb[0].mxu0 %v625
        %v1393 = vpop.f32.mrb[0].mxu0
        %v1394 = vadd.f32 %v561, %v1393
        %v1395 = vpop.f32.mrb[0].mxu0
        %v1396 = vpop.f32.mrb[0].mxu0
        %v1397 = vadd.f32 %v566, %v1396
        %v1398 = vpop.f32.mrb[0].mxu0
        %1399 = vmatprep.mubr.bf16.mxu0 0
        %1400 = vmatmul.mubr.bf16.gmra.mrb[0].mxu0 %v628
        %v1401 = vpop.f32.mrb[0].mxu0
        %v1402 = vadd.f32 %v571, %v1401
        %v1403 = vpop.f32.mrb[0].mxu0
        %v1404 = vpop.f32.mrb[0].mxu0
        %v1405 = vadd.f32 %v576, %v1404
        %v1406 = vpop.f32.mrb[0].mxu0
        %1407 = vmatprep.mubr.bf16.mxu0 0
        %1408 = vmatmul.mubr.bf16.gmra.mrb[0].mxu0 %v631
        %v1409 = vpop.f32.mrb[0].mxu0
        %v1410 = vadd.f32 %v581, %v1409
        %v1411 = vpop.f32.mrb[0].mxu0
        %v1412 = vpop.f32.mrb[0].mxu0
        %v1413 = vadd.f32 %v586, %v1412
        %v1414 = vpop.f32.mrb[0].mxu0
        %1415 = vdwg.mxu0
        %s1416 = scalar_lea.vmem %s418, 80 [#allocation2]
        %v1417 = vld [vmem:[%s1416] sm:$0xf]
        %v1418 = vld [vmem:[%s1416 + $0x4] sm:$0xf]
        %v1419 = vld [vmem:[%s1416 + $0x8] sm:$0xf]
        %v1420 = vld [vmem:[%s1416 + $0xc] sm:$0xf]
        %v1425 = vunpack.c.l.b16 %v1417
        %v1426 = vunpack.c.l.b16 %v1418
        %v1427 = vunpack.c.l.b16 %v1419
        %v1428 = vunpack.c.l.b16 %v1420
        %v1429 = vpack.c.b16 %v1426, %v1425
        %v1430 = vpack.c.b16 %v1428, %v1427
        %1433 = vmatprep.subr.bf16.mxu0 0
        %1434 = vmatpush1.bf16.msra.mxu0 %v1429
        %1435 = vmatprep.subr.bf16.mxu0 0
        %1436 = vmatpush1.bf16.msra.mxu0 %v1430
        %1437 = vmatprep.subr.bf16.mxu0 0
        %1438 = vmatpush1.bf16.msra.mxu0 0
        %1439 = vmatprep.subr.bf16.mxu0 0
        %1440 = vmatpush1.bf16.msra.mxu0 0
        %1441 = vmatprep.subr.bf16.mxu0 0
        %1442 = vmatpush1.bf16.msra.mxu0 0
        %1443 = vmatprep.subr.bf16.mxu0 0
        %1444 = vmatpush1.bf16.msra.mxu0 0
        %1445 = vmatprep.subr.bf16.mxu0 0
        %1446 = vmatpush1.bf16.msra.mxu0 0
        %1447 = vmatprep.subr.bf16.mxu0 0
        %1448 = vmatpush1.bf16.msra.mxu0 0
        %1449 = vmatprep.subr.bf16.mxu0 0
        %1450 = vmatpush1.bf16.msra.mxu0 0
        %1451 = vmatprep.subr.bf16.mxu0 0
        %1452 = vmatpush1.bf16.msra.mxu0 0
        %1453 = vmatprep.subr.bf16.mxu0 0
        %1454 = vmatpush1.bf16.msra.mxu0 0
        %1455 = vmatprep.subr.bf16.mxu0 0
        %1456 = vmatpush1.bf16.msra.mxu0 0
        %1457 = vmatprep.subr.bf16.mxu0 0
        %1458 = vmatpush1.bf16.msra.mxu0 0
        %1459 = vmatprep.subr.bf16.mxu0 0
        %1460 = vmatpush1.bf16.msra.mxu0 0
        %1461 = vmatprep.subr.bf16.mxu0 0
        %1462 = vmatpush1.bf16.msra.mxu0 0
        %1463 = vmatprep.subr.bf16.mxu0 0
        %1464 = vmatpush1.bf16.msra.mxu0 0
        %1465 = vmatprep.mubr.bf16.mxu0 0
        %1466 = vmatmul.mubr.bf16.gmra.mrb[0].mxu0 %v776
        %v1467 = vpop.f32.mrb[0].mxu0
        %v1468 = vadd.f32 %v706, %v1467
        %v1469 = vpop.f32.mrb[0].mxu0
        %v1470 = vpop.f32.mrb[0].mxu0
        %v1471 = vadd.f32 %v711, %v1470
        %v1472 = vpop.f32.mrb[0].mxu0
        %1473 = vmatprep.mubr.bf16.mxu0 0
        %1474 = vmatmul.mubr.bf16.gmra.mrb[0].mxu0 %v779
        %v1475 = vpop.f32.mrb[0].mxu0
        %v1476 = vadd.f32 %v716, %v1475
        %v1477 = vpop.f32.mrb[0].mxu0
        %v1478 = vpop.f32.mrb[0].mxu0
        %v1479 = vadd.f32 %v721, %v1478
        %v1480 = vpop.f32.mrb[0].mxu0
        %1481 = vmatprep.mubr.bf16.mxu0 0
        %1482 = vmatmul.mubr.bf16.gmra.mrb[0].mxu0 %v782
        %v1483 = vpop.f32.mrb[0].mxu0
        %v1484 = vadd.f32 %v726, %v1483
        %v1485 = vpop.f32.mrb[0].mxu0
        %v1486 = vpop.f32.mrb[0].mxu0
        %v1487 = vadd.f32 %v731, %v1486
        %v1488 = vpop.f32.mrb[0].mxu0
        %1489 = vmatprep.mubr.bf16.mxu0 0
        %1490 = vmatmul.mubr.bf16.gmra.mrb[0].mxu0 %v785
        %v1491 = vpop.f32.mrb[0].mxu0
        %v1492 = vadd.f32 %v736, %v1491
        %v1493 = vpop.f32.mrb[0].mxu0
        %v1494 = vpop.f32.mrb[0].mxu0
        %v1495 = vadd.f32 %v741, %v1494
        %v1496 = vpop.f32.mrb[0].mxu0
        %1497 = vdwg.mxu0
        %s1498 = scalar_lea.vmem %s418, 144 [#allocation2]
        %v1499 = vld [vmem:[%s1498] sm:$0xf]
        %v1500 = vld [vmem:[%s1498 + $0x4] sm:$0xf]
        %v1501 = vld [vmem:[%s1498 + $0x8] sm:$0xf]
        %v1502 = vld [vmem:[%s1498 + $0xc] sm:$0xf]
        %v1507 = vunpack.c.l.b16 %v1499
        %v1508 = vunpack.c.l.b16 %v1500
        %v1509 = vunpack.c.l.b16 %v1501
        %v1510 = vunpack.c.l.b16 %v1502
        %v1511 = vpack.c.b16 %v1508, %v1507
        %v1512 = vpack.c.b16 %v1510, %v1509
        %1515 = vmatprep.subr.bf16.mxu0 0
        %1516 = vmatpush1.bf16.msra.mxu0 %v1511
        %1517 = vmatprep.subr.bf16.mxu0 0
        %1518 = vmatpush1.bf16.msra.mxu0 %v1512
        %1519 = vmatprep.subr.bf16.mxu0 0
        %1520 = vmatpush1.bf16.msra.mxu0 0
        %1521 = vmatprep.subr.bf16.mxu0 0
        %1522 = vmatpush1.bf16.msra.mxu0 0
        %1523 = vmatprep.subr.bf16.mxu0 0
        %1524 = vmatpush1.bf16.msra.mxu0 0
        %1525 = vmatprep.subr.bf16.mxu0 0
        %1526 = vmatpush1.bf16.msra.mxu0 0
        %1527 = vmatprep.subr.bf16.mxu0 0
        %1528 = vmatpush1.bf16.msra.mxu0 0
        %1529 = vmatprep.subr.bf16.mxu0 0
        %1530 = vmatpush1.bf16.msra.mxu0 0
        %1531 = vmatprep.subr.bf16.mxu0 0
        %1532 = vmatpush1.bf16.msra.mxu0 0
        %1533 = vmatprep.subr.bf16.mxu0 0
        %1534 = vmatpush1.bf16.msra.mxu0 0
        %1535 = vmatprep.subr.bf16.mxu0 0
        %1536 = vmatpush1.bf16.msra.mxu0 0
        %1537 = vmatprep.subr.bf16.mxu0 0
        %1538 = vmatpush1.bf16.msra.mxu0 0
        %1539 = vmatprep.subr.bf16.mxu0 0
        %1540 = vmatpush1.bf16.msra.mxu0 0
        %1541 = vmatprep.subr.bf16.mxu0 0
        %1542 = vmatpush1.bf16.msra.mxu0 0
        %1543 = vmatprep.subr.bf16.mxu0 0
        %1544 = vmatpush1.bf16.msra.mxu0 0
        %1545 = vmatprep.subr.bf16.mxu0 0
        %1546 = vmatpush1.bf16.msra.mxu0 0
        %1547 = vmatprep.mubr.bf16.mxu0 0
        %1548 = vmatmul.mubr.bf16.gmra.mrb[0].mxu0 %v930
        %v1549 = vpop.f32.mrb[0].mxu0
        %v1550 = vadd.f32 %v860, %v1549
        %v1551 = vpop.f32.mrb[0].mxu0
        %v1552 = vpop.f32.mrb[0].mxu0
        %v1553 = vadd.f32 %v865, %v1552
        %v1554 = vpop.f32.mrb[0].mxu0
        %1555 = vmatprep.mubr.bf16.mxu0 0
        %1556 = vmatmul.mubr.bf16.gmra.mrb[0].mxu0 %v933
        %v1557 = vpop.f32.mrb[0].mxu0
        %v1558 = vadd.f32 %v870, %v1557
        %v1559 = vpop.f32.mrb[0].mxu0
        %v1560 = vpop.f32.mrb[0].mxu0
        %v1561 = vadd.f32 %v875, %v1560
        %v1562 = vpop.f32.mrb[0].mxu0
        %1563 = vmatprep.mubr.bf16.mxu0 0
        %1564 = vmatmul.mubr.bf16.gmra.mrb[0].mxu0 %v936
        %v1565 = vpop.f32.mrb[0].mxu0
        %v1566 = vadd.f32 %v880, %v1565
        %v1567 = vpop.f32.mrb[0].mxu0
        %v1568 = vpop.f32.mrb[0].mxu0
        %v1569 = vadd.f32 %v885, %v1568
        %v1570 = vpop.f32.mrb[0].mxu0
        %1571 = vmatprep.mubr.bf16.mxu0 0
        %1572 = vmatmul.mubr.bf16.gmra.mrb[0].mxu0 %v939
        %v1573 = vpop.f32.mrb[0].mxu0
        %v1574 = vadd.f32 %v890, %v1573
        %v1575 = vpop.f32.mrb[0].mxu0
        %v1576 = vpop.f32.mrb[0].mxu0
        %v1577 = vadd.f32 %v895, %v1576
        %v1578 = vpop.f32.mrb[0].mxu0
        %1579 = vdwg.mxu0
        %v1580 = vmax.f32 %v1386, %v1468
        %v1581 = vmax.f32 %v1389, %v1471
        %v1582 = vmax.f32 %v1394, %v1476
        %v1583 = vmax.f32 %v1397, %v1479
        %v1584 = vmax.f32 %v1402, %v1484
        %v1585 = vmax.f32 %v1405, %v1487
        %v1586 = vmax.f32 %v1410, %v1492
        %v1587 = vmax.f32 %v1413, %v1495
        %v1588 = vmax.f32 %v1580, %v1550
        %v1589 = vmax.f32 %v1581, %v1553
        %v1590 = vmax.f32 %v1582, %v1558
        %v1591 = vmax.f32 %v1583, %v1561
        %v1592 = vmax.f32 %v1584, %v1566
        %v1593 = vmax.f32 %v1585, %v1569
        %v1594 = vmax.f32 %v1586, %v1574
        %v1595 = vmax.f32 %v1587, %v1577
        %v1596 = vmul.f32 %v1386, %v1025
        %v1597 = vmul.f32 %v1389, %v1030
        %v1598 = vmul.f32 %v1394, %v1035
        %v1599 = vmul.f32 %v1397, %v1040
        %v1600 = vmul.f32 %v1402, %v1045
        %v1601 = vmul.f32 %v1405, %v1050
        %v1602 = vmul.f32 %v1410, %v1055
        %v1603 = vmul.f32 %v1413, %v1060
        %v1604 = vmul.f32 %v1588, %v1073
        %v1605 = vmul.f32 %v1589, %v1078
        %v1606 = vmul.f32 %v1590, %v1083
        %v1607 = vmul.f32 %v1591, %v1088
        %v1608 = vmul.f32 %v1592, %v1093
        %v1609 = vmul.f32 %v1593, %v1098
        %v1610 = vmul.f32 %v1594, %v1103
        %v1611 = vmul.f32 %v1595, %v1108
        %v1612 = vadd.f32 %v1596, %v1604
        %v1613 = vadd.f32 %v1597, %v1605
        %v1614 = vadd.f32 %v1598, %v1606
        %v1615 = vadd.f32 %v1599, %v1607
        %v1616 = vadd.f32 %v1600, %v1608
        %v1617 = vadd.f32 %v1601, %v1609
        %v1618 = vadd.f32 %v1602, %v1610
        %v1619 = vadd.f32 %v1603, %v1611
        %v1620 = vmul.f32 %v1468, %v1129
        %v1621 = vmul.f32 %v1471, %v1134
        %v1622 = vmul.f32 %v1476, %v1139
        %v1623 = vmul.f32 %v1479, %v1144
        %v1624 = vmul.f32 %v1484, %v1149
        %v1625 = vmul.f32 %v1487, %v1154
        %v1626 = vmul.f32 %v1492, %v1159
        %v1627 = vmul.f32 %v1495, %v1164
        %v1628 = vmul.f32 %v1588, %v1177
        %v1629 = vmul.f32 %v1589, %v1182
        %v1630 = vmul.f32 %v1590, %v1187
        %v1631 = vmul.f32 %v1591, %v1192
        %v1632 = vmul.f32 %v1592, %v1197
        %v1633 = vmul.f32 %v1593, %v1202
        %v1634 = vmul.f32 %v1594, %v1207
        %v1635 = vmul.f32 %v1595, %v1212
        %v1636 = vadd.f32 %v1620, %v1628
        %v1637 = vadd.f32 %v1621, %v1629
        %v1638 = vadd.f32 %v1622, %v1630
        %v1639 = vadd.f32 %v1623, %v1631
        %v1640 = vadd.f32 %v1624, %v1632
        %v1641 = vadd.f32 %v1625, %v1633
        %v1642 = vadd.f32 %v1626, %v1634
        %v1643 = vadd.f32 %v1627, %v1635
        %v1644 = vmul.f32 %v1550, %v1233
        %v1645 = vmul.f32 %v1553, %v1238
        %v1646 = vmul.f32 %v1558, %v1243
        %v1647 = vmul.f32 %v1561, %v1248
        %v1648 = vmul.f32 %v1566, %v1253
        %v1649 = vmul.f32 %v1569, %v1258
        %v1650 = vmul.f32 %v1574, %v1263
        %v1651 = vmul.f32 %v1577, %v1268
        %v1652 = vmul.f32 %v1588, %v1281
        %v1653 = vmul.f32 %v1589, %v1286
        %v1654 = vmul.f32 %v1590, %v1291
        %v1655 = vmul.f32 %v1591, %v1296
        %v1656 = vmul.f32 %v1592, %v1301
        %v1657 = vmul.f32 %v1593, %v1306
        %v1658 = vmul.f32 %v1594, %v1311
        %v1659 = vmul.f32 %v1595, %v1316
        %v1660 = vadd.f32 %v1644, %v1652
        %v1661 = vadd.f32 %v1645, %v1653
        %v1662 = vadd.f32 %v1646, %v1654
        %v1663 = vadd.f32 %v1647, %v1655
        %v1664 = vadd.f32 %v1648, %v1656
        %v1665 = vadd.f32 %v1649, %v1657
        %v1666 = vadd.f32 %v1650, %v1658
        %v1667 = vadd.f32 %v1651, %v1659
        %v1668 = vmax.f32 %v1118, %v1612
        %v1669 = vmax.f32 %v1119, %v1613
        %v1670 = vmax.f32 %v1120, %v1614
        %v1671 = vmax.f32 %v1121, %v1615
        %v1672 = vmax.f32 %v1122, %v1616
        %v1673 = vmax.f32 %v1123, %v1617
        %v1674 = vmax.f32 %v1124, %v1618
        %v1675 = vmax.f32 %v1125, %v1619
        %v1676 = vmax.f32 %v1222, %v1636
        %v1677 = vmax.f32 %v1223, %v1637
        %v1678 = vmax.f32 %v1224, %v1638
        %v1679 = vmax.f32 %v1225, %v1639
        %v1680 = vmax.f32 %v1226, %v1640
        %v1681 = vmax.f32 %v1227, %v1641
        %v1682 = vmax.f32 %v1228, %v1642
        %v1683 = vmax.f32 %v1229, %v1643
        %v1684 = vmax.f32 %v1326, %v1660
        %v1685 = vmax.f32 %v1327, %v1661
        %v1686 = vmax.f32 %v1328, %v1662
        %v1687 = vmax.f32 %v1329, %v1663
        %v1688 = vmax.f32 %v1330, %v1664
        %v1689 = vmax.f32 %v1331, %v1665
        %v1690 = vmax.f32 %v1332, %v1666
        %v1691 = vmax.f32 %v1333, %v1667
        %s1692 = scalar_lea.vmem %s418, 32 [#allocation2]
        %v1693 = vld [vmem:[%s1692] sm:$0xf]
        %v1694 = vld [vmem:[%s1692 + $0x4] sm:$0xf]
        %v1695 = vld [vmem:[%s1692 + $0x8] sm:$0xf]
        %v1696 = vld [vmem:[%s1692 + $0xc] sm:$0xf]
        %v1701 = vunpack.c.l.b16 %v1693
        %v1702 = vunpack.c.l.b16 %v1694
        %v1703 = vunpack.c.l.b16 %v1695
        %v1704 = vunpack.c.l.b16 %v1696
        %v1705 = vpack.c.b16 %v1702, %v1701
        %v1706 = vpack.c.b16 %v1704, %v1703
        %1709 = vmatprep.subr.bf16.mxu0 0
        %1710 = vmatpush1.bf16.msra.mxu0 %v1705
        %1711 = vmatprep.subr.bf16.mxu0 0
        %1712 = vmatpush1.bf16.msra.mxu0 %v1706
        %1713 = vmatprep.subr.bf16.mxu0 0
        %1714 = vmatpush1.bf16.msra.mxu0 0
        %1715 = vmatprep.subr.bf16.mxu0 0
        %1716 = vmatpush1.bf16.msra.mxu0 0
        %1717 = vmatprep.subr.bf16.mxu0 0
        %1718 = vmatpush1.bf16.msra.mxu0 0
        %1719 = vmatprep.subr.bf16.mxu0 0
        %1720 = vmatpush1.bf16.msra.mxu0 0
        %1721 = vmatprep.subr.bf16.mxu0 0
        %1722 = vmatpush1.bf16.msra.mxu0 0
        %1723 = vmatprep.subr.bf16.mxu0 0
        %1724 = vmatpush1.bf16.msra.mxu0 0
        %1725 = vmatprep.subr.bf16.mxu0 0
        %1726 = vmatpush1.bf16.msra.mxu0 0
        %1727 = vmatprep.subr.bf16.mxu0 0
        %1728 = vmatpush1.bf16.msra.mxu0 0
        %1729 = vmatprep.subr.bf16.mxu0 0
        %1730 = vmatpush1.bf16.msra.mxu0 0
        %1731 = vmatprep.subr.bf16.mxu0 0
        %1732 = vmatpush1.bf16.msra.mxu0 0
        %1733 = vmatprep.subr.bf16.mxu0 0
        %1734 = vmatpush1.bf16.msra.mxu0 0
        %1735 = vmatprep.subr.bf16.mxu0 0
        %1736 = vmatpush1.bf16.msra.mxu0 0
        %1737 = vmatprep.subr.bf16.mxu0 0
        %1738 = vmatpush1.bf16.msra.mxu0 0
        %1739 = vmatprep.subr.bf16.mxu0 0
        %1740 = vmatpush1.bf16.msra.mxu0 0
        %1741 = vmatprep.mubr.bf16.mxu0 0
        %1742 = vmatmul.mubr.bf16.gmra.mrb[0].mxu0 %v622
        %v1743 = vpop.f32.mrb[0].mxu0
        %v1744 = vadd.f32 %v551, %v1743
        %v1745 = vpop.f32.mrb[0].mxu0
        %v1746 = vpop.f32.mrb[0].mxu0
        %v1747 = vadd.f32 %v556, %v1746
        %v1748 = vpop.f32.mrb[0].mxu0
        %1749 = vmatprep.mubr.bf16.mxu0 0
        %1750 = vmatmul.mubr.bf16.gmra.mrb[0].mxu0 %v625
        %v1751 = vpop.f32.mrb[0].mxu0
        %v1752 = vadd.f32 %v561, %v1751
        %v1753 = vpop.f32.mrb[0].mxu0
        %v1754 = vpop.f32.mrb[0].mxu0
        %v1755 = vadd.f32 %v566, %v1754
        %v1756 = vpop.f32.mrb[0].mxu0
        %1757 = vmatprep.mubr.bf16.mxu0 0
        %1758 = vmatmul.mubr.bf16.gmra.mrb[0].mxu0 %v628
        %v1759 = vpop.f32.mrb[0].mxu0
        %v1760 = vadd.f32 %v571, %v1759
        %v1761 = vpop.f32.mrb[0].mxu0
        %v1762 = vpop.f32.mrb[0].mxu0
        %v1763 = vadd.f32 %v576, %v1762
        %v1764 = vpop.f32.mrb[0].mxu0
        %1765 = vmatprep.mubr.bf16.mxu0 0
        %1766 = vmatmul.mubr.bf16.gmra.mrb[0].mxu0 %v631
        %v1767 = vpop.f32.mrb[0].mxu0
        %v1768 = vadd.f32 %v581, %v1767
        %v1769 = vpop.f32.mrb[0].mxu0
        %v1770 = vpop.f32.mrb[0].mxu0
        %v1771 = vadd.f32 %v586, %v1770
        %v1772 = vpop.f32.mrb[0].mxu0
        %1773 = vdwg.mxu0
        %s1774 = scalar_lea.vmem %s418, 96 [#allocation2]
        %v1775 = vld [vmem:[%s1774] sm:$0xf]
        %v1776 = vld [vmem:[%s1774 + $0x4] sm:$0xf]
        %v1777 = vld [vmem:[%s1774 + $0x8] sm:$0xf]
        %v1778 = vld [vmem:[%s1774 + $0xc] sm:$0xf]
        %v1783 = vunpack.c.l.b16 %v1775
        %v1784 = vunpack.c.l.b16 %v1776
        %v1785 = vunpack.c.l.b16 %v1777
        %v1786 = vunpack.c.l.b16 %v1778
        %v1787 = vpack.c.b16 %v1784, %v1783
        %v1788 = vpack.c.b16 %v1786, %v1785
        %1791 = vmatprep.subr.bf16.mxu0 0
        %1792 = vmatpush1.bf16.msra.mxu0 %v1787
        %1793 = vmatprep.subr.bf16.mxu0 0
        %1794 = vmatpush1.bf16.msra.mxu0 %v1788
        %1795 = vmatprep.subr.bf16.mxu0 0
        %1796 = vmatpush1.bf16.msra.mxu0 0
        %1797 = vmatprep.subr.bf16.mxu0 0
        %1798 = vmatpush1.bf16.msra.mxu0 0
        %1799 = vmatprep.subr.bf16.mxu0 0
        %1800 = vmatpush1.bf16.msra.mxu0 0
        %1801 = vmatprep.subr.bf16.mxu0 0
        %1802 = vmatpush1.bf16.msra.mxu0 0
        %1803 = vmatprep.subr.bf16.mxu0 0
        %1804 = vmatpush1.bf16.msra.mxu0 0
        %1805 = vmatprep.subr.bf16.mxu0 0
        %1806 = vmatpush1.bf16.msra.mxu0 0
        %1807 = vmatprep.subr.bf16.mxu0 0
        %1808 = vmatpush1.bf16.msra.mxu0 0
        %1809 = vmatprep.subr.bf16.mxu0 0
        %1810 = vmatpush1.bf16.msra.mxu0 0
        %1811 = vmatprep.subr.bf16.mxu0 0
        %1812 = vmatpush1.bf16.msra.mxu0 0
        %1813 = vmatprep.subr.bf16.mxu0 0
        %1814 = vmatpush1.bf16.msra.mxu0 0
        %1815 = vmatprep.subr.bf16.mxu0 0
        %1816 = vmatpush1.bf16.msra.mxu0 0
        %1817 = vmatprep.subr.bf16.mxu0 0
        %1818 = vmatpush1.bf16.msra.mxu0 0
        %1819 = vmatprep.subr.bf16.mxu0 0
        %1820 = vmatpush1.bf16.msra.mxu0 0
        %1821 = vmatprep.subr.bf16.mxu0 0
        %1822 = vmatpush1.bf16.msra.mxu0 0
        %1823 = vmatprep.mubr.bf16.mxu0 0
        %1824 = vmatmul.mubr.bf16.gmra.mrb[0].mxu0 %v776
        %v1825 = vpop.f32.mrb[0].mxu0
        %v1826 = vadd.f32 %v706, %v1825
        %v1827 = vpop.f32.mrb[0].mxu0
        %v1828 = vpop.f32.mrb[0].mxu0
        %v1829 = vadd.f32 %v711, %v1828
        %v1830 = vpop.f32.mrb[0].mxu0
        %1831 = vmatprep.mubr.bf16.mxu0 0
        %1832 = vmatmul.mubr.bf16.gmra.mrb[0].mxu0 %v779
        %v1833 = vpop.f32.mrb[0].mxu0
        %v1834 = vadd.f32 %v716, %v1833
        %v1835 = vpop.f32.mrb[0].mxu0
        %v1836 = vpop.f32.mrb[0].mxu0
        %v1837 = vadd.f32 %v721, %v1836
        %v1838 = vpop.f32.mrb[0].mxu0
        %1839 = vmatprep.mubr.bf16.mxu0 0
        %1840 = vmatmul.mubr.bf16.gmra.mrb[0].mxu0 %v782
        %v1841 = vpop.f32.mrb[0].mxu0
        %v1842 = vadd.f32 %v726, %v1841
        %v1843 = vpop.f32.mrb[0].mxu0
        %v1844 = vpop.f32.mrb[0].mxu0
        %v1845 = vadd.f32 %v731, %v1844
        %v1846 = vpop.f32.mrb[0].mxu0
        %1847 = vmatprep.mubr.bf16.mxu0 0
        %1848 = vmatmul.mubr.bf16.gmra.mrb[0].mxu0 %v785
        %v1849 = vpop.f32.mrb[0].mxu0
        %v1850 = vadd.f32 %v736, %v1849
        %v1851 = vpop.f32.mrb[0].mxu0
        %v1852 = vpop.f32.mrb[0].mxu0
        %v1853 = vadd.f32 %v741, %v1852
        %v1854 = vpop.f32.mrb[0].mxu0
        %1855 = vdwg.mxu0
        %s1856 = scalar_lea.vmem %s418, 160 [#allocation2]
        %v1857 = vld [vmem:[%s1856] sm:$0xf]
        %v1858 = vld [vmem:[%s1856 + $0x4] sm:$0xf]
        %v1859 = vld [vmem:[%s1856 + $0x8] sm:$0xf]
        %v1860 = vld [vmem:[%s1856 + $0xc] sm:$0xf]
        %v1865 = vunpack.c.l.b16 %v1857
        %v1866 = vunpack.c.l.b16 %v1858
        %v1867 = vunpack.c.l.b16 %v1859
        %v1868 = vunpack.c.l.b16 %v1860
        %v1869 = vpack.c.b16 %v1866, %v1865
        %v1870 = vpack.c.b16 %v1868, %v1867
        %1873 = vmatprep.subr.bf16.mxu0 0
        %1874 = vmatpush1.bf16.msra.mxu0 %v1869
        %1875 = vmatprep.subr.bf16.mxu0 0
        %1876 = vmatpush1.bf16.msra.mxu0 %v1870
        %1877 = vmatprep.subr.bf16.mxu0 0
        %1878 = vmatpush1.bf16.msra.mxu0 0
        %1879 = vmatprep.subr.bf16.mxu0 0
        %1880 = vmatpush1.bf16.msra.mxu0 0
        %1881 = vmatprep.subr.bf16.mxu0 0
        %1882 = vmatpush1.bf16.msra.mxu0 0
        %1883 = vmatprep.subr.bf16.mxu0 0
        %1884 = vmatpush1.bf16.msra.mxu0 0
        %1885 = vmatprep.subr.bf16.mxu0 0
        %1886 = vmatpush1.bf16.msra.mxu0 0
        %1887 = vmatprep.subr.bf16.mxu0 0
        %1888 = vmatpush1.bf16.msra.mxu0 0
        %1889 = vmatprep.subr.bf16.mxu0 0
        %1890 = vmatpush1.bf16.msra.mxu0 0
        %1891 = vmatprep.subr.bf16.mxu0 0
        %1892 = vmatpush1.bf16.msra.mxu0 0
        %1893 = vmatprep.subr.bf16.mxu0 0
        %1894 = vmatpush1.bf16.msra.mxu0 0
        %1895 = vmatprep.subr.bf16.mxu0 0
        %1896 = vmatpush1.bf16.msra.mxu0 0
        %1897 = vmatprep.subr.bf16.mxu0 0
        %1898 = vmatpush1.bf16.msra.mxu0 0
        %1899 = vmatprep.subr.bf16.mxu0 0
        %1900 = vmatpush1.bf16.msra.mxu0 0
        %1901 = vmatprep.subr.bf16.mxu0 0
        %1902 = vmatpush1.bf16.msra.mxu0 0
        %1903 = vmatprep.subr.bf16.mxu0 0
        %1904 = vmatpush1.bf16.msra.mxu0 0
        %1905 = vmatprep.mubr.bf16.mxu0 0
        %1906 = vmatmul.mubr.bf16.gmra.mrb[0].mxu0 %v930
        %v1907 = vpop.f32.mrb[0].mxu0
        %v1908 = vadd.f32 %v860, %v1907
        %v1909 = vpop.f32.mrb[0].mxu0
        %v1910 = vpop.f32.mrb[0].mxu0
        %v1911 = vadd.f32 %v865, %v1910
        %v1912 = vpop.f32.mrb[0].mxu0
        %1913 = vmatprep.mubr.bf16.mxu0 0
        %1914 = vmatmul.mubr.bf16.gmra.mrb[0].mxu0 %v933
        %v1915 = vpop.f32.mrb[0].mxu0
        %v1916 = vadd.f32 %v870, %v1915
        %v1917 = vpop.f32.mrb[0].mxu0
        %v1918 = vpop.f32.mrb[0].mxu0
        %v1919 = vadd.f32 %v875, %v1918
        %v1920 = vpop.f32.mrb[0].mxu0
        %1921 = vmatprep.mubr.bf16.mxu0 0
        %1922 = vmatmul.mubr.bf16.gmra.mrb[0].mxu0 %v936
        %v1923 = vpop.f32.mrb[0].mxu0
        %v1924 = vadd.f32 %v880, %v1923
        %v1925 = vpop.f32.mrb[0].mxu0
        %v1926 = vpop.f32.mrb[0].mxu0
        %v1927 = vadd.f32 %v885, %v1926
        %v1928 = vpop.f32.mrb[0].mxu0
        %1929 = vmatprep.mubr.bf16.mxu0 0
        %1930 = vmatmul.mubr.bf16.gmra.mrb[0].mxu0 %v939
        %v1931 = vpop.f32.mrb[0].mxu0
        %v1932 = vadd.f32 %v890, %v1931
        %v1933 = vpop.f32.mrb[0].mxu0
        %v1934 = vpop.f32.mrb[0].mxu0
        %v1935 = vadd.f32 %v895, %v1934
        %v1936 = vpop.f32.mrb[0].mxu0
        %1937 = vdwg.mxu0
        %v1938 = vmax.f32 %v1744, %v1826
        %v1939 = vmax.f32 %v1747, %v1829
        %v1940 = vmax.f32 %v1752, %v1834
        %v1941 = vmax.f32 %v1755, %v1837
        %v1942 = vmax.f32 %v1760, %v1842
        %v1943 = vmax.f32 %v1763, %v1845
        %v1944 = vmax.f32 %v1768, %v1850
        %v1945 = vmax.f32 %v1771, %v1853
        %v1946 = vmax.f32 %v1938, %v1908
        %v1947 = vmax.f32 %v1939, %v1911
        %v1948 = vmax.f32 %v1940, %v1916
        %v1949 = vmax.f32 %v1941, %v1919
        %v1950 = vmax.f32 %v1942, %v1924
        %v1951 = vmax.f32 %v1943, %v1927
        %v1952 = vmax.f32 %v1944, %v1932
        %v1953 = vmax.f32 %v1945, %v1935
        %v1954 = vmul.f32 %v1744, %v1025
        %v1955 = vmul.f32 %v1747, %v1030
        %v1956 = vmul.f32 %v1752, %v1035
        %v1957 = vmul.f32 %v1755, %v1040
        %v1958 = vmul.f32 %v1760, %v1045
        %v1959 = vmul.f32 %v1763, %v1050
        %v1960 = vmul.f32 %v1768, %v1055
        %v1961 = vmul.f32 %v1771, %v1060
        %v1962 = vmul.f32 %v1946, %v1073
        %v1963 = vmul.f32 %v1947, %v1078
        %v1964 = vmul.f32 %v1948, %v1083
        %v1965 = vmul.f32 %v1949, %v1088
        %v1966 = vmul.f32 %v1950, %v1093
        %v1967 = vmul.f32 %v1951, %v1098
        %v1968 = vmul.f32 %v1952, %v1103
        %v1969 = vmul.f32 %v1953, %v1108
        %v1970 = vadd.f32 %v1954, %v1962
        %v1971 = vadd.f32 %v1955, %v1963
        %v1972 = vadd.f32 %v1956, %v1964
        %v1973 = vadd.f32 %v1957, %v1965
        %v1974 = vadd.f32 %v1958, %v1966
        %v1975 = vadd.f32 %v1959, %v1967
        %v1976 = vadd.f32 %v1960, %v1968
        %v1977 = vadd.f32 %v1961, %v1969
        %v1978 = vmul.f32 %v1826, %v1129
        %v1979 = vmul.f32 %v1829, %v1134
        %v1980 = vmul.f32 %v1834, %v1139
        %v1981 = vmul.f32 %v1837, %v1144
        %v1982 = vmul.f32 %v1842, %v1149
        %v1983 = vmul.f32 %v1845, %v1154
        %v1984 = vmul.f32 %v1850, %v1159
        %v1985 = vmul.f32 %v1853, %v1164
        %v1986 = vmul.f32 %v1946, %v1177
        %v1987 = vmul.f32 %v1947, %v1182
        %v1988 = vmul.f32 %v1948, %v1187
        %v1989 = vmul.f32 %v1949, %v1192
        %v1990 = vmul.f32 %v1950, %v1197
        %v1991 = vmul.f32 %v1951, %v1202
        %v1992 = vmul.f32 %v1952, %v1207
        %v1993 = vmul.f32 %v1953, %v1212
        %v1994 = vadd.f32 %v1978, %v1986
        %v1995 = vadd.f32 %v1979, %v1987
        %v1996 = vadd.f32 %v1980, %v1988
        %v1997 = vadd.f32 %v1981, %v1989
        %v1998 = vadd.f32 %v1982, %v1990
        %v1999 = vadd.f32 %v1983, %v1991
        %v2000 = vadd.f32 %v1984, %v1992
        %v2001 = vadd.f32 %v1985, %v1993
        %v2002 = vmul.f32 %v1908, %v1233
        %v2003 = vmul.f32 %v1911, %v1238
        %v2004 = vmul.f32 %v1916, %v1243
        %v2005 = vmul.f32 %v1919, %v1248
        %v2006 = vmul.f32 %v1924, %v1253
        %v2007 = vmul.f32 %v1927, %v1258
        %v2008 = vmul.f32 %v1932, %v1263
        %v2009 = vmul.f32 %v1935, %v1268
        %v2010 = vmul.f32 %v1946, %v1281
        %v2011 = vmul.f32 %v1947, %v1286
        %v2012 = vmul.f32 %v1948, %v1291
        %v2013 = vmul.f32 %v1949, %v1296
        %v2014 = vmul.f32 %v1950, %v1301
        %v2015 = vmul.f32 %v1951, %v1306
        %v2016 = vmul.f32 %v1952, %v1311
        %v2017 = vmul.f32 %v1953, %v1316
        %v2018 = vadd.f32 %v2002, %v2010
        %v2019 = vadd.f32 %v2003, %v2011
        %v2020 = vadd.f32 %v2004, %v2012
        %v2021 = vadd.f32 %v2005, %v2013
        %v2022 = vadd.f32 %v2006, %v2014
        %v2023 = vadd.f32 %v2007, %v2015
        %v2024 = vadd.f32 %v2008, %v2016
        %v2025 = vadd.f32 %v2009, %v2017
        %v2026 = vmax.f32 %v1668, %v1970
        %v2027 = vmax.f32 %v1669, %v1971
        %v2028 = vmax.f32 %v1670, %v1972
        %v2029 = vmax.f32 %v1671, %v1973
        %v2030 = vmax.f32 %v1672, %v1974
        %v2031 = vmax.f32 %v1673, %v1975
        %v2032 = vmax.f32 %v1674, %v1976
        %v2033 = vmax.f32 %v1675, %v1977
        %v2034 = vmax.f32 %v1676, %v1994
        %v2035 = vmax.f32 %v1677, %v1995
        %v2036 = vmax.f32 %v1678, %v1996
        %v2037 = vmax.f32 %v1679, %v1997
        %v2038 = vmax.f32 %v1680, %v1998
        %v2039 = vmax.f32 %v1681, %v1999
        %v2040 = vmax.f32 %v1682, %v2000
        %v2041 = vmax.f32 %v1683, %v2001
        %v2042 = vmax.f32 %v1684, %v2018
        %v2043 = vmax.f32 %v1685, %v2019
        %v2044 = vmax.f32 %v1686, %v2020
        %v2045 = vmax.f32 %v1687, %v2021
        %v2046 = vmax.f32 %v1688, %v2022
        %v2047 = vmax.f32 %v1689, %v2023
        %v2048 = vmax.f32 %v1690, %v2024
        %v2049 = vmax.f32 %v1691, %v2025
        %s2050 = scalar_lea.vmem %s418, 48 [#allocation2]
        %v2051 = vld [vmem:[%s2050] sm:$0xf]
        %v2052 = vld [vmem:[%s2050 + $0x4] sm:$0xf]
        %v2053 = vld [vmem:[%s2050 + $0x8] sm:$0xf]
        %v2054 = vld [vmem:[%s2050 + $0xc] sm:$0xf]
        %v2059 = vunpack.c.l.b16 %v2051
        %v2060 = vunpack.c.l.b16 %v2052
        %v2061 = vunpack.c.l.b16 %v2053
        %v2062 = vunpack.c.l.b16 %v2054
        %v2063 = vpack.c.b16 %v2060, %v2059
        %v2064 = vpack.c.b16 %v2062, %v2061
        %2067 = vmatprep.subr.bf16.mxu0 0
        %2068 = vmatpush1.bf16.msra.mxu0 %v2063
        %2069 = vmatprep.subr.bf16.mxu0 0
        %2070 = vmatpush1.bf16.msra.mxu0 %v2064
        %2071 = vmatprep.subr.bf16.mxu0 0
        %2072 = vmatpush1.bf16.msra.mxu0 0
        %2073 = vmatprep.subr.bf16.mxu0 0
        %2074 = vmatpush1.bf16.msra.mxu0 0
        %2075 = vmatprep.subr.bf16.mxu0 0
        %2076 = vmatpush1.bf16.msra.mxu0 0
        %2077 = vmatprep.subr.bf16.mxu0 0
        %2078 = vmatpush1.bf16.msra.mxu0 0
        %2079 = vmatprep.subr.bf16.mxu0 0
        %2080 = vmatpush1.bf16.msra.mxu0 0
        %2081 = vmatprep.subr.bf16.mxu0 0
        %2082 = vmatpush1.bf16.msra.mxu0 0
        %2083 = vmatprep.subr.bf16.mxu0 0
        %2084 = vmatpush1.bf16.msra.mxu0 0
        %2085 = vmatprep.subr.bf16.mxu0 0
        %2086 = vmatpush1.bf16.msra.mxu0 0
        %2087 = vmatprep.subr.bf16.mxu0 0
        %2088 = vmatpush1.bf16.msra.mxu0 0
        %2089 = vmatprep.subr.bf16.mxu0 0
        %2090 = vmatpush1.bf16.msra.mxu0 0
        %2091 = vmatprep.subr.bf16.mxu0 0
        %2092 = vmatpush1.bf16.msra.mxu0 0
        %2093 = vmatprep.subr.bf16.mxu0 0
        %2094 = vmatpush1.bf16.msra.mxu0 0
        %2095 = vmatprep.subr.bf16.mxu0 0
        %2096 = vmatpush1.bf16.msra.mxu0 0
        %2097 = vmatprep.subr.bf16.mxu0 0
        %2098 = vmatpush1.bf16.msra.mxu0 0
        %2099 = vmatprep.mubr.bf16.mxu0 0
        %2100 = vmatmul.mubr.bf16.gmra.mrb[0].mxu0 %v622
        %v2101 = vpop.f32.mrb[0].mxu0
        %v2102 = vadd.f32 %v551, %v2101
        %v2103 = vpop.f32.mrb[0].mxu0
        %v2104 = vpop.f32.mrb[0].mxu0
        %v2105 = vadd.f32 %v556, %v2104
        %v2106 = vpop.f32.mrb[0].mxu0
        %2107 = vmatprep.mubr.bf16.mxu0 0
        %2108 = vmatmul.mubr.bf16.gmra.mrb[0].mxu0 %v625
        %v2109 = vpop.f32.mrb[0].mxu0
        %v2110 = vadd.f32 %v561, %v2109
        %v2111 = vpop.f32.mrb[0].mxu0
        %v2112 = vpop.f32.mrb[0].mxu0
        %v2113 = vadd.f32 %v566, %v2112
        %v2114 = vpop.f32.mrb[0].mxu0
        %2115 = vmatprep.mubr.bf16.mxu0 0
        %2116 = vmatmul.mubr.bf16.gmra.mrb[0].mxu0 %v628
        %v2117 = vpop.f32.mrb[0].mxu0
        %v2118 = vadd.f32 %v571, %v2117
        %v2119 = vpop.f32.mrb[0].mxu0
        %v2120 = vpop.f32.mrb[0].mxu0
        %v2121 = vadd.f32 %v576, %v2120
        %v2122 = vpop.f32.mrb[0].mxu0
        %2123 = vmatprep.mubr.bf16.mxu0 0
        %2124 = vmatmul.mubr.bf16.gmra.mrb[0].mxu0 %v631
        %v2125 = vpop.f32.mrb[0].mxu0
        %v2126 = vadd.f32 %v581, %v2125
        %v2127 = vpop.f32.mrb[0].mxu0
        %v2128 = vpop.f32.mrb[0].mxu0
        %v2129 = vadd.f32 %v586, %v2128
        %v2130 = vpop.f32.mrb[0].mxu0
        %2131 = vdwg.mxu0
        %s2132 = scalar_lea.vmem %s418, 112 [#allocation2]
        %v2133 = vld [vmem:[%s2132] sm:$0xf]
        %v2134 = vld [vmem:[%s2132 + $0x4] sm:$0xf]
        %v2135 = vld [vmem:[%s2132 + $0x8] sm:$0xf]
        %v2136 = vld [vmem:[%s2132 + $0xc] sm:$0xf]
        %v2141 = vunpack.c.l.b16 %v2133
        %v2142 = vunpack.c.l.b16 %v2134
        %v2143 = vunpack.c.l.b16 %v2135
        %v2144 = vunpack.c.l.b16 %v2136
        %v2145 = vpack.c.b16 %v2142, %v2141
        %v2146 = vpack.c.b16 %v2144, %v2143
        %2149 = vmatprep.subr.bf16.mxu0 0
        %2150 = vmatpush1.bf16.msra.mxu0 %v2145
        %2151 = vmatprep.subr.bf16.mxu0 0
        %2152 = vmatpush1.bf16.msra.mxu0 %v2146
        %2153 = vmatprep.subr.bf16.mxu0 0
        %2154 = vmatpush1.bf16.msra.mxu0 0
        %2155 = vmatprep.subr.bf16.mxu0 0
        %2156 = vmatpush1.bf16.msra.mxu0 0
        %2157 = vmatprep.subr.bf16.mxu0 0
        %2158 = vmatpush1.bf16.msra.mxu0 0
        %2159 = vmatprep.subr.bf16.mxu0 0
        %2160 = vmatpush1.bf16.msra.mxu0 0
        %2161 = vmatprep.subr.bf16.mxu0 0
        %2162 = vmatpush1.bf16.msra.mxu0 0
        %2163 = vmatprep.subr.bf16.mxu0 0
        %2164 = vmatpush1.bf16.msra.mxu0 0
        %2165 = vmatprep.subr.bf16.mxu0 0
        %2166 = vmatpush1.bf16.msra.mxu0 0
        %2167 = vmatprep.subr.bf16.mxu0 0
        %2168 = vmatpush1.bf16.msra.mxu0 0
        %2169 = vmatprep.subr.bf16.mxu0 0
        %2170 = vmatpush1.bf16.msra.mxu0 0
        %2171 = vmatprep.subr.bf16.mxu0 0
        %2172 = vmatpush1.bf16.msra.mxu0 0
        %2173 = vmatprep.subr.bf16.mxu0 0
        %2174 = vmatpush1.bf16.msra.mxu0 0
        %2175 = vmatprep.subr.bf16.mxu0 0
        %2176 = vmatpush1.bf16.msra.mxu0 0
        %2177 = vmatprep.subr.bf16.mxu0 0
        %2178 = vmatpush1.bf16.msra.mxu0 0
        %2179 = vmatprep.subr.bf16.mxu0 0
        %2180 = vmatpush1.bf16.msra.mxu0 0
        %2181 = vmatprep.mubr.bf16.mxu0 0
        %2182 = vmatmul.mubr.bf16.gmra.mrb[0].mxu0 %v776
        %v2183 = vpop.f32.mrb[0].mxu0
        %v2184 = vadd.f32 %v706, %v2183
        %v2185 = vpop.f32.mrb[0].mxu0
        %v2186 = vpop.f32.mrb[0].mxu0
        %v2187 = vadd.f32 %v711, %v2186
        %v2188 = vpop.f32.mrb[0].mxu0
        %2189 = vmatprep.mubr.bf16.mxu0 0
        %2190 = vmatmul.mubr.bf16.gmra.mrb[0].mxu0 %v779
        %v2191 = vpop.f32.mrb[0].mxu0
        %v2192 = vadd.f32 %v716, %v2191
        %v2193 = vpop.f32.mrb[0].mxu0
        %v2194 = vpop.f32.mrb[0].mxu0
        %v2195 = vadd.f32 %v721, %v2194
        %v2196 = vpop.f32.mrb[0].mxu0
        %2197 = vmatprep.mubr.bf16.mxu0 0
        %2198 = vmatmul.mubr.bf16.gmra.mrb[0].mxu0 %v782
        %v2199 = vpop.f32.mrb[0].mxu0
        %v2200 = vadd.f32 %v726, %v2199
        %v2201 = vpop.f32.mrb[0].mxu0
        %v2202 = vpop.f32.mrb[0].mxu0
        %v2203 = vadd.f32 %v731, %v2202
        %v2204 = vpop.f32.mrb[0].mxu0
        %2205 = vmatprep.mubr.bf16.mxu0 0
        %2206 = vmatmul.mubr.bf16.gmra.mrb[0].mxu0 %v785
        %v2207 = vpop.f32.mrb[0].mxu0
        %v2208 = vadd.f32 %v736, %v2207
        %v2209 = vpop.f32.mrb[0].mxu0
        %v2210 = vpop.f32.mrb[0].mxu0
        %v2211 = vadd.f32 %v741, %v2210
        %v2212 = vpop.f32.mrb[0].mxu0
        %2213 = vdwg.mxu0
        %s2214 = scalar_lea.vmem %s418, 176 [#allocation2]
        %v2215 = vld [vmem:[%s2214] sm:$0xf]
        %v2216 = vld [vmem:[%s2214 + $0x4] sm:$0xf]
        %v2217 = vld [vmem:[%s2214 + $0x8] sm:$0xf]
        %v2218 = vld [vmem:[%s2214 + $0xc] sm:$0xf]
        %v2223 = vunpack.c.l.b16 %v2215
        %v2224 = vunpack.c.l.b16 %v2216
        %v2225 = vunpack.c.l.b16 %v2217
        %v2226 = vunpack.c.l.b16 %v2218
        %v2227 = vpack.c.b16 %v2224, %v2223
        %v2228 = vpack.c.b16 %v2226, %v2225
        %2231 = vmatprep.subr.bf16.mxu0 0
        %2232 = vmatpush1.bf16.msra.mxu0 %v2227
        %2233 = vmatprep.subr.bf16.mxu0 0
        %2234 = vmatpush1.bf16.msra.mxu0 %v2228
        %2235 = vmatprep.subr.bf16.mxu0 0
        %2236 = vmatpush1.bf16.msra.mxu0 0
        %2237 = vmatprep.subr.bf16.mxu0 0
        %2238 = vmatpush1.bf16.msra.mxu0 0
        %2239 = vmatprep.subr.bf16.mxu0 0
        %2240 = vmatpush1.bf16.msra.mxu0 0
        %2241 = vmatprep.subr.bf16.mxu0 0
        %2242 = vmatpush1.bf16.msra.mxu0 0
        %2243 = vmatprep.subr.bf16.mxu0 0
        %2244 = vmatpush1.bf16.msra.mxu0 0
        %2245 = vmatprep.subr.bf16.mxu0 0
        %2246 = vmatpush1.bf16.msra.mxu0 0
        %2247 = vmatprep.subr.bf16.mxu0 0
        %2248 = vmatpush1.bf16.msra.mxu0 0
        %2249 = vmatprep.subr.bf16.mxu0 0
        %2250 = vmatpush1.bf16.msra.mxu0 0
        %2251 = vmatprep.subr.bf16.mxu0 0
        %2252 = vmatpush1.bf16.msra.mxu0 0
        %2253 = vmatprep.subr.bf16.mxu0 0
        %2254 = vmatpush1.bf16.msra.mxu0 0
        %2255 = vmatprep.subr.bf16.mxu0 0
        %2256 = vmatpush1.bf16.msra.mxu0 0
        %2257 = vmatprep.subr.bf16.mxu0 0
        %2258 = vmatpush1.bf16.msra.mxu0 0
        %2259 = vmatprep.subr.bf16.mxu0 0
        %2260 = vmatpush1.bf16.msra.mxu0 0
        %2261 = vmatprep.subr.bf16.mxu0 0
        %2262 = vmatpush1.bf16.msra.mxu0 0
        %2263 = vmatprep.mubr.bf16.mxu0 0
        %2264 = vmatmul.mubr.bf16.gmra.mrb[0].mxu0 %v930
        %v2265 = vpop.f32.mrb[0].mxu0
        %v2266 = vadd.f32 %v860, %v2265
        %v2267 = vpop.f32.mrb[0].mxu0
        %v2268 = vpop.f32.mrb[0].mxu0
        %v2269 = vadd.f32 %v865, %v2268
        %v2270 = vpop.f32.mrb[0].mxu0
        %2271 = vmatprep.mubr.bf16.mxu0 0
        %2272 = vmatmul.mubr.bf16.gmra.mrb[0].mxu0 %v933
        %v2273 = vpop.f32.mrb[0].mxu0
        %v2274 = vadd.f32 %v870, %v2273
        %v2275 = vpop.f32.mrb[0].mxu0
        %v2276 = vpop.f32.mrb[0].mxu0
        %v2277 = vadd.f32 %v875, %v2276
        %v2278 = vpop.f32.mrb[0].mxu0
        %2279 = vmatprep.mubr.bf16.mxu0 0
        %2280 = vmatmul.mubr.bf16.gmra.mrb[0].mxu0 %v936
        %v2281 = vpop.f32.mrb[0].mxu0
        %v2282 = vadd.f32 %v880, %v2281
        %v2283 = vpop.f32.mrb[0].mxu0
        %v2284 = vpop.f32.mrb[0].mxu0
        %v2285 = vadd.f32 %v885, %v2284
        %v2286 = vpop.f32.mrb[0].mxu0
        %2287 = vmatprep.mubr.bf16.mxu0 0
        %2288 = vmatmul.mubr.bf16.gmra.mrb[0].mxu0 %v939
        %v2289 = vpop.f32.mrb[0].mxu0
        %v2290 = vadd.f32 %v890, %v2289
        %v2291 = vpop.f32.mrb[0].mxu0
        %v2292 = vpop.f32.mrb[0].mxu0
        %v2293 = vadd.f32 %v895, %v2292
        %v2294 = vpop.f32.mrb[0].mxu0
        %2295 = vdwg.mxu0
        %v2296 = vmax.f32 %v2102, %v2184
        %v2297 = vmax.f32 %v2105, %v2187
        %v2298 = vmax.f32 %v2110, %v2192
        %v2299 = vmax.f32 %v2113, %v2195
        %v2300 = vmax.f32 %v2118, %v2200
        %v2301 = vmax.f32 %v2121, %v2203
        %v2302 = vmax.f32 %v2126, %v2208
        %v2303 = vmax.f32 %v2129, %v2211
        %v2304 = vmax.f32 %v2296, %v2266
        %v2305 = vmax.f32 %v2297, %v2269
        %v2306 = vmax.f32 %v2298, %v2274
        %v2307 = vmax.f32 %v2299, %v2277
        %v2308 = vmax.f32 %v2300, %v2282
        %v2309 = vmax.f32 %v2301, %v2285
        %v2310 = vmax.f32 %v2302, %v2290
        %v2311 = vmax.f32 %v2303, %v2293
        %v2312 = vmul.f32 %v2102, %v1025
        %v2313 = vmul.f32 %v2105, %v1030
        %v2314 = vmul.f32 %v2110, %v1035
        %v2315 = vmul.f32 %v2113, %v1040
        %v2316 = vmul.f32 %v2118, %v1045
        %v2317 = vmul.f32 %v2121, %v1050
        %v2318 = vmul.f32 %v2126, %v1055
        %v2319 = vmul.f32 %v2129, %v1060
        %v2320 = vmul.f32 %v2304, %v1073
        %v2321 = vmul.f32 %v2305, %v1078
        %v2322 = vmul.f32 %v2306, %v1083
        %v2323 = vmul.f32 %v2307, %v1088
        %v2324 = vmul.f32 %v2308, %v1093
        %v2325 = vmul.f32 %v2309, %v1098
        %v2326 = vmul.f32 %v2310, %v1103
        %v2327 = vmul.f32 %v2311, %v1108
        %v2328 = vadd.f32 %v2312, %v2320
        %v2329 = vadd.f32 %v2313, %v2321
        %v2330 = vadd.f32 %v2314, %v2322
        %v2331 = vadd.f32 %v2315, %v2323
        %v2332 = vadd.f32 %v2316, %v2324
        %v2333 = vadd.f32 %v2317, %v2325
        %v2334 = vadd.f32 %v2318, %v2326
        %v2335 = vadd.f32 %v2319, %v2327
        %v2336 = vmul.f32 %v2184, %v1129
        %v2337 = vmul.f32 %v2187, %v1134
        %v2338 = vmul.f32 %v2192, %v1139
        %v2339 = vmul.f32 %v2195, %v1144
        %v2340 = vmul.f32 %v2200, %v1149
        %v2341 = vmul.f32 %v2203, %v1154
        %v2342 = vmul.f32 %v2208, %v1159
        %v2343 = vmul.f32 %v2211, %v1164
        %v2344 = vmul.f32 %v2304, %v1177
        %v2345 = vmul.f32 %v2305, %v1182
        %v2346 = vmul.f32 %v2306, %v1187
        %v2347 = vmul.f32 %v2307, %v1192
        %v2348 = vmul.f32 %v2308, %v1197
        %v2349 = vmul.f32 %v2309, %v1202
        %v2350 = vmul.f32 %v2310, %v1207
        %v2351 = vmul.f32 %v2311, %v1212
        %v2352 = vadd.f32 %v2336, %v2344
        %v2353 = vadd.f32 %v2337, %v2345
        %v2354 = vadd.f32 %v2338, %v2346
        %v2355 = vadd.f32 %v2339, %v2347
        %v2356 = vadd.f32 %v2340, %v2348
        %v2357 = vadd.f32 %v2341, %v2349
        %v2358 = vadd.f32 %v2342, %v2350
        %v2359 = vadd.f32 %v2343, %v2351
        %v2360 = vmul.f32 %v2266, %v1233
        %v2361 = vmul.f32 %v2269, %v1238
        %v2362 = vmul.f32 %v2274, %v1243
        %v2363 = vmul.f32 %v2277, %v1248
        %v2364 = vmul.f32 %v2282, %v1253
        %v2365 = vmul.f32 %v2285, %v1258
        %v2366 = vmul.f32 %v2290, %v1263
        %v2367 = vmul.f32 %v2293, %v1268
        %v2368 = vmul.f32 %v2304, %v1281
        %v2369 = vmul.f32 %v2305, %v1286
        %v2370 = vmul.f32 %v2306, %v1291
        %v2371 = vmul.f32 %v2307, %v1296
        %v2372 = vmul.f32 %v2308, %v1301
        %v2373 = vmul.f32 %v2309, %v1306
        %v2374 = vmul.f32 %v2310, %v1311
        %v2375 = vmul.f32 %v2311, %v1316
        %v2376 = vadd.f32 %v2360, %v2368
        %v2377 = vadd.f32 %v2361, %v2369
        %v2378 = vadd.f32 %v2362, %v2370
        %v2379 = vadd.f32 %v2363, %v2371
        %v2380 = vadd.f32 %v2364, %v2372
        %v2381 = vadd.f32 %v2365, %v2373
        %v2382 = vadd.f32 %v2366, %v2374
        %v2383 = vadd.f32 %v2367, %v2375
        %v2384 = vmax.f32 %v2026, %v2328
        %v2385 = vmax.f32 %v2027, %v2329
        %v2386 = vmax.f32 %v2028, %v2330
        %v2387 = vmax.f32 %v2029, %v2331
        %v2388 = vmax.f32 %v2030, %v2332
        %v2389 = vmax.f32 %v2031, %v2333
        %v2390 = vmax.f32 %v2032, %v2334
        %v2391 = vmax.f32 %v2033, %v2335
        %v2392 = vmax.f32 %v2034, %v2352
        %v2393 = vmax.f32 %v2035, %v2353
        %v2394 = vmax.f32 %v2036, %v2354
        %v2395 = vmax.f32 %v2037, %v2355
        %v2396 = vmax.f32 %v2038, %v2356
        %v2397 = vmax.f32 %v2039, %v2357
        %v2398 = vmax.f32 %v2040, %v2358
        %v2399 = vmax.f32 %v2041, %v2359
        %v2400 = vmax.f32 %v2042, %v2376
        %v2401 = vmax.f32 %v2043, %v2377
        %v2402 = vmax.f32 %v2044, %v2378
        %v2403 = vmax.f32 %v2045, %v2379
        %v2404 = vmax.f32 %v2046, %v2380
        %v2405 = vmax.f32 %v2047, %v2381
        %v2406 = vmax.f32 %v2048, %v2382
        %v2407 = vmax.f32 %v2049, %v2383
        %v2408 = vmax.f32 %v2384, 0.0
        %v2409 = vmax.f32 %v2385, 0.0
        %v2410 = vmax.f32 %v2386, 0.0
        %v2411 = vmax.f32 %v2387, 0.0
        %v2412 = vmax.f32 %v2388, 0.0
        %v2413 = vmax.f32 %v2389, 0.0
        %v2414 = vmax.f32 %v2390, 0.0
        %v2415 = vmax.f32 %v2391, 0.0
        %v2416 = vpack.c.bf16 %v2409, %v2408
        %v2417 = vpack.c.bf16 %v2411, %v2410
        %v2418 = vpack.c.bf16 %v2413, %v2412
        %v2419 = vpack.c.bf16 %v2415, %v2414
        %v2424 = vunpack.c.l.b16 %v2416
        %v2425 = vunpack.c.h.b16 %v2416
        %v2426 = vunpack.c.l.b16 %v2417
        %v2427 = vunpack.c.h.b16 %v2417
        %v2428 = vunpack.c.l.b16 %v2418
        %v2429 = vunpack.c.h.b16 %v2418
        %v2430 = vunpack.c.l.b16 %v2419
        %v2431 = vunpack.c.h.b16 %v2419
        %v2432 = vpack.c.b16 %v2424, %v2424
        %v2433 = vpack.c.b16 %v2425, %v2425
        %v2434 = vpack.c.b16 %v2426, %v2426
        %v2435 = vpack.c.b16 %v2427, %v2427
        %v2436 = vpack.c.b16 %v2428, %v2428
        %v2437 = vpack.c.b16 %v2429, %v2429
        %v2438 = vpack.c.b16 %v2430, %v2430
        %v2439 = vpack.c.b16 %v2431, %v2431
        %vm2448 = vcmask 125952
        %2449 = vst.msk [vmem:[%s439] sm:$0xf] %vm2448, %v2432
        %2450 = vst.msk [vmem:[%s439 + $0x4] sm:$0xf] %vm2448, %v2433
        %2451 = vst.msk [vmem:[%s439 + $0x8] sm:$0xf] %vm2448, %v2434
        %2452 = vst.msk [vmem:[%s439 + $0xc] sm:$0xf] %vm2448, %v2435
        %2453 = vst.msk [vmem:[%s439 + $0x10] sm:$0xf] %vm2448, %v2436
        %2454 = vst.msk [vmem:[%s439 + $0x14] sm:$0xf] %vm2448, %v2437
        %2455 = vst.msk [vmem:[%s439 + $0x18] sm:$0xf] %vm2448, %v2438
        %2456 = vst.msk [vmem:[%s439 + $0x1c] sm:$0xf] %vm2448, %v2439
        %v2457 = vmax.f32 %v2392, 0.0
        %v2458 = vmax.f32 %v2393, 0.0
        %v2459 = vmax.f32 %v2394, 0.0
        %v2460 = vmax.f32 %v2395, 0.0
        %v2461 = vmax.f32 %v2396, 0.0
        %v2462 = vmax.f32 %v2397, 0.0
        %v2463 = vmax.f32 %v2398, 0.0
        %v2464 = vmax.f32 %v2399, 0.0
        %v2465 = vpack.c.bf16 %v2458, %v2457
        %v2466 = vpack.c.bf16 %v2460, %v2459
        %v2467 = vpack.c.bf16 %v2462, %v2461
        %v2468 = vpack.c.bf16 %v2464, %v2463
        %v2473 = vunpack.c.l.b16 %v2465
        %v2474 = vunpack.c.h.b16 %v2465
        %v2475 = vunpack.c.l.b16 %v2466
        %v2476 = vunpack.c.h.b16 %v2466
        %v2477 = vunpack.c.l.b16 %v2467
        %v2478 = vunpack.c.h.b16 %v2467
        %v2479 = vunpack.c.l.b16 %v2468
        %v2480 = vunpack.c.h.b16 %v2468
        %v2481 = vpack.c.b16 %v2473, %v2473
        %v2482 = vpack.c.b16 %v2474, %v2474
        %v2483 = vpack.c.b16 %v2475, %v2475
        %v2484 = vpack.c.b16 %v2476, %v2476
        %v2485 = vpack.c.b16 %v2477, %v2477
        %v2486 = vpack.c.b16 %v2478, %v2478
        %v2487 = vpack.c.b16 %v2479, %v2479
        %v2488 = vpack.c.b16 %v2480, %v2480
        %s2497 = scalar_lea.vmem %s439, 32 [#allocation3]
        %2498 = vst.msk [vmem:[%s2497] sm:$0xf] %vm2448, %v2481
        %2499 = vst.msk [vmem:[%s2497 + $0x4] sm:$0xf] %vm2448, %v2482
        %2500 = vst.msk [vmem:[%s2497 + $0x8] sm:$0xf] %vm2448, %v2483
        %2501 = vst.msk [vmem:[%s2497 + $0xc] sm:$0xf] %vm2448, %v2484
        %2502 = vst.msk [vmem:[%s2497 + $0x10] sm:$0xf] %vm2448, %v2485
        %2503 = vst.msk [vmem:[%s2497 + $0x14] sm:$0xf] %vm2448, %v2486
        %2504 = vst.msk [vmem:[%s2497 + $0x18] sm:$0xf] %vm2448, %v2487
        %2505 = vst.msk [vmem:[%s2497 + $0x1c] sm:$0xf] %vm2448, %v2488
        %v2506 = vmax.f32 %v2400, 0.0
        %v2507 = vmax.f32 %v2401, 0.0
        %v2508 = vmax.f32 %v2402, 0.0
        %v2509 = vmax.f32 %v2403, 0.0
        %v2510 = vmax.f32 %v2404, 0.0
        %v2511 = vmax.f32 %v2405, 0.0
        %v2512 = vmax.f32 %v2406, 0.0
        %v2513 = vmax.f32 %v2407, 0.0
        %v2514 = vpack.c.bf16 %v2507, %v2506
        %v2515 = vpack.c.bf16 %v2509, %v2508
        %v2516 = vpack.c.bf16 %v2511, %v2510
        %v2517 = vpack.c.bf16 %v2513, %v2512
        %v2522 = vunpack.c.l.b16 %v2514
        %v2523 = vunpack.c.h.b16 %v2514
        %v2524 = vunpack.c.l.b16 %v2515
        %v2525 = vunpack.c.h.b16 %v2515
        %v2526 = vunpack.c.l.b16 %v2516
        %v2527 = vunpack.c.h.b16 %v2516
        %v2528 = vunpack.c.l.b16 %v2517
        %v2529 = vunpack.c.h.b16 %v2517
        %v2530 = vpack.c.b16 %v2522, %v2522
        %v2531 = vpack.c.b16 %v2523, %v2523
        %v2532 = vpack.c.b16 %v2524, %v2524
        %v2533 = vpack.c.b16 %v2525, %v2525
        %v2534 = vpack.c.b16 %v2526, %v2526
        %v2535 = vpack.c.b16 %v2527, %v2527
        %v2536 = vpack.c.b16 %v2528, %v2528
        %v2537 = vpack.c.b16 %v2529, %v2529
        %s2546 = scalar_lea.vmem %s439, 64 [#allocation3]
        %2547 = vst.msk [vmem:[%s2546] sm:$0xf] %vm2448, %v2530
        %2548 = vst.msk [vmem:[%s2546 + $0x4] sm:$0xf] %vm2448, %v2531
        %2549 = vst.msk [vmem:[%s2546 + $0x8] sm:$0xf] %vm2448, %v2532
        %2550 = vst.msk [vmem:[%s2546 + $0xc] sm:$0xf] %vm2448, %v2533
        %2551 = vst.msk [vmem:[%s2546 + $0x10] sm:$0xf] %vm2448, %v2534
        %2552 = vst.msk [vmem:[%s2546 + $0x14] sm:$0xf] %vm2448, %v2535
        %2553 = vst.msk [vmem:[%s2546 + $0x18] sm:$0xf] %vm2448, %v2536
        %2554 = vst.msk [vmem:[%s2546 + $0x1c] sm:$0xf] %vm2448, %v2537
        %s2555 = sand.u32 %s128, 1
        %s2556 = sand.u32 %s128, 1
        %s2557 = smul.addr %s2556, 96
        %s2558 = scalar_lea.vmem [#allocation3], %s2557
        // Predicated region
        $region78: #{cen_cnn_forward.6} parent=72 // pred_check
          %p2559 = pneg %p138
        $region79: #{cen_cnn_forward.6} parent=72 // pred_check_branch
          %2561 = sbr.rel (%p2559) target = $region81
        $region80: #{cen_cnn_forward.6} parent=72 // pred_region
          %s2562 = smul.addr %s19, 8
          %s2563 = sadd.s32 %s20, %s2562
          %s2564 = smul.addr %s2563, 4
          %s2565 = scalar_lea.vmem %s4, %s2564
          // Predicated region
          $region82: #{cen_cnn_forward.6} parent=80 // pred_check
            _
          $region83: #{cen_cnn_forward.6} parent=80 // pred_check_branch
            %2567 = sbr.rel (0) target = $region85
          $region84: #{cen_cnn_forward.6} parent=80 // pred_region
            // Predicated region
            $region86: #{cen_cnn_forward.6} parent=84 // pred_check
              _
            $region87: #{cen_cnn_forward.6} parent=84 // pred_check_branch
              %2569 = sbr.rel target = $region89
            $region88: #{cen_cnn_forward.6} parent=84 // pred_region
              // Predicated region
              $region101: #{cen_cnn_forward.6} parent=88 // pred_check
                _
              $region102: #{cen_cnn_forward.6} parent=88 // pred_check_branch
                %2630 = sbr.rel (0) target = $region104
              $region103: #{cen_cnn_forward.6} parent=88 // pred_region
                loop: start=0, step=1, limit=1
                $region105: #{cen_cnn_forward.6} parent=103 // loop_pre_header
                  _
                $region106: #{cen_cnn_forward.6} parent=103 // loop_header
                  %s2632 = sphi 0, %s2636
                  %p2633 = scmp.ge.s32.totalorder %s2632, 1
                  %s2637 = sphi %s2558, %s2558
                  %s2638 = sphi %s2565, %s2565
                $region107: #{cen_cnn_forward.6} parent=103 // loop_header_branch
                  %2635 = sbr.rel (%p2633) target = $region111
                $region108: #{cen_cnn_forward.6} parent=103 // loop_body
                  _
                $region109: #{cen_cnn_forward.6} parent=103 // loop_footer
                  %s2636 = sadd.s32 1, %s2632
                $region110: #{cen_cnn_forward.6} parent=103 // loop_footer_branch
                  %2631 = sbr.rel target = $region106
                $region111: #{cen_cnn_forward.6} parent=103 // loop_exit
                  _
                loop: start=0, step=1, limit=1
                $region112: #{cen_cnn_forward.6} parent=103 // loop_pre_header
                  _
                $region113: #{cen_cnn_forward.6} parent=103 // loop_header
                  %s2641 = sphi 0, %s2645
                  %p2642 = scmp.ge.s32.totalorder %s2641, 1
                  %s2646 = sphi %s2558, %s2558
                  %s2647 = sphi %s2565, %s2565
                $region114: #{cen_cnn_forward.6} parent=103 // loop_header_branch
                  %2644 = sbr.rel (%p2642) target = $region118
                $region115: #{cen_cnn_forward.6} parent=103 // loop_body
                  %v2648 = vld [vmem:[%s2646] sm:$0xf]
                  %2649 = vst [vmem:[%s2647] sm:$0xf] %v2648
                  %v2650 = vld [vmem:[%s2646 + $0x4] sm:$0xf]
                  %2651 = vst [vmem:[%s2647 + $0x4] sm:$0xf] %v2650
                  %v2652 = vld [vmem:[%s2646 + $0x8] sm:$0xf]
                  %2653 = vst [vmem:[%s2647 + $0x8] sm:$0xf] %v2652
                  %v2654 = vld [vmem:[%s2646 + $0xc] sm:$0xf]
                  %2655 = vst [vmem:[%s2647 + $0xc] sm:$0xf] %v2654
                  %v2656 = vld [vmem:[%s2646 + $0x10] sm:$0xf]
                  %2657 = vst [vmem:[%s2647 + $0x10] sm:$0xf] %v2656
                  %v2658 = vld [vmem:[%s2646 + $0x14] sm:$0xf]
                  %2659 = vst [vmem:[%s2647 + $0x14] sm:$0xf] %v2658
                  %v2660 = vld [vmem:[%s2646 + $0x18] sm:$0xf]
                  %2661 = vst [vmem:[%s2647 + $0x18] sm:$0xf] %v2660
                  %v2662 = vld [vmem:[%s2646 + $0x1c] sm:$0xf]
                  %2663 = vst [vmem:[%s2647 + $0x1c] sm:$0xf] %v2662
                  %v2664 = vld [vmem:[%s2646 + $0x20] sm:$0xf]
                  %2665 = vst [vmem:[%s2647 + $0x80] sm:$0xf] %v2664
                  %v2666 = vld [vmem:[%s2646 + $0x24] sm:$0xf]
                  %2667 = vst [vmem:[%s2647 + $0x84] sm:$0xf] %v2666
                  %v2668 = vld [vmem:[%s2646 + $0x28] sm:$0xf]
                  %2669 = vst [vmem:[%s2647 + $0x88] sm:$0xf] %v2668
                  %v2670 = vld [vmem:[%s2646 + $0x2c] sm:$0xf]
                  %2671 = vst [vmem:[%s2647 + $0x8c] sm:$0xf] %v2670
                  %v2672 = vld [vmem:[%s2646 + $0x30] sm:$0xf]
                  %2673 = vst [vmem:[%s2647 + $0x90] sm:$0xf] %v2672
                  %v2674 = vld [vmem:[%s2646 + $0x34] sm:$0xf]
                  %2675 = vst [vmem:[%s2647 + $0x94] sm:$0xf] %v2674
                  %v2676 = vld [vmem:[%s2646 + $0x38] sm:$0xf]
                  %2677 = vst [vmem:[%s2647 + $0x98] sm:$0xf] %v2676
                  %v2678 = vld [vmem:[%s2646 + $0x3c] sm:$0xf]
                  %2679 = vst [vmem:[%s2647 + $0x9c] sm:$0xf] %v2678
                  %v2680 = vld [vmem:[%s2646 + $0x40] sm:$0xf]
                  %2681 = vst [vmem:[%s2647 + $0x100] sm:$0xf] %v2680
                  %v2682 = vld [vmem:[%s2646 + $0x44] sm:$0xf]
                  %2683 = vst [vmem:[%s2647 + $0x104] sm:$0xf] %v2682
                  %v2684 = vld [vmem:[%s2646 + $0x48] sm:$0xf]
                  %2685 = vst [vmem:[%s2647 + $0x108] sm:$0xf] %v2684
                  %v2686 = vld [vmem:[%s2646 + $0x4c] sm:$0xf]
                  %2687 = vst [vmem:[%s2647 + $0x10c] sm:$0xf] %v2686
                  %v2688 = vld [vmem:[%s2646 + $0x50] sm:$0xf]
                  %2689 = vst [vmem:[%s2647 + $0x110] sm:$0xf] %v2688
                  %v2690 = vld [vmem:[%s2646 + $0x54] sm:$0xf]
                  %2691 = vst [vmem:[%s2647 + $0x114] sm:$0xf] %v2690
                  %v2692 = vld [vmem:[%s2646 + $0x58] sm:$0xf]
                  %2693 = vst [vmem:[%s2647 + $0x118] sm:$0xf] %v2692
                  %v2694 = vld [vmem:[%s2646 + $0x5c] sm:$0xf]
                  %2695 = vst [vmem:[%s2647 + $0x11c] sm:$0xf] %v2694
                $region116: #{cen_cnn_forward.6} parent=103 // loop_footer
                  %s2645 = sadd.s32 1, %s2641
                $region117: #{cen_cnn_forward.6} parent=103 // loop_footer_branch
                  %2640 = sbr.rel target = $region113
                $region118: #{cen_cnn_forward.6} parent=103 // loop_exit
                  _
              $region104: #{cen_cnn_forward.6} parent=88 // pred_fallthru
                _
            $region89: #{cen_cnn_forward.6} parent=84 // pred_fallthru
              _
            // Predicated region
            $region90: #{cen_cnn_forward.6} parent=84 // pred_check
              _
            $region91: #{cen_cnn_forward.6} parent=84 // pred_check_branch
              %2571 = sbr.rel (0) target = $region93
            $region92: #{cen_cnn_forward.6} parent=84 // pred_region
              loop: start=0, step=1, limit=1
              $region94: #{cen_cnn_forward.6} parent=92 // loop_pre_header
                _
              $region95: #{cen_cnn_forward.6} parent=92 // loop_header
                %s2574 = sphi 0, %s2578
                %p2575 = scmp.ge.s32.totalorder %s2574, 1
                %s2579 = sphi %s2558, %s2558
                %s2580 = sphi %s2565, %s2565
              $region96: #{cen_cnn_forward.6} parent=92 // loop_header_branch
                %2577 = sbr.rel (%p2575) target = $region100
              $region97: #{cen_cnn_forward.6} parent=92 // loop_body
                %v2581 = vld [vmem:[%s2579] sm:$0xf]
                %2582 = vst [vmem:[%s2580] sm:$0xf] %v2581
                %v2583 = vld [vmem:[%s2579 + $0x4] sm:$0xf]
                %2584 = vst [vmem:[%s2580 + $0x4] sm:$0xf] %v2583
                %v2585 = vld [vmem:[%s2579 + $0x8] sm:$0xf]
                %2586 = vst [vmem:[%s2580 + $0x8] sm:$0xf] %v2585
                %v2587 = vld [vmem:[%s2579 + $0xc] sm:$0xf]
                %2588 = vst [vmem:[%s2580 + $0xc] sm:$0xf] %v2587
                %v2589 = vld [vmem:[%s2579 + $0x10] sm:$0xf]
                %2590 = vst [vmem:[%s2580 + $0x10] sm:$0xf] %v2589
                %v2591 = vld [vmem:[%s2579 + $0x14] sm:$0xf]
                %2592 = vst [vmem:[%s2580 + $0x14] sm:$0xf] %v2591
                %v2593 = vld [vmem:[%s2579 + $0x18] sm:$0xf]
                %2594 = vst [vmem:[%s2580 + $0x18] sm:$0xf] %v2593
                %v2595 = vld [vmem:[%s2579 + $0x1c] sm:$0xf]
                %2596 = vst [vmem:[%s2580 + $0x1c] sm:$0xf] %v2595
                %v2597 = vld [vmem:[%s2579 + $0x20] sm:$0xf]
                %2598 = vst [vmem:[%s2580 + $0x80] sm:$0xf] %v2597
                %v2599 = vld [vmem:[%s2579 + $0x24] sm:$0xf]
                %2600 = vst [vmem:[%s2580 + $0x84] sm:$0xf] %v2599
                %v2601 = vld [vmem:[%s2579 + $0x28] sm:$0xf]
                %2602 = vst [vmem:[%s2580 + $0x88] sm:$0xf] %v2601
                %v2603 = vld [vmem:[%s2579 + $0x2c] sm:$0xf]
                %2604 = vst [vmem:[%s2580 + $0x8c] sm:$0xf] %v2603
                %v2605 = vld [vmem:[%s2579 + $0x30] sm:$0xf]
                %2606 = vst [vmem:[%s2580 + $0x90] sm:$0xf] %v2605
                %v2607 = vld [vmem:[%s2579 + $0x34] sm:$0xf]
                %2608 = vst [vmem:[%s2580 + $0x94] sm:$0xf] %v2607
                %v2609 = vld [vmem:[%s2579 + $0x38] sm:$0xf]
                %2610 = vst [vmem:[%s2580 + $0x98] sm:$0xf] %v2609
                %v2611 = vld [vmem:[%s2579 + $0x3c] sm:$0xf]
                %2612 = vst [vmem:[%s2580 + $0x9c] sm:$0xf] %v2611
                %v2613 = vld [vmem:[%s2579 + $0x40] sm:$0xf]
                %2614 = vst [vmem:[%s2580 + $0x100] sm:$0xf] %v2613
                %v2615 = vld [vmem:[%s2579 + $0x44] sm:$0xf]
                %2616 = vst [vmem:[%s2580 + $0x104] sm:$0xf] %v2615
                %v2617 = vld [vmem:[%s2579 + $0x48] sm:$0xf]
                %2618 = vst [vmem:[%s2580 + $0x108] sm:$0xf] %v2617
                %v2619 = vld [vmem:[%s2579 + $0x4c] sm:$0xf]
                %2620 = vst [vmem:[%s2580 + $0x10c] sm:$0xf] %v2619
                %v2621 = vld [vmem:[%s2579 + $0x50] sm:$0xf]
                %2622 = vst [vmem:[%s2580 + $0x110] sm:$0xf] %v2621
                %v2623 = vld [vmem:[%s2579 + $0x54] sm:$0xf]
                %2624 = vst [vmem:[%s2580 + $0x114] sm:$0xf] %v2623
                %v2625 = vld [vmem:[%s2579 + $0x58] sm:$0xf]
                %2626 = vst [vmem:[%s2580 + $0x118] sm:$0xf] %v2625
                %v2627 = vld [vmem:[%s2579 + $0x5c] sm:$0xf]
                %2628 = vst [vmem:[%s2580 + $0x11c] sm:$0xf] %v2627
              $region98: #{cen_cnn_forward.6} parent=92 // loop_footer
                %s2578 = sadd.s32 1, %s2574
              $region99: #{cen_cnn_forward.6} parent=92 // loop_footer_branch
                %2573 = sbr.rel target = $region95
              $region100: #{cen_cnn_forward.6} parent=92 // loop_exit
                _
            $region93: #{cen_cnn_forward.6} parent=84 // pred_fallthru
              _
          $region85: #{cen_cnn_forward.6} parent=80 // pred_fallthru
            _
          %2696 = vnop
        $region81: #{cen_cnn_forward.6} parent=72 // pred_fallthru
          _
      $region73: #{cen_cnn_forward.6} parent=5 // pred_fallthru
        _
      %p2697 = scmp.le.s32.totalorder 2, %s10
      // Predicated region
      $region119: #{cen_cnn_forward.6} parent=5 // pred_check
        %p2698 = pneg %p2697
      $region120: #{cen_cnn_forward.6} parent=5 // pred_check_branch
        %2700 = sbr.rel (%p2698) target = $region122
      $region121: #{cen_cnn_forward.6} parent=5 // pred_region
        %s2701 = ssub.s32 %s10, 2
        // Predicated region
        $region123: #{cen_cnn_forward.6} parent=121 // pred_check
          %p2702 = pneg %p144
        $region124: #{cen_cnn_forward.6} parent=121 // pred_check_branch
          %2704 = sbr.rel (%p2702) target = $region126
        $region125: #{cen_cnn_forward.6} parent=121 // pred_region
          %s2705 = sand.u32 %s129, 1
          %s2706 = sand.u32 %s129, 1
          %s2707 = smul.addr %s2706, 96
          %s2708 = scalar_lea.vmem [#allocation3], %s2707
        $region126: #{cen_cnn_forward.6} parent=121 // pred_fallthru
          _
      $region122: #{cen_cnn_forward.6} parent=5 // pred_fallthru
        _
    $region6: #{cen_cnn_forward.6} parent=1 // loop_footer
      %s14 = sadd.s32 1, %s10
    $region7: #{cen_cnn_forward.6} parent=1 // loop_footer_branch
      %9 = sbr.rel target = $region3
    $region8: #{cen_cnn_forward.6} parent=1 // loop_exit
      _

// kernel: cen_cnn_forward.8
$region0: #{cen_cnn_forward.8}
  #allocation0 [shape = 'u32[]', space=smem, size = 0x4, offset = 0x4, fixed_abs, tag = 'smem constant byte address 0x4 - core index']
  #allocation1 [shape = 'u32[144,128]{1,0:T(1,128)}', space=vmem, size = 0x12000, scoped, tag = 'internal scratch']
  #allocation2 [shape = 'f32[2,128]{1,0:T(2,128)}', space=vmem, size = 0x400, scoped, tag = 'scratch operand']
  %s0 = inlined_call_operand.vmem [shape: bf16[2,3072], index: 0, kind: input, shape index: {}]
  %s1 = inlined_call_operand.vmem [shape: bf16[3072,256], index: 1, kind: input, shape index: {}]
  %s2 = inlined_call_operand.vmem [shape: f32[1,256], index: 2, kind: input, shape index: {}]
  %s3 = inlined_call_operand.vmem [shape: f32[2,256], index: 3, kind: output, shape index: {}]
  %s4 = sld [smem:[#allocation0]]
  $region94: #{cen_cnn_forward.8} parent=0
    _
  %s6 = ssub.s32 1, %s4
  %s7 = scalar_select 0, %s6, %s4
  $region1: #{cen_cnn_forward.8} parent=0
    #allocation3 [shape = 'u8[786432]{0}', space=vmem, size = 0xc0000, scoped, tag = 'input window, operand 1']
    loop: start=0, step=1, limit=6
    $region2: #{cen_cnn_forward.8} parent=1 // loop_pre_header
      _
    $region3: #{cen_cnn_forward.8} parent=1 // loop_header
      %s9 = sphi 0, %s13
      %p10 = scmp.ge.s32.totalorder %s9, 6
      %s16 = sphi 0, %s28
      %s17 = sphi 0, %s24
      %s18 = sphi 0, %s16
      %s19 = sphi 0, %s17
      %s20 = sphi 0, %s18
      %s21 = sphi 0, %s19
      %s31 = sphi 0, %s33
      %s34 = sphi 0, %s31
      %s35 = sphi 0, %s34
      %s51 = sphi 0, %s35
      %s59 = sphi 0, %s61
      %s62 = sphi 0, %s59
      %s63 = sphi 0, %s62
      %s79 = sphi 0, %s63
      %s85 = sphi 0, %s87
      %s88 = sphi 0, %s85
      %s89 = sphi 0, %s88
      %s105 = sphi 0, %s89
      %s111 = sphi 0, %s113
      %s114 = sphi 0, %s111
      %s115 = sphi 0, %s114
      %s131 = sphi 0, %s115
    $region4: #{cen_cnn_forward.8} parent=1 // loop_header_branch
      %12 = sbr.rel (%p10) target = $region8
    $region5: #{cen_cnn_forward.8} parent=1 // loop_body
      %s14 = ssub.s32 %s9, 1
      %s15 = ssub.s32 %s9, 2
      %s22 = sadd.s32 1, %s17
      %p23 = scmp.ge.s32.totalorder %s22, 2
      %s24 = scalar_select %p23, 0, %s22
      %s25 = sadd.s32 1, %s16
      %s26 = scalar_select %p23, %s25, %s16
      %p27 = scmp.ge.s32.totalorder %s26, 2
      %s28 = scalar_select %p27, 0, %s26
      %s29 = ssub.s32 %s17, %s24
      %p30 = scmp.eq.s32.totalorder %s29, 0
      %s32 = sadd.s32 %s31, 1
      %s33 = scalar_select %p30, %s31, %s32
      %p36 = pneg %p30
      %p37 = scmp.eq.s32.totalorder %s9, 3
      %p38 = por %p36, %p37
      %p39 = scmp.ne.s32.totalorder %s31, %s34
      %p40 = scmp.eq.s32.totalorder %s9, 0
      %p41 = por %p39, %p40
      %p42 = scmp.ne.s32.totalorder %s31, %s34
      %p43 = scmp.eq.s32.totalorder %s14, 3
      %p44 = por %p42, %p43
      %p45 = scmp.ne.s32.totalorder %s34, %s35
      %p46 = scmp.eq.s32.totalorder %s14, 0
      %p47 = por %p45, %p46
      %p48 = scmp.ne.s32.totalorder %s34, %s35
      %p49 = scmp.eq.s32.totalorder %s15, 3
      %p50 = por %p48, %p49
      %p52 = scmp.ne.s32.totalorder %s35, %s51
      %p53 = scmp.eq.s32.totalorder %s15, 0
      %p54 = por %p52, %p53
      %s55 = ssub.s32 %s17, %s24
      %s56 = ssub.s32 %s16, %s28
      %s57 = sor.u32 %s55, %s56
      %p58 = scmp.eq.s32.totalorder %s57, 0
      %s60 = sadd.s32 %s59, 1
      %s61 = scalar_select %p58, %s59, %s60
      %p64 = pneg %p58
      %p65 = scmp.eq.s32.totalorder %s9, 3
      %p66 = por %p64, %p65
      %p67 = scmp.ne.s32.totalorder %s59, %s62
      %p68 = scmp.eq.s32.totalorder %s9, 0
      %p69 = por %p67, %p68
      %p70 = scmp.ne.s32.totalorder %s59, %s62
      %p71 = scmp.eq.s32.totalorder %s14, 3
      %p72 = por %p70, %p71
      %p73 = scmp.ne.s32.totalorder %s62, %s63
      %p74 = scmp.eq.s32.totalorder %s14, 0
      %p75 = por %p73, %p74
      %p76 = scmp.ne.s32.totalorder %s62, %s63
      %p77 = scmp.eq.s32.totalorder %s15, 3
      %p78 = por %p76, %p77
      %p80 = scmp.ne.s32.totalorder %s63, %s79
      %p81 = scmp.eq.s32.totalorder %s15, 0
      %p82 = por %p80, %p81
      %s83 = ssub.s32 %s16, %s28
      %p84 = scmp.eq.s32.totalorder %s83, 0
      %s86 = sadd.s32 %s85, 1
      %s87 = scalar_select %p84, %s85, %s86
      %p90 = pneg %p84
      %p91 = scmp.eq.s32.totalorder %s9, 3
      %p92 = por %p90, %p91
      %p93 = scmp.ne.s32.totalorder %s85, %s88
      %p94 = scmp.eq.s32.totalorder %s9, 0
      %p95 = por %p93, %p94
      %p96 = scmp.ne.s32.totalorder %s85, %s88
      %p97 = scmp.eq.s32.totalorder %s14, 3
      %p98 = por %p96, %p97
      %p99 = scmp.ne.s32.totalorder %s88, %s89
      %p100 = scmp.eq.s32.totalorder %s14, 0
      %p101 = por %p99, %p100
      %p102 = scmp.ne.s32.totalorder %s88, %s89
      %p103 = scmp.eq.s32.totalorder %s15, 3
      %p104 = por %p102, %p103
      %p106 = scmp.ne.s32.totalorder %s89, %s105
      %p107 = scmp.eq.s32.totalorder %s15, 0
      %p108 = por %p106, %p107
      %s109 = ssub.s32 %s16, %s28
      %p110 = scmp.eq.s32.totalorder %s109, 0
      %s112 = sadd.s32 %s111, 1
      %s113 = scalar_select %p110, %s111, %s112
      %p116 = pneg %p110
      %p117 = scmp.eq.s32.totalorder %s9, 3
      %p118 = por %p116, %p117
      %p119 = scmp.ne.s32.totalorder %s111, %s114
      %p120 = scmp.eq.s32.totalorder %s9, 0
      %p121 = por %p119, %p120
      %p122 = scmp.ne.s32.totalorder %s111, %s114
      %p123 = scmp.eq.s32.totalorder %s14, 3
      %p124 = por %p122, %p123
      %p125 = scmp.ne.s32.totalorder %s114, %s115
      %p126 = scmp.eq.s32.totalorder %s14, 0
      %p127 = por %p125, %p126
      %p128 = scmp.ne.s32.totalorder %s114, %s115
      %p129 = scmp.eq.s32.totalorder %s15, 3
      %p130 = por %p128, %p129
      %p132 = scmp.ne.s32.totalorder %s115, %s131
      %p133 = scmp.eq.s32.totalorder %s15, 0
      %p134 = por %p132, %p133
      %p135 = scmp.le.s32.totalorder 1, %s9
      %p136 = scmp.lt.s32.totalorder %s9, 5
      %p137 = pnand %p135, %p136
      %p138 = pneg %p137
      // Predicated region
      $region9: #{cen_cnn_forward.8} parent=5 // pred_check
        _
      $region10: #{cen_cnn_forward.8} parent=5 // pred_check_branch
        %140 = sbr.rel (%p137) target = $region12
      $region11: #{cen_cnn_forward.8} parent=5 // pred_region
        %s141 = ssub.s32 %s9, 1
      $region12: #{cen_cnn_forward.8} parent=5 // pred_fallthru
        _
      %p142 = scmp.lt.s32.totalorder %s9, 4
      // Predicated region
      $region13: #{cen_cnn_forward.8} parent=5 // pred_check
        %p143 = pneg %p142
      $region14: #{cen_cnn_forward.8} parent=5 // pred_check_branch
        %145 = sbr.rel (%p143) target = $region16
      $region15: #{cen_cnn_forward.8} parent=5 // pred_region
        // Predicated region
        $region17: #{cen_cnn_forward.8} parent=15 // pred_check
          %p146 = pneg %p41
        $region18: #{cen_cnn_forward.8} parent=15 // pred_check_branch
          %148 = sbr.rel (%p146) target = $region20
        $region19: #{cen_cnn_forward.8} parent=15 // pred_region
          %s149 = smul.u32 12, %s17
          %p150 = scmp.lt.s32.totalorder %s149, 23
          %s151 = scalar_select %p150, %s149, 23
          %s152 = scalar_lea.vmem %s0, %s151
          %s153 = smul.u32 12, %s17
        $region20: #{cen_cnn_forward.8} parent=15 // pred_fallthru
          _
        // Predicated region
        $region21: #{cen_cnn_forward.8} parent=15 // pred_check
          %p154 = pneg %p69
        $region22: #{cen_cnn_forward.8} parent=15 // pred_check_branch
          %156 = sbr.rel (%p154) target = $region24
        $region23: #{cen_cnn_forward.8} parent=15 // pred_region
          %s157 = sand.u32 %s59, 1
          %s158 = sand.u32 %s59, 1
          %s159 = smul.addr %s158, 768
          %s160 = scalar_lea.vmem [#allocation3], %s159
          %s161 = smul.u32 192, %s17
          %s162 = smul.addr %s161, 2
          %s163 = sadd.s32 %s16, %s162
          %s164 = smul.addr %s163, 4
          %s165 = scalar_lea.vmem %s1, %s164
          // Predicated region
          $region25: #{cen_cnn_forward.8} parent=23 // pred_check
            _
          $region26: #{cen_cnn_forward.8} parent=23 // pred_check_branch
            %167 = sbr.rel (0) target = $region28
          $region27: #{cen_cnn_forward.8} parent=23 // pred_region
            // Predicated region
            $region29: #{cen_cnn_forward.8} parent=27 // pred_check
              _
            $region30: #{cen_cnn_forward.8} parent=27 // pred_check_branch
              %169 = sbr.rel target = $region32
            $region31: #{cen_cnn_forward.8} parent=27 // pred_region
              // Predicated region
              $region44: #{cen_cnn_forward.8} parent=31 // pred_check
                _
              $region45: #{cen_cnn_forward.8} parent=31 // pred_check_branch
                %566 = sbr.rel (0) target = $region47
              $region46: #{cen_cnn_forward.8} parent=31 // pred_region
                loop: start=0, step=1, limit=1
                $region48: #{cen_cnn_forward.8} parent=46 // loop_pre_header
                  _
                $region49: #{cen_cnn_forward.8} parent=46 // loop_header
                  %s568 = sphi 0, %s572
                  %p569 = scmp.ge.s32.totalorder %s568, 1
                  %s573 = sphi %s165, %s165
                  %s574 = sphi %s160, %s160
                $region50: #{cen_cnn_forward.8} parent=46 // loop_header_branch
                  %571 = sbr.rel (%p569) target = $region54
                $region51: #{cen_cnn_forward.8} parent=46 // loop_body
                  _
                $region52: #{cen_cnn_forward.8} parent=46 // loop_footer
                  %s572 = sadd.s32 1, %s568
                $region53: #{cen_cnn_forward.8} parent=46 // loop_footer_branch
                  %567 = sbr.rel target = $region49
                $region54: #{cen_cnn_forward.8} parent=46 // loop_exit
                  _
                loop: start=0, step=1, limit=1
                $region55: #{cen_cnn_forward.8} parent=46 // loop_pre_header
                  _
                $region56: #{cen_cnn_forward.8} parent=46 // loop_header
                  %s577 = sphi 0, %s581
                  %p578 = scmp.ge.s32.totalorder %s577, 1
                  %s582 = sphi %s165, %s165
                  %s583 = sphi %s160, %s160
                $region57: #{cen_cnn_forward.8} parent=46 // loop_header_branch
                  %580 = sbr.rel (%p578) target = $region61
                $region58: #{cen_cnn_forward.8} parent=46 // loop_body
                  %v584 = vld [vmem:[%s582] sm:$0xf]
                  %585 = vst [vmem:[%s583] sm:$0xf] %v584
                  %v586 = vld [vmem:[%s582 + $0x8] sm:$0xf]
                  %587 = vst [vmem:[%s583 + $0x4] sm:$0xf] %v586
                  %v588 = vld [vmem:[%s582 + $0x10] sm:$0xf]
                  %589 = vst [vmem:[%s583 + $0x8] sm:$0xf] %v588
                  %v590 = vld [vmem:[%s582 + $0x18] sm:$0xf]
                  %591 = vst [vmem:[%s583 + $0xc] sm:$0xf] %v590
                  %v592 = vld [vmem:[%s582 + $0x20] sm:$0xf]
                  %593 = vst [vmem:[%s583 + $0x10] sm:$0xf] %v592
                  %v594 = vld [vmem:[%s582 + $0x28] sm:$0xf]
                  %595 = vst [vmem:[%s583 + $0x14] sm:$0xf] %v594
                  %v596 = vld [vmem:[%s582 + $0x30] sm:$0xf]
                  %597 = vst [vmem:[%s583 + $0x18] sm:$0xf] %v596
                  %v598 = vld [vmem:[%s582 + $0x38] sm:$0xf]
                  %599 = vst [vmem:[%s583 + $0x1c] sm:$0xf] %v598
                  %v600 = vld [vmem:[%s582 + $0x40] sm:$0xf]
                  %601 = vst [vmem:[%s583 + $0x20] sm:$0xf] %v600
                  %v602 = vld [vmem:[%s582 + $0x48] sm:$0xf]
                  %603 = vst [vmem:[%s583 + $0x24] sm:$0xf] %v602
                  %v604 = vld [vmem:[%s582 + $0x50] sm:$0xf]
                  %605 = vst [vmem:[%s583 + $0x28] sm:$0xf] %v604
                  %v606 = vld [vmem:[%s582 + $0x58] sm:$0xf]
                  %607 = vst [vmem:[%s583 + $0x2c] sm:$0xf] %v606
                  %v608 = vld [vmem:[%s582 + $0x60] sm:$0xf]
                  %609 = vst [vmem:[%s583 + $0x30] sm:$0xf] %v608
                  %v610 = vld [vmem:[%s582 + $0x68] sm:$0xf]
                  %611 = vst [vmem:[%s583 + $0x34] sm:$0xf] %v610
                  %v612 = vld [vmem:[%s582 + $0x70] sm:$0xf]
                  %613 = vst [vmem:[%s583 + $0x38] sm:$0xf] %v612
                  %v614 = vld [vmem:[%s582 + $0x78] sm:$0xf]
                  %615 = vst [vmem:[%s583 + $0x3c] sm:$0xf] %v614
                  %v616 = vld [vmem:[%s582 + $0x80] sm:$0xf]
                  %617 = vst [vmem:[%s583 + $0x40] sm:$0xf] %v616
                  %v618 = vld [vmem:[%s582 + $0x88] sm:$0xf]
                  %619 = vst [vmem:[%s583 + $0x44] sm:$0xf] %v618
                  %v620 = vld [vmem:[%s582 + $0x90] sm:$0xf]
                  %621 = vst [vmem:[%s583 + $0x48] sm:$0xf] %v620
                  %v622 = vld [vmem:[%s582 + $0x98] sm:$0xf]
                  %623 = vst [vmem:[%s583 + $0x4c] sm:$0xf] %v622
                  %v624 = vld [vmem:[%s582 + $0xa0] sm:$0xf]
                  %625 = vst [vmem:[%s583 + $0x50] sm:$0xf] %v624
                  %v626 = vld [vmem:[%s582 + $0xa8] sm:$0xf]
                  %627 = vst [vmem:[%s583 + $0x54] sm:$0xf] %v626
                  %v628 = vld [vmem:[%s582 + $0xb0] sm:$0xf]
                  %629 = vst [vmem:[%s583 + $0x58] sm:$0xf] %v628
                  %v630 = vld [vmem:[%s582 + $0xb8] sm:$0xf]
                  %631 = vst [vmem:[%s583 + $0x5c] sm:$0xf] %v630
                  %v632 = vld [vmem:[%s582 + $0xc0] sm:$0xf]
                  %633 = vst [vmem:[%s583 + $0x60] sm:$0xf] %v632
                  %v634 = vld [vmem:[%s582 + $0xc8] sm:$0xf]
                  %635 = vst [vmem:[%s583 + $0x64] sm:$0xf] %v634
                  %v636 = vld [vmem:[%s582 + $0xd0] sm:$0xf]
                  %637 = vst [vmem:[%s583 + $0x68] sm:$0xf] %v636
                  %v638 = vld [vmem:[%s582 + $0xd8] sm:$0xf]
                  %639 = vst [vmem:[%s583 + $0x6c] sm:$0xf] %v638
                  %v640 = vld [vmem:[%s582 + $0xe0] sm:$0xf]
                  %641 = vst [vmem:[%s583 + $0x70] sm:$0xf] %v640
                  %v642 = vld [vmem:[%s582 + $0xe8] sm:$0xf]
                  %643 = vst [vmem:[%s583 + $0x74] sm:$0xf] %v642
                  %v644 = vld [vmem:[%s582 + $0xf0] sm:$0xf]
                  %645 = vst [vmem:[%s583 + $0x78] sm:$0xf] %v644
                  %v646 = vld [vmem:[%s582 + $0xf8] sm:$0xf]
                  %647 = vst [vmem:[%s583 + $0x7c] sm:$0xf] %v646
                  %v648 = vld [vmem:[%s582 + $0x100] sm:$0xf]
                  %649 = vst [vmem:[%s583 + $0x80] sm:$0xf] %v648
                  %v650 = vld [vmem:[%s582 + $0x108] sm:$0xf]
                  %651 = vst [vmem:[%s583 + $0x84] sm:$0xf] %v650
                  %v652 = vld [vmem:[%s582 + $0x110] sm:$0xf]
                  %653 = vst [vmem:[%s583 + $0x88] sm:$0xf] %v652
                  %v654 = vld [vmem:[%s582 + $0x118] sm:$0xf]
                  %655 = vst [vmem:[%s583 + $0x8c] sm:$0xf] %v654
                  %v656 = vld [vmem:[%s582 + $0x120] sm:$0xf]
                  %657 = vst [vmem:[%s583 + $0x90] sm:$0xf] %v656
                  %v658 = vld [vmem:[%s582 + $0x128] sm:$0xf]
                  %659 = vst [vmem:[%s583 + $0x94] sm:$0xf] %v658
                  %v660 = vld [vmem:[%s582 + $0x130] sm:$0xf]
                  %661 = vst [vmem:[%s583 + $0x98] sm:$0xf] %v660
                  %v662 = vld [vmem:[%s582 + $0x138] sm:$0xf]
                  %663 = vst [vmem:[%s583 + $0x9c] sm:$0xf] %v662
                  %v664 = vld [vmem:[%s582 + $0x140] sm:$0xf]
                  %665 = vst [vmem:[%s583 + $0xa0] sm:$0xf] %v664
                  %v666 = vld [vmem:[%s582 + $0x148] sm:$0xf]
                  %667 = vst [vmem:[%s583 + $0xa4] sm:$0xf] %v666
                  %v668 = vld [vmem:[%s582 + $0x150] sm:$0xf]
                  %669 = vst [vmem:[%s583 + $0xa8] sm:$0xf] %v668
                  %v670 = vld [vmem:[%s582 + $0x158] sm:$0xf]
                  %671 = vst [vmem:[%s583 + $0xac] sm:$0xf] %v670
                  %v672 = vld [vmem:[%s582 + $0x160] sm:$0xf]
                  %673 = vst [vmem:[%s583 + $0xb0] sm:$0xf] %v672
                  %v674 = vld [vmem:[%s582 + $0x168] sm:$0xf]
                  %675 = vst [vmem:[%s583 + $0xb4] sm:$0xf] %v674
                  %v676 = vld [vmem:[%s582 + $0x170] sm:$0xf]
                  %677 = vst [vmem:[%s583 + $0xb8] sm:$0xf] %v676
                  %v678 = vld [vmem:[%s582 + $0x178] sm:$0xf]
                  %679 = vst [vmem:[%s583 + $0xbc] sm:$0xf] %v678
                  %v680 = vld [vmem:[%s582 + $0x180] sm:$0xf]
                  %681 = vst [vmem:[%s583 + $0xc0] sm:$0xf] %v680
                  %v682 = vld [vmem:[%s582 + $0x188] sm:$0xf]
                  %683 = vst [vmem:[%s583 + $0xc4] sm:$0xf] %v682
                  %v684 = vld [vmem:[%s582 + $0x190] sm:$0xf]
                  %685 = vst [vmem:[%s583 + $0xc8] sm:$0xf] %v684
                  %v686 = vld [vmem:[%s582 + $0x198] sm:$0xf]
                  %687 = vst [vmem:[%s583 + $0xcc] sm:$0xf] %v686
                  %v688 = vld [vmem:[%s582 + $0x1a0] sm:$0xf]
                  %689 = vst [vmem:[%s583 + $0xd0] sm:$0xf] %v688
                  %v690 = vld [vmem:[%s582 + $0x1a8] sm:$0xf]
                  %691 = vst [vmem:[%s583 + $0xd4] sm:$0xf] %v690
                  %v692 = vld [vmem:[%s582 + $0x1b0] sm:$0xf]
                  %693 = vst [vmem:[%s583 + $0xd8] sm:$0xf] %v692
                  %v694 = vld [vmem:[%s582 + $0x1b8] sm:$0xf]
                  %695 = vst [vmem:[%s583 + $0xdc] sm:$0xf] %v694
                  %v696 = vld [vmem:[%s582 + $0x1c0] sm:$0xf]
                  %697 = vst [vmem:[%s583 + $0xe0] sm:$0xf] %v696
                  %v698 = vld [vmem:[%s582 + $0x1c8] sm:$0xf]
                  %699 = vst [vmem:[%s583 + $0xe4] sm:$0xf] %v698
                  %v700 = vld [vmem:[%s582 + $0x1d0] sm:$0xf]
                  %701 = vst [vmem:[%s583 + $0xe8] sm:$0xf] %v700
                  %v702 = vld [vmem:[%s582 + $0x1d8] sm:$0xf]
                  %703 = vst [vmem:[%s583 + $0xec] sm:$0xf] %v702
                  %v704 = vld [vmem:[%s582 + $0x1e0] sm:$0xf]
                  %705 = vst [vmem:[%s583 + $0xf0] sm:$0xf] %v704
                  %v706 = vld [vmem:[%s582 + $0x1e8] sm:$0xf]
                  %707 = vst [vmem:[%s583 + $0xf4] sm:$0xf] %v706
                  %v708 = vld [vmem:[%s582 + $0x1f0] sm:$0xf]
                  %709 = vst [vmem:[%s583 + $0xf8] sm:$0xf] %v708
                  %v710 = vld [vmem:[%s582 + $0x1f8] sm:$0xf]
                  %711 = vst [vmem:[%s583 + $0xfc] sm:$0xf] %v710
                  %v712 = vld [vmem:[%s582 + $0x200] sm:$0xf]
                  %713 = vst [vmem:[%s583 + $0x100] sm:$0xf] %v712
                  %v714 = vld [vmem:[%s582 + $0x208] sm:$0xf]
                  %715 = vst [vmem:[%s583 + $0x104] sm:$0xf] %v714
                  %v716 = vld [vmem:[%s582 + $0x210] sm:$0xf]
                  %717 = vst [vmem:[%s583 + $0x108] sm:$0xf] %v716
                  %v718 = vld [vmem:[%s582 + $0x218] sm:$0xf]
                  %719 = vst [vmem:[%s583 + $0x10c] sm:$0xf] %v718
                  %v720 = vld [vmem:[%s582 + $0x220] sm:$0xf]
                  %721 = vst [vmem:[%s583 + $0x110] sm:$0xf] %v720
                  %v722 = vld [vmem:[%s582 + $0x228] sm:$0xf]
                  %723 = vst [vmem:[%s583 + $0x114] sm:$0xf] %v722
                  %v724 = vld [vmem:[%s582 + $0x230] sm:$0xf]
                  %725 = vst [vmem:[%s583 + $0x118] sm:$0xf] %v724
                  %v726 = vld [vmem:[%s582 + $0x238] sm:$0xf]
                  %727 = vst [vmem:[%s583 + $0x11c] sm:$0xf] %v726
                  %v728 = vld [vmem:[%s582 + $0x240] sm:$0xf]
                  %729 = vst [vmem:[%s583 + $0x120] sm:$0xf] %v728
                  %v730 = vld [vmem:[%s582 + $0x248] sm:$0xf]
                  %731 = vst [vmem:[%s583 + $0x124] sm:$0xf] %v730
                  %v732 = vld [vmem:[%s582 + $0x250] sm:$0xf]
                  %733 = vst [vmem:[%s583 + $0x128] sm:$0xf] %v732
                  %v734 = vld [vmem:[%s582 + $0x258] sm:$0xf]
                  %735 = vst [vmem:[%s583 + $0x12c] sm:$0xf] %v734
                  %v736 = vld [vmem:[%s582 + $0x260] sm:$0xf]
                  %737 = vst [vmem:[%s583 + $0x130] sm:$0xf] %v736
                  %v738 = vld [vmem:[%s582 + $0x268] sm:$0xf]
                  %739 = vst [vmem:[%s583 + $0x134] sm:$0xf] %v738
                  %v740 = vld [vmem:[%s582 + $0x270] sm:$0xf]
                  %741 = vst [vmem:[%s583 + $0x138] sm:$0xf] %v740
                  %v742 = vld [vmem:[%s582 + $0x278] sm:$0xf]
                  %743 = vst [vmem:[%s583 + $0x13c] sm:$0xf] %v742
                  %v744 = vld [vmem:[%s582 + $0x280] sm:$0xf]
                  %745 = vst [vmem:[%s583 + $0x140] sm:$0xf] %v744
                  %v746 = vld [vmem:[%s582 + $0x288] sm:$0xf]
                  %747 = vst [vmem:[%s583 + $0x144] sm:$0xf] %v746
                  %v748 = vld [vmem:[%s582 + $0x290] sm:$0xf]
                  %749 = vst [vmem:[%s583 + $0x148] sm:$0xf] %v748
                  %v750 = vld [vmem:[%s582 + $0x298] sm:$0xf]
                  %751 = vst [vmem:[%s583 + $0x14c] sm:$0xf] %v750
                  %v752 = vld [vmem:[%s582 + $0x2a0] sm:$0xf]
                  %753 = vst [vmem:[%s583 + $0x150] sm:$0xf] %v752
                  %v754 = vld [vmem:[%s582 + $0x2a8] sm:$0xf]
                  %755 = vst [vmem:[%s583 + $0x154] sm:$0xf] %v754
                  %v756 = vld [vmem:[%s582 + $0x2b0] sm:$0xf]
                  %757 = vst [vmem:[%s583 + $0x158] sm:$0xf] %v756
                  %v758 = vld [vmem:[%s582 + $0x2b8] sm:$0xf]
                  %759 = vst [vmem:[%s583 + $0x15c] sm:$0xf] %v758
                  %v760 = vld [vmem:[%s582 + $0x2c0] sm:$0xf]
                  %761 = vst [vmem:[%s583 + $0x160] sm:$0xf] %v760
                  %v762 = vld [vmem:[%s582 + $0x2c8] sm:$0xf]
                  %763 = vst [vmem:[%s583 + $0x164] sm:$0xf] %v762
                  %v764 = vld [vmem:[%s582 + $0x2d0] sm:$0xf]
                  %765 = vst [vmem:[%s583 + $0x168] sm:$0xf] %v764
                  %v766 = vld [vmem:[%s582 + $0x2d8] sm:$0xf]
                  %767 = vst [vmem:[%s583 + $0x16c] sm:$0xf] %v766
                  %v768 = vld [vmem:[%s582 + $0x2e0] sm:$0xf]
                  %769 = vst [vmem:[%s583 + $0x170] sm:$0xf] %v768
                  %v770 = vld [vmem:[%s582 + $0x2e8] sm:$0xf]
                  %771 = vst [vmem:[%s583 + $0x174] sm:$0xf] %v770
                  %v772 = vld [vmem:[%s582 + $0x2f0] sm:$0xf]
                  %773 = vst [vmem:[%s583 + $0x178] sm:$0xf] %v772
                  %v774 = vld [vmem:[%s582 + $0x2f8] sm:$0xf]
                  %775 = vst [vmem:[%s583 + $0x17c] sm:$0xf] %v774
                  %v776 = vld [vmem:[%s582 + $0x300] sm:$0xf]
                  %777 = vst [vmem:[%s583 + $0x180] sm:$0xf] %v776
                  %v778 = vld [vmem:[%s582 + $0x308] sm:$0xf]
                  %779 = vst [vmem:[%s583 + $0x184] sm:$0xf] %v778
                  %v780 = vld [vmem:[%s582 + $0x310] sm:$0xf]
                  %781 = vst [vmem:[%s583 + $0x188] sm:$0xf] %v780
                  %v782 = vld [vmem:[%s582 + $0x318] sm:$0xf]
                  %783 = vst [vmem:[%s583 + $0x18c] sm:$0xf] %v782
                  %v784 = vld [vmem:[%s582 + $0x320] sm:$0xf]
                  %785 = vst [vmem:[%s583 + $0x190] sm:$0xf] %v784
                  %v786 = vld [vmem:[%s582 + $0x328] sm:$0xf]
                  %787 = vst [vmem:[%s583 + $0x194] sm:$0xf] %v786
                  %v788 = vld [vmem:[%s582 + $0x330] sm:$0xf]
                  %789 = vst [vmem:[%s583 + $0x198] sm:$0xf] %v788
                  %v790 = vld [vmem:[%s582 + $0x338] sm:$0xf]
                  %791 = vst [vmem:[%s583 + $0x19c] sm:$0xf] %v790
                  %v792 = vld [vmem:[%s582 + $0x340] sm:$0xf]
                  %793 = vst [vmem:[%s583 + $0x1a0] sm:$0xf] %v792
                  %v794 = vld [vmem:[%s582 + $0x348] sm:$0xf]
                  %795 = vst [vmem:[%s583 + $0x1a4] sm:$0xf] %v794
                  %v796 = vld [vmem:[%s582 + $0x350] sm:$0xf]
                  %797 = vst [vmem:[%s583 + $0x1a8] sm:$0xf] %v796
                  %v798 = vld [vmem:[%s582 + $0x358] sm:$0xf]
                  %799 = vst [vmem:[%s583 + $0x1ac] sm:$0xf] %v798
                  %v800 = vld [vmem:[%s582 + $0x360] sm:$0xf]
                  %801 = vst [vmem:[%s583 + $0x1b0] sm:$0xf] %v800
                  %v802 = vld [vmem:[%s582 + $0x368] sm:$0xf]
                  %803 = vst [vmem:[%s583 + $0x1b4] sm:$0xf] %v802
                  %v804 = vld [vmem:[%s582 + $0x370] sm:$0xf]
                  %805 = vst [vmem:[%s583 + $0x1b8] sm:$0xf] %v804
                  %v806 = vld [vmem:[%s582 + $0x378] sm:$0xf]
                  %807 = vst [vmem:[%s583 + $0x1bc] sm:$0xf] %v806
                  %v808 = vld [vmem:[%s582 + $0x380] sm:$0xf]
                  %809 = vst [vmem:[%s583 + $0x1c0] sm:$0xf] %v808
                  %v810 = vld [vmem:[%s582 + $0x388] sm:$0xf]
                  %811 = vst [vmem:[%s583 + $0x1c4] sm:$0xf] %v810
                  %v812 = vld [vmem:[%s582 + $0x390] sm:$0xf]
                  %813 = vst [vmem:[%s583 + $0x1c8] sm:$0xf] %v812
                  %v814 = vld [vmem:[%s582 + $0x398] sm:$0xf]
                  %815 = vst [vmem:[%s583 + $0x1cc] sm:$0xf] %v814
                  %v816 = vld [vmem:[%s582 + $0x3a0] sm:$0xf]
                  %817 = vst [vmem:[%s583 + $0x1d0] sm:$0xf] %v816
                  %v818 = vld [vmem:[%s582 + $0x3a8] sm:$0xf]
                  %819 = vst [vmem:[%s583 + $0x1d4] sm:$0xf] %v818
                  %v820 = vld [vmem:[%s582 + $0x3b0] sm:$0xf]
                  %821 = vst [vmem:[%s583 + $0x1d8] sm:$0xf] %v820
                  %v822 = vld [vmem:[%s582 + $0x3b8] sm:$0xf]
                  %823 = vst [vmem:[%s583 + $0x1dc] sm:$0xf] %v822
                  %v824 = vld [vmem:[%s582 + $0x3c0] sm:$0xf]
                  %825 = vst [vmem:[%s583 + $0x1e0] sm:$0xf] %v824
                  %v826 = vld [vmem:[%s582 + $0x3c8] sm:$0xf]
                  %827 = vst [vmem:[%s583 + $0x1e4] sm:$0xf] %v826
                  %v828 = vld [vmem:[%s582 + $0x3d0] sm:$0xf]
                  %829 = vst [vmem:[%s583 + $0x1e8] sm:$0xf] %v828
                  %v830 = vld [vmem:[%s582 + $0x3d8] sm:$0xf]
                  %831 = vst [vmem:[%s583 + $0x1ec] sm:$0xf] %v830
                  %v832 = vld [vmem:[%s582 + $0x3e0] sm:$0xf]
                  %833 = vst [vmem:[%s583 + $0x1f0] sm:$0xf] %v832
                  %v834 = vld [vmem:[%s582 + $0x3e8] sm:$0xf]
                  %835 = vst [vmem:[%s583 + $0x1f4] sm:$0xf] %v834
                  %v836 = vld [vmem:[%s582 + $0x3f0] sm:$0xf]
                  %837 = vst [vmem:[%s583 + $0x1f8] sm:$0xf] %v836
                  %v838 = vld [vmem:[%s582 + $0x3f8] sm:$0xf]
                  %839 = vst [vmem:[%s583 + $0x1fc] sm:$0xf] %v838
                  %v840 = vld [vmem:[%s582 + $0x400] sm:$0xf]
                  %841 = vst [vmem:[%s583 + $0x200] sm:$0xf] %v840
                  %v842 = vld [vmem:[%s582 + $0x408] sm:$0xf]
                  %843 = vst [vmem:[%s583 + $0x204] sm:$0xf] %v842
                  %v844 = vld [vmem:[%s582 + $0x410] sm:$0xf]
                  %845 = vst [vmem:[%s583 + $0x208] sm:$0xf] %v844
                  %v846 = vld [vmem:[%s582 + $0x418] sm:$0xf]
                  %847 = vst [vmem:[%s583 + $0x20c] sm:$0xf] %v846
                  %v848 = vld [vmem:[%s582 + $0x420] sm:$0xf]
                  %849 = vst [vmem:[%s583 + $0x210] sm:$0xf] %v848
                  %v850 = vld [vmem:[%s582 + $0x428] sm:$0xf]
                  %851 = vst [vmem:[%s583 + $0x214] sm:$0xf] %v850
                  %v852 = vld [vmem:[%s582 + $0x430] sm:$0xf]
                  %853 = vst [vmem:[%s583 + $0x218] sm:$0xf] %v852
                  %v854 = vld [vmem:[%s582 + $0x438] sm:$0xf]
                  %855 = vst [vmem:[%s583 + $0x21c] sm:$0xf] %v854
                  %v856 = vld [vmem:[%s582 + $0x440] sm:$0xf]
                  %857 = vst [vmem:[%s583 + $0x220] sm:$0xf] %v856
                  %v858 = vld [vmem:[%s582 + $0x448] sm:$0xf]
                  %859 = vst [vmem:[%s583 + $0x224] sm:$0xf] %v858
                  %v860 = vld [vmem:[%s582 + $0x450] sm:$0xf]
                  %861 = vst [vmem:[%s583 + $0x228] sm:$0xf] %v860
                  %v862 = vld [vmem:[%s582 + $0x458] sm:$0xf]
                  %863 = vst [vmem:[%s583 + $0x22c] sm:$0xf] %v862
                  %v864 = vld [vmem:[%s582 + $0x460] sm:$0xf]
                  %865 = vst [vmem:[%s583 + $0x230] sm:$0xf] %v864
                  %v866 = vld [vmem:[%s582 + $0x468] sm:$0xf]
                  %867 = vst [vmem:[%s583 + $0x234] sm:$0xf] %v866
                  %v868 = vld [vmem:[%s582 + $0x470] sm:$0xf]
                  %869 = vst [vmem:[%s583 + $0x238] sm:$0xf] %v868
                  %v870 = vld [vmem:[%s582 + $0x478] sm:$0xf]
                  %871 = vst [vmem:[%s583 + $0x23c] sm:$0xf] %v870
                  %v872 = vld [vmem:[%s582 + $0x480] sm:$0xf]
                  %873 = vst [vmem:[%s583 + $0x240] sm:$0xf] %v872
                  %v874 = vld [vmem:[%s582 + $0x488] sm:$0xf]
                  %875 = vst [vmem:[%s583 + $0x244] sm:$0xf] %v874
                  %v876 = vld [vmem:[%s582 + $0x490] sm:$0xf]
                  %877 = vst [vmem:[%s583 + $0x248] sm:$0xf] %v876
                  %v878 = vld [vmem:[%s582 + $0x498] sm:$0xf]
                  %879 = vst [vmem:[%s583 + $0x24c] sm:$0xf] %v878
                  %v880 = vld [vmem:[%s582 + $0x4a0] sm:$0xf]
                  %881 = vst [vmem:[%s583 + $0x250] sm:$0xf] %v880
                  %v882 = vld [vmem:[%s582 + $0x4a8] sm:$0xf]
                  %883 = vst [vmem:[%s583 + $0x254] sm:$0xf] %v882
                  %v884 = vld [vmem:[%s582 + $0x4b0] sm:$0xf]
                  %885 = vst [vmem:[%s583 + $0x258] sm:$0xf] %v884
                  %v886 = vld [vmem:[%s582 + $0x4b8] sm:$0xf]
                  %887 = vst [vmem:[%s583 + $0x25c] sm:$0xf] %v886
                  %v888 = vld [vmem:[%s582 + $0x4c0] sm:$0xf]
                  %889 = vst [vmem:[%s583 + $0x260] sm:$0xf] %v888
                  %v890 = vld [vmem:[%s582 + $0x4c8] sm:$0xf]
                  %891 = vst [vmem:[%s583 + $0x264] sm:$0xf] %v890
                  %v892 = vld [vmem:[%s582 + $0x4d0] sm:$0xf]
                  %893 = vst [vmem:[%s583 + $0x268] sm:$0xf] %v892
                  %v894 = vld [vmem:[%s582 + $0x4d8] sm:$0xf]
                  %895 = vst [vmem:[%s583 + $0x26c] sm:$0xf] %v894
                  %v896 = vld [vmem:[%s582 + $0x4e0] sm:$0xf]
                  %897 = vst [vmem:[%s583 + $0x270] sm:$0xf] %v896
                  %v898 = vld [vmem:[%s582 + $0x4e8] sm:$0xf]
                  %899 = vst [vmem:[%s583 + $0x274] sm:$0xf] %v898
                  %v900 = vld [vmem:[%s582 + $0x4f0] sm:$0xf]
                  %901 = vst [vmem:[%s583 + $0x278] sm:$0xf] %v900
                  %v902 = vld [vmem:[%s582 + $0x4f8] sm:$0xf]
                  %903 = vst [vmem:[%s583 + $0x27c] sm:$0xf] %v902
                  %v904 = vld [vmem:[%s582 + $0x500] sm:$0xf]
                  %905 = vst [vmem:[%s583 + $0x280] sm:$0xf] %v904
                  %v906 = vld [vmem:[%s582 + $0x508] sm:$0xf]
                  %907 = vst [vmem:[%s583 + $0x284] sm:$0xf] %v906
                  %v908 = vld [vmem:[%s582 + $0x510] sm:$0xf]
                  %909 = vst [vmem:[%s583 + $0x288] sm:$0xf] %v908
                  %v910 = vld [vmem:[%s582 + $0x518] sm:$0xf]
                  %911 = vst [vmem:[%s583 + $0x28c] sm:$0xf] %v910
                  %v912 = vld [vmem:[%s582 + $0x520] sm:$0xf]
                  %913 = vst [vmem:[%s583 + $0x290] sm:$0xf] %v912
                  %v914 = vld [vmem:[%s582 + $0x528] sm:$0xf]
                  %915 = vst [vmem:[%s583 + $0x294] sm:$0xf] %v914
                  %v916 = vld [vmem:[%s582 + $0x530] sm:$0xf]
                  %917 = vst [vmem:[%s583 + $0x298] sm:$0xf] %v916
                  %v918 = vld [vmem:[%s582 + $0x538] sm:$0xf]
                  %919 = vst [vmem:[%s583 + $0x29c] sm:$0xf] %v918
                  %v920 = vld [vmem:[%s582 + $0x540] sm:$0xf]
                  %921 = vst [vmem:[%s583 + $0x2a0] sm:$0xf] %v920
                  %v922 = vld [vmem:[%s582 + $0x548] sm:$0xf]
                  %923 = vst [vmem:[%s583 + $0x2a4] sm:$0xf] %v922
                  %v924 = vld [vmem:[%s582 + $0x550] sm:$0xf]
                  %925 = vst [vmem:[%s583 + $0x2a8] sm:$0xf] %v924
                  %v926 = vld [vmem:[%s582 + $0x558] sm:$0xf]
                  %927 = vst [vmem:[%s583 + $0x2ac] sm:$0xf] %v926
                  %v928 = vld [vmem:[%s582 + $0x560] sm:$0xf]
                  %929 = vst [vmem:[%s583 + $0x2b0] sm:$0xf] %v928
                  %v930 = vld [vmem:[%s582 + $0x568] sm:$0xf]
                  %931 = vst [vmem:[%s583 + $0x2b4] sm:$0xf] %v930
                  %v932 = vld [vmem:[%s582 + $0x570] sm:$0xf]
                  %933 = vst [vmem:[%s583 + $0x2b8] sm:$0xf] %v932
                  %v934 = vld [vmem:[%s582 + $0x578] sm:$0xf]
                  %935 = vst [vmem:[%s583 + $0x2bc] sm:$0xf] %v934
                  %v936 = vld [vmem:[%s582 + $0x580] sm:$0xf]
                  %937 = vst [vmem:[%s583 + $0x2c0] sm:$0xf] %v936
                  %v938 = vld [vmem:[%s582 + $0x588] sm:$0xf]
                  %939 = vst [vmem:[%s583 + $0x2c4] sm:$0xf] %v938
                  %v940 = vld [vmem:[%s582 + $0x590] sm:$0xf]
                  %941 = vst [vmem:[%s583 + $0x2c8] sm:$0xf] %v940
                  %v942 = vld [vmem:[%s582 + $0x598] sm:$0xf]
                  %943 = vst [vmem:[%s583 + $0x2cc] sm:$0xf] %v942
                  %v944 = vld [vmem:[%s582 + $0x5a0] sm:$0xf]
                  %945 = vst [vmem:[%s583 + $0x2d0] sm:$0xf] %v944
                  %v946 = vld [vmem:[%s582 + $0x5a8] sm:$0xf]
                  %947 = vst [vmem:[%s583 + $0x2d4] sm:$0xf] %v946
                  %v948 = vld [vmem:[%s582 + $0x5b0] sm:$0xf]
                  %949 = vst [vmem:[%s583 + $0x2d8] sm:$0xf] %v948
                  %v950 = vld [vmem:[%s582 + $0x5b8] sm:$0xf]
                  %951 = vst [vmem:[%s583 + $0x2dc] sm:$0xf] %v950
                  %v952 = vld [vmem:[%s582 + $0x5c0] sm:$0xf]
                  %953 = vst [vmem:[%s583 + $0x2e0] sm:$0xf] %v952
                  %v954 = vld [vmem:[%s582 + $0x5c8] sm:$0xf]
                  %955 = vst [vmem:[%s583 + $0x2e4] sm:$0xf] %v954
                  %v956 = vld [vmem:[%s582 + $0x5d0] sm:$0xf]
                  %957 = vst [vmem:[%s583 + $0x2e8] sm:$0xf] %v956
                  %v958 = vld [vmem:[%s582 + $0x5d8] sm:$0xf]
                  %959 = vst [vmem:[%s583 + $0x2ec] sm:$0xf] %v958
                  %v960 = vld [vmem:[%s582 + $0x5e0] sm:$0xf]
                  %961 = vst [vmem:[%s583 + $0x2f0] sm:$0xf] %v960
                  %v962 = vld [vmem:[%s582 + $0x5e8] sm:$0xf]
                  %963 = vst [vmem:[%s583 + $0x2f4] sm:$0xf] %v962
                  %v964 = vld [vmem:[%s582 + $0x5f0] sm:$0xf]
                  %965 = vst [vmem:[%s583 + $0x2f8] sm:$0xf] %v964
                  %v966 = vld [vmem:[%s582 + $0x5f8] sm:$0xf]
                  %967 = vst [vmem:[%s583 + $0x2fc] sm:$0xf] %v966
                $region59: #{cen_cnn_forward.8} parent=46 // loop_footer
                  %s581 = sadd.s32 1, %s577
                $region60: #{cen_cnn_forward.8} parent=46 // loop_footer_branch
                  %576 = sbr.rel target = $region56
                $region61: #{cen_cnn_forward.8} parent=46 // loop_exit
                  _
              $region47: #{cen_cnn_forward.8} parent=31 // pred_fallthru
                _
            $region32: #{cen_cnn_forward.8} parent=27 // pred_fallthru
              _
            // Predicated region
            $region33: #{cen_cnn_forward.8} parent=27 // pred_check
              _
            $region34: #{cen_cnn_forward.8} parent=27 // pred_check_branch
              %171 = sbr.rel (0) target = $region36
            $region35: #{cen_cnn_forward.8} parent=27 // pred_region
              loop: start=0, step=1, limit=1
              $region37: #{cen_cnn_forward.8} parent=35 // loop_pre_header
                _
              $region38: #{cen_cnn_forward.8} parent=35 // loop_header
                %s174 = sphi 0, %s178
                %p175 = scmp.ge.s32.totalorder %s174, 1
                %s179 = sphi %s165, %s165
                %s180 = sphi %s160, %s160
              $region39: #{cen_cnn_forward.8} parent=35 // loop_header_branch
                %177 = sbr.rel (%p175) target = $region43
              $region40: #{cen_cnn_forward.8} parent=35 // loop_body
                %v181 = vld [vmem:[%s179] sm:$0xf]
                %182 = vst [vmem:[%s180] sm:$0xf] %v181
                %v183 = vld [vmem:[%s179 + $0x8] sm:$0xf]
                %184 = vst [vmem:[%s180 + $0x4] sm:$0xf] %v183
                %v185 = vld [vmem:[%s179 + $0x10] sm:$0xf]
                %186 = vst [vmem:[%s180 + $0x8] sm:$0xf] %v185
                %v187 = vld [vmem:[%s179 + $0x18] sm:$0xf]
                %188 = vst [vmem:[%s180 + $0xc] sm:$0xf] %v187
                %v189 = vld [vmem:[%s179 + $0x20] sm:$0xf]
                %190 = vst [vmem:[%s180 + $0x10] sm:$0xf] %v189
                %v191 = vld [vmem:[%s179 + $0x28] sm:$0xf]
                %192 = vst [vmem:[%s180 + $0x14] sm:$0xf] %v191
                %v193 = vld [vmem:[%s179 + $0x30] sm:$0xf]
                %194 = vst [vmem:[%s180 + $0x18] sm:$0xf] %v193
                %v195 = vld [vmem:[%s179 + $0x38] sm:$0xf]
                %196 = vst [vmem:[%s180 + $0x1c] sm:$0xf] %v195
                %v197 = vld [vmem:[%s179 + $0x40] sm:$0xf]
                %198 = vst [vmem:[%s180 + $0x20] sm:$0xf] %v197
                %v199 = vld [vmem:[%s179 + $0x48] sm:$0xf]
                %200 = vst [vmem:[%s180 + $0x24] sm:$0xf] %v199
                %v201 = vld [vmem:[%s179 + $0x50] sm:$0xf]
                %202 = vst [vmem:[%s180 + $0x28] sm:$0xf] %v201
                %v203 = vld [vmem:[%s179 + $0x58] sm:$0xf]
                %204 = vst [vmem:[%s180 + $0x2c] sm:$0xf] %v203
                %v205 = vld [vmem:[%s179 + $0x60] sm:$0xf]
                %206 = vst [vmem:[%s180 + $0x30] sm:$0xf] %v205
                %v207 = vld [vmem:[%s179 + $0x68] sm:$0xf]
                %208 = vst [vmem:[%s180 + $0x34] sm:$0xf] %v207
                %v209 = vld [vmem:[%s179 + $0x70] sm:$0xf]
                %210 = vst [vmem:[%s180 + $0x38] sm:$0xf] %v209
                %v211 = vld [vmem:[%s179 + $0x78] sm:$0xf]
                %212 = vst [vmem:[%s180 + $0x3c] sm:$0xf] %v211
                %v213 = vld [vmem:[%s179 + $0x80] sm:$0xf]
                %214 = vst [vmem:[%s180 + $0x40] sm:$0xf] %v213
                %v215 = vld [vmem:[%s179 + $0x88] sm:$0xf]
                %216 = vst [vmem:[%s180 + $0x44] sm:$0xf] %v215
                %v217 = vld [vmem:[%s179 + $0x90] sm:$0xf]
                %218 = vst [vmem:[%s180 + $0x48] sm:$0xf] %v217
                %v219 = vld [vmem:[%s179 + $0x98] sm:$0xf]
                %220 = vst [vmem:[%s180 + $0x4c] sm:$0xf] %v219
                %v221 = vld [vmem:[%s179 + $0xa0] sm:$0xf]
                %222 = vst [vmem:[%s180 + $0x50] sm:$0xf] %v221
                %v223 = vld [vmem:[%s179 + $0xa8] sm:$0xf]
                %224 = vst [vmem:[%s180 + $0x54] sm:$0xf] %v223
                %v225 = vld [vmem:[%s179 + $0xb0] sm:$0xf]
                %226 = vst [vmem:[%s180 + $0x58] sm:$0xf] %v225
                %v227 = vld [vmem:[%s179 + $0xb8] sm:$0xf]
                %228 = vst [vmem:[%s180 + $0x5c] sm:$0xf] %v227
                %v229 = vld [vmem:[%s179 + $0xc0] sm:$0xf]
                %230 = vst [vmem:[%s180 + $0x60] sm:$0xf] %v229
                %v231 = vld [vmem:[%s179 + $0xc8] sm:$0xf]
                %232 = vst [vmem:[%s180 + $0x64] sm:$0xf] %v231
                %v233 = vld [vmem:[%s179 + $0xd0] sm:$0xf]
                %234 = vst [vmem:[%s180 + $0x68] sm:$0xf] %v233
                %v235 = vld [vmem:[%s179 + $0xd8] sm:$0xf]
                %236 = vst [vmem:[%s180 + $0x6c] sm:$0xf] %v235
                %v237 = vld [vmem:[%s179 + $0xe0] sm:$0xf]
                %238 = vst [vmem:[%s180 + $0x70] sm:$0xf] %v237
                %v239 = vld [vmem:[%s179 + $0xe8] sm:$0xf]
                %240 = vst [vmem:[%s180 + $0x74] sm:$0xf] %v239
                %v241 = vld [vmem:[%s179 + $0xf0] sm:$0xf]
                %242 = vst [vmem:[%s180 + $0x78] sm:$0xf] %v241
                %v243 = vld [vmem:[%s179 + $0xf8] sm:$0xf]
                %244 = vst [vmem:[%s180 + $0x7c] sm:$0xf] %v243
                %v245 = vld [vmem:[%s179 + $0x100] sm:$0xf]
                %246 = vst [vmem:[%s180 + $0x80] sm:$0xf] %v245
                %v247 = vld [vmem:[%s179 + $0x108] sm:$0xf]
                %248 = vst [vmem:[%s180 + $0x84] sm:$0xf] %v247
                %v249 = vld [vmem:[%s179 + $0x110] sm:$0xf]
                %250 = vst [vmem:[%s180 + $0x88] sm:$0xf] %v249
                %v251 = vld [vmem:[%s179 + $0x118] sm:$0xf]
                %252 = vst [vmem:[%s180 + $0x8c] sm:$0xf] %v251
                %v253 = vld [vmem:[%s179 + $0x120] sm:$0xf]
                %254 = vst [vmem:[%s180 + $0x90] sm:$0xf] %v253
                %v255 = vld [vmem:[%s179 + $0x128] sm:$0xf]
                %256 = vst [vmem:[%s180 + $0x94] sm:$0xf] %v255
                %v257 = vld [vmem:[%s179 + $0x130] sm:$0xf]
                %258 = vst [vmem:[%s180 + $0x98] sm:$0xf] %v257
                %v259 = vld [vmem:[%s179 + $0x138] sm:$0xf]
                %260 = vst [vmem:[%s180 + $0x9c] sm:$0xf] %v259
                %v261 = vld [vmem:[%s179 + $0x140] sm:$0xf]
                %262 = vst [vmem:[%s180 + $0xa0] sm:$0xf] %v261
                %v263 = vld [vmem:[%s179 + $0x148] sm:$0xf]
                %264 = vst [vmem:[%s180 + $0xa4] sm:$0xf] %v263
                %v265 = vld [vmem:[%s179 + $0x150] sm:$0xf]
                %266 = vst [vmem:[%s180 + $0xa8] sm:$0xf] %v265
                %v267 = vld [vmem:[%s179 + $0x158] sm:$0xf]
                %268 = vst [vmem:[%s180 + $0xac] sm:$0xf] %v267
                %v269 = vld [vmem:[%s179 + $0x160] sm:$0xf]
                %270 = vst [vmem:[%s180 + $0xb0] sm:$0xf] %v269
                %v271 = vld [vmem:[%s179 + $0x168] sm:$0xf]
                %272 = vst [vmem:[%s180 + $0xb4] sm:$0xf] %v271
                %v273 = vld [vmem:[%s179 + $0x170] sm:$0xf]
                %274 = vst [vmem:[%s180 + $0xb8] sm:$0xf] %v273
                %v275 = vld [vmem:[%s179 + $0x178] sm:$0xf]
                %276 = vst [vmem:[%s180 + $0xbc] sm:$0xf] %v275
                %v277 = vld [vmem:[%s179 + $0x180] sm:$0xf]
                %278 = vst [vmem:[%s180 + $0xc0] sm:$0xf] %v277
                %v279 = vld [vmem:[%s179 + $0x188] sm:$0xf]
                %280 = vst [vmem:[%s180 + $0xc4] sm:$0xf] %v279
                %v281 = vld [vmem:[%s179 + $0x190] sm:$0xf]
                %282 = vst [vmem:[%s180 + $0xc8] sm:$0xf] %v281
                %v283 = vld [vmem:[%s179 + $0x198] sm:$0xf]
                %284 = vst [vmem:[%s180 + $0xcc] sm:$0xf] %v283
                %v285 = vld [vmem:[%s179 + $0x1a0] sm:$0xf]
                %286 = vst [vmem:[%s180 + $0xd0] sm:$0xf] %v285
                %v287 = vld [vmem:[%s179 + $0x1a8] sm:$0xf]
                %288 = vst [vmem:[%s180 + $0xd4] sm:$0xf] %v287
                %v289 = vld [vmem:[%s179 + $0x1b0] sm:$0xf]
                %290 = vst [vmem:[%s180 + $0xd8] sm:$0xf] %v289
                %v291 = vld [vmem:[%s179 + $0x1b8] sm:$0xf]
                %292 = vst [vmem:[%s180 + $0xdc] sm:$0xf] %v291
                %v293 = vld [vmem:[%s179 + $0x1c0] sm:$0xf]
                %294 = vst [vmem:[%s180 + $0xe0] sm:$0xf] %v293
                %v295 = vld [vmem:[%s179 + $0x1c8] sm:$0xf]
                %296 = vst [vmem:[%s180 + $0xe4] sm:$0xf] %v295
                %v297 = vld [vmem:[%s179 + $0x1d0] sm:$0xf]
                %298 = vst [vmem:[%s180 + $0xe8] sm:$0xf] %v297
                %v299 = vld [vmem:[%s179 + $0x1d8] sm:$0xf]
                %300 = vst [vmem:[%s180 + $0xec] sm:$0xf] %v299
                %v301 = vld [vmem:[%s179 + $0x1e0] sm:$0xf]
                %302 = vst [vmem:[%s180 + $0xf0] sm:$0xf] %v301
                %v303 = vld [vmem:[%s179 + $0x1e8] sm:$0xf]
                %304 = vst [vmem:[%s180 + $0xf4] sm:$0xf] %v303
                %v305 = vld [vmem:[%s179 + $0x1f0] sm:$0xf]
                %306 = vst [vmem:[%s180 + $0xf8] sm:$0xf] %v305
                %v307 = vld [vmem:[%s179 + $0x1f8] sm:$0xf]
                %308 = vst [vmem:[%s180 + $0xfc] sm:$0xf] %v307
                %v309 = vld [vmem:[%s179 + $0x200] sm:$0xf]
                %310 = vst [vmem:[%s180 + $0x100] sm:$0xf] %v309
                %v311 = vld [vmem:[%s179 + $0x208] sm:$0xf]
                %312 = vst [vmem:[%s180 + $0x104] sm:$0xf] %v311
                %v313 = vld [vmem:[%s179 + $0x210] sm:$0xf]
                %314 = vst [vmem:[%s180 + $0x108] sm:$0xf] %v313
                %v315 = vld [vmem:[%s179 + $0x218] sm:$0xf]
                %316 = vst [vmem:[%s180 + $0x10c] sm:$0xf] %v315
                %v317 = vld [vmem:[%s179 + $0x220] sm:$0xf]
                %318 = vst [vmem:[%s180 + $0x110] sm:$0xf] %v317
                %v319 = vld [vmem:[%s179 + $0x228] sm:$0xf]
                %320 = vst [vmem:[%s180 + $0x114] sm:$0xf] %v319
                %v321 = vld [vmem:[%s179 + $0x230] sm:$0xf]
                %322 = vst [vmem:[%s180 + $0x118] sm:$0xf] %v321
                %v323 = vld [vmem:[%s179 + $0x238] sm:$0xf]
                %324 = vst [vmem:[%s180 + $0x11c] sm:$0xf] %v323
                %v325 = vld [vmem:[%s179 + $0x240] sm:$0xf]
                %326 = vst [vmem:[%s180 + $0x120] sm:$0xf] %v325
                %v327 = vld [vmem:[%s179 + $0x248] sm:$0xf]
                %328 = vst [vmem:[%s180 + $0x124] sm:$0xf] %v327
                %v329 = vld [vmem:[%s179 + $0x250] sm:$0xf]
                %330 = vst [vmem:[%s180 + $0x128] sm:$0xf] %v329
                %v331 = vld [vmem:[%s179 + $0x258] sm:$0xf]
                %332 = vst [vmem:[%s180 + $0x12c] sm:$0xf] %v331
                %v333 = vld [vmem:[%s179 + $0x260] sm:$0xf]
                %334 = vst [vmem:[%s180 + $0x130] sm:$0xf] %v333
                %v335 = vld [vmem:[%s179 + $0x268] sm:$0xf]
                %336 = vst [vmem:[%s180 + $0x134] sm:$0xf] %v335
                %v337 = vld [vmem:[%s179 + $0x270] sm:$0xf]
                %338 = vst [vmem:[%s180 + $0x138] sm:$0xf] %v337
                %v339 = vld [vmem:[%s179 + $0x278] sm:$0xf]
                %340 = vst [vmem:[%s180 + $0x13c] sm:$0xf] %v339
                %v341 = vld [vmem:[%s179 + $0x280] sm:$0xf]
                %342 = vst [vmem:[%s180 + $0x140] sm:$0xf] %v341
                %v343 = vld [vmem:[%s179 + $0x288] sm:$0xf]
                %344 = vst [vmem:[%s180 + $0x144] sm:$0xf] %v343
                %v345 = vld [vmem:[%s179 + $0x290] sm:$0xf]
                %346 = vst [vmem:[%s180 + $0x148] sm:$0xf] %v345
                %v347 = vld [vmem:[%s179 + $0x298] sm:$0xf]
                %348 = vst [vmem:[%s180 + $0x14c] sm:$0xf] %v347
                %v349 = vld [vmem:[%s179 + $0x2a0] sm:$0xf]
                %350 = vst [vmem:[%s180 + $0x150] sm:$0xf] %v349
                %v351 = vld [vmem:[%s179 + $0x2a8] sm:$0xf]
                %352 = vst [vmem:[%s180 + $0x154] sm:$0xf] %v351
                %v353 = vld [vmem:[%s179 + $0x2b0] sm:$0xf]
                %354 = vst [vmem:[%s180 + $0x158] sm:$0xf] %v353
                %v355 = vld [vmem:[%s179 + $0x2b8] sm:$0xf]
                %356 = vst [vmem:[%s180 + $0x15c] sm:$0xf] %v355
                %v357 = vld [vmem:[%s179 + $0x2c0] sm:$0xf]
                %358 = vst [vmem:[%s180 + $0x160] sm:$0xf] %v357
                %v359 = vld [vmem:[%s179 + $0x2c8] sm:$0xf]
                %360 = vst [vmem:[%s180 + $0x164] sm:$0xf] %v359
                %v361 = vld [vmem:[%s179 + $0x2d0] sm:$0xf]
                %362 = vst [vmem:[%s180 + $0x168] sm:$0xf] %v361
                %v363 = vld [vmem:[%s179 + $0x2d8] sm:$0xf]
                %364 = vst [vmem:[%s180 + $0x16c] sm:$0xf] %v363
                %v365 = vld [vmem:[%s179 + $0x2e0] sm:$0xf]
                %366 = vst [vmem:[%s180 + $0x170] sm:$0xf] %v365
                %v367 = vld [vmem:[%s179 + $0x2e8] sm:$0xf]
                %368 = vst [vmem:[%s180 + $0x174] sm:$0xf] %v367
                %v369 = vld [vmem:[%s179 + $0x2f0] sm:$0xf]
                %370 = vst [vmem:[%s180 + $0x178] sm:$0xf] %v369
                %v371 = vld [vmem:[%s179 + $0x2f8] sm:$0xf]
                %372 = vst [vmem:[%s180 + $0x17c] sm:$0xf] %v371
                %v373 = vld [vmem:[%s179 + $0x300] sm:$0xf]
                %374 = vst [vmem:[%s180 + $0x180] sm:$0xf] %v373
                %v375 = vld [vmem:[%s179 + $0x308] sm:$0xf]
                %376 = vst [vmem:[%s180 + $0x184] sm:$0xf] %v375
                %v377 = vld [vmem:[%s179 + $0x310] sm:$0xf]
                %378 = vst [vmem:[%s180 + $0x188] sm:$0xf] %v377
                %v379 = vld [vmem:[%s179 + $0x318] sm:$0xf]
                %380 = vst [vmem:[%s180 + $0x18c] sm:$0xf] %v379
                %v381 = vld [vmem:[%s179 + $0x320] sm:$0xf]
                %382 = vst [vmem:[%s180 + $0x190] sm:$0xf] %v381
                %v383 = vld [vmem:[%s179 + $0x328] sm:$0xf]
                %384 = vst [vmem:[%s180 + $0x194] sm:$0xf] %v383
                %v385 = vld [vmem:[%s179 + $0x330] sm:$0xf]
                %386 = vst [vmem:[%s180 + $0x198] sm:$0xf] %v385
                %v387 = vld [vmem:[%s179 + $0x338] sm:$0xf]
                %388 = vst [vmem:[%s180 + $0x19c] sm:$0xf] %v387
                %v389 = vld [vmem:[%s179 + $0x340] sm:$0xf]
                %390 = vst [vmem:[%s180 + $0x1a0] sm:$0xf] %v389
                %v391 = vld [vmem:[%s179 + $0x348] sm:$0xf]
                %392 = vst [vmem:[%s180 + $0x1a4] sm:$0xf] %v391
                %v393 = vld [vmem:[%s179 + $0x350] sm:$0xf]
                %394 = vst [vmem:[%s180 + $0x1a8] sm:$0xf] %v393
                %v395 = vld [vmem:[%s179 + $0x358] sm:$0xf]
                %396 = vst [vmem:[%s180 + $0x1ac] sm:$0xf] %v395
                %v397 = vld [vmem:[%s179 + $0x360] sm:$0xf]
                %398 = vst [vmem:[%s180 + $0x1b0] sm:$0xf] %v397
                %v399 = vld [vmem:[%s179 + $0x368] sm:$0xf]
                %400 = vst [vmem:[%s180 + $0x1b4] sm:$0xf] %v399
                %v401 = vld [vmem:[%s179 + $0x370] sm:$0xf]
                %402 = vst [vmem:[%s180 + $0x1b8] sm:$0xf] %v401
                %v403 = vld [vmem:[%s179 + $0x378] sm:$0xf]
                %404 = vst [vmem:[%s180 + $0x1bc] sm:$0xf] %v403
                %v405 = vld [vmem:[%s179 + $0x380] sm:$0xf]
                %406 = vst [vmem:[%s180 + $0x1c0] sm:$0xf] %v405
                %v407 = vld [vmem:[%s179 + $0x388] sm:$0xf]
                %408 = vst [vmem:[%s180 + $0x1c4] sm:$0xf] %v407
                %v409 = vld [vmem:[%s179 + $0x390] sm:$0xf]
                %410 = vst [vmem:[%s180 + $0x1c8] sm:$0xf] %v409
                %v411 = vld [vmem:[%s179 + $0x398] sm:$0xf]
                %412 = vst [vmem:[%s180 + $0x1cc] sm:$0xf] %v411
                %v413 = vld [vmem:[%s179 + $0x3a0] sm:$0xf]
                %414 = vst [vmem:[%s180 + $0x1d0] sm:$0xf] %v413
                %v415 = vld [vmem:[%s179 + $0x3a8] sm:$0xf]
                %416 = vst [vmem:[%s180 + $0x1d4] sm:$0xf] %v415
                %v417 = vld [vmem:[%s179 + $0x3b0] sm:$0xf]
                %418 = vst [vmem:[%s180 + $0x1d8] sm:$0xf] %v417
                %v419 = vld [vmem:[%s179 + $0x3b8] sm:$0xf]
                %420 = vst [vmem:[%s180 + $0x1dc] sm:$0xf] %v419
                %v421 = vld [vmem:[%s179 + $0x3c0] sm:$0xf]
                %422 = vst [vmem:[%s180 + $0x1e0] sm:$0xf] %v421
                %v423 = vld [vmem:[%s179 + $0x3c8] sm:$0xf]
                %424 = vst [vmem:[%s180 + $0x1e4] sm:$0xf] %v423
                %v425 = vld [vmem:[%s179 + $0x3d0] sm:$0xf]
                %426 = vst [vmem:[%s180 + $0x1e8] sm:$0xf] %v425
                %v427 = vld [vmem:[%s179 + $0x3d8] sm:$0xf]
                %428 = vst [vmem:[%s180 + $0x1ec] sm:$0xf] %v427
                %v429 = vld [vmem:[%s179 + $0x3e0] sm:$0xf]
                %430 = vst [vmem:[%s180 + $0x1f0] sm:$0xf] %v429
                %v431 = vld [vmem:[%s179 + $0x3e8] sm:$0xf]
                %432 = vst [vmem:[%s180 + $0x1f4] sm:$0xf] %v431
                %v433 = vld [vmem:[%s179 + $0x3f0] sm:$0xf]
                %434 = vst [vmem:[%s180 + $0x1f8] sm:$0xf] %v433
                %v435 = vld [vmem:[%s179 + $0x3f8] sm:$0xf]
                %436 = vst [vmem:[%s180 + $0x1fc] sm:$0xf] %v435
                %v437 = vld [vmem:[%s179 + $0x400] sm:$0xf]
                %438 = vst [vmem:[%s180 + $0x200] sm:$0xf] %v437
                %v439 = vld [vmem:[%s179 + $0x408] sm:$0xf]
                %440 = vst [vmem:[%s180 + $0x204] sm:$0xf] %v439
                %v441 = vld [vmem:[%s179 + $0x410] sm:$0xf]
                %442 = vst [vmem:[%s180 + $0x208] sm:$0xf] %v441
                %v443 = vld [vmem:[%s179 + $0x418] sm:$0xf]
                %444 = vst [vmem:[%s180 + $0x20c] sm:$0xf] %v443
                %v445 = vld [vmem:[%s179 + $0x420] sm:$0xf]
                %446 = vst [vmem:[%s180 + $0x210] sm:$0xf] %v445
                %v447 = vld [vmem:[%s179 + $0x428] sm:$0xf]
                %448 = vst [vmem:[%s180 + $0x214] sm:$0xf] %v447
                %v449 = vld [vmem:[%s179 + $0x430] sm:$0xf]
                %450 = vst [vmem:[%s180 + $0x218] sm:$0xf] %v449
                %v451 = vld [vmem:[%s179 + $0x438] sm:$0xf]
                %452 = vst [vmem:[%s180 + $0x21c] sm:$0xf] %v451
                %v453 = vld [vmem:[%s179 + $0x440] sm:$0xf]
                %454 = vst [vmem:[%s180 + $0x220] sm:$0xf] %v453
                %v455 = vld [vmem:[%s179 + $0x448] sm:$0xf]
                %456 = vst [vmem:[%s180 + $0x224] sm:$0xf] %v455
                %v457 = vld [vmem:[%s179 + $0x450] sm:$0xf]
                %458 = vst [vmem:[%s180 + $0x228] sm:$0xf] %v457
                %v459 = vld [vmem:[%s179 + $0x458] sm:$0xf]
                %460 = vst [vmem:[%s180 + $0x22c] sm:$0xf] %v459
                %v461 = vld [vmem:[%s179 + $0x460] sm:$0xf]
                %462 = vst [vmem:[%s180 + $0x230] sm:$0xf] %v461
                %v463 = vld [vmem:[%s179 + $0x468] sm:$0xf]
                %464 = vst [vmem:[%s180 + $0x234] sm:$0xf] %v463
                %v465 = vld [vmem:[%s179 + $0x470] sm:$0xf]
                %466 = vst [vmem:[%s180 + $0x238] sm:$0xf] %v465
                %v467 = vld [vmem:[%s179 + $0x478] sm:$0xf]
                %468 = vst [vmem:[%s180 + $0x23c] sm:$0xf] %v467
                %v469 = vld [vmem:[%s179 + $0x480] sm:$0xf]
                %470 = vst [vmem:[%s180 + $0x240] sm:$0xf] %v469
                %v471 = vld [vmem:[%s179 + $0x488] sm:$0xf]
                %472 = vst [vmem:[%s180 + $0x244] sm:$0xf] %v471
                %v473 = vld [vmem:[%s179 + $0x490] sm:$0xf]
                %474 = vst [vmem:[%s180 + $0x248] sm:$0xf] %v473
                %v475 = vld [vmem:[%s179 + $0x498] sm:$0xf]
                %476 = vst [vmem:[%s180 + $0x24c] sm:$0xf] %v475
                %v477 = vld [vmem:[%s179 + $0x4a0] sm:$0xf]
                %478 = vst [vmem:[%s180 + $0x250] sm:$0xf] %v477
                %v479 = vld [vmem:[%s179 + $0x4a8] sm:$0xf]
                %480 = vst [vmem:[%s180 + $0x254] sm:$0xf] %v479
                %v481 = vld [vmem:[%s179 + $0x4b0] sm:$0xf]
                %482 = vst [vmem:[%s180 + $0x258] sm:$0xf] %v481
                %v483 = vld [vmem:[%s179 + $0x4b8] sm:$0xf]
                %484 = vst [vmem:[%s180 + $0x25c] sm:$0xf] %v483
                %v485 = vld [vmem:[%s179 + $0x4c0] sm:$0xf]
                %486 = vst [vmem:[%s180 + $0x260] sm:$0xf] %v485
                %v487 = vld [vmem:[%s179 + $0x4c8] sm:$0xf]
                %488 = vst [vmem:[%s180 + $0x264] sm:$0xf] %v487
                %v489 = vld [vmem:[%s179 + $0x4d0] sm:$0xf]
                %490 = vst [vmem:[%s180 + $0x268] sm:$0xf] %v489
                %v491 = vld [vmem:[%s179 + $0x4d8] sm:$0xf]
                %492 = vst [vmem:[%s180 + $0x26c] sm:$0xf] %v491
                %v493 = vld [vmem:[%s179 + $0x4e0] sm:$0xf]
                %494 = vst [vmem:[%s180 + $0x270] sm:$0xf] %v493
                %v495 = vld [vmem:[%s179 + $0x4e8] sm:$0xf]
                %496 = vst [vmem:[%s180 + $0x274] sm:$0xf] %v495
                %v497 = vld [vmem:[%s179 + $0x4f0] sm:$0xf]
                %498 = vst [vmem:[%s180 + $0x278] sm:$0xf] %v497
                %v499 = vld [vmem:[%s179 + $0x4f8] sm:$0xf]
                %500 = vst [vmem:[%s180 + $0x27c] sm:$0xf] %v499
                %v501 = vld [vmem:[%s179 + $0x500] sm:$0xf]
                %502 = vst [vmem:[%s180 + $0x280] sm:$0xf] %v501
                %v503 = vld [vmem:[%s179 + $0x508] sm:$0xf]
                %504 = vst [vmem:[%s180 + $0x284] sm:$0xf] %v503
                %v505 = vld [vmem:[%s179 + $0x510] sm:$0xf]
                %506 = vst [vmem:[%s180 + $0x288] sm:$0xf] %v505
                %v507 = vld [vmem:[%s179 + $0x518] sm:$0xf]
                %508 = vst [vmem:[%s180 + $0x28c] sm:$0xf] %v507
                %v509 = vld [vmem:[%s179 + $0x520] sm:$0xf]
                %510 = vst [vmem:[%s180 + $0x290] sm:$0xf] %v509
                %v511 = vld [vmem:[%s179 + $0x528] sm:$0xf]
                %512 = vst [vmem:[%s180 + $0x294] sm:$0xf] %v511
                %v513 = vld [vmem:[%s179 + $0x530] sm:$0xf]
                %514 = vst [vmem:[%s180 + $0x298] sm:$0xf] %v513
                %v515 = vld [vmem:[%s179 + $0x538] sm:$0xf]
                %516 = vst [vmem:[%s180 + $0x29c] sm:$0xf] %v515
                %v517 = vld [vmem:[%s179 + $0x540] sm:$0xf]
                %518 = vst [vmem:[%s180 + $0x2a0] sm:$0xf] %v517
                %v519 = vld [vmem:[%s179 + $0x548] sm:$0xf]
                %520 = vst [vmem:[%s180 + $0x2a4] sm:$0xf] %v519
                %v521 = vld [vmem:[%s179 + $0x550] sm:$0xf]
                %522 = vst [vmem:[%s180 + $0x2a8] sm:$0xf] %v521
                %v523 = vld [vmem:[%s179 + $0x558] sm:$0xf]
                %524 = vst [vmem:[%s180 + $0x2ac] sm:$0xf] %v523
                %v525 = vld [vmem:[%s179 + $0x560] sm:$0xf]
                %526 = vst [vmem:[%s180 + $0x2b0] sm:$0xf] %v525
                %v527 = vld [vmem:[%s179 + $0x568] sm:$0xf]
                %528 = vst [vmem:[%s180 + $0x2b4] sm:$0xf] %v527
                %v529 = vld [vmem:[%s179 + $0x570] sm:$0xf]
                %530 = vst [vmem:[%s180 + $0x2b8] sm:$0xf] %v529
                %v531 = vld [vmem:[%s179 + $0x578] sm:$0xf]
                %532 = vst [vmem:[%s180 + $0x2bc] sm:$0xf] %v531
                %v533 = vld [vmem:[%s179 + $0x580] sm:$0xf]
                %534 = vst [vmem:[%s180 + $0x2c0] sm:$0xf] %v533
                %v535 = vld [vmem:[%s179 + $0x588] sm:$0xf]
                %536 = vst [vmem:[%s180 + $0x2c4] sm:$0xf] %v535
                %v537 = vld [vmem:[%s179 + $0x590] sm:$0xf]
                %538 = vst [vmem:[%s180 + $0x2c8] sm:$0xf] %v537
                %v539 = vld [vmem:[%s179 + $0x598] sm:$0xf]
                %540 = vst [vmem:[%s180 + $0x2cc] sm:$0xf] %v539
                %v541 = vld [vmem:[%s179 + $0x5a0] sm:$0xf]
                %542 = vst [vmem:[%s180 + $0x2d0] sm:$0xf] %v541
                %v543 = vld [vmem:[%s179 + $0x5a8] sm:$0xf]
                %544 = vst [vmem:[%s180 + $0x2d4] sm:$0xf] %v543
                %v545 = vld [vmem:[%s179 + $0x5b0] sm:$0xf]
                %546 = vst [vmem:[%s180 + $0x2d8] sm:$0xf] %v545
                %v547 = vld [vmem:[%s179 + $0x5b8] sm:$0xf]
                %548 = vst [vmem:[%s180 + $0x2dc] sm:$0xf] %v547
                %v549 = vld [vmem:[%s179 + $0x5c0] sm:$0xf]
                %550 = vst [vmem:[%s180 + $0x2e0] sm:$0xf] %v549
                %v551 = vld [vmem:[%s179 + $0x5c8] sm:$0xf]
                %552 = vst [vmem:[%s180 + $0x2e4] sm:$0xf] %v551
                %v553 = vld [vmem:[%s179 + $0x5d0] sm:$0xf]
                %554 = vst [vmem:[%s180 + $0x2e8] sm:$0xf] %v553
                %v555 = vld [vmem:[%s179 + $0x5d8] sm:$0xf]
                %556 = vst [vmem:[%s180 + $0x2ec] sm:$0xf] %v555
                %v557 = vld [vmem:[%s179 + $0x5e0] sm:$0xf]
                %558 = vst [vmem:[%s180 + $0x2f0] sm:$0xf] %v557
                %v559 = vld [vmem:[%s179 + $0x5e8] sm:$0xf]
                %560 = vst [vmem:[%s180 + $0x2f4] sm:$0xf] %v559
                %v561 = vld [vmem:[%s179 + $0x5f0] sm:$0xf]
                %562 = vst [vmem:[%s180 + $0x2f8] sm:$0xf] %v561
                %v563 = vld [vmem:[%s179 + $0x5f8] sm:$0xf]
                %564 = vst [vmem:[%s180 + $0x2fc] sm:$0xf] %v563
              $region41: #{cen_cnn_forward.8} parent=35 // loop_footer
                %s178 = sadd.s32 1, %s174
              $region42: #{cen_cnn_forward.8} parent=35 // loop_footer_branch
                %173 = sbr.rel target = $region38
              $region43: #{cen_cnn_forward.8} parent=35 // loop_exit
                _
            $region36: #{cen_cnn_forward.8} parent=27 // pred_fallthru
              _
          $region28: #{cen_cnn_forward.8} parent=23 // pred_fallthru
            _
          %968 = vnop
        $region24: #{cen_cnn_forward.8} parent=15 // pred_fallthru
          _
        // Predicated region
        $region62: #{cen_cnn_forward.8} parent=15 // pred_check
          %p969 = pneg %p95
        $region63: #{cen_cnn_forward.8} parent=15 // pred_check_branch
          %971 = sbr.rel (%p969) target = $region65
        $region64: #{cen_cnn_forward.8} parent=15 // pred_region
          %p972 = scmp.lt.s32.totalorder %s16, 1
          %s973 = scalar_select %p972, %s16, 1
          %s974 = scalar_lea.vmem %s2, %s973
        $region65: #{cen_cnn_forward.8} parent=15 // pred_fallthru
          _
      $region16: #{cen_cnn_forward.8} parent=5 // pred_fallthru
        _
      %p975 = scmp.le.s32.totalorder 1, %s9
      %p976 = scmp.lt.s32.totalorder %s9, 5
      %p977 = pnand %p975, %p976
      %p978 = pneg %p977
      // Predicated region
      $region66: #{cen_cnn_forward.8} parent=5 // pred_check
        _
      $region67: #{cen_cnn_forward.8} parent=5 // pred_check_branch
        %980 = sbr.rel (%p977) target = $region69
      $region68: #{cen_cnn_forward.8} parent=5 // pred_region
        %s981 = ssub.s32 %s9, 1
        %s982 = sand.u32 %s62, 1
        %s983 = sand.u32 %s62, 1
        %s984 = smul.addr %s983, 768
        %s985 = scalar_lea.vmem [#allocation3], %s984
        // Predicated region
        $region70: #{cen_cnn_forward.8} parent=68 // pred_check
          %p986 = pneg %p75
        $region71: #{cen_cnn_forward.8} parent=68 // pred_check_branch
          %988 = sbr.rel (%p986) target = $region73
        $region72: #{cen_cnn_forward.8} parent=68 // pred_region
          _
        $region73: #{cen_cnn_forward.8} parent=68 // pred_fallthru
          _
        %s989 = smul.u32 12, %s19
        %p990 = scmp.lt.s32.totalorder %s989, 23
        %s991 = scalar_select %p990, %s989, 23
        %s992 = scalar_lea.vmem %s0, %s991
        %p993 = pneg %p47
        %p994 = pneg %p44
        %s995 = sand.u32 %s62, 1
        %s996 = sand.u32 %s62, 1
        %s997 = smul.addr %s996, 768
        %s998 = scalar_lea.vmem [#allocation3], %s997
        %p999 = pneg %p75
        %p1000 = pneg %p72
        %p1001 = scmp.lt.s32.totalorder %s18, 1
        %s1002 = scalar_select %p1001, %s18, 1
        %s1003 = scalar_lea.vmem %s2, %s1002
        %p1004 = pneg %p101
        %p1005 = pneg %p98
        %p1006 = pneg %p127
        %p1007 = pneg %p124
        %p1008 = scmp.lt.s32.totalorder %s18, 1
        %s1009 = scalar_select %p1008, %s18, 1
        %s1010 = smul.addr %s1009, 2
        %s1011 = scalar_lea.vmem %s3, %s1010
        %s1012 = smul.u32 12, %s19
        %p1013 = scmp.lt.s32.totalorder %s1012, 23
        %s1014 = scalar_select %p1013, %s1012, 23
        %s1015 = scalar_lea.vmem %s0, %s1014
        %s1016 = smul.u32 12, %s19
        %s1017 = smul.u32 192, %s19
        %p1018 = scmp.lt.s32.totalorder %s18, 1
        %s1019 = scalar_select %p1018, %s18, 1
        %s1020 = scalar_lea.vmem %s2, %s1019
        %p1021 = scmp.lt.s32.totalorder %s18, 1
        %s1022 = scalar_select %p1021, %s18, 1
        %s1023 = smul.addr %s1022, 2
        %s1024 = scalar_lea.vmem %s3, %s1023
        %p1026 = scmp.eq.s32.totalorder %s19, 0
        // Predicated region
        $region74: #{cen_cnn_forward.8} parent=68 // pred_check
          %p1027 = pneg %p1026
        $region75: #{cen_cnn_forward.8} parent=68 // pred_check_branch
          %1029 = sbr.rel (%p1027) target = $region77
        $region76: #{cen_cnn_forward.8} parent=68 // pred_region
          %1030 = vst [vmem:[#allocation2] sm:$0x3] 0.0
        $region77: #{cen_cnn_forward.8} parent=68 // pred_fallthru
          _
        %v1031 = vld [vmem:[#allocation2] sm:$0x3]
        %v1032 = vld [vmem:[%s1015] sm:$0xff]
        %v1033 = vld [vmem:[%s1015 + $0x8] sm:$0xf]
        %v1034 = vld [vmem:[%s985] sm:$0xf]
        %v1035 = vld [vmem:[%s985 + $0x4] sm:$0xf]
        %v1036 = vld [vmem:[%s985 + $0x8] sm:$0xf]
        %v1037 = vld [vmem:[%s985 + $0xc] sm:$0xf]
        %v1038 = vld [vmem:[%s985 + $0x10] sm:$0xf]
        %v1039 = vld [vmem:[%s985 + $0x14] sm:$0xf]
        %v1040 = vld [vmem:[%s985 + $0x18] sm:$0xf]
        %v1041 = vld [vmem:[%s985 + $0x1c] sm:$0xf]
        %v1042 = vld [vmem:[%s985 + $0x20] sm:$0xf]
        %v1043 = vld [vmem:[%s985 + $0x24] sm:$0xf]
        %v1044 = vld [vmem:[%s985 + $0x28] sm:$0xf]
        %v1045 = vld [vmem:[%s985 + $0x2c] sm:$0xf]
        %v1046 = vld [vmem:[%s985 + $0x30] sm:$0xf]
        %v1047 = vld [vmem:[%s985 + $0x34] sm:$0xf]
        %v1048 = vld [vmem:[%s985 + $0x38] sm:$0xf]
        %v1049 = vld [vmem:[%s985 + $0x3c] sm:$0xf]
        %v1050 = vld [vmem:[%s985 + $0x40] sm:$0xf]
        %v1051 = vld [vmem:[%s985 + $0x44] sm:$0xf]
        %v1052 = vld [vmem:[%s985 + $0x48] sm:$0xf]
        %v1053 = vld [vmem:[%s985 + $0x4c] sm:$0xf]
        %v1054 = vld [vmem:[%s985 + $0x50] sm:$0xf]
        %v1055 = vld [vmem:[%s985 + $0x54] sm:$0xf]
        %v1056 = vld [vmem:[%s985 + $0x58] sm:$0xf]
        %v1057 = vld [vmem:[%s985 + $0x5c] sm:$0xf]
        %v1058 = vld [vmem:[%s985 + $0x60] sm:$0xf]
        %v1059 = vld [vmem:[%s985 + $0x64] sm:$0xf]
        %v1060 = vld [vmem:[%s985 + $0x68] sm:$0xf]
        %v1061 = vld [vmem:[%s985 + $0x6c] sm:$0xf]
        %v1062 = vld [vmem:[%s985 + $0x70] sm:$0xf]
        %v1063 = vld [vmem:[%s985 + $0x74] sm:$0xf]
        %v1064 = vld [vmem:[%s985 + $0x78] sm:$0xf]
        %v1065 = vld [vmem:[%s985 + $0x7c] sm:$0xf]
        %v1066 = vld [vmem:[%s985 + $0x80] sm:$0xf]
        %v1067 = vld [vmem:[%s985 + $0x84] sm:$0xf]
        %v1068 = vld [vmem:[%s985 + $0x88] sm:$0xf]
        %v1069 = vld [vmem:[%s985 + $0x8c] sm:$0xf]
        %v1070 = vld [vmem:[%s985 + $0x90] sm:$0xf]
        %v1071 = vld [vmem:[%s985 + $0x94] sm:$0xf]
        %v1072 = vld [vmem:[%s985 + $0x98] sm:$0xf]
        %v1073 = vld [vmem:[%s985 + $0x9c] sm:$0xf]
        %v1074 = vld [vmem:[%s985 + $0xa0] sm:$0xf]
        %v1075 = vld [vmem:[%s985 + $0xa4] sm:$0xf]
        %v1076 = vld [vmem:[%s985 + $0xa8] sm:$0xf]
        %v1077 = vld [vmem:[%s985 + $0xac] sm:$0xf]
        %v1078 = vld [vmem:[%s985 + $0xb0] sm:$0xf]
        %v1079 = vld [vmem:[%s985 + $0xb4] sm:$0xf]
        %v1080 = vld [vmem:[%s985 + $0xb8] sm:$0xf]
        %v1081 = vld [vmem:[%s985 + $0xbc] sm:$0xf]
        %v1082 = vld [vmem:[%s985 + $0xc0] sm:$0xf]
        %v1083 = vld [vmem:[%s985 + $0xc4] sm:$0xf]
        %v1084 = vld [vmem:[%s985 + $0xc8] sm:$0xf]
        %v1085 = vld [vmem:[%s985 + $0xcc] sm:$0xf]
        %v1086 = vld [vmem:[%s985 + $0xd0] sm:$0xf]
        %v1087 = vld [vmem:[%s985 + $0xd4] sm:$0xf]
        %v1088 = vld [vmem:[%s985 + $0xd8] sm:$0xf]
        %v1089 = vld [vmem:[%s985 + $0xdc] sm:$0xf]
        %v1090 = vld [vmem:[%s985 + $0xe0] sm:$0xf]
        %v1091 = vld [vmem:[%s985 + $0xe4] sm:$0xf]
        %v1092 = vld [vmem:[%s985 + $0xe8] sm:$0xf]
        %v1093 = vld [vmem:[%s985 + $0xec] sm:$0xf]
        %v1094 = vld [vmem:[%s985 + $0xf0] sm:$0xf]
        %v1095 = vld [vmem:[%s985 + $0xf4] sm:$0xf]
        %v1096 = vld [vmem:[%s985 + $0xf8] sm:$0xf]
        %v1097 = vld [vmem:[%s985 + $0xfc] sm:$0xf]
        %v1098 = vld [vmem:[%s985 + $0x100] sm:$0xf]
        %v1099 = vld [vmem:[%s985 + $0x104] sm:$0xf]
        %v1100 = vld [vmem:[%s985 + $0x108] sm:$0xf]
        %v1101 = vld [vmem:[%s985 + $0x10c] sm:$0xf]
        %v1102 = vld [vmem:[%s985 + $0x110] sm:$0xf]
        %v1103 = vld [vmem:[%s985 + $0x114] sm:$0xf]
        %v1104 = vld [vmem:[%s985 + $0x118] sm:$0xf]
        %v1105 = vld [vmem:[%s985 + $0x11c] sm:$0xf]
        %v1106 = vld [vmem:[%s985 + $0x120] sm:$0xf]
        %v1107 = vld [vmem:[%s985 + $0x124] sm:$0xf]
        %v1108 = vld [vmem:[%s985 + $0x128] sm:$0xf]
        %v1109 = vld [vmem:[%s985 + $0x12c] sm:$0xf]
        %v1110 = vld [vmem:[%s985 + $0x130] sm:$0xf]
        %v1111 = vld [vmem:[%s985 + $0x134] sm:$0xf]
        %v1112 = vld [vmem:[%s985 + $0x138] sm:$0xf]
        %v1113 = vld [vmem:[%s985 + $0x13c] sm:$0xf]
        %v1114 = vld [vmem:[%s985 + $0x140] sm:$0xf]
        %v1115 = vld [vmem:[%s985 + $0x144] sm:$0xf]
        %v1116 = vld [vmem:[%s985 + $0x148] sm:$0xf]
        %v1117 = vld [vmem:[%s985 + $0x14c] sm:$0xf]
        %v1118 = vld [vmem:[%s985 + $0x150] sm:$0xf]
        %v1119 = vld [vmem:[%s985 + $0x154] sm:$0xf]
        %v1120 = vld [vmem:[%s985 + $0x158] sm:$0xf]
        %v1121 = vld [vmem:[%s985 + $0x15c] sm:$0xf]
        %v1122 = vld [vmem:[%s985 + $0x160] sm:$0xf]
        %v1123 = vld [vmem:[%s985 + $0x164] sm:$0xf]
        %v1124 = vld [vmem:[%s985 + $0x168] sm:$0xf]
        %v1125 = vld [vmem:[%s985 + $0x16c] sm:$0xf]
        %v1126 = vld [vmem:[%s985 + $0x170] sm:$0xf]
        %v1127 = vld [vmem:[%s985 + $0x174] sm:$0xf]
        %v1128 = vld [vmem:[%s985 + $0x178] sm:$0xf]
        %v1129 = vld [vmem:[%s985 + $0x17c] sm:$0xf]
        %v1130 = vld [vmem:[%s985 + $0x180] sm:$0xf]
        %v1131 = vld [vmem:[%s985 + $0x184] sm:$0xf]
        %v1132 = vld [vmem:[%s985 + $0x188] sm:$0xf]
        %v1133 = vld [vmem:[%s985 + $0x18c] sm:$0xf]
        %v1134 = vld [vmem:[%s985 + $0x190] sm:$0xf]
        %v1135 = vld [vmem:[%s985 + $0x194] sm:$0xf]
        %v1136 = vld [vmem:[%s985 + $0x198] sm:$0xf]
        %v1137 = vld [vmem:[%s985 + $0x19c] sm:$0xf]
        %v1138 = vld [vmem:[%s985 + $0x1a0] sm:$0xf]
        %v1139 = vld [vmem:[%s985 + $0x1a4] sm:$0xf]
        %v1140 = vld [vmem:[%s985 + $0x1a8] sm:$0xf]
        %v1141 = vld [vmem:[%s985 + $0x1ac] sm:$0xf]
        %v1142 = vld [vmem:[%s985 + $0x1b0] sm:$0xf]
        %v1143 = vld [vmem:[%s985 + $0x1b4] sm:$0xf]
        %v1144 = vld [vmem:[%s985 + $0x1b8] sm:$0xf]
        %v1145 = vld [vmem:[%s985 + $0x1bc] sm:$0xf]
        %v1146 = vld [vmem:[%s985 + $0x1c0] sm:$0xf]
        %v1147 = vld [vmem:[%s985 + $0x1c4] sm:$0xf]
        %v1148 = vld [vmem:[%s985 + $0x1c8] sm:$0xf]
        %v1149 = vld [vmem:[%s985 + $0x1cc] sm:$0xf]
        %v1150 = vld [vmem:[%s985 + $0x1d0] sm:$0xf]
        %v1151 = vld [vmem:[%s985 + $0x1d4] sm:$0xf]
        %v1152 = vld [vmem:[%s985 + $0x1d8] sm:$0xf]
        %v1153 = vld [vmem:[%s985 + $0x1dc] sm:$0xf]
        %v1154 = vld [vmem:[%s985 + $0x1e0] sm:$0xf]
        %v1155 = vld [vmem:[%s985 + $0x1e4] sm:$0xf]
        %v1156 = vld [vmem:[%s985 + $0x1e8] sm:$0xf]
        %v1157 = vld [vmem:[%s985 + $0x1ec] sm:$0xf]
        %v1158 = vld [vmem:[%s985 + $0x1f0] sm:$0xf]
        %v1159 = vld [vmem:[%s985 + $0x1f4] sm:$0xf]
        %v1160 = vld [vmem:[%s985 + $0x1f8] sm:$0xf]
        %v1161 = vld [vmem:[%s985 + $0x1fc] sm:$0xf]
        %v1162 = vld [vmem:[%s985 + $0x200] sm:$0xf]
        %v1163 = vld [vmem:[%s985 + $0x204] sm:$0xf]
        %v1164 = vld [vmem:[%s985 + $0x208] sm:$0xf]
        %v1165 = vld [vmem:[%s985 + $0x20c] sm:$0xf]
        %v1166 = vld [vmem:[%s985 + $0x210] sm:$0xf]
        %v1167 = vld [vmem:[%s985 + $0x214] sm:$0xf]
        %v1168 = vld [vmem:[%s985 + $0x218] sm:$0xf]
        %v1169 = vld [vmem:[%s985 + $0x21c] sm:$0xf]
        %v1170 = vld [vmem:[%s985 + $0x220] sm:$0xf]
        %v1171 = vld [vmem:[%s985 + $0x224] sm:$0xf]
        %v1172 = vld [vmem:[%s985 + $0x228] sm:$0xf]
        %v1173 = vld [vmem:[%s985 + $0x22c] sm:$0xf]
        %v1174 = vld [vmem:[%s985 + $0x230] sm:$0xf]
        %v1175 = vld [vmem:[%s985 + $0x234] sm:$0xf]
        %v1176 = vld [vmem:[%s985 + $0x238] sm:$0xf]
        %v1177 = vld [vmem:[%s985 + $0x23c] sm:$0xf]
        %v1178 = vld [vmem:[%s985 + $0x240] sm:$0xf]
        %v1179 = vld [vmem:[%s985 + $0x244] sm:$0xf]
        %v1180 = vld [vmem:[%s985 + $0x248] sm:$0xf]
        %v1181 = vld [vmem:[%s985 + $0x24c] sm:$0xf]
        %v1182 = vld [vmem:[%s985 + $0x250] sm:$0xf]
        %v1183 = vld [vmem:[%s985 + $0x254] sm:$0xf]
        %v1184 = vld [vmem:[%s985 + $0x258] sm:$0xf]
        %v1185 = vld [vmem:[%s985 + $0x25c] sm:$0xf]
        %v1186 = vld [vmem:[%s985 + $0x260] sm:$0xf]
        %v1187 = vld [vmem:[%s985 + $0x264] sm:$0xf]
        %v1188 = vld [vmem:[%s985 + $0x268] sm:$0xf]
        %v1189 = vld [vmem:[%s985 + $0x26c] sm:$0xf]
        %v1190 = vld [vmem:[%s985 + $0x270] sm:$0xf]
        %v1191 = vld [vmem:[%s985 + $0x274] sm:$0xf]
        %v1192 = vld [vmem:[%s985 + $0x278] sm:$0xf]
        %v1193 = vld [vmem:[%s985 + $0x27c] sm:$0xf]
        %v1194 = vld [vmem:[%s985 + $0x280] sm:$0xf]
        %v1195 = vld [vmem:[%s985 + $0x284] sm:$0xf]
        %v1196 = vld [vmem:[%s985 + $0x288] sm:$0xf]
        %v1197 = vld [vmem:[%s985 + $0x28c] sm:$0xf]
        %v1198 = vld [vmem:[%s985 + $0x290] sm:$0xf]
        %v1199 = vld [vmem:[%s985 + $0x294] sm:$0xf]
        %v1200 = vld [vmem:[%s985 + $0x298] sm:$0xf]
        %v1201 = vld [vmem:[%s985 + $0x29c] sm:$0xf]
        %v1202 = vld [vmem:[%s985 + $0x2a0] sm:$0xf]
        %v1203 = vld [vmem:[%s985 + $0x2a4] sm:$0xf]
        %v1204 = vld [vmem:[%s985 + $0x2a8] sm:$0xf]
        %v1205 = vld [vmem:[%s985 + $0x2ac] sm:$0xf]
        %v1206 = vld [vmem:[%s985 + $0x2b0] sm:$0xf]
        %v1207 = vld [vmem:[%s985 + $0x2b4] sm:$0xf]
        %v1208 = vld [vmem:[%s985 + $0x2b8] sm:$0xf]
        %v1209 = vld [vmem:[%s985 + $0x2bc] sm:$0xf]
        %v1210 = vld [vmem:[%s985 + $0x2c0] sm:$0xf]
        %v1211 = vld [vmem:[%s985 + $0x2c4] sm:$0xf]
        %v1212 = vld [vmem:[%s985 + $0x2c8] sm:$0xf]
        %v1213 = vld [vmem:[%s985 + $0x2cc] sm:$0xf]
        %v1214 = vld [vmem:[%s985 + $0x2d0] sm:$0xf]
        %v1215 = vld [vmem:[%s985 + $0x2d4] sm:$0xf]
        %v1216 = vld [vmem:[%s985 + $0x2d8] sm:$0xf]
        %v1217 = vld [vmem:[%s985 + $0x2dc] sm:$0xf]
        %v1218 = vld [vmem:[%s985 + $0x2e0] sm:$0xf]
        %v1219 = vld [vmem:[%s985 + $0x2e4] sm:$0xf]
        %v1220 = vld [vmem:[%s985 + $0x2e8] sm:$0xf]
        %v1221 = vld [vmem:[%s985 + $0x2ec] sm:$0xf]
        %v1222 = vld [vmem:[%s985 + $0x2f0] sm:$0xf]
        %v1223 = vld [vmem:[%s985 + $0x2f4] sm:$0xf]
        %v1224 = vld [vmem:[%s985 + $0x2f8] sm:$0xf]
        %v1225 = vld [vmem:[%s985 + $0x2fc] sm:$0xf]
        %v1228 = vcombine.high %v1032, %v1032
        %v1230 = vunpack.c.l.s4 1966171168
        %v1231 = vunpack.c.0.s8 %v1230
        %v1232 = vlaneseq
        %v1233 = vshrl.u32 %v1232, 7
        %v1234 = vsub.s32 %v1231, %v1233
        %v1235 = vrot.slane %v1032, %v1234
        %v1237 = vunpack.c.l.s4 1966171168
        %v1238 = vunpack.c.0.s8 %v1237
        %v1239 = vlaneseq
        %v1240 = vshrl.u32 %v1239, 7
        %v1241 = vsub.s32 %v1238, %v1240
        %v1242 = vrot.slane %v1228, %v1241
        %v1243 = vcombine.high %v1235, %v1235
        %v1244 = vcombine.high %v1242, %v1242
        %v1246 = vunpack.c.l.s4 1966171168
        %v1247 = vunpack.c.0.s8 %v1246
        %v1248 = vlaneseq
        %v1249 = vshrl.u32 %v1248, 7
        %v1250 = vsub.s32 %v1247, %v1249
        %v1251 = vrot.slane %v1235, %v1250
        %v1253 = vunpack.c.l.s4 1966171168
        %v1254 = vunpack.c.0.s8 %v1253
        %v1255 = vlaneseq
        %v1256 = vshrl.u32 %v1255, 7
        %v1257 = vsub.s32 %v1254, %v1256
        %v1258 = vrot.slane %v1242, %v1257
        %v1260 = vunpack.c.l.s4 1966171168
        %v1261 = vunpack.c.0.s8 %v1260
        %v1262 = vlaneseq
        %v1263 = vshrl.u32 %v1262, 7
        %v1264 = vsub.s32 %v1261, %v1263
        %v1265 = vrot.slane %v1243, %v1264
        %v1267 = vunpack.c.l.s4 1966171168
        %v1268 = vunpack.c.0.s8 %v1267
        %v1269 = vlaneseq
        %v1270 = vshrl.u32 %v1269, 7
        %v1271 = vsub.s32 %v1268, %v1270
        %v1272 = vrot.slane %v1244, %v1271
        %v1273 = vcombine.high %v1251, %v1251
        %v1274 = vcombine.high %v1258, %v1258
        %v1275 = vcombine.high %v1265, %v1265
        %v1276 = vcombine.high %v1272, %v1272
        %v1278 = vunpack.c.l.s4 1966171168
        %v1279 = vunpack.c.0.s8 %v1278
        %v1280 = vlaneseq
        %v1281 = vshrl.u32 %v1280, 7
        %v1282 = vsub.s32 %v1279, %v1281
        %v1283 = vrot.slane %v1033, %v1282
        %v1284 = vcombine.high %v1283, %v1283
        %v1286 = vunpack.c.l.s4 1966171168
        %v1287 = vunpack.c.0.s8 %v1286
        %v1288 = vlaneseq
        %v1289 = vshrl.u32 %v1288, 7
        %v1290 = vsub.s32 %v1287, %v1289
        %v1291 = vrot.slane %v1283, %v1290
        %v1293 = vunpack.c.l.s4 1966171168
        %v1294 = vunpack.c.0.s8 %v1293
        %v1295 = vlaneseq
        %v1296 = vshrl.u32 %v1295, 7
        %v1297 = vsub.s32 %v1294, %v1296
        %v1298 = vrot.slane %v1284, %v1297
        %v1299 = vcombine.high %v1291, %v1291
        %v1300 = vcombine.high %v1298, %v1298
        %v1505 = vunpack.c.l.b16 %v1034
        %v1506 = vunpack.c.l.b16 %v1035
        %v1507 = vunpack.c.l.b16 %v1036
        %v1508 = vunpack.c.l.b16 %v1037
        %v1509 = vunpack.c.l.b16 %v1038
        %v1510 = vunpack.c.l.b16 %v1039
        %v1511 = vunpack.c.l.b16 %v1040
        %v1512 = vunpack.c.l.b16 %v1041
        %v1513 = vunpack.c.l.b16 %v1042
        %v1514 = vunpack.c.l.b16 %v1043
        %v1515 = vunpack.c.l.b16 %v1044
        %v1516 = vunpack.c.l.b16 %v1045
        %v1517 = vunpack.c.l.b16 %v1046
        %v1518 = vunpack.c.l.b16 %v1047
        %v1519 = vunpack.c.l.b16 %v1048
        %v1520 = vunpack.c.l.b16 %v1049
        %v1521 = vunpack.c.l.b16 %v1050
        %v1522 = vunpack.c.l.b16 %v1051
        %v1523 = vunpack.c.l.b16 %v1052
        %v1524 = vunpack.c.l.b16 %v1053
        %v1525 = vunpack.c.l.b16 %v1054
        %v1526 = vunpack.c.l.b16 %v1055
        %v1527 = vunpack.c.l.b16 %v1056
        %v1528 = vunpack.c.l.b16 %v1057
        %v1529 = vunpack.c.l.b16 %v1058
        %v1530 = vunpack.c.l.b16 %v1059
        %v1531 = vunpack.c.l.b16 %v1060
        %v1532 = vunpack.c.l.b16 %v1061
        %v1533 = vunpack.c.l.b16 %v1062
        %v1534 = vunpack.c.l.b16 %v1063
        %v1535 = vunpack.c.l.b16 %v1064
        %v1536 = vunpack.c.l.b16 %v1065
        %v1537 = vunpack.c.l.b16 %v1066
        %v1538 = vunpack.c.l.b16 %v1067
        %v1539 = vunpack.c.l.b16 %v1068
        %v1540 = vunpack.c.l.b16 %v1069
        %v1541 = vunpack.c.l.b16 %v1070
        %v1542 = vunpack.c.l.b16 %v1071
        %v1543 = vunpack.c.l.b16 %v1072
        %v1544 = vunpack.c.l.b16 %v1073
        %v1545 = vunpack.c.l.b16 %v1074
        %v1546 = vunpack.c.l.b16 %v1075
        %v1547 = vunpack.c.l.b16 %v1076
        %v1548 = vunpack.c.l.b16 %v1077
        %v1549 = vunpack.c.l.b16 %v1078
        %v1550 = vunpack.c.l.b16 %v1079
        %v1551 = vunpack.c.l.b16 %v1080
        %v1552 = vunpack.c.l.b16 %v1081
        %v1553 = vunpack.c.l.b16 %v1082
        %v1554 = vunpack.c.l.b16 %v1083
        %v1555 = vunpack.c.l.b16 %v1084
        %v1556 = vunpack.c.l.b16 %v1085
        %v1557 = vunpack.c.l.b16 %v1086
        %v1558 = vunpack.c.l.b16 %v1087
        %v1559 = vunpack.c.l.b16 %v1088
        %v1560 = vunpack.c.l.b16 %v1089
        %v1561 = vunpack.c.l.b16 %v1090
        %v1562 = vunpack.c.l.b16 %v1091
        %v1563 = vunpack.c.l.b16 %v1092
        %v1564 = vunpack.c.l.b16 %v1093
        %v1565 = vunpack.c.l.b16 %v1094
        %v1566 = vunpack.c.l.b16 %v1095
        %v1567 = vunpack.c.l.b16 %v1096
        %v1568 = vunpack.c.l.b16 %v1097
        %v1569 = vunpack.c.l.b16 %v1098
        %v1570 = vunpack.c.l.b16 %v1099
        %v1571 = vunpack.c.l.b16 %v1100
        %v1572 = vunpack.c.l.b16 %v1101
        %v1573 = vunpack.c.l.b16 %v1102
        %v1574 = vunpack.c.l.b16 %v1103
        %v1575 = vunpack.c.l.b16 %v1104
        %v1576 = vunpack.c.l.b16 %v1105
        %v1577 = vunpack.c.l.b16 %v1106
        %v1578 = vunpack.c.l.b16 %v1107
        %v1579 = vunpack.c.l.b16 %v1108
        %v1580 = vunpack.c.l.b16 %v1109
        %v1581 = vunpack.c.l.b16 %v1110
        %v1582 = vunpack.c.l.b16 %v1111
        %v1583 = vunpack.c.l.b16 %v1112
        %v1584 = vunpack.c.l.b16 %v1113
        %v1585 = vunpack.c.l.b16 %v1114
        %v1586 = vunpack.c.l.b16 %v1115
        %v1587 = vunpack.c.l.b16 %v1116
        %v1588 = vunpack.c.l.b16 %v1117
        %v1589 = vunpack.c.l.b16 %v1118
        %v1590 = vunpack.c.l.b16 %v1119
        %v1591 = vunpack.c.l.b16 %v1120
        %v1592 = vunpack.c.l.b16 %v1121
        %v1593 = vunpack.c.l.b16 %v1122
        %v1594 = vunpack.c.l.b16 %v1123
        %v1595 = vunpack.c.l.b16 %v1124
        %v1596 = vunpack.c.l.b16 %v1125
        %v1597 = vunpack.c.l.b16 %v1126
        %v1598 = vunpack.c.l.b16 %v1127
        %v1599 = vunpack.c.l.b16 %v1128
        %v1600 = vunpack.c.l.b16 %v1129
        %v1601 = vunpack.c.l.b16 %v1130
        %v1602 = vunpack.c.l.b16 %v1131
        %v1603 = vunpack.c.l.b16 %v1132
        %v1604 = vunpack.c.l.b16 %v1133
        %v1605 = vunpack.c.l.b16 %v1134
        %v1606 = vunpack.c.l.b16 %v1135
        %v1607 = vunpack.c.l.b16 %v1136
        %v1608 = vunpack.c.l.b16 %v1137
        %v1609 = vunpack.c.l.b16 %v1138
        %v1610 = vunpack.c.l.b16 %v1139
        %v1611 = vunpack.c.l.b16 %v1140
        %v1612 = vunpack.c.l.b16 %v1141
        %v1613 = vunpack.c.l.b16 %v1142
        %v1614 = vunpack.c.l.b16 %v1143
        %v1615 = vunpack.c.l.b16 %v1144
        %v1616 = vunpack.c.l.b16 %v1145
        %v1617 = vunpack.c.l.b16 %v1146
        %v1618 = vunpack.c.l.b16 %v1147
        %v1619 = vunpack.c.l.b16 %v1148
        %v1620 = vunpack.c.l.b16 %v1149
        %v1621 = vunpack.c.l.b16 %v1150
        %v1622 = vunpack.c.l.b16 %v1151
        %v1623 = vunpack.c.l.b16 %v1152
        %v1624 = vunpack.c.l.b16 %v1153
        %v1625 = vunpack.c.l.b16 %v1154
        %v1626 = vunpack.c.l.b16 %v1155
        %v1627 = vunpack.c.l.b16 %v1156
        %v1628 = vunpack.c.l.b16 %v1157
        %v1629 = vunpack.c.l.b16 %v1158
        %v1630 = vunpack.c.l.b16 %v1159
        %v1631 = vunpack.c.l.b16 %v1160
        %v1632 = vunpack.c.l.b16 %v1161
        %v1633 = vunpack.c.l.b16 %v1162
        %v1634 = vunpack.c.l.b16 %v1163
        %v1635 = vunpack.c.l.b16 %v1164
        %v1636 = vunpack.c.l.b16 %v1165
        %v1637 = vunpack.c.l.b16 %v1166
        %v1638 = vunpack.c.l.b16 %v1167
        %v1639 = vunpack.c.l.b16 %v1168
        %v1640 = vunpack.c.l.b16 %v1169
        %v1641 = vunpack.c.l.b16 %v1170
        %v1642 = vunpack.c.l.b16 %v1171
        %v1643 = vunpack.c.l.b16 %v1172
        %v1644 = vunpack.c.l.b16 %v1173
        %v1645 = vunpack.c.l.b16 %v1174
        %v1646 = vunpack.c.l.b16 %v1175
        %v1647 = vunpack.c.l.b16 %v1176
        %v1648 = vunpack.c.l.b16 %v1177
        %v1649 = vunpack.c.l.b16 %v1178
        %v1650 = vunpack.c.l.b16 %v1179
        %v1651 = vunpack.c.l.b16 %v1180
        %v1652 = vunpack.c.l.b16 %v1181
        %v1653 = vunpack.c.l.b16 %v1182
        %v1654 = vunpack.c.l.b16 %v1183
        %v1655 = vunpack.c.l.b16 %v1184
        %v1656 = vunpack.c.l.b16 %v1185
        %v1657 = vunpack.c.l.b16 %v1186
        %v1658 = vunpack.c.l.b16 %v1187
        %v1659 = vunpack.c.l.b16 %v1188
        %v1660 = vunpack.c.l.b16 %v1189
        %v1661 = vunpack.c.l.b16 %v1190
        %v1662 = vunpack.c.l.b16 %v1191
        %v1663 = vunpack.c.l.b16 %v1192
        %v1664 = vunpack.c.l.b16 %v1193
        %v1665 = vunpack.c.l.b16 %v1194
        %v1666 = vunpack.c.l.b16 %v1195
        %v1667 = vunpack.c.l.b16 %v1196
        %v1668 = vunpack.c.l.b16 %v1197
        %v1669 = vunpack.c.l.b16 %v1198
        %v1670 = vunpack.c.l.b16 %v1199
        %v1671 = vunpack.c.l.b16 %v1200
        %v1672 = vunpack.c.l.b16 %v1201
        %v1673 = vunpack.c.l.b16 %v1202
        %v1674 = vunpack.c.l.b16 %v1203
        %v1675 = vunpack.c.l.b16 %v1204
        %v1676 = vunpack.c.l.b16 %v1205
        %v1677 = vunpack.c.l.b16 %v1206
        %v1678 = vunpack.c.l.b16 %v1207
        %v1679 = vunpack.c.l.b16 %v1208
        %v1680 = vunpack.c.l.b16 %v1209
        %v1681 = vunpack.c.l.b16 %v1210
        %v1682 = vunpack.c.l.b16 %v1211
        %v1683 = vunpack.c.l.b16 %v1212
        %v1684 = vunpack.c.l.b16 %v1213
        %v1685 = vunpack.c.l.b16 %v1214
        %v1686 = vunpack.c.l.b16 %v1215
        %v1687 = vunpack.c.l.b16 %v1216
        %v1688 = vunpack.c.l.b16 %v1217
        %v1689 = vunpack.c.l.b16 %v1218
        %v1690 = vunpack.c.l.b16 %v1219
        %v1691 = vunpack.c.l.b16 %v1220
        %v1692 = vunpack.c.l.b16 %v1221
        %v1693 = vunpack.c.l.b16 %v1222
        %v1694 = vunpack.c.l.b16 %v1223
        %v1695 = vunpack.c.l.b16 %v1224
        %v1696 = vunpack.c.l.b16 %v1225
        %v1697 = vpack.c.b16 %v1506, %v1505
        %v1698 = vpack.c.b16 %v1508, %v1507
        %v1699 = vpack.c.b16 %v1510, %v1509
        %v1700 = vpack.c.b16 %v1512, %v1511
        %v1701 = vpack.c.b16 %v1514, %v1513
        %v1702 = vpack.c.b16 %v1516, %v1515
        %v1703 = vpack.c.b16 %v1518, %v1517
        %v1704 = vpack.c.b16 %v1520, %v1519
        %v1705 = vpack.c.b16 %v1522, %v1521
        %v1706 = vpack.c.b16 %v1524, %v1523
        %v1707 = vpack.c.b16 %v1526, %v1525
        %v1708 = vpack.c.b16 %v1528, %v1527
        %v1709 = vpack.c.b16 %v1530, %v1529
        %v1710 = vpack.c.b16 %v1532, %v1531
        %v1711 = vpack.c.b16 %v1534, %v1533
        %v1712 = vpack.c.b16 %v1536, %v1535
        %v1713 = vpack.c.b16 %v1538, %v1537
        %v1714 = vpack.c.b16 %v1540, %v1539
        %v1715 = vpack.c.b16 %v1542, %v1541
        %v1716 = vpack.c.b16 %v1544, %v1543
        %v1717 = vpack.c.b16 %v1546, %v1545
        %v1718 = vpack.c.b16 %v1548, %v1547
        %v1719 = vpack.c.b16 %v1550, %v1549
        %v1720 = vpack.c.b16 %v1552, %v1551
        %v1721 = vpack.c.b16 %v1554, %v1553
        %v1722 = vpack.c.b16 %v1556, %v1555
        %v1723 = vpack.c.b16 %v1558, %v1557
        %v1724 = vpack.c.b16 %v1560, %v1559
        %v1725 = vpack.c.b16 %v1562, %v1561
        %v1726 = vpack.c.b16 %v1564, %v1563
        %v1727 = vpack.c.b16 %v1566, %v1565
        %v1728 = vpack.c.b16 %v1568, %v1567
        %v1729 = vpack.c.b16 %v1570, %v1569
        %v1730 = vpack.c.b16 %v1572, %v1571
        %v1731 = vpack.c.b16 %v1574, %v1573
        %v1732 = vpack.c.b16 %v1576, %v1575
        %v1733 = vpack.c.b16 %v1578, %v1577
        %v1734 = vpack.c.b16 %v1580, %v1579
        %v1735 = vpack.c.b16 %v1582, %v1581
        %v1736 = vpack.c.b16 %v1584, %v1583
        %v1737 = vpack.c.b16 %v1586, %v1585
        %v1738 = vpack.c.b16 %v1588, %v1587
        %v1739 = vpack.c.b16 %v1590, %v1589
        %v1740 = vpack.c.b16 %v1592, %v1591
        %v1741 = vpack.c.b16 %v1594, %v1593
        %v1742 = vpack.c.b16 %v1596, %v1595
        %v1743 = vpack.c.b16 %v1598, %v1597
        %v1744 = vpack.c.b16 %v1600, %v1599
        %v1745 = vpack.c.b16 %v1602, %v1601
        %v1746 = vpack.c.b16 %v1604, %v1603
        %v1747 = vpack.c.b16 %v1606, %v1605
        %v1748 = vpack.c.b16 %v1608, %v1607
        %v1749 = vpack.c.b16 %v1610, %v1609
        %v1750 = vpack.c.b16 %v1612, %v1611
        %v1751 = vpack.c.b16 %v1614, %v1613
        %v1752 = vpack.c.b16 %v1616, %v1615
        %v1753 = vpack.c.b16 %v1618, %v1617
        %v1754 = vpack.c.b16 %v1620, %v1619
        %v1755 = vpack.c.b16 %v1622, %v1621
        %v1756 = vpack.c.b16 %v1624, %v1623
        %v1757 = vpack.c.b16 %v1626, %v1625
        %v1758 = vpack.c.b16 %v1628, %v1627
        %v1759 = vpack.c.b16 %v1630, %v1629
        %v1760 = vpack.c.b16 %v1632, %v1631
        %v1761 = vpack.c.b16 %v1634, %v1633
        %v1762 = vpack.c.b16 %v1636, %v1635
        %v1763 = vpack.c.b16 %v1638, %v1637
        %v1764 = vpack.c.b16 %v1640, %v1639
        %v1765 = vpack.c.b16 %v1642, %v1641
        %v1766 = vpack.c.b16 %v1644, %v1643
        %v1767 = vpack.c.b16 %v1646, %v1645
        %v1768 = vpack.c.b16 %v1648, %v1647
        %v1769 = vpack.c.b16 %v1650, %v1649
        %v1770 = vpack.c.b16 %v1652, %v1651
        %v1771 = vpack.c.b16 %v1654, %v1653
        %v1772 = vpack.c.b16 %v1656, %v1655
        %v1773 = vpack.c.b16 %v1658, %v1657
        %v1774 = vpack.c.b16 %v1660, %v1659
        %v1775 = vpack.c.b16 %v1662, %v1661
        %v1776 = vpack.c.b16 %v1664, %v1663
        %v1777 = vpack.c.b16 %v1666, %v1665
        %v1778 = vpack.c.b16 %v1668, %v1667
        %v1779 = vpack.c.b16 %v1670, %v1669
        %v1780 = vpack.c.b16 %v1672, %v1671
        %v1781 = vpack.c.b16 %v1674, %v1673
        %v1782 = vpack.c.b16 %v1676, %v1675
        %v1783 = vpack.c.b16 %v1678, %v1677
        %v1784 = vpack.c.b16 %v1680, %v1679
        %v1785 = vpack.c.b16 %v1682, %v1681
        %v1786 = vpack.c.b16 %v1684, %v1683
        %v1787 = vpack.c.b16 %v1686, %v1685
        %v1788 = vpack.c.b16 %v1688, %v1687
        %v1789 = vpack.c.b16 %v1690, %v1689
        %v1790 = vpack.c.b16 %v1692, %v1691
        %v1791 = vpack.c.b16 %v1694, %v1693
        %v1792 = vpack.c.b16 %v1696, %v1695
        %1889 = vmatprep.subr.bf16.mxu0 0
        %1890 = vmatpush1.bf16.msra.mxu0 %v1697
        %1891 = vmatprep.subr.bf16.mxu0 0
        %1892 = vmatpush1.bf16.msra.mxu0 %v1698
        %1893 = vmatprep.subr.bf16.mxu0 0
        %1894 = vmatpush1.bf16.msra.mxu0 %v1699
        %1895 = vmatprep.subr.bf16.mxu0 0
        %1896 = vmatpush1.bf16.msra.mxu0 %v1700
        %1897 = vmatprep.subr.bf16.mxu0 0
        %1898 = vmatpush1.bf16.msra.mxu0 %v1701
        %1899 = vmatprep.subr.bf16.mxu0 0
        %1900 = vmatpush1.bf16.msra.mxu0 %v1702
        %1901 = vmatprep.subr.bf16.mxu0 0
        %1902 = vmatpush1.bf16.msra.mxu0 %v1703
        %1903 = vmatprep.subr.bf16.mxu0 0
        %1904 = vmatpush1.bf16.msra.mxu0 %v1704
        %1905 = vmatprep.subr.bf16.mxu0 0
        %1906 = vmatpush1.bf16.msra.mxu0 %v1705
        %1907 = vmatprep.subr.bf16.mxu0 0
        %1908 = vmatpush1.bf16.msra.mxu0 %v1706
        %1909 = vmatprep.subr.bf16.mxu0 0
        %1910 = vmatpush1.bf16.msra.mxu0 %v1707
        %1911 = vmatprep.subr.bf16.mxu0 0
        %1912 = vmatpush1.bf16.msra.mxu0 %v1708
        %1913 = vmatprep.subr.bf16.mxu0 0
        %1914 = vmatpush1.bf16.msra.mxu0 %v1709
        %1915 = vmatprep.subr.bf16.mxu0 0
        %1916 = vmatpush1.bf16.msra.mxu0 %v1710
        %1917 = vmatprep.subr.bf16.mxu0 0
        %1918 = vmatpush1.bf16.msra.mxu0 %v1711
        %1919 = vmatprep.subr.bf16.mxu0 0
        %1920 = vmatpush1.bf16.msra.mxu0 %v1712
        %1921 = vmatprep.mubr.bf16.mxu0 %v1265
        %1922 = vmatmul.mubr.bf16.gmra.mrb[0].mxu0 %v1251
        %v1923 = vpop.f32.mrb[0].mxu0
        %v1924 = vadd.f32 0.0, %v1923
        %v1925 = vpop.f32.mrb[0].mxu0
        %v1926 = vpop.f32.mrb[0].mxu0
        %v1927 = vpop.f32.mrb[0].mxu0
        %1928 = vdwg.mxu0
        %1929 = vmatprep.subr.bf16.mxu0 0
        %1930 = vmatpush1.bf16.msra.mxu0 %v1713
        %1931 = vmatprep.subr.bf16.mxu0 0
        %1932 = vmatpush1.bf16.msra.mxu0 %v1714
        %1933 = vmatprep.subr.bf16.mxu0 0
        %1934 = vmatpush1.bf16.msra.mxu0 %v1715
        %1935 = vmatprep.subr.bf16.mxu0 0
        %1936 = vmatpush1.bf16.msra.mxu0 %v1716
        %1937 = vmatprep.subr.bf16.mxu0 0
        %1938 = vmatpush1.bf16.msra.mxu0 %v1717
        %1939 = vmatprep.subr.bf16.mxu0 0
        %1940 = vmatpush1.bf16.msra.mxu0 %v1718
        %1941 = vmatprep.subr.bf16.mxu0 0
        %1942 = vmatpush1.bf16.msra.mxu0 %v1719
        %1943 = vmatprep.subr.bf16.mxu0 0
        %1944 = vmatpush1.bf16.msra.mxu0 %v1720
        %1945 = vmatprep.subr.bf16.mxu0 0
        %1946 = vmatpush1.bf16.msra.mxu0 %v1721
        %1947 = vmatprep.subr.bf16.mxu0 0
        %1948 = vmatpush1.bf16.msra.mxu0 %v1722
        %1949 = vmatprep.subr.bf16.mxu0 0
        %1950 = vmatpush1.bf16.msra.mxu0 %v1723
        %1951 = vmatprep.subr.bf16.mxu0 0
        %1952 = vmatpush1.bf16.msra.mxu0 %v1724
        %1953 = vmatprep.subr.bf16.mxu0 0
        %1954 = vmatpush1.bf16.msra.mxu0 %v1725
        %1955 = vmatprep.subr.bf16.mxu0 0
        %1956 = vmatpush1.bf16.msra.mxu0 %v1726
        %1957 = vmatprep.subr.bf16.mxu0 0
        %1958 = vmatpush1.bf16.msra.mxu0 %v1727
        %1959 = vmatprep.subr.bf16.mxu0 0
        %1960 = vmatpush1.bf16.msra.mxu0 %v1728
        %1961 = vmatprep.mubr.bf16.mxu0 %v1275
        %1962 = vmatmul.mubr.bf16.gmra.mrb[0].mxu0 %v1273
        %v1963 = vpop.f32.mrb[0].mxu0
        %v1964 = vadd.f32 %v1924, %v1963
        %v1965 = vpop.f32.mrb[0].mxu0
        %v1966 = vpop.f32.mrb[0].mxu0
        %v1967 = vpop.f32.mrb[0].mxu0
        %1968 = vdwg.mxu0
        %1969 = vmatprep.subr.bf16.mxu0 0
        %1970 = vmatpush1.bf16.msra.mxu0 %v1729
        %1971 = vmatprep.subr.bf16.mxu0 0
        %1972 = vmatpush1.bf16.msra.mxu0 %v1730
        %1973 = vmatprep.subr.bf16.mxu0 0
        %1974 = vmatpush1.bf16.msra.mxu0 %v1731
        %1975 = vmatprep.subr.bf16.mxu0 0
        %1976 = vmatpush1.bf16.msra.mxu0 %v1732
        %1977 = vmatprep.subr.bf16.mxu0 0
        %1978 = vmatpush1.bf16.msra.mxu0 %v1733
        %1979 = vmatprep.subr.bf16.mxu0 0
        %1980 = vmatpush1.bf16.msra.mxu0 %v1734
        %1981 = vmatprep.subr.bf16.mxu0 0
        %1982 = vmatpush1.bf16.msra.mxu0 %v1735
        %1983 = vmatprep.subr.bf16.mxu0 0
        %1984 = vmatpush1.bf16.msra.mxu0 %v1736
        %1985 = vmatprep.subr.bf16.mxu0 0
        %1986 = vmatpush1.bf16.msra.mxu0 %v1737
        %1987 = vmatprep.subr.bf16.mxu0 0
        %1988 = vmatpush1.bf16.msra.mxu0 %v1738
        %1989 = vmatprep.subr.bf16.mxu0 0
        %1990 = vmatpush1.bf16.msra.mxu0 %v1739
        %1991 = vmatprep.subr.bf16.mxu0 0
        %1992 = vmatpush1.bf16.msra.mxu0 %v1740
        %1993 = vmatprep.subr.bf16.mxu0 0
        %1994 = vmatpush1.bf16.msra.mxu0 %v1741
        %1995 = vmatprep.subr.bf16.mxu0 0
        %1996 = vmatpush1.bf16.msra.mxu0 %v1742
        %1997 = vmatprep.subr.bf16.mxu0 0
        %1998 = vmatpush1.bf16.msra.mxu0 %v1743
        %1999 = vmatprep.subr.bf16.mxu0 0
        %2000 = vmatpush1.bf16.msra.mxu0 %v1744
        %2001 = vmatprep.mubr.bf16.mxu0 %v1272
        %2002 = vmatmul.mubr.bf16.gmra.mrb[0].mxu0 %v1258
        %v2003 = vpop.f32.mrb[0].mxu0
        %v2004 = vadd.f32 %v1964, %v2003
        %v2005 = vpop.f32.mrb[0].mxu0
        %v2006 = vpop.f32.mrb[0].mxu0
        %v2007 = vpop.f32.mrb[0].mxu0
        %2008 = vdwg.mxu0
        %2009 = vmatprep.subr.bf16.mxu0 0
        %2010 = vmatpush1.bf16.msra.mxu0 %v1745
        %2011 = vmatprep.subr.bf16.mxu0 0
        %2012 = vmatpush1.bf16.msra.mxu0 %v1746
        %2013 = vmatprep.subr.bf16.mxu0 0
        %2014 = vmatpush1.bf16.msra.mxu0 %v1747
        %2015 = vmatprep.subr.bf16.mxu0 0
        %2016 = vmatpush1.bf16.msra.mxu0 %v1748
        %2017 = vmatprep.subr.bf16.mxu0 0
        %2018 = vmatpush1.bf16.msra.mxu0 %v1749
        %2019 = vmatprep.subr.bf16.mxu0 0
        %2020 = vmatpush1.bf16.msra.mxu0 %v1750
        %2021 = vmatprep.subr.bf16.mxu0 0
        %2022 = vmatpush1.bf16.msra.mxu0 %v1751
        %2023 = vmatprep.subr.bf16.mxu0 0
        %2024 = vmatpush1.bf16.msra.mxu0 %v1752
        %2025 = vmatprep.subr.bf16.mxu0 0
        %2026 = vmatpush1.bf16.msra.mxu0 %v1753
        %2027 = vmatprep.subr.bf16.mxu0 0
        %2028 = vmatpush1.bf16.msra.mxu0 %v1754
        %2029 = vmatprep.subr.bf16.mxu0 0
        %2030 = vmatpush1.bf16.msra.mxu0 %v1755
        %2031 = vmatprep.subr.bf16.mxu0 0
        %2032 = vmatpush1.bf16.msra.mxu0 %v1756
        %2033 = vmatprep.subr.bf16.mxu0 0
        %2034 = vmatpush1.bf16.msra.mxu0 %v1757
        %2035 = vmatprep.subr.bf16.mxu0 0
        %2036 = vmatpush1.bf16.msra.mxu0 %v1758
        %2037 = vmatprep.subr.bf16.mxu0 0
        %2038 = vmatpush1.bf16.msra.mxu0 %v1759
        %2039 = vmatprep.subr.bf16.mxu0 0
        %2040 = vmatpush1.bf16.msra.mxu0 %v1760
        %2041 = vmatprep.mubr.bf16.mxu0 %v1276
        %2042 = vmatmul.mubr.bf16.gmra.mrb[0].mxu0 %v1274
        %v2043 = vpop.f32.mrb[0].mxu0
        %v2044 = vadd.f32 %v2004, %v2043
        %v2045 = vpop.f32.mrb[0].mxu0
        %v2046 = vpop.f32.mrb[0].mxu0
        %v2047 = vpop.f32.mrb[0].mxu0
        %2048 = vdwg.mxu0
        %2049 = vmatprep.subr.bf16.mxu0 0
        %2050 = vmatpush1.bf16.msra.mxu0 %v1761
        %2051 = vmatprep.subr.bf16.mxu0 0
        %2052 = vmatpush1.bf16.msra.mxu0 %v1762
        %2053 = vmatprep.subr.bf16.mxu0 0
        %2054 = vmatpush1.bf16.msra.mxu0 %v1763
        %2055 = vmatprep.subr.bf16.mxu0 0
        %2056 = vmatpush1.bf16.msra.mxu0 %v1764
        %2057 = vmatprep.subr.bf16.mxu0 0
        %2058 = vmatpush1.bf16.msra.mxu0 %v1765
        %2059 = vmatprep.subr.bf16.mxu0 0
        %2060 = vmatpush1.bf16.msra.mxu0 %v1766
        %2061 = vmatprep.subr.bf16.mxu0 0
        %2062 = vmatpush1.bf16.msra.mxu0 %v1767
        %2063 = vmatprep.subr.bf16.mxu0 0
        %2064 = vmatpush1.bf16.msra.mxu0 %v1768
        %2065 = vmatprep.subr.bf16.mxu0 0
        %2066 = vmatpush1.bf16.msra.mxu0 %v1769
        %2067 = vmatprep.subr.bf16.mxu0 0
        %2068 = vmatpush1.bf16.msra.mxu0 %v1770
        %2069 = vmatprep.subr.bf16.mxu0 0
        %2070 = vmatpush1.bf16.msra.mxu0 %v1771
        %2071 = vmatprep.subr.bf16.mxu0 0
        %2072 = vmatpush1.bf16.msra.mxu0 %v1772
        %2073 = vmatprep.subr.bf16.mxu0 0
        %2074 = vmatpush1.bf16.msra.mxu0 %v1773
        %2075 = vmatprep.subr.bf16.mxu0 0
        %2076 = vmatpush1.bf16.msra.mxu0 %v1774
        %2077 = vmatprep.subr.bf16.mxu0 0
        %2078 = vmatpush1.bf16.msra.mxu0 %v1775
        %2079 = vmatprep.subr.bf16.mxu0 0
        %2080 = vmatpush1.bf16.msra.mxu0 %v1776
        %2081 = vmatprep.mubr.bf16.mxu0 %v1298
        %2082 = vmatmul.mubr.bf16.gmra.mrb[0].mxu0 %v1291
        %v2083 = vpop.f32.mrb[0].mxu0
        %v2084 = vadd.f32 %v2044, %v2083
        %v2085 = vpop.f32.mrb[0].mxu0
        %v2086 = vpop.f32.mrb[0].mxu0
        %v2087 = vpop.f32.mrb[0].mxu0
        %2088 = vdwg.mxu0
        %2089 = vmatprep.subr.bf16.mxu0 0
        %2090 = vmatpush1.bf16.msra.mxu0 %v1777
        %2091 = vmatprep.subr.bf16.mxu0 0
        %2092 = vmatpush1.bf16.msra.mxu0 %v1778
        %2093 = vmatprep.subr.bf16.mxu0 0
        %2094 = vmatpush1.bf16.msra.mxu0 %v1779
        %2095 = vmatprep.subr.bf16.mxu0 0
        %2096 = vmatpush1.bf16.msra.mxu0 %v1780
        %2097 = vmatprep.subr.bf16.mxu0 0
        %2098 = vmatpush1.bf16.msra.mxu0 %v1781
        %2099 = vmatprep.subr.bf16.mxu0 0
        %2100 = vmatpush1.bf16.msra.mxu0 %v1782
        %2101 = vmatprep.subr.bf16.mxu0 0
        %2102 = vmatpush1.bf16.msra.mxu0 %v1783
        %2103 = vmatprep.subr.bf16.mxu0 0
        %2104 = vmatpush1.bf16.msra.mxu0 %v1784
        %2105 = vmatprep.subr.bf16.mxu0 0
        %2106 = vmatpush1.bf16.msra.mxu0 %v1785
        %2107 = vmatprep.subr.bf16.mxu0 0
        %2108 = vmatpush1.bf16.msra.mxu0 %v1786
        %2109 = vmatprep.subr.bf16.mxu0 0
        %2110 = vmatpush1.bf16.msra.mxu0 %v1787
        %2111 = vmatprep.subr.bf16.mxu0 0
        %2112 = vmatpush1.bf16.msra.mxu0 %v1788
        %2113 = vmatprep.subr.bf16.mxu0 0
        %2114 = vmatpush1.bf16.msra.mxu0 %v1789
        %2115 = vmatprep.subr.bf16.mxu0 0
        %2116 = vmatpush1.bf16.msra.mxu0 %v1790
        %2117 = vmatprep.subr.bf16.mxu0 0
        %2118 = vmatpush1.bf16.msra.mxu0 %v1791
        %2119 = vmatprep.subr.bf16.mxu0 0
        %2120 = vmatpush1.bf16.msra.mxu0 %v1792
        %2121 = vmatprep.mubr.bf16.mxu0 %v1300
        %2122 = vmatmul.mubr.bf16.gmra.mrb[0].mxu0 %v1299
        %v2123 = vpop.f32.mrb[0].mxu0
        %v2124 = vadd.f32 %v2084, %v2123
        %v2125 = vpop.f32.mrb[0].mxu0
        %v2126 = vpop.f32.mrb[0].mxu0
        %v2127 = vpop.f32.mrb[0].mxu0
        %2128 = vdwg.mxu0
        %v2129 = vadd.f32 %v1031, %v2124
        %2130 = vst [vmem:[#allocation2] sm:$0x3] %v2129
        %p2131 = scmp.eq.s32.totalorder %s19, 1
        // Predicated region
        $region78: #{cen_cnn_forward.8} parent=68 // pred_check
          %p2132 = pneg %p2131
        $region79: #{cen_cnn_forward.8} parent=68 // pred_check_branch
          %2134 = sbr.rel (%p2132) target = $region81
        $region80: #{cen_cnn_forward.8} parent=68 // pred_region
          %v2135 = vld [vmem:[#allocation2] sm:$0x3]
          %v2136 = vld [vmem:[%s1020] sm:$0x1]
          %v2138 = vlaneseq
          %v2139 = vshrl.u32 %v2138, 7
          %v2140 = vsub.s32 0, %v2139
          %v2141 = vrot.slane %v2136, %v2140
          %v2143 = vadd.f32 %v2135, %v2141
          %v2144 = vmax.f32 %v2143, 0.0
          %2145 = vst [vmem:[%s1024] sm:$0x3] %v2144
        $region81: #{cen_cnn_forward.8} parent=68 // pred_fallthru
          _
        %p2146 = scmp.lt.s32.totalorder %s18, 1
        %s2147 = scalar_select %p2146, %s18, 1
        %s2148 = smul.addr %s2147, 2
        %s2149 = scalar_lea.vmem %s3, %s2148
        // Predicated region
        $region82: #{cen_cnn_forward.8} parent=68 // pred_check
          %p2150 = pneg %p124
        $region83: #{cen_cnn_forward.8} parent=68 // pred_check_branch
          %2152 = sbr.rel (%p2150) target = $region85
        $region84: #{cen_cnn_forward.8} parent=68 // pred_region
          _
        $region85: #{cen_cnn_forward.8} parent=68 // pred_fallthru
          _
      $region69: #{cen_cnn_forward.8} parent=5 // pred_fallthru
        _
      %p2153 = scmp.le.s32.totalorder 2, %s9
      // Predicated region
      $region86: #{cen_cnn_forward.8} parent=5 // pred_check
        %p2154 = pneg %p2153
      $region87: #{cen_cnn_forward.8} parent=5 // pred_check_branch
        %2156 = sbr.rel (%p2154) target = $region89
      $region88: #{cen_cnn_forward.8} parent=5 // pred_region
        %s2157 = ssub.s32 %s9, 2
        // Predicated region
        $region90: #{cen_cnn_forward.8} parent=88 // pred_check
          %p2158 = pneg %p130
        $region91: #{cen_cnn_forward.8} parent=88 // pred_check_branch
          %2160 = sbr.rel (%p2158) target = $region93
        $region92: #{cen_cnn_forward.8} parent=88 // pred_region
          %p2161 = scmp.lt.s32.totalorder %s20, 1
          %s2162 = scalar_select %p2161, %s20, 1
          %s2163 = smul.addr %s2162, 2
          %s2164 = scalar_lea.vmem %s3, %s2163
        $region93: #{cen_cnn_forward.8} parent=88 // pred_fallthru
          _
      $region89: #{cen_cnn_forward.8} parent=5 // pred_fallthru
        _
    $region6: #{cen_cnn_forward.8} parent=1 // loop_footer
      %s13 = sadd.s32 1, %s9
    $region7: #{cen_cnn_forward.8} parent=1 // loop_footer_branch
      %8 = sbr.rel target = $region3
    $region8: #{cen_cnn_forward.8} parent=1 // loop_exit
      _

// kernel: cen_cnn_forward.7
$region0: #{cen_cnn_forward.7}
  #allocation0 [shape = 'u32[]', space=smem, size = 0x4, offset = 0x4, fixed_abs, tag = 'smem constant byte address 0x4 - core index']
  #allocation1 [shape = 'u32[144,128]{1,0:T(1,128)}', space=vmem, size = 0x12000, scoped, tag = 'internal scratch']
  %s0 = inlined_call_operand.vmem [shape: bf16[3,4,64,16], index: 0, kind: input, shape index: {}]
  %s1 = inlined_call_operand.vmem [shape: bf16[3,128,64], index: 1, kind: input, shape index: {}]
  %s2 = inlined_call_operand.vmem [shape: f32[3,128,1], index: 2, kind: input, shape index: {}]
  %s3 = inlined_call_operand.vmem [shape: f32[3,128,1], index: 3, kind: input, shape index: {}]
  %s4 = inlined_call_operand.vmem [shape: bf16[3,1,128,16], index: 4, kind: output, shape index: {}]
  %s5 = sld [smem:[#allocation0]]
  $region26: #{cen_cnn_forward.7} parent=0
    _
  %s7 = ssub.s32 1, %s5
  %s8 = scalar_select 0, %s7, %s5
  // Predicated region
  $region2: #{cen_cnn_forward.7} parent=0 // pred_check
    _
  $region3: #{cen_cnn_forward.7} parent=0 // pred_check_branch
    %10 = sbr.rel (0) target = $region5
  $region4: #{cen_cnn_forward.7} parent=0 // pred_region
    _
  $region5: #{cen_cnn_forward.7} parent=0 // pred_fallthru
    _
  // Predicated region
  $region6: #{cen_cnn_forward.7} parent=0 // pred_check
    _
  $region7: #{cen_cnn_forward.7} parent=0 // pred_check_branch
    %12 = sbr.rel (0) target = $region9
  $region8: #{cen_cnn_forward.7} parent=0 // pred_region
    _
  $region9: #{cen_cnn_forward.7} parent=0 // pred_fallthru
    _
  // Predicated region
  $region10: #{cen_cnn_forward.7} parent=0 // pred_check
    _
  $region11: #{cen_cnn_forward.7} parent=0 // pred_check_branch
    %14 = sbr.rel (0) target = $region13
  $region12: #{cen_cnn_forward.7} parent=0 // pred_region
    _
  $region13: #{cen_cnn_forward.7} parent=0 // pred_fallthru
    _
  // Predicated region
  $region14: #{cen_cnn_forward.7} parent=0 // pred_check
    _
  $region15: #{cen_cnn_forward.7} parent=0 // pred_check_branch
    %16 = sbr.rel (0) target = $region17
  $region16: #{cen_cnn_forward.7} parent=0 // pred_region
    _
  $region17: #{cen_cnn_forward.7} parent=0 // pred_fallthru
    _
  %v18 = vld [vmem:[%s2] sm:$0xff]
  %v19 = vld [vmem:[%s2 + $0x8] sm:$0xff]
  %v20 = vld [vmem:[%s2 + $0x10] sm:$0xff]
  %v21 = vld [vmem:[%s2 + $0x18] sm:$0xff]
  %v22 = vld [vmem:[%s2 + $0x20] sm:$0xff]
  %v23 = vld [vmem:[%s2 + $0x28] sm:$0xff]
  %v24 = vld [vmem:[%s2 + $0x30] sm:$0xff]
  %v25 = vld [vmem:[%s2 + $0x38] sm:$0xff]
  %v26 = vld [vmem:[%s2 + $0x40] sm:$0xff]
  %v27 = vld [vmem:[%s2 + $0x48] sm:$0xff]
  %v28 = vld [vmem:[%s2 + $0x50] sm:$0xff]
  %v29 = vld [vmem:[%s2 + $0x58] sm:$0xff]
  %v30 = vld [vmem:[%s2 + $0x60] sm:$0xff]
  %v31 = vld [vmem:[%s2 + $0x68] sm:$0xff]
  %v32 = vld [vmem:[%s2 + $0x70] sm:$0xff]
  %v33 = vld [vmem:[%s2 + $0x78] sm:$0xff]
  %s34 = scalar_lea.vmem %s2, 128
  %v35 = vld [vmem:[%s34] sm:$0xff]
  %v36 = vld [vmem:[%s34 + $0x8] sm:$0xff]
  %v37 = vld [vmem:[%s34 + $0x10] sm:$0xff]
  %v38 = vld [vmem:[%s34 + $0x18] sm:$0xff]
  %v39 = vld [vmem:[%s34 + $0x20] sm:$0xff]
  %v40 = vld [vmem:[%s34 + $0x28] sm:$0xff]
  %v41 = vld [vmem:[%s34 + $0x30] sm:$0xff]
  %v42 = vld [vmem:[%s34 + $0x38] sm:$0xff]
  %v43 = vld [vmem:[%s34 + $0x40] sm:$0xff]
  %v44 = vld [vmem:[%s34 + $0x48] sm:$0xff]
  %v45 = vld [vmem:[%s34 + $0x50] sm:$0xff]
  %v46 = vld [vmem:[%s34 + $0x58] sm:$0xff]
  %v47 = vld [vmem:[%s34 + $0x60] sm:$0xff]
  %v48 = vld [vmem:[%s34 + $0x68] sm:$0xff]
  %v49 = vld [vmem:[%s34 + $0x70] sm:$0xff]
  %v50 = vld [vmem:[%s34 + $0x78] sm:$0xff]
  %s51 = scalar_lea.vmem %s2, 256
  %v52 = vld [vmem:[%s51] sm:$0xff]
  %v53 = vld [vmem:[%s51 + $0x8] sm:$0xff]
  %v54 = vld [vmem:[%s51 + $0x10] sm:$0xff]
  %v55 = vld [vmem:[%s51 + $0x18] sm:$0xff]
  %v56 = vld [vmem:[%s51 + $0x20] sm:$0xff]
  %v57 = vld [vmem:[%s51 + $0x28] sm:$0xff]
  %v58 = vld [vmem:[%s51 + $0x30] sm:$0xff]
  %v59 = vld [vmem:[%s51 + $0x38] sm:$0xff]
  %v60 = vld [vmem:[%s51 + $0x40] sm:$0xff]
  %v61 = vld [vmem:[%s51 + $0x48] sm:$0xff]
  %v62 = vld [vmem:[%s51 + $0x50] sm:$0xff]
  %v63 = vld [vmem:[%s51 + $0x58] sm:$0xff]
  %v64 = vld [vmem:[%s51 + $0x60] sm:$0xff]
  %v65 = vld [vmem:[%s51 + $0x68] sm:$0xff]
  %v66 = vld [vmem:[%s51 + $0x70] sm:$0xff]
  %v67 = vld [vmem:[%s51 + $0x78] sm:$0xff]
  %v68 = vld [vmem:[%s1] sm:$0xf]
  %v69 = vld [vmem:[%s1 + $0x4] sm:$0xf]
  %v70 = vld [vmem:[%s1 + $0x8] sm:$0xf]
  %v71 = vld [vmem:[%s1 + $0xc] sm:$0xf]
  %v72 = vld [vmem:[%s1 + $0x10] sm:$0xf]
  %v73 = vld [vmem:[%s1 + $0x14] sm:$0xf]
  %v74 = vld [vmem:[%s1 + $0x18] sm:$0xf]
  %v75 = vld [vmem:[%s1 + $0x1c] sm:$0xf]
  %v76 = vld [vmem:[%s1 + $0x20] sm:$0xf]
  %v77 = vld [vmem:[%s1 + $0x24] sm:$0xf]
  %v78 = vld [vmem:[%s1 + $0x28] sm:$0xf]
  %v79 = vld [vmem:[%s1 + $0x2c] sm:$0xf]
  %v80 = vld [vmem:[%s1 + $0x30] sm:$0xf]
  %v81 = vld [vmem:[%s1 + $0x34] sm:$0xf]
  %v82 = vld [vmem:[%s1 + $0x38] sm:$0xf]
  %v83 = vld [vmem:[%s1 + $0x3c] sm:$0xf]
  %s84 = scalar_lea.vmem %s1, 64
  %v85 = vld [vmem:[%s84] sm:$0xf]
  %v86 = vld [vmem:[%s84 + $0x4] sm:$0xf]
  %v87 = vld [vmem:[%s84 + $0x8] sm:$0xf]
  %v88 = vld [vmem:[%s84 + $0xc] sm:$0xf]
  %v89 = vld [vmem:[%s84 + $0x10] sm:$0xf]
  %v90 = vld [vmem:[%s84 + $0x14] sm:$0xf]
  %v91 = vld [vmem:[%s84 + $0x18] sm:$0xf]
  %v92 = vld [vmem:[%s84 + $0x1c] sm:$0xf]
  %v93 = vld [vmem:[%s84 + $0x20] sm:$0xf]
  %v94 = vld [vmem:[%s84 + $0x24] sm:$0xf]
  %v95 = vld [vmem:[%s84 + $0x28] sm:$0xf]
  %v96 = vld [vmem:[%s84 + $0x2c] sm:$0xf]
  %v97 = vld [vmem:[%s84 + $0x30] sm:$0xf]
  %v98 = vld [vmem:[%s84 + $0x34] sm:$0xf]
  %v99 = vld [vmem:[%s84 + $0x38] sm:$0xf]
  %v100 = vld [vmem:[%s84 + $0x3c] sm:$0xf]
  %s101 = scalar_lea.vmem %s1, 128
  %v102 = vld [vmem:[%s101] sm:$0xf]
  %v103 = vld [vmem:[%s101 + $0x4] sm:$0xf]
  %v104 = vld [vmem:[%s101 + $0x8] sm:$0xf]
  %v105 = vld [vmem:[%s101 + $0xc] sm:$0xf]
  %v106 = vld [vmem:[%s101 + $0x10] sm:$0xf]
  %v107 = vld [vmem:[%s101 + $0x14] sm:$0xf]
  %v108 = vld [vmem:[%s101 + $0x18] sm:$0xf]
  %v109 = vld [vmem:[%s101 + $0x1c] sm:$0xf]
  %v110 = vld [vmem:[%s101 + $0x20] sm:$0xf]
  %v111 = vld [vmem:[%s101 + $0x24] sm:$0xf]
  %v112 = vld [vmem:[%s101 + $0x28] sm:$0xf]
  %v113 = vld [vmem:[%s101 + $0x2c] sm:$0xf]
  %v114 = vld [vmem:[%s101 + $0x30] sm:$0xf]
  %v115 = vld [vmem:[%s101 + $0x34] sm:$0xf]
  %v116 = vld [vmem:[%s101 + $0x38] sm:$0xf]
  %v117 = vld [vmem:[%s101 + $0x3c] sm:$0xf]
  %v118 = vld [vmem:[%s0] sm:$0xf]
  %v119 = vld [vmem:[%s0 + $0x4] sm:$0xf]
  %v120 = vld [vmem:[%s0 + $0x8] sm:$0xf]
  %v121 = vld [vmem:[%s0 + $0xc] sm:$0xf]
  %v122 = vld [vmem:[%s0 + $0x10] sm:$0xf]
  %v123 = vld [vmem:[%s0 + $0x14] sm:$0xf]
  %v124 = vld [vmem:[%s0 + $0x18] sm:$0xf]
  %v125 = vld [vmem:[%s0 + $0x1c] sm:$0xf]
  %127 = vset.pattern.permute.xlu0 0
  %128 = vperm.xlu0 %127, %v18
  %v129 = vpop.permute.xlu0 %128
  %132 = vset.pattern.permute.xlu0 0
  %133 = vperm.xlu0 %132, %v19
  %v134 = vpop.permute.xlu0 %133
  %137 = vset.pattern.permute.xlu0 0
  %138 = vperm.xlu0 %137, %v20
  %v139 = vpop.permute.xlu0 %138
  %142 = vset.pattern.permute.xlu0 0
  %143 = vperm.xlu0 %142, %v21
  %v144 = vpop.permute.xlu0 %143
  %147 = vset.pattern.permute.xlu0 0
  %148 = vperm.xlu0 %147, %v22
  %v149 = vpop.permute.xlu0 %148
  %152 = vset.pattern.permute.xlu0 0
  %153 = vperm.xlu0 %152, %v23
  %v154 = vpop.permute.xlu0 %153
  %157 = vset.pattern.permute.xlu0 0
  %158 = vperm.xlu0 %157, %v24
  %v159 = vpop.permute.xlu0 %158
  %162 = vset.pattern.permute.xlu0 0
  %163 = vperm.xlu0 %162, %v25
  %v164 = vpop.permute.xlu0 %163
  %167 = vset.pattern.permute.xlu0 0
  %168 = vperm.xlu0 %167, %v26
  %v169 = vpop.permute.xlu0 %168
  %172 = vset.pattern.permute.xlu0 0
  %173 = vperm.xlu0 %172, %v27
  %v174 = vpop.permute.xlu0 %173
  %177 = vset.pattern.permute.xlu0 0
  %178 = vperm.xlu0 %177, %v28
  %v179 = vpop.permute.xlu0 %178
  %182 = vset.pattern.permute.xlu0 0
  %183 = vperm.xlu0 %182, %v29
  %v184 = vpop.permute.xlu0 %183
  %187 = vset.pattern.permute.xlu0 0
  %188 = vperm.xlu0 %187, %v30
  %v189 = vpop.permute.xlu0 %188
  %192 = vset.pattern.permute.xlu0 0
  %193 = vperm.xlu0 %192, %v31
  %v194 = vpop.permute.xlu0 %193
  %197 = vset.pattern.permute.xlu0 0
  %198 = vperm.xlu0 %197, %v32
  %v199 = vpop.permute.xlu0 %198
  %202 = vset.pattern.permute.xlu0 0
  %203 = vperm.xlu0 %202, %v33
  %v204 = vpop.permute.xlu0 %203
  %v222 = vunpack.c.l.b16 %v68
  %v223 = vunpack.c.l.b16 %v69
  %v224 = vunpack.c.l.b16 %v70
  %v225 = vunpack.c.l.b16 %v71
  %v226 = vunpack.c.l.b16 %v72
  %v227 = vunpack.c.l.b16 %v73
  %v228 = vunpack.c.l.b16 %v74
  %v229 = vunpack.c.l.b16 %v75
  %v230 = vunpack.c.l.b16 %v76
  %v231 = vunpack.c.l.b16 %v77
  %v232 = vunpack.c.l.b16 %v78
  %v233 = vunpack.c.l.b16 %v79
  %v234 = vunpack.c.l.b16 %v80
  %v235 = vunpack.c.l.b16 %v81
  %v236 = vunpack.c.l.b16 %v82
  %v237 = vunpack.c.l.b16 %v83
  %v238 = vpack.c.b16 %v223, %v222
  %v239 = vpack.c.b16 %v225, %v224
  %v240 = vpack.c.b16 %v227, %v226
  %v241 = vpack.c.b16 %v229, %v228
  %v242 = vpack.c.b16 %v231, %v230
  %v243 = vpack.c.b16 %v233, %v232
  %v244 = vpack.c.b16 %v235, %v234
  %v245 = vpack.c.b16 %v237, %v236
  %v254 = vunpack.c.l.b16 %v118
  %v255 = vunpack.c.l.b16 %v119
  %v256 = vunpack.c.l.b16 %v120
  %v257 = vunpack.c.l.b16 %v121
  %v258 = vunpack.c.l.b16 %v122
  %v259 = vunpack.c.l.b16 %v123
  %v260 = vunpack.c.l.b16 %v124
  %v261 = vunpack.c.l.b16 %v125
  %v262 = vpack.c.b16 %v255, %v254
  %v263 = vpack.c.b16 %v257, %v256
  %v264 = vpack.c.b16 %v259, %v258
  %v265 = vpack.c.b16 %v261, %v260
  %vm270 = vcmask 523264
  %v272 = vsel %vm270, %v238, 0
  %v275 = vsel %vm270, %v239, 0
  %v278 = vsel %vm270, %v240, 0
  %v281 = vsel %vm270, %v241, 0
  %v284 = vsel %vm270, %v242, 0
  %v287 = vsel %vm270, %v243, 0
  %v290 = vsel %vm270, %v244, 0
  %v293 = vsel %vm270, %v245, 0
  %295 = vmatprep.subr.bf16.mxu0 0
  %296 = vmatpush1.bf16.msra.mxu0 %v262
  %297 = vmatprep.subr.bf16.mxu0 0
  %298 = vmatpush1.bf16.msra.mxu0 %v263
  %299 = vmatprep.subr.bf16.mxu0 0
  %300 = vmatpush1.bf16.msra.mxu0 %v264
  %301 = vmatprep.subr.bf16.mxu0 0
  %302 = vmatpush1.bf16.msra.mxu0 %v265
  %303 = vmatprep.subr.bf16.mxu0 0
  %304 = vmatpush1.bf16.msra.mxu0 0
  %305 = vmatprep.subr.bf16.mxu0 0
  %306 = vmatpush1.bf16.msra.mxu0 0
  %307 = vmatprep.subr.bf16.mxu0 0
  %308 = vmatpush1.bf16.msra.mxu0 0
  %309 = vmatprep.subr.bf16.mxu0 0
  %310 = vmatpush1.bf16.msra.mxu0 0
  %311 = vmatprep.subr.bf16.mxu0 0
  %312 = vmatpush1.bf16.msra.mxu0 0
  %313 = vmatprep.subr.bf16.mxu0 0
  %314 = vmatpush1.bf16.msra.mxu0 0
  %315 = vmatprep.subr.bf16.mxu0 0
  %316 = vmatpush1.bf16.msra.mxu0 0
  %317 = vmatprep.subr.bf16.mxu0 0
  %318 = vmatpush1.bf16.msra.mxu0 0
  %319 = vmatprep.subr.bf16.mxu0 0
  %320 = vmatpush1.bf16.msra.mxu0 0
  %321 = vmatprep.subr.bf16.mxu0 0
  %322 = vmatpush1.bf16.msra.mxu0 0
  %323 = vmatprep.subr.bf16.mxu0 0
  %324 = vmatpush1.bf16.msra.mxu0 0
  %325 = vmatprep.subr.bf16.mxu0 0
  %326 = vmatpush1.bf16.msra.mxu0 0
  %327 = vmatprep.mubr.bf16.mxu0 0
  %328 = vmatmul.mubr.bf16.gmra.mrb[0].mxu0 %v272
  %v329 = vpop.f32.mrb[0].mxu0
  %v330 = vadd.f32 %v129, %v329
  %v331 = vpop.f32.mrb[0].mxu0
  %v332 = vpop.f32.mrb[0].mxu0
  %v333 = vadd.f32 %v134, %v332
  %v334 = vpop.f32.mrb[0].mxu0
  %335 = vmatprep.mubr.bf16.mxu0 0
  %336 = vmatmul.mubr.bf16.gmra.mrb[0].mxu0 %v275
  %v337 = vpop.f32.mrb[0].mxu0
  %v338 = vadd.f32 %v139, %v337
  %v339 = vpop.f32.mrb[0].mxu0
  %v340 = vpop.f32.mrb[0].mxu0
  %v341 = vadd.f32 %v144, %v340
  %v342 = vpop.f32.mrb[0].mxu0
  %343 = vmatprep.mubr.bf16.mxu0 0
  %344 = vmatmul.mubr.bf16.gmra.mrb[0].mxu0 %v278
  %v345 = vpop.f32.mrb[0].mxu0
  %v346 = vadd.f32 %v149, %v345
  %v347 = vpop.f32.mrb[0].mxu0
  %v348 = vpop.f32.mrb[0].mxu0
  %v349 = vadd.f32 %v154, %v348
  %v350 = vpop.f32.mrb[0].mxu0
  %351 = vmatprep.mubr.bf16.mxu0 0
  %352 = vmatmul.mubr.bf16.gmra.mrb[0].mxu0 %v281
  %v353 = vpop.f32.mrb[0].mxu0
  %v354 = vadd.f32 %v159, %v353
  %v355 = vpop.f32.mrb[0].mxu0
  %v356 = vpop.f32.mrb[0].mxu0
  %v357 = vadd.f32 %v164, %v356
  %v358 = vpop.f32.mrb[0].mxu0
  %359 = vmatprep.mubr.bf16.mxu0 0
  %360 = vmatmul.mubr.bf16.gmra.mrb[0].mxu0 %v284
  %v361 = vpop.f32.mrb[0].mxu0
  %v362 = vadd.f32 %v169, %v361
  %v363 = vpop.f32.mrb[0].mxu0
  %v364 = vpop.f32.mrb[0].mxu0
  %v365 = vadd.f32 %v174, %v364
  %v366 = vpop.f32.mrb[0].mxu0
  %367 = vmatprep.mubr.bf16.mxu0 0
  %368 = vmatmul.mubr.bf16.gmra.mrb[0].mxu0 %v287
  %v369 = vpop.f32.mrb[0].mxu0
  %v370 = vadd.f32 %v179, %v369
  %v371 = vpop.f32.mrb[0].mxu0
  %v372 = vpop.f32.mrb[0].mxu0
  %v373 = vadd.f32 %v184, %v372
  %v374 = vpop.f32.mrb[0].mxu0
  %375 = vmatprep.mubr.bf16.mxu0 0
  %376 = vmatmul.mubr.bf16.gmra.mrb[0].mxu0 %v290
  %v377 = vpop.f32.mrb[0].mxu0
  %v378 = vadd.f32 %v189, %v377
  %v379 = vpop.f32.mrb[0].mxu0
  %v380 = vpop.f32.mrb[0].mxu0
  %v381 = vadd.f32 %v194, %v380
  %v382 = vpop.f32.mrb[0].mxu0
  %383 = vmatprep.mubr.bf16.mxu0 0
  %384 = vmatmul.mubr.bf16.gmra.mrb[0].mxu0 %v293
  %v385 = vpop.f32.mrb[0].mxu0
  %v386 = vadd.f32 %v199, %v385
  %v387 = vpop.f32.mrb[0].mxu0
  %v388 = vpop.f32.mrb[0].mxu0
  %v389 = vadd.f32 %v204, %v388
  %v390 = vpop.f32.mrb[0].mxu0
  %391 = vdwg.mxu0
  %s392 = scalar_lea.vmem %s0, 128
  %v393 = vld [vmem:[%s392] sm:$0xf]
  %v394 = vld [vmem:[%s392 + $0x4] sm:$0xf]
  %v395 = vld [vmem:[%s392 + $0x8] sm:$0xf]
  %v396 = vld [vmem:[%s392 + $0xc] sm:$0xf]
  %v397 = vld [vmem:[%s392 + $0x10] sm:$0xf]
  %v398 = vld [vmem:[%s392 + $0x14] sm:$0xf]
  %v399 = vld [vmem:[%s392 + $0x18] sm:$0xf]
  %v400 = vld [vmem:[%s392 + $0x1c] sm:$0xf]
  %402 = vset.pattern.permute.xlu0 0
  %403 = vperm.xlu0 %402, %v35
  %v404 = vpop.permute.xlu0 %403
  %407 = vset.pattern.permute.xlu0 0
  %408 = vperm.xlu0 %407, %v36
  %v409 = vpop.permute.xlu0 %408
  %412 = vset.pattern.permute.xlu0 0
  %413 = vperm.xlu0 %412, %v37
  %v414 = vpop.permute.xlu0 %413
  %417 = vset.pattern.permute.xlu0 0
  %418 = vperm.xlu0 %417, %v38
  %v419 = vpop.permute.xlu0 %418
  %422 = vset.pattern.permute.xlu0 0
  %423 = vperm.xlu0 %422, %v39
  %v424 = vpop.permute.xlu0 %423
  %427 = vset.pattern.permute.xlu0 0
  %428 = vperm.xlu0 %427, %v40
  %v429 = vpop.permute.xlu0 %428
  %432 = vset.pattern.permute.xlu0 0
  %433 = vperm.xlu0 %432, %v41
  %v434 = vpop.permute.xlu0 %433
  %437 = vset.pattern.permute.xlu0 0
  %438 = vperm.xlu0 %437, %v42
  %v439 = vpop.permute.xlu0 %438
  %442 = vset.pattern.permute.xlu0 0
  %443 = vperm.xlu0 %442, %v43
  %v444 = vpop.permute.xlu0 %443
  %447 = vset.pattern.permute.xlu0 0
  %448 = vperm.xlu0 %447, %v44
  %v449 = vpop.permute.xlu0 %448
  %452 = vset.pattern.permute.xlu0 0
  %453 = vperm.xlu0 %452, %v45
  %v454 = vpop.permute.xlu0 %453
  %457 = vset.pattern.permute.xlu0 0
  %458 = vperm.xlu0 %457, %v46
  %v459 = vpop.permute.xlu0 %458
  %462 = vset.pattern.permute.xlu0 0
  %463 = vperm.xlu0 %462, %v47
  %v464 = vpop.permute.xlu0 %463
  %467 = vset.pattern.permute.xlu0 0
  %468 = vperm.xlu0 %467, %v48
  %v469 = vpop.permute.xlu0 %468
  %472 = vset.pattern.permute.xlu0 0
  %473 = vperm.xlu0 %472, %v49
  %v474 = vpop.permute.xlu0 %473
  %477 = vset.pattern.permute.xlu0 0
  %478 = vperm.xlu0 %477, %v50
  %v479 = vpop.permute.xlu0 %478
  %v497 = vunpack.c.l.b16 %v85
  %v498 = vunpack.c.l.b16 %v86
  %v499 = vunpack.c.l.b16 %v87
  %v500 = vunpack.c.l.b16 %v88
  %v501 = vunpack.c.l.b16 %v89
  %v502 = vunpack.c.l.b16 %v90
  %v503 = vunpack.c.l.b16 %v91
  %v504 = vunpack.c.l.b16 %v92
  %v505 = vunpack.c.l.b16 %v93
  %v506 = vunpack.c.l.b16 %v94
  %v507 = vunpack.c.l.b16 %v95
  %v508 = vunpack.c.l.b16 %v96
  %v509 = vunpack.c.l.b16 %v97
  %v510 = vunpack.c.l.b16 %v98
  %v511 = vunpack.c.l.b16 %v99
  %v512 = vunpack.c.l.b16 %v100
  %v513 = vpack.c.b16 %v498, %v497
  %v514 = vpack.c.b16 %v500, %v499
  %v515 = vpack.c.b16 %v502, %v501
  %v516 = vpack.c.b16 %v504, %v503
  %v517 = vpack.c.b16 %v506, %v505
  %v518 = vpack.c.b16 %v508, %v507
  %v519 = vpack.c.b16 %v510, %v509
  %v520 = vpack.c.b16 %v512, %v511
  %v529 = vunpack.c.l.b16 %v393
  %v530 = vunpack.c.l.b16 %v394
  %v531 = vunpack.c.l.b16 %v395
  %v532 = vunpack.c.l.b16 %v396
  %v533 = vunpack.c.l.b16 %v397
  %v534 = vunpack.c.l.b16 %v398
  %v535 = vunpack.c.l.b16 %v399
  %v536 = vunpack.c.l.b16 %v400
  %v537 = vpack.c.b16 %v530, %v529
  %v538 = vpack.c.b16 %v532, %v531
  %v539 = vpack.c.b16 %v534, %v533
  %v540 = vpack.c.b16 %v536, %v535
  %v546 = vsel %vm270, %v513, 0
  %v549 = vsel %vm270, %v514, 0
  %v552 = vsel %vm270, %v515, 0
  %v555 = vsel %vm270, %v516, 0
  %v558 = vsel %vm270, %v517, 0
  %v561 = vsel %vm270, %v518, 0
  %v564 = vsel %vm270, %v519, 0
  %v567 = vsel %vm270, %v520, 0
  %569 = vmatprep.subr.bf16.mxu0 0
  %570 = vmatpush1.bf16.msra.mxu0 %v537
  %571 = vmatprep.subr.bf16.mxu0 0
  %572 = vmatpush1.bf16.msra.mxu0 %v538
  %573 = vmatprep.subr.bf16.mxu0 0
  %574 = vmatpush1.bf16.msra.mxu0 %v539
  %575 = vmatprep.subr.bf16.mxu0 0
  %576 = vmatpush1.bf16.msra.mxu0 %v540
  %577 = vmatprep.subr.bf16.mxu0 0
  %578 = vmatpush1.bf16.msra.mxu0 0
  %579 = vmatprep.subr.bf16.mxu0 0
  %580 = vmatpush1.bf16.msra.mxu0 0
  %581 = vmatprep.subr.bf16.mxu0 0
  %582 = vmatpush1.bf16.msra.mxu0 0
  %583 = vmatprep.subr.bf16.mxu0 0
  %584 = vmatpush1.bf16.msra.mxu0 0
  %585 = vmatprep.subr.bf16.mxu0 0
  %586 = vmatpush1.bf16.msra.mxu0 0
  %587 = vmatprep.subr.bf16.mxu0 0
  %588 = vmatpush1.bf16.msra.mxu0 0
  %589 = vmatprep.subr.bf16.mxu0 0
  %590 = vmatpush1.bf16.msra.mxu0 0
  %591 = vmatprep.subr.bf16.mxu0 0
  %592 = vmatpush1.bf16.msra.mxu0 0
  %593 = vmatprep.subr.bf16.mxu0 0
  %594 = vmatpush1.bf16.msra.mxu0 0
  %595 = vmatprep.subr.bf16.mxu0 0
  %596 = vmatpush1.bf16.msra.mxu0 0
  %597 = vmatprep.subr.bf16.mxu0 0
  %598 = vmatpush1.bf16.msra.mxu0 0
  %599 = vmatprep.subr.bf16.mxu0 0
  %600 = vmatpush1.bf16.msra.mxu0 0
  %601 = vmatprep.mubr.bf16.mxu0 0
  %602 = vmatmul.mubr.bf16.gmra.mrb[0].mxu0 %v546
  %v603 = vpop.f32.mrb[0].mxu0
  %v604 = vadd.f32 %v404, %v603
  %v605 = vpop.f32.mrb[0].mxu0
  %v606 = vpop.f32.mrb[0].mxu0
  %v607 = vadd.f32 %v409, %v606
  %v608 = vpop.f32.mrb[0].mxu0
  %609 = vmatprep.mubr.bf16.mxu0 0
  %610 = vmatmul.mubr.bf16.gmra.mrb[0].mxu0 %v549
  %v611 = vpop.f32.mrb[0].mxu0
  %v612 = vadd.f32 %v414, %v611
  %v613 = vpop.f32.mrb[0].mxu0
  %v614 = vpop.f32.mrb[0].mxu0
  %v615 = vadd.f32 %v419, %v614
  %v616 = vpop.f32.mrb[0].mxu0
  %617 = vmatprep.mubr.bf16.mxu0 0
  %618 = vmatmul.mubr.bf16.gmra.mrb[0].mxu0 %v552
  %v619 = vpop.f32.mrb[0].mxu0
  %v620 = vadd.f32 %v424, %v619
  %v621 = vpop.f32.mrb[0].mxu0
  %v622 = vpop.f32.mrb[0].mxu0
  %v623 = vadd.f32 %v429, %v622
  %v624 = vpop.f32.mrb[0].mxu0
  %625 = vmatprep.mubr.bf16.mxu0 0
  %626 = vmatmul.mubr.bf16.gmra.mrb[0].mxu0 %v555
  %v627 = vpop.f32.mrb[0].mxu0
  %v628 = vadd.f32 %v434, %v627
  %v629 = vpop.f32.mrb[0].mxu0
  %v630 = vpop.f32.mrb[0].mxu0
  %v631 = vadd.f32 %v439, %v630
  %v632 = vpop.f32.mrb[0].mxu0
  %633 = vmatprep.mubr.bf16.mxu0 0
  %634 = vmatmul.mubr.bf16.gmra.mrb[0].mxu0 %v558
  %v635 = vpop.f32.mrb[0].mxu0
  %v636 = vadd.f32 %v444, %v635
  %v637 = vpop.f32.mrb[0].mxu0
  %v638 = vpop.f32.mrb[0].mxu0
  %v639 = vadd.f32 %v449, %v638
  %v640 = vpop.f32.mrb[0].mxu0
  %641 = vmatprep.mubr.bf16.mxu0 0
  %642 = vmatmul.mubr.bf16.gmra.mrb[0].mxu0 %v561
  %v643 = vpop.f32.mrb[0].mxu0
  %v644 = vadd.f32 %v454, %v643
  %v645 = vpop.f32.mrb[0].mxu0
  %v646 = vpop.f32.mrb[0].mxu0
  %v647 = vadd.f32 %v459, %v646
  %v648 = vpop.f32.mrb[0].mxu0
  %649 = vmatprep.mubr.bf16.mxu0 0
  %650 = vmatmul.mubr.bf16.gmra.mrb[0].mxu0 %v564
  %v651 = vpop.f32.mrb[0].mxu0
  %v652 = vadd.f32 %v464, %v651
  %v653 = vpop.f32.mrb[0].mxu0
  %v654 = vpop.f32.mrb[0].mxu0
  %v655 = vadd.f32 %v469, %v654
  %v656 = vpop.f32.mrb[0].mxu0
  %657 = vmatprep.mubr.bf16.mxu0 0
  %658 = vmatmul.mubr.bf16.gmra.mrb[0].mxu0 %v567
  %v659 = vpop.f32.mrb[0].mxu0
  %v660 = vadd.f32 %v474, %v659
  %v661 = vpop.f32.mrb[0].mxu0
  %v662 = vpop.f32.mrb[0].mxu0
  %v663 = vadd.f32 %v479, %v662
  %v664 = vpop.f32.mrb[0].mxu0
  %665 = vdwg.mxu0
  %s666 = scalar_lea.vmem %s0, 256
  %v667 = vld [vmem:[%s666] sm:$0xf]
  %v668 = vld [vmem:[%s666 + $0x4] sm:$0xf]
  %v669 = vld [vmem:[%s666 + $0x8] sm:$0xf]
  %v670 = vld [vmem:[%s666 + $0xc] sm:$0xf]
  %v671 = vld [vmem:[%s666 + $0x10] sm:$0xf]
  %v672 = vld [vmem:[%s666 + $0x14] sm:$0xf]
  %v673 = vld [vmem:[%s666 + $0x18] sm:$0xf]
  %v674 = vld [vmem:[%s666 + $0x1c] sm:$0xf]
  %676 = vset.pattern.permute.xlu0 0
  %677 = vperm.xlu0 %676, %v52
  %v678 = vpop.permute.xlu0 %677
  %681 = vset.pattern.permute.xlu0 0
  %682 = vperm.xlu0 %681, %v53
  %v683 = vpop.permute.xlu0 %682
  %686 = vset.pattern.permute.xlu0 0
  %687 = vperm.xlu0 %686, %v54
  %v688 = vpop.permute.xlu0 %687
  %691 = vset.pattern.permute.xlu0 0
  %692 = vperm.xlu0 %691, %v55
  %v693 = vpop.permute.xlu0 %692
  %696 = vset.pattern.permute.xlu0 0
  %697 = vperm.xlu0 %696, %v56
  %v698 = vpop.permute.xlu0 %697
  %701 = vset.pattern.permute.xlu0 0
  %702 = vperm.xlu0 %701, %v57
  %v703 = vpop.permute.xlu0 %702
  %706 = vset.pattern.permute.xlu0 0
  %707 = vperm.xlu0 %706, %v58
  %v708 = vpop.permute.xlu0 %707
  %711 = vset.pattern.permute.xlu0 0
  %712 = vperm.xlu0 %711, %v59
  %v713 = vpop.permute.xlu0 %712
  %716 = vset.pattern.permute.xlu0 0
  %717 = vperm.xlu0 %716, %v60
  %v718 = vpop.permute.xlu0 %717
  %721 = vset.pattern.permute.xlu0 0
  %722 = vperm.xlu0 %721, %v61
  %v723 = vpop.permute.xlu0 %722
  %726 = vset.pattern.permute.xlu0 0
  %727 = vperm.xlu0 %726, %v62
  %v728 = vpop.permute.xlu0 %727
  %731 = vset.pattern.permute.xlu0 0
  %732 = vperm.xlu0 %731, %v63
  %v733 = vpop.permute.xlu0 %732
  %736 = vset.pattern.permute.xlu0 0
  %737 = vperm.xlu0 %736, %v64
  %v738 = vpop.permute.xlu0 %737
  %741 = vset.pattern.permute.xlu0 0
  %742 = vperm.xlu0 %741, %v65
  %v743 = vpop.permute.xlu0 %742
  %746 = vset.pattern.permute.xlu0 0
  %747 = vperm.xlu0 %746, %v66
  %v748 = vpop.permute.xlu0 %747
  %751 = vset.pattern.permute.xlu0 0
  %752 = vperm.xlu0 %751, %v67
  %v753 = vpop.permute.xlu0 %752
  %v771 = vunpack.c.l.b16 %v102
  %v772 = vunpack.c.l.b16 %v103
  %v773 = vunpack.c.l.b16 %v104
  %v774 = vunpack.c.l.b16 %v105
  %v775 = vunpack.c.l.b16 %v106
  %v776 = vunpack.c.l.b16 %v107
  %v777 = vunpack.c.l.b16 %v108
  %v778 = vunpack.c.l.b16 %v109
  %v779 = vunpack.c.l.b16 %v110
  %v780 = vunpack.c.l.b16 %v111
  %v781 = vunpack.c.l.b16 %v112
  %v782 = vunpack.c.l.b16 %v113
  %v783 = vunpack.c.l.b16 %v114
  %v784 = vunpack.c.l.b16 %v115
  %v785 = vunpack.c.l.b16 %v116
  %v786 = vunpack.c.l.b16 %v117
  %v787 = vpack.c.b16 %v772, %v771
  %v788 = vpack.c.b16 %v774, %v773
  %v789 = vpack.c.b16 %v776, %v775
  %v790 = vpack.c.b16 %v778, %v777
  %v791 = vpack.c.b16 %v780, %v779
  %v792 = vpack.c.b16 %v782, %v781
  %v793 = vpack.c.b16 %v784, %v783
  %v794 = vpack.c.b16 %v786, %v785
  %v803 = vunpack.c.l.b16 %v667
  %v804 = vunpack.c.l.b16 %v668
  %v805 = vunpack.c.l.b16 %v669
  %v806 = vunpack.c.l.b16 %v670
  %v807 = vunpack.c.l.b16 %v671
  %v808 = vunpack.c.l.b16 %v672
  %v809 = vunpack.c.l.b16 %v673
  %v810 = vunpack.c.l.b16 %v674
  %v811 = vpack.c.b16 %v804, %v803
  %v812 = vpack.c.b16 %v806, %v805
  %v813 = vpack.c.b16 %v808, %v807
  %v814 = vpack.c.b16 %v810, %v809
  %v820 = vsel %vm270, %v787, 0
  %v823 = vsel %vm270, %v788, 0
  %v826 = vsel %vm270, %v789, 0
  %v829 = vsel %vm270, %v790, 0
  %v832 = vsel %vm270, %v791, 0
  %v835 = vsel %vm270, %v792, 0
  %v838 = vsel %vm270, %v793, 0
  %v841 = vsel %vm270, %v794, 0
  %843 = vmatprep.subr.bf16.mxu0 0
  %844 = vmatpush1.bf16.msra.mxu0 %v811
  %845 = vmatprep.subr.bf16.mxu0 0
  %846 = vmatpush1.bf16.msra.mxu0 %v812
  %847 = vmatprep.subr.bf16.mxu0 0
  %848 = vmatpush1.bf16.msra.mxu0 %v813
  %849 = vmatprep.subr.bf16.mxu0 0
  %850 = vmatpush1.bf16.msra.mxu0 %v814
  %851 = vmatprep.subr.bf16.mxu0 0
  %852 = vmatpush1.bf16.msra.mxu0 0
  %853 = vmatprep.subr.bf16.mxu0 0
  %854 = vmatpush1.bf16.msra.mxu0 0
  %855 = vmatprep.subr.bf16.mxu0 0
  %856 = vmatpush1.bf16.msra.mxu0 0
  %857 = vmatprep.subr.bf16.mxu0 0
  %858 = vmatpush1.bf16.msra.mxu0 0
  %859 = vmatprep.subr.bf16.mxu0 0
  %860 = vmatpush1.bf16.msra.mxu0 0
  %861 = vmatprep.subr.bf16.mxu0 0
  %862 = vmatpush1.bf16.msra.mxu0 0
  %863 = vmatprep.subr.bf16.mxu0 0
  %864 = vmatpush1.bf16.msra.mxu0 0
  %865 = vmatprep.subr.bf16.mxu0 0
  %866 = vmatpush1.bf16.msra.mxu0 0
  %867 = vmatprep.subr.bf16.mxu0 0
  %868 = vmatpush1.bf16.msra.mxu0 0
  %869 = vmatprep.subr.bf16.mxu0 0
  %870 = vmatpush1.bf16.msra.mxu0 0
  %871 = vmatprep.subr.bf16.mxu0 0
  %872 = vmatpush1.bf16.msra.mxu0 0
  %873 = vmatprep.subr.bf16.mxu0 0
  %874 = vmatpush1.bf16.msra.mxu0 0
  %875 = vmatprep.mubr.bf16.mxu0 0
  %876 = vmatmul.mubr.bf16.gmra.mrb[0].mxu0 %v820
  %v877 = vpop.f32.mrb[0].mxu0
  %v878 = vadd.f32 %v678, %v877
  %v879 = vpop.f32.mrb[0].mxu0
  %v880 = vpop.f32.mrb[0].mxu0
  %v881 = vadd.f32 %v683, %v880
  %v882 = vpop.f32.mrb[0].mxu0
  %883 = vmatprep.mubr.bf16.mxu0 0
  %884 = vmatmul.mubr.bf16.gmra.mrb[0].mxu0 %v823
  %v885 = vpop.f32.mrb[0].mxu0
  %v886 = vadd.f32 %v688, %v885
  %v887 = vpop.f32.mrb[0].mxu0
  %v888 = vpop.f32.mrb[0].mxu0
  %v889 = vadd.f32 %v693, %v888
  %v890 = vpop.f32.mrb[0].mxu0
  %891 = vmatprep.mubr.bf16.mxu0 0
  %892 = vmatmul.mubr.bf16.gmra.mrb[0].mxu0 %v826
  %v893 = vpop.f32.mrb[0].mxu0
  %v894 = vadd.f32 %v698, %v893
  %v895 = vpop.f32.mrb[0].mxu0
  %v896 = vpop.f32.mrb[0].mxu0
  %v897 = vadd.f32 %v703, %v896
  %v898 = vpop.f32.mrb[0].mxu0
  %899 = vmatprep.mubr.bf16.mxu0 0
  %900 = vmatmul.mubr.bf16.gmra.mrb[0].mxu0 %v829
  %v901 = vpop.f32.mrb[0].mxu0
  %v902 = vadd.f32 %v708, %v901
  %v903 = vpop.f32.mrb[0].mxu0
  %v904 = vpop.f32.mrb[0].mxu0
  %v905 = vadd.f32 %v713, %v904
  %v906 = vpop.f32.mrb[0].mxu0
  %907 = vmatprep.mubr.bf16.mxu0 0
  %908 = vmatmul.mubr.bf16.gmra.mrb[0].mxu0 %v832
  %v909 = vpop.f32.mrb[0].mxu0
  %v910 = vadd.f32 %v718, %v909
  %v911 = vpop.f32.mrb[0].mxu0
  %v912 = vpop.f32.mrb[0].mxu0
  %v913 = vadd.f32 %v723, %v912
  %v914 = vpop.f32.mrb[0].mxu0
  %915 = vmatprep.mubr.bf16.mxu0 0
  %916 = vmatmul.mubr.bf16.gmra.mrb[0].mxu0 %v835
  %v917 = vpop.f32.mrb[0].mxu0
  %v918 = vadd.f32 %v728, %v917
  %v919 = vpop.f32.mrb[0].mxu0
  %v920 = vpop.f32.mrb[0].mxu0
  %v921 = vadd.f32 %v733, %v920
  %v922 = vpop.f32.mrb[0].mxu0
  %923 = vmatprep.mubr.bf16.mxu0 0
  %924 = vmatmul.mubr.bf16.gmra.mrb[0].mxu0 %v838
  %v925 = vpop.f32.mrb[0].mxu0
  %v926 = vadd.f32 %v738, %v925
  %v927 = vpop.f32.mrb[0].mxu0
  %v928 = vpop.f32.mrb[0].mxu0
  %v929 = vadd.f32 %v743, %v928
  %v930 = vpop.f32.mrb[0].mxu0
  %931 = vmatprep.mubr.bf16.mxu0 0
  %932 = vmatmul.mubr.bf16.gmra.mrb[0].mxu0 %v841
  %v933 = vpop.f32.mrb[0].mxu0
  %v934 = vadd.f32 %v748, %v933
  %v935 = vpop.f32.mrb[0].mxu0
  %v936 = vpop.f32.mrb[0].mxu0
  %v937 = vadd.f32 %v753, %v936
  %v938 = vpop.f32.mrb[0].mxu0
  %939 = vdwg.mxu0
  %s940 = scalar_lea.vmem %s0, 32
  %v941 = vld [vmem:[%s940] sm:$0xf]
  %v942 = vld [vmem:[%s940 + $0x4] sm:$0xf]
  %v943 = vld [vmem:[%s940 + $0x8] sm:$0xf]
  %v944 = vld [vmem:[%s940 + $0xc] sm:$0xf]
  %v945 = vld [vmem:[%s940 + $0x10] sm:$0xf]
  %v946 = vld [vmem:[%s940 + $0x14] sm:$0xf]
  %v947 = vld [vmem:[%s940 + $0x18] sm:$0xf]
  %v948 = vld [vmem:[%s940 + $0x1c] sm:$0xf]
  %v957 = vunpack.c.l.b16 %v941
  %v958 = vunpack.c.l.b16 %v942
  %v959 = vunpack.c.l.b16 %v943
  %v960 = vunpack.c.l.b16 %v944
  %v961 = vunpack.c.l.b16 %v945
  %v962 = vunpack.c.l.b16 %v946
  %v963 = vunpack.c.l.b16 %v947
  %v964 = vunpack.c.l.b16 %v948
  %v965 = vpack.c.b16 %v958, %v957
  %v966 = vpack.c.b16 %v960, %v959
  %v967 = vpack.c.b16 %v962, %v961
  %v968 = vpack.c.b16 %v964, %v963
  %973 = vmatprep.subr.bf16.mxu0 0
  %974 = vmatpush1.bf16.msra.mxu0 %v965
  %975 = vmatprep.subr.bf16.mxu0 0
  %976 = vmatpush1.bf16.msra.mxu0 %v966
  %977 = vmatprep.subr.bf16.mxu0 0
  %978 = vmatpush1.bf16.msra.mxu0 %v967
  %979 = vmatprep.subr.bf16.mxu0 0
  %980 = vmatpush1.bf16.msra.mxu0 %v968
  %981 = vmatprep.subr.bf16.mxu0 0
  %982 = vmatpush1.bf16.msra.mxu0 0
  %983 = vmatprep.subr.bf16.mxu0 0
  %984 = vmatpush1.bf16.msra.mxu0 0
  %985 = vmatprep.subr.bf16.mxu0 0
  %986 = vmatpush1.bf16.msra.mxu0 0
  %987 = vmatprep.subr.bf16.mxu0 0
  %988 = vmatpush1.bf16.msra.mxu0 0
  %989 = vmatprep.subr.bf16.mxu0 0
  %990 = vmatpush1.bf16.msra.mxu0 0
  %991 = vmatprep.subr.bf16.mxu0 0
  %992 = vmatpush1.bf16.msra.mxu0 0
  %993 = vmatprep.subr.bf16.mxu0 0
  %994 = vmatpush1.bf16.msra.mxu0 0
  %995 = vmatprep.subr.bf16.mxu0 0
  %996 = vmatpush1.bf16.msra.mxu0 0
  %997 = vmatprep.subr.bf16.mxu0 0
  %998 = vmatpush1.bf16.msra.mxu0 0
  %999 = vmatprep.subr.bf16.mxu0 0
  %1000 = vmatpush1.bf16.msra.mxu0 0
  %1001 = vmatprep.subr.bf16.mxu0 0
  %1002 = vmatpush1.bf16.msra.mxu0 0
  %1003 = vmatprep.subr.bf16.mxu0 0
  %1004 = vmatpush1.bf16.msra.mxu0 0
  %1005 = vmatprep.mubr.bf16.mxu0 0
  %1006 = vmatmul.mubr.bf16.gmra.mrb[0].mxu0 %v272
  %v1007 = vpop.f32.mrb[0].mxu0
  %v1008 = vadd.f32 %v129, %v1007
  %v1009 = vpop.f32.mrb[0].mxu0
  %v1010 = vpop.f32.mrb[0].mxu0
  %v1011 = vadd.f32 %v134, %v1010
  %v1012 = vpop.f32.mrb[0].mxu0
  %1013 = vmatprep.mubr.bf16.mxu0 0
  %1014 = vmatmul.mubr.bf16.gmra.mrb[0].mxu0 %v275
  %v1015 = vpop.f32.mrb[0].mxu0
  %v1016 = vadd.f32 %v139, %v1015
  %v1017 = vpop.f32.mrb[0].mxu0
  %v1018 = vpop.f32.mrb[0].mxu0
  %v1019 = vadd.f32 %v144, %v1018
  %v1020 = vpop.f32.mrb[0].mxu0
  %1021 = vmatprep.mubr.bf16.mxu0 0
  %1022 = vmatmul.mubr.bf16.gmra.mrb[0].mxu0 %v278
  %v1023 = vpop.f32.mrb[0].mxu0
  %v1024 = vadd.f32 %v149, %v1023
  %v1025 = vpop.f32.mrb[0].mxu0
  %v1026 = vpop.f32.mrb[0].mxu0
  %v1027 = vadd.f32 %v154, %v1026
  %v1028 = vpop.f32.mrb[0].mxu0
  %1029 = vmatprep.mubr.bf16.mxu0 0
  %1030 = vmatmul.mubr.bf16.gmra.mrb[0].mxu0 %v281
  %v1031 = vpop.f32.mrb[0].mxu0
  %v1032 = vadd.f32 %v159, %v1031
  %v1033 = vpop.f32.mrb[0].mxu0
  %v1034 = vpop.f32.mrb[0].mxu0
  %v1035 = vadd.f32 %v164, %v1034
  %v1036 = vpop.f32.mrb[0].mxu0
  %1037 = vmatprep.mubr.bf16.mxu0 0
  %1038 = vmatmul.mubr.bf16.gmra.mrb[0].mxu0 %v284
  %v1039 = vpop.f32.mrb[0].mxu0
  %v1040 = vadd.f32 %v169, %v1039
  %v1041 = vpop.f32.mrb[0].mxu0
  %v1042 = vpop.f32.mrb[0].mxu0
  %v1043 = vadd.f32 %v174, %v1042
  %v1044 = vpop.f32.mrb[0].mxu0
  %1045 = vmatprep.mubr.bf16.mxu0 0
  %1046 = vmatmul.mubr.bf16.gmra.mrb[0].mxu0 %v287
  %v1047 = vpop.f32.mrb[0].mxu0
  %v1048 = vadd.f32 %v179, %v1047
  %v1049 = vpop.f32.mrb[0].mxu0
  %v1050 = vpop.f32.mrb[0].mxu0
  %v1051 = vadd.f32 %v184, %v1050
  %v1052 = vpop.f32.mrb[0].mxu0
  %1053 = vmatprep.mubr.bf16.mxu0 0
  %1054 = vmatmul.mubr.bf16.gmra.mrb[0].mxu0 %v290
  %v1055 = vpop.f32.mrb[0].mxu0
  %v1056 = vadd.f32 %v189, %v1055
  %v1057 = vpop.f32.mrb[0].mxu0
  %v1058 = vpop.f32.mrb[0].mxu0
  %v1059 = vadd.f32 %v194, %v1058
  %v1060 = vpop.f32.mrb[0].mxu0
  %1061 = vmatprep.mubr.bf16.mxu0 0
  %1062 = vmatmul.mubr.bf16.gmra.mrb[0].mxu0 %v293
  %v1063 = vpop.f32.mrb[0].mxu0
  %v1064 = vadd.f32 %v199, %v1063
  %v1065 = vpop.f32.mrb[0].mxu0
  %v1066 = vpop.f32.mrb[0].mxu0
  %v1067 = vadd.f32 %v204, %v1066
  %v1068 = vpop.f32.mrb[0].mxu0
  %1069 = vdwg.mxu0
  %s1070 = scalar_lea.vmem %s0, 160
  %v1071 = vld [vmem:[%s1070] sm:$0xf]
  %v1072 = vld [vmem:[%s1070 + $0x4] sm:$0xf]
  %v1073 = vld [vmem:[%s1070 + $0x8] sm:$0xf]
  %v1074 = vld [vmem:[%s1070 + $0xc] sm:$0xf]
  %v1075 = vld [vmem:[%s1070 + $0x10] sm:$0xf]
  %v1076 = vld [vmem:[%s1070 + $0x14] sm:$0xf]
  %v1077 = vld [vmem:[%s1070 + $0x18] sm:$0xf]
  %v1078 = vld [vmem:[%s1070 + $0x1c] sm:$0xf]
  %v1087 = vunpack.c.l.b16 %v1071
  %v1088 = vunpack.c.l.b16 %v1072
  %v1089 = vunpack.c.l.b16 %v1073
  %v1090 = vunpack.c.l.b16 %v1074
  %v1091 = vunpack.c.l.b16 %v1075
  %v1092 = vunpack.c.l.b16 %v1076
  %v1093 = vunpack.c.l.b16 %v1077
  %v1094 = vunpack.c.l.b16 %v1078
  %v1095 = vpack.c.b16 %v1088, %v1087
  %v1096 = vpack.c.b16 %v1090, %v1089
  %v1097 = vpack.c.b16 %v1092, %v1091
  %v1098 = vpack.c.b16 %v1094, %v1093
  %1103 = vmatprep.subr.bf16.mxu0 0
  %1104 = vmatpush1.bf16.msra.mxu0 %v1095
  %1105 = vmatprep.subr.bf16.mxu0 0
  %1106 = vmatpush1.bf16.msra.mxu0 %v1096
  %1107 = vmatprep.subr.bf16.mxu0 0
  %1108 = vmatpush1.bf16.msra.mxu0 %v1097
  %1109 = vmatprep.subr.bf16.mxu0 0
  %1110 = vmatpush1.bf16.msra.mxu0 %v1098
  %1111 = vmatprep.subr.bf16.mxu0 0
  %1112 = vmatpush1.bf16.msra.mxu0 0
  %1113 = vmatprep.subr.bf16.mxu0 0
  %1114 = vmatpush1.bf16.msra.mxu0 0
  %1115 = vmatprep.subr.bf16.mxu0 0
  %1116 = vmatpush1.bf16.msra.mxu0 0
  %1117 = vmatprep.subr.bf16.mxu0 0
  %1118 = vmatpush1.bf16.msra.mxu0 0
  %1119 = vmatprep.subr.bf16.mxu0 0
  %1120 = vmatpush1.bf16.msra.mxu0 0
  %1121 = vmatprep.subr.bf16.mxu0 0
  %1122 = vmatpush1.bf16.msra.mxu0 0
  %1123 = vmatprep.subr.bf16.mxu0 0
  %1124 = vmatpush1.bf16.msra.mxu0 0
  %1125 = vmatprep.subr.bf16.mxu0 0
  %1126 = vmatpush1.bf16.msra.mxu0 0
  %1127 = vmatprep.subr.bf16.mxu0 0
  %1128 = vmatpush1.bf16.msra.mxu0 0
  %1129 = vmatprep.subr.bf16.mxu0 0
  %1130 = vmatpush1.bf16.msra.mxu0 0
  %1131 = vmatprep.subr.bf16.mxu0 0
  %1132 = vmatpush1.bf16.msra.mxu0 0
  %1133 = vmatprep.subr.bf16.mxu0 0
  %1134 = vmatpush1.bf16.msra.mxu0 0
  %1135 = vmatprep.mubr.bf16.mxu0 0
  %1136 = vmatmul.mubr.bf16.gmra.mrb[0].mxu0 %v546
  %v1137 = vpop.f32.mrb[0].mxu0
  %v1138 = vadd.f32 %v404, %v1137
  %v1139 = vpop.f32.mrb[0].mxu0
  %v1140 = vpop.f32.mrb[0].mxu0
  %v1141 = vadd.f32 %v409, %v1140
  %v1142 = vpop.f32.mrb[0].mxu0
  %1143 = vmatprep.mubr.bf16.mxu0 0
  %1144 = vmatmul.mubr.bf16.gmra.mrb[0].mxu0 %v549
  %v1145 = vpop.f32.mrb[0].mxu0
  %v1146 = vadd.f32 %v414, %v1145
  %v1147 = vpop.f32.mrb[0].mxu0
  %v1148 = vpop.f32.mrb[0].mxu0
  %v1149 = vadd.f32 %v419, %v1148
  %v1150 = vpop.f32.mrb[0].mxu0
  %1151 = vmatprep.mubr.bf16.mxu0 0
  %1152 = vmatmul.mubr.bf16.gmra.mrb[0].mxu0 %v552
  %v1153 = vpop.f32.mrb[0].mxu0
  %v1154 = vadd.f32 %v424, %v1153
  %v1155 = vpop.f32.mrb[0].mxu0
  %v1156 = vpop.f32.mrb[0].mxu0
  %v1157 = vadd.f32 %v429, %v1156
  %v1158 = vpop.f32.mrb[0].mxu0
  %1159 = vmatprep.mubr.bf16.mxu0 0
  %1160 = vmatmul.mubr.bf16.gmra.mrb[0].mxu0 %v555
  %v1161 = vpop.f32.mrb[0].mxu0
  %v1162 = vadd.f32 %v434, %v1161
  %v1163 = vpop.f32.mrb[0].mxu0
  %v1164 = vpop.f32.mrb[0].mxu0
  %v1165 = vadd.f32 %v439, %v1164
  %v1166 = vpop.f32.mrb[0].mxu0
  %1167 = vmatprep.mubr.bf16.mxu0 0
  %1168 = vmatmul.mubr.bf16.gmra.mrb[0].mxu0 %v558
  %v1169 = vpop.f32.mrb[0].mxu0
  %v1170 = vadd.f32 %v444, %v1169
  %v1171 = vpop.f32.mrb[0].mxu0
  %v1172 = vpop.f32.mrb[0].mxu0
  %v1173 = vadd.f32 %v449, %v1172
  %v1174 = vpop.f32.mrb[0].mxu0
  %1175 = vmatprep.mubr.bf16.mxu0 0
  %1176 = vmatmul.mubr.bf16.gmra.mrb[0].mxu0 %v561
  %v1177 = vpop.f32.mrb[0].mxu0
  %v1178 = vadd.f32 %v454, %v1177
  %v1179 = vpop.f32.mrb[0].mxu0
  %v1180 = vpop.f32.mrb[0].mxu0
  %v1181 = vadd.f32 %v459, %v1180
  %v1182 = vpop.f32.mrb[0].mxu0
  %1183 = vmatprep.mubr.bf16.mxu0 0
  %1184 = vmatmul.mubr.bf16.gmra.mrb[0].mxu0 %v564
  %v1185 = vpop.f32.mrb[0].mxu0
  %v1186 = vadd.f32 %v464, %v1185
  %v1187 = vpop.f32.mrb[0].mxu0
  %v1188 = vpop.f32.mrb[0].mxu0
  %v1189 = vadd.f32 %v469, %v1188
  %v1190 = vpop.f32.mrb[0].mxu0
  %1191 = vmatprep.mubr.bf16.mxu0 0
  %1192 = vmatmul.mubr.bf16.gmra.mrb[0].mxu0 %v567
  %v1193 = vpop.f32.mrb[0].mxu0
  %v1194 = vadd.f32 %v474, %v1193
  %v1195 = vpop.f32.mrb[0].mxu0
  %v1196 = vpop.f32.mrb[0].mxu0
  %v1197 = vadd.f32 %v479, %v1196
  %v1198 = vpop.f32.mrb[0].mxu0
  %1199 = vdwg.mxu0
  %s1200 = scalar_lea.vmem %s0, 288
  %v1201 = vld [vmem:[%s1200] sm:$0xf]
  %v1202 = vld [vmem:[%s1200 + $0x4] sm:$0xf]
  %v1203 = vld [vmem:[%s1200 + $0x8] sm:$0xf]
  %v1204 = vld [vmem:[%s1200 + $0xc] sm:$0xf]
  %v1205 = vld [vmem:[%s1200 + $0x10] sm:$0xf]
  %v1206 = vld [vmem:[%s1200 + $0x14] sm:$0xf]
  %v1207 = vld [vmem:[%s1200 + $0x18] sm:$0xf]
  %v1208 = vld [vmem:[%s1200 + $0x1c] sm:$0xf]
  %v1217 = vunpack.c.l.b16 %v1201
  %v1218 = vunpack.c.l.b16 %v1202
  %v1219 = vunpack.c.l.b16 %v1203
  %v1220 = vunpack.c.l.b16 %v1204
  %v1221 = vunpack.c.l.b16 %v1205
  %v1222 = vunpack.c.l.b16 %v1206
  %v1223 = vunpack.c.l.b16 %v1207
  %v1224 = vunpack.c.l.b16 %v1208
  %v1225 = vpack.c.b16 %v1218, %v1217
  %v1226 = vpack.c.b16 %v1220, %v1219
  %v1227 = vpack.c.b16 %v1222, %v1221
  %v1228 = vpack.c.b16 %v1224, %v1223
  %1233 = vmatprep.subr.bf16.mxu0 0
  %1234 = vmatpush1.bf16.msra.mxu0 %v1225
  %1235 = vmatprep.subr.bf16.mxu0 0
  %1236 = vmatpush1.bf16.msra.mxu0 %v1226
  %1237 = vmatprep.subr.bf16.mxu0 0
  %1238 = vmatpush1.bf16.msra.mxu0 %v1227
  %1239 = vmatprep.subr.bf16.mxu0 0
  %1240 = vmatpush1.bf16.msra.mxu0 %v1228
  %1241 = vmatprep.subr.bf16.mxu0 0
  %1242 = vmatpush1.bf16.msra.mxu0 0
  %1243 = vmatprep.subr.bf16.mxu0 0
  %1244 = vmatpush1.bf16.msra.mxu0 0
  %1245 = vmatprep.subr.bf16.mxu0 0
  %1246 = vmatpush1.bf16.msra.mxu0 0
  %1247 = vmatprep.subr.bf16.mxu0 0
  %1248 = vmatpush1.bf16.msra.mxu0 0
  %1249 = vmatprep.subr.bf16.mxu0 0
  %1250 = vmatpush1.bf16.msra.mxu0 0
  %1251 = vmatprep.subr.bf16.mxu0 0
  %1252 = vmatpush1.bf16.msra.mxu0 0
  %1253 = vmatprep.subr.bf16.mxu0 0
  %1254 = vmatpush1.bf16.msra.mxu0 0
  %1255 = vmatprep.subr.bf16.mxu0 0
  %1256 = vmatpush1.bf16.msra.mxu0 0
  %1257 = vmatprep.subr.bf16.mxu0 0
  %1258 = vmatpush1.bf16.msra.mxu0 0
  %1259 = vmatprep.subr.bf16.mxu0 0
  %1260 = vmatpush1.bf16.msra.mxu0 0
  %1261 = vmatprep.subr.bf16.mxu0 0
  %1262 = vmatpush1.bf16.msra.mxu0 0
  %1263 = vmatprep.subr.bf16.mxu0 0
  %1264 = vmatpush1.bf16.msra.mxu0 0
  %1265 = vmatprep.mubr.bf16.mxu0 0
  %1266 = vmatmul.mubr.bf16.gmra.mrb[0].mxu0 %v820
  %v1267 = vpop.f32.mrb[0].mxu0
  %v1268 = vadd.f32 %v678, %v1267
  %v1269 = vpop.f32.mrb[0].mxu0
  %v1270 = vpop.f32.mrb[0].mxu0
  %v1271 = vadd.f32 %v683, %v1270
  %v1272 = vpop.f32.mrb[0].mxu0
  %1273 = vmatprep.mubr.bf16.mxu0 0
  %1274 = vmatmul.mubr.bf16.gmra.mrb[0].mxu0 %v823
  %v1275 = vpop.f32.mrb[0].mxu0
  %v1276 = vadd.f32 %v688, %v1275
  %v1277 = vpop.f32.mrb[0].mxu0
  %v1278 = vpop.f32.mrb[0].mxu0
  %v1279 = vadd.f32 %v693, %v1278
  %v1280 = vpop.f32.mrb[0].mxu0
  %1281 = vmatprep.mubr.bf16.mxu0 0
  %1282 = vmatmul.mubr.bf16.gmra.mrb[0].mxu0 %v826
  %v1283 = vpop.f32.mrb[0].mxu0
  %v1284 = vadd.f32 %v698, %v1283
  %v1285 = vpop.f32.mrb[0].mxu0
  %v1286 = vpop.f32.mrb[0].mxu0
  %v1287 = vadd.f32 %v703, %v1286
  %v1288 = vpop.f32.mrb[0].mxu0
  %1289 = vmatprep.mubr.bf16.mxu0 0
  %1290 = vmatmul.mubr.bf16.gmra.mrb[0].mxu0 %v829
  %v1291 = vpop.f32.mrb[0].mxu0
  %v1292 = vadd.f32 %v708, %v1291
  %v1293 = vpop.f32.mrb[0].mxu0
  %v1294 = vpop.f32.mrb[0].mxu0
  %v1295 = vadd.f32 %v713, %v1294
  %v1296 = vpop.f32.mrb[0].mxu0
  %1297 = vmatprep.mubr.bf16.mxu0 0
  %1298 = vmatmul.mubr.bf16.gmra.mrb[0].mxu0 %v832
  %v1299 = vpop.f32.mrb[0].mxu0
  %v1300 = vadd.f32 %v718, %v1299
  %v1301 = vpop.f32.mrb[0].mxu0
  %v1302 = vpop.f32.mrb[0].mxu0
  %v1303 = vadd.f32 %v723, %v1302
  %v1304 = vpop.f32.mrb[0].mxu0
  %1305 = vmatprep.mubr.bf16.mxu0 0
  %1306 = vmatmul.mubr.bf16.gmra.mrb[0].mxu0 %v835
  %v1307 = vpop.f32.mrb[0].mxu0
  %v1308 = vadd.f32 %v728, %v1307
  %v1309 = vpop.f32.mrb[0].mxu0
  %v1310 = vpop.f32.mrb[0].mxu0
  %v1311 = vadd.f32 %v733, %v1310
  %v1312 = vpop.f32.mrb[0].mxu0
  %1313 = vmatprep.mubr.bf16.mxu0 0
  %1314 = vmatmul.mubr.bf16.gmra.mrb[0].mxu0 %v838
  %v1315 = vpop.f32.mrb[0].mxu0
  %v1316 = vadd.f32 %v738, %v1315
  %v1317 = vpop.f32.mrb[0].mxu0
  %v1318 = vpop.f32.mrb[0].mxu0
  %v1319 = vadd.f32 %v743, %v1318
  %v1320 = vpop.f32.mrb[0].mxu0
  %1321 = vmatprep.mubr.bf16.mxu0 0
  %1322 = vmatmul.mubr.bf16.gmra.mrb[0].mxu0 %v841
  %v1323 = vpop.f32.mrb[0].mxu0
  %v1324 = vadd.f32 %v748, %v1323
  %v1325 = vpop.f32.mrb[0].mxu0
  %v1326 = vpop.f32.mrb[0].mxu0
  %v1327 = vadd.f32 %v753, %v1326
  %v1328 = vpop.f32.mrb[0].mxu0
  %1329 = vdwg.mxu0
  %v1330 = vmax.f32 %v330, %v1008
  %v1331 = vmax.f32 %v333, %v1011
  %v1332 = vmax.f32 %v338, %v1016
  %v1333 = vmax.f32 %v341, %v1019
  %v1334 = vmax.f32 %v346, %v1024
  %v1335 = vmax.f32 %v349, %v1027
  %v1336 = vmax.f32 %v354, %v1032
  %v1337 = vmax.f32 %v357, %v1035
  %v1338 = vmax.f32 %v362, %v1040
  %v1339 = vmax.f32 %v365, %v1043
  %v1340 = vmax.f32 %v370, %v1048
  %v1341 = vmax.f32 %v373, %v1051
  %v1342 = vmax.f32 %v378, %v1056
  %v1343 = vmax.f32 %v381, %v1059
  %v1344 = vmax.f32 %v386, %v1064
  %v1345 = vmax.f32 %v389, %v1067
  %v1346 = vmax.f32 %v604, %v1138
  %v1347 = vmax.f32 %v607, %v1141
  %v1348 = vmax.f32 %v612, %v1146
  %v1349 = vmax.f32 %v615, %v1149
  %v1350 = vmax.f32 %v620, %v1154
  %v1351 = vmax.f32 %v623, %v1157
  %v1352 = vmax.f32 %v628, %v1162
  %v1353 = vmax.f32 %v631, %v1165
  %v1354 = vmax.f32 %v636, %v1170
  %v1355 = vmax.f32 %v639, %v1173
  %v1356 = vmax.f32 %v644, %v1178
  %v1357 = vmax.f32 %v647, %v1181
  %v1358 = vmax.f32 %v652, %v1186
  %v1359 = vmax.f32 %v655, %v1189
  %v1360 = vmax.f32 %v660, %v1194
  %v1361 = vmax.f32 %v663, %v1197
  %v1362 = vmax.f32 %v878, %v1268
  %v1363 = vmax.f32 %v881, %v1271
  %v1364 = vmax.f32 %v886, %v1276
  %v1365 = vmax.f32 %v889, %v1279
  %v1366 = vmax.f32 %v894, %v1284
  %v1367 = vmax.f32 %v897, %v1287
  %v1368 = vmax.f32 %v902, %v1292
  %v1369 = vmax.f32 %v905, %v1295
  %v1370 = vmax.f32 %v910, %v1300
  %v1371 = vmax.f32 %v913, %v1303
  %v1372 = vmax.f32 %v918, %v1308
  %v1373 = vmax.f32 %v921, %v1311
  %v1374 = vmax.f32 %v926, %v1316
  %v1375 = vmax.f32 %v929, %v1319
  %v1376 = vmax.f32 %v934, %v1324
  %v1377 = vmax.f32 %v937, %v1327
  %s1378 = scalar_lea.vmem %s0, 64
  %v1379 = vld [vmem:[%s1378] sm:$0xf]
  %v1380 = vld [vmem:[%s1378 + $0x4] sm:$0xf]
  %v1381 = vld [vmem:[%s1378 + $0x8] sm:$0xf]
  %v1382 = vld [vmem:[%s1378 + $0xc] sm:$0xf]
  %v1383 = vld [vmem:[%s1378 + $0x10] sm:$0xf]
  %v1384 = vld [vmem:[%s1378 + $0x14] sm:$0xf]
  %v1385 = vld [vmem:[%s1378 + $0x18] sm:$0xf]
  %v1386 = vld [vmem:[%s1378 + $0x1c] sm:$0xf]
  %v1395 = vunpack.c.l.b16 %v1379
  %v1396 = vunpack.c.l.b16 %v1380
  %v1397 = vunpack.c.l.b16 %v1381
  %v1398 = vunpack.c.l.b16 %v1382
  %v1399 = vunpack.c.l.b16 %v1383
  %v1400 = vunpack.c.l.b16 %v1384
  %v1401 = vunpack.c.l.b16 %v1385
  %v1402 = vunpack.c.l.b16 %v1386
  %v1403 = vpack.c.b16 %v1396, %v1395
  %v1404 = vpack.c.b16 %v1398, %v1397
  %v1405 = vpack.c.b16 %v1400, %v1399
  %v1406 = vpack.c.b16 %v1402, %v1401
  %1411 = vmatprep.subr.bf16.mxu0 0
  %1412 = vmatpush1.bf16.msra.mxu0 %v1403
  %1413 = vmatprep.subr.bf16.mxu0 0
  %1414 = vmatpush1.bf16.msra.mxu0 %v1404
  %1415 = vmatprep.subr.bf16.mxu0 0
  %1416 = vmatpush1.bf16.msra.mxu0 %v1405
  %1417 = vmatprep.subr.bf16.mxu0 0
  %1418 = vmatpush1.bf16.msra.mxu0 %v1406
  %1419 = vmatprep.subr.bf16.mxu0 0
  %1420 = vmatpush1.bf16.msra.mxu0 0
  %1421 = vmatprep.subr.bf16.mxu0 0
  %1422 = vmatpush1.bf16.msra.mxu0 0
  %1423 = vmatprep.subr.bf16.mxu0 0
  %1424 = vmatpush1.bf16.msra.mxu0 0
  %1425 = vmatprep.subr.bf16.mxu0 0
  %1426 = vmatpush1.bf16.msra.mxu0 0
  %1427 = vmatprep.subr.bf16.mxu0 0
  %1428 = vmatpush1.bf16.msra.mxu0 0
  %1429 = vmatprep.subr.bf16.mxu0 0
  %1430 = vmatpush1.bf16.msra.mxu0 0
  %1431 = vmatprep.subr.bf16.mxu0 0
  %1432 = vmatpush1.bf16.msra.mxu0 0
  %1433 = vmatprep.subr.bf16.mxu0 0
  %1434 = vmatpush1.bf16.msra.mxu0 0
  %1435 = vmatprep.subr.bf16.mxu0 0
  %1436 = vmatpush1.bf16.msra.mxu0 0
  %1437 = vmatprep.subr.bf16.mxu0 0
  %1438 = vmatpush1.bf16.msra.mxu0 0
  %1439 = vmatprep.subr.bf16.mxu0 0
  %1440 = vmatpush1.bf16.msra.mxu0 0
  %1441 = vmatprep.subr.bf16.mxu0 0
  %1442 = vmatpush1.bf16.msra.mxu0 0
  %1443 = vmatprep.mubr.bf16.mxu0 0
  %1444 = vmatmul.mubr.bf16.gmra.mrb[0].mxu0 %v272
  %v1445 = vpop.f32.mrb[0].mxu0
  %v1446 = vadd.f32 %v129, %v1445
  %v1447 = vpop.f32.mrb[0].mxu0
  %v1448 = vpop.f32.mrb[0].mxu0
  %v1449 = vadd.f32 %v134, %v1448
  %v1450 = vpop.f32.mrb[0].mxu0
  %1451 = vmatprep.mubr.bf16.mxu0 0
  %1452 = vmatmul.mubr.bf16.gmra.mrb[0].mxu0 %v275
  %v1453 = vpop.f32.mrb[0].mxu0
  %v1454 = vadd.f32 %v139, %v1453
  %v1455 = vpop.f32.mrb[0].mxu0
  %v1456 = vpop.f32.mrb[0].mxu0
  %v1457 = vadd.f32 %v144, %v1456
  %v1458 = vpop.f32.mrb[0].mxu0
  %1459 = vmatprep.mubr.bf16.mxu0 0
  %1460 = vmatmul.mubr.bf16.gmra.mrb[0].mxu0 %v278
  %v1461 = vpop.f32.mrb[0].mxu0
  %v1462 = vadd.f32 %v149, %v1461
  %v1463 = vpop.f32.mrb[0].mxu0
  %v1464 = vpop.f32.mrb[0].mxu0
  %v1465 = vadd.f32 %v154, %v1464
  %v1466 = vpop.f32.mrb[0].mxu0
  %1467 = vmatprep.mubr.bf16.mxu0 0
  %1468 = vmatmul.mubr.bf16.gmra.mrb[0].mxu0 %v281
  %v1469 = vpop.f32.mrb[0].mxu0
  %v1470 = vadd.f32 %v159, %v1469
  %v1471 = vpop.f32.mrb[0].mxu0
  %v1472 = vpop.f32.mrb[0].mxu0
  %v1473 = vadd.f32 %v164, %v1472
  %v1474 = vpop.f32.mrb[0].mxu0
  %1475 = vmatprep.mubr.bf16.mxu0 0
  %1476 = vmatmul.mubr.bf16.gmra.mrb[0].mxu0 %v284
  %v1477 = vpop.f32.mrb[0].mxu0
  %v1478 = vadd.f32 %v169, %v1477
  %v1479 = vpop.f32.mrb[0].mxu0
  %v1480 = vpop.f32.mrb[0].mxu0
  %v1481 = vadd.f32 %v174, %v1480
  %v1482 = vpop.f32.mrb[0].mxu0
  %1483 = vmatprep.mubr.bf16.mxu0 0
  %1484 = vmatmul.mubr.bf16.gmra.mrb[0].mxu0 %v287
  %v1485 = vpop.f32.mrb[0].mxu0
  %v1486 = vadd.f32 %v179, %v1485
  %v1487 = vpop.f32.mrb[0].mxu0
  %v1488 = vpop.f32.mrb[0].mxu0
  %v1489 = vadd.f32 %v184, %v1488
  %v1490 = vpop.f32.mrb[0].mxu0
  %1491 = vmatprep.mubr.bf16.mxu0 0
  %1492 = vmatmul.mubr.bf16.gmra.mrb[0].mxu0 %v290
  %v1493 = vpop.f32.mrb[0].mxu0
  %v1494 = vadd.f32 %v189, %v1493
  %v1495 = vpop.f32.mrb[0].mxu0
  %v1496 = vpop.f32.mrb[0].mxu0
  %v1497 = vadd.f32 %v194, %v1496
  %v1498 = vpop.f32.mrb[0].mxu0
  %1499 = vmatprep.mubr.bf16.mxu0 0
  %1500 = vmatmul.mubr.bf16.gmra.mrb[0].mxu0 %v293
  %v1501 = vpop.f32.mrb[0].mxu0
  %v1502 = vadd.f32 %v199, %v1501
  %v1503 = vpop.f32.mrb[0].mxu0
  %v1504 = vpop.f32.mrb[0].mxu0
  %v1505 = vadd.f32 %v204, %v1504
  %v1506 = vpop.f32.mrb[0].mxu0
  %1507 = vdwg.mxu0
  %s1508 = scalar_lea.vmem %s0, 192
  %v1509 = vld [vmem:[%s1508] sm:$0xf]
  %v1510 = vld [vmem:[%s1508 + $0x4] sm:$0xf]
  %v1511 = vld [vmem:[%s1508 + $0x8] sm:$0xf]
  %v1512 = vld [vmem:[%s1508 + $0xc] sm:$0xf]
  %v1513 = vld [vmem:[%s1508 + $0x10] sm:$0xf]
  %v1514 = vld [vmem:[%s1508 + $0x14] sm:$0xf]
  %v1515 = vld [vmem:[%s1508 + $0x18] sm:$0xf]
  %v1516 = vld [vmem:[%s1508 + $0x1c] sm:$0xf]
  %v1525 = vunpack.c.l.b16 %v1509
  %v1526 = vunpack.c.l.b16 %v1510
  %v1527 = vunpack.c.l.b16 %v1511
  %v1528 = vunpack.c.l.b16 %v1512
  %v1529 = vunpack.c.l.b16 %v1513
  %v1530 = vunpack.c.l.b16 %v1514
  %v1531 = vunpack.c.l.b16 %v1515
  %v1532 = vunpack.c.l.b16 %v1516
  %v1533 = vpack.c.b16 %v1526, %v1525
  %v1534 = vpack.c.b16 %v1528, %v1527
  %v1535 = vpack.c.b16 %v1530, %v1529
  %v1536 = vpack.c.b16 %v1532, %v1531
  %1541 = vmatprep.subr.bf16.mxu0 0
  %1542 = vmatpush1.bf16.msra.mxu0 %v1533
  %1543 = vmatprep.subr.bf16.mxu0 0
  %1544 = vmatpush1.bf16.msra.mxu0 %v1534
  %1545 = vmatprep.subr.bf16.mxu0 0
  %1546 = vmatpush1.bf16.msra.mxu0 %v1535
  %1547 = vmatprep.subr.bf16.mxu0 0
  %1548 = vmatpush1.bf16.msra.mxu0 %v1536
  %1549 = vmatprep.subr.bf16.mxu0 0
  %1550 = vmatpush1.bf16.msra.mxu0 0
  %1551 = vmatprep.subr.bf16.mxu0 0
  %1552 = vmatpush1.bf16.msra.mxu0 0
  %1553 = vmatprep.subr.bf16.mxu0 0
  %1554 = vmatpush1.bf16.msra.mxu0 0
  %1555 = vmatprep.subr.bf16.mxu0 0
  %1556 = vmatpush1.bf16.msra.mxu0 0
  %1557 = vmatprep.subr.bf16.mxu0 0
  %1558 = vmatpush1.bf16.msra.mxu0 0
  %1559 = vmatprep.subr.bf16.mxu0 0
  %1560 = vmatpush1.bf16.msra.mxu0 0
  %1561 = vmatprep.subr.bf16.mxu0 0
  %1562 = vmatpush1.bf16.msra.mxu0 0
  %1563 = vmatprep.subr.bf16.mxu0 0
  %1564 = vmatpush1.bf16.msra.mxu0 0
  %1565 = vmatprep.subr.bf16.mxu0 0
  %1566 = vmatpush1.bf16.msra.mxu0 0
  %1567 = vmatprep.subr.bf16.mxu0 0
  %1568 = vmatpush1.bf16.msra.mxu0 0
  %1569 = vmatprep.subr.bf16.mxu0 0
  %1570 = vmatpush1.bf16.msra.mxu0 0
  %1571 = vmatprep.subr.bf16.mxu0 0
  %1572 = vmatpush1.bf16.msra.mxu0 0
  %1573 = vmatprep.mubr.bf16.mxu0 0
  %1574 = vmatmul.mubr.bf16.gmra.mrb[0].mxu0 %v546
  %v1575 = vpop.f32.mrb[0].mxu0
  %v1576 = vadd.f32 %v404, %v1575
  %v1577 = vpop.f32.mrb[0].mxu0
  %v1578 = vpop.f32.mrb[0].mxu0
  %v1579 = vadd.f32 %v409, %v1578
  %v1580 = vpop.f32.mrb[0].mxu0
  %1581 = vmatprep.mubr.bf16.mxu0 0
  %1582 = vmatmul.mubr.bf16.gmra.mrb[0].mxu0 %v549
  %v1583 = vpop.f32.mrb[0].mxu0
  %v1584 = vadd.f32 %v414, %v1583
  %v1585 = vpop.f32.mrb[0].mxu0
  %v1586 = vpop.f32.mrb[0].mxu0
  %v1587 = vadd.f32 %v419, %v1586
  %v1588 = vpop.f32.mrb[0].mxu0
  %1589 = vmatprep.mubr.bf16.mxu0 0
  %1590 = vmatmul.mubr.bf16.gmra.mrb[0].mxu0 %v552
  %v1591 = vpop.f32.mrb[0].mxu0
  %v1592 = vadd.f32 %v424, %v1591
  %v1593 = vpop.f32.mrb[0].mxu0
  %v1594 = vpop.f32.mrb[0].mxu0
  %v1595 = vadd.f32 %v429, %v1594
  %v1596 = vpop.f32.mrb[0].mxu0
  %1597 = vmatprep.mubr.bf16.mxu0 0
  %1598 = vmatmul.mubr.bf16.gmra.mrb[0].mxu0 %v555
  %v1599 = vpop.f32.mrb[0].mxu0
  %v1600 = vadd.f32 %v434, %v1599
  %v1601 = vpop.f32.mrb[0].mxu0
  %v1602 = vpop.f32.mrb[0].mxu0
  %v1603 = vadd.f32 %v439, %v1602
  %v1604 = vpop.f32.mrb[0].mxu0
  %1605 = vmatprep.mubr.bf16.mxu0 0
  %1606 = vmatmul.mubr.bf16.gmra.mrb[0].mxu0 %v558
  %v1607 = vpop.f32.mrb[0].mxu0
  %v1608 = vadd.f32 %v444, %v1607
  %v1609 = vpop.f32.mrb[0].mxu0
  %v1610 = vpop.f32.mrb[0].mxu0
  %v1611 = vadd.f32 %v449, %v1610
  %v1612 = vpop.f32.mrb[0].mxu0
  %1613 = vmatprep.mubr.bf16.mxu0 0
  %1614 = vmatmul.mubr.bf16.gmra.mrb[0].mxu0 %v561
  %v1615 = vpop.f32.mrb[0].mxu0
  %v1616 = vadd.f32 %v454, %v1615
  %v1617 = vpop.f32.mrb[0].mxu0
  %v1618 = vpop.f32.mrb[0].mxu0
  %v1619 = vadd.f32 %v459, %v1618
  %v1620 = vpop.f32.mrb[0].mxu0
  %1621 = vmatprep.mubr.bf16.mxu0 0
  %1622 = vmatmul.mubr.bf16.gmra.mrb[0].mxu0 %v564
  %v1623 = vpop.f32.mrb[0].mxu0
  %v1624 = vadd.f32 %v464, %v1623
  %v1625 = vpop.f32.mrb[0].mxu0
  %v1626 = vpop.f32.mrb[0].mxu0
  %v1627 = vadd.f32 %v469, %v1626
  %v1628 = vpop.f32.mrb[0].mxu0
  %1629 = vmatprep.mubr.bf16.mxu0 0
  %1630 = vmatmul.mubr.bf16.gmra.mrb[0].mxu0 %v567
  %v1631 = vpop.f32.mrb[0].mxu0
  %v1632 = vadd.f32 %v474, %v1631
  %v1633 = vpop.f32.mrb[0].mxu0
  %v1634 = vpop.f32.mrb[0].mxu0
  %v1635 = vadd.f32 %v479, %v1634
  %v1636 = vpop.f32.mrb[0].mxu0
  %1637 = vdwg.mxu0
  %s1638 = scalar_lea.vmem %s0, 320
  %v1639 = vld [vmem:[%s1638] sm:$0xf]
  %v1640 = vld [vmem:[%s1638 + $0x4] sm:$0xf]
  %v1641 = vld [vmem:[%s1638 + $0x8] sm:$0xf]
  %v1642 = vld [vmem:[%s1638 + $0xc] sm:$0xf]
  %v1643 = vld [vmem:[%s1638 + $0x10] sm:$0xf]
  %v1644 = vld [vmem:[%s1638 + $0x14] sm:$0xf]
  %v1645 = vld [vmem:[%s1638 + $0x18] sm:$0xf]
  %v1646 = vld [vmem:[%s1638 + $0x1c] sm:$0xf]
  %v1655 = vunpack.c.l.b16 %v1639
  %v1656 = vunpack.c.l.b16 %v1640
  %v1657 = vunpack.c.l.b16 %v1641
  %v1658 = vunpack.c.l.b16 %v1642
  %v1659 = vunpack.c.l.b16 %v1643
  %v1660 = vunpack.c.l.b16 %v1644
  %v1661 = vunpack.c.l.b16 %v1645
  %v1662 = vunpack.c.l.b16 %v1646
  %v1663 = vpack.c.b16 %v1656, %v1655
  %v1664 = vpack.c.b16 %v1658, %v1657
  %v1665 = vpack.c.b16 %v1660, %v1659
  %v1666 = vpack.c.b16 %v1662, %v1661
  %1671 = vmatprep.subr.bf16.mxu0 0
  %1672 = vmatpush1.bf16.msra.mxu0 %v1663
  %1673 = vmatprep.subr.bf16.mxu0 0
  %1674 = vmatpush1.bf16.msra.mxu0 %v1664
  %1675 = vmatprep.subr.bf16.mxu0 0
  %1676 = vmatpush1.bf16.msra.mxu0 %v1665
  %1677 = vmatprep.subr.bf16.mxu0 0
  %1678 = vmatpush1.bf16.msra.mxu0 %v1666
  %1679 = vmatprep.subr.bf16.mxu0 0
  %1680 = vmatpush1.bf16.msra.mxu0 0
  %1681 = vmatprep.subr.bf16.mxu0 0
  %1682 = vmatpush1.bf16.msra.mxu0 0
  %1683 = vmatprep.subr.bf16.mxu0 0
  %1684 = vmatpush1.bf16.msra.mxu0 0
  %1685 = vmatprep.subr.bf16.mxu0 0
  %1686 = vmatpush1.bf16.msra.mxu0 0
  %1687 = vmatprep.subr.bf16.mxu0 0
  %1688 = vmatpush1.bf16.msra.mxu0 0
  %1689 = vmatprep.subr.bf16.mxu0 0
  %1690 = vmatpush1.bf16.msra.mxu0 0
  %1691 = vmatprep.subr.bf16.mxu0 0
  %1692 = vmatpush1.bf16.msra.mxu0 0
  %1693 = vmatprep.subr.bf16.mxu0 0
  %1694 = vmatpush1.bf16.msra.mxu0 0
  %1695 = vmatprep.subr.bf16.mxu0 0
  %1696 = vmatpush1.bf16.msra.mxu0 0
  %1697 = vmatprep.subr.bf16.mxu0 0
  %1698 = vmatpush1.bf16.msra.mxu0 0
  %1699 = vmatprep.subr.bf16.mxu0 0
  %1700 = vmatpush1.bf16.msra.mxu0 0
  %1701 = vmatprep.subr.bf16.mxu0 0
  %1702 = vmatpush1.bf16.msra.mxu0 0
  %1703 = vmatprep.mubr.bf16.mxu0 0
  %1704 = vmatmul.mubr.bf16.gmra.mrb[0].mxu0 %v820
  %v1705 = vpop.f32.mrb[0].mxu0
  %v1706 = vadd.f32 %v678, %v1705
  %v1707 = vpop.f32.mrb[0].mxu0
  %v1708 = vpop.f32.mrb[0].mxu0
  %v1709 = vadd.f32 %v683, %v1708
  %v1710 = vpop.f32.mrb[0].mxu0
  %1711 = vmatprep.mubr.bf16.mxu0 0
  %1712 = vmatmul.mubr.bf16.gmra.mrb[0].mxu0 %v823
  %v1713 = vpop.f32.mrb[0].mxu0
  %v1714 = vadd.f32 %v688, %v1713
  %v1715 = vpop.f32.mrb[0].mxu0
  %v1716 = vpop.f32.mrb[0].mxu0
  %v1717 = vadd.f32 %v693, %v1716
  %v1718 = vpop.f32.mrb[0].mxu0
  %1719 = vmatprep.mubr.bf16.mxu0 0
  %1720 = vmatmul.mubr.bf16.gmra.mrb[0].mxu0 %v826
  %v1721 = vpop.f32.mrb[0].mxu0
  %v1722 = vadd.f32 %v698, %v1721
  %v1723 = vpop.f32.mrb[0].mxu0
  %v1724 = vpop.f32.mrb[0].mxu0
  %v1725 = vadd.f32 %v703, %v1724
  %v1726 = vpop.f32.mrb[0].mxu0
  %1727 = vmatprep.mubr.bf16.mxu0 0
  %1728 = vmatmul.mubr.bf16.gmra.mrb[0].mxu0 %v829
  %v1729 = vpop.f32.mrb[0].mxu0
  %v1730 = vadd.f32 %v708, %v1729
  %v1731 = vpop.f32.mrb[0].mxu0
  %v1732 = vpop.f32.mrb[0].mxu0
  %v1733 = vadd.f32 %v713, %v1732
  %v1734 = vpop.f32.mrb[0].mxu0
  %1735 = vmatprep.mubr.bf16.mxu0 0
  %1736 = vmatmul.mubr.bf16.gmra.mrb[0].mxu0 %v832
  %v1737 = vpop.f32.mrb[0].mxu0
  %v1738 = vadd.f32 %v718, %v1737
  %v1739 = vpop.f32.mrb[0].mxu0
  %v1740 = vpop.f32.mrb[0].mxu0
  %v1741 = vadd.f32 %v723, %v1740
  %v1742 = vpop.f32.mrb[0].mxu0
  %1743 = vmatprep.mubr.bf16.mxu0 0
  %1744 = vmatmul.mubr.bf16.gmra.mrb[0].mxu0 %v835
  %v1745 = vpop.f32.mrb[0].mxu0
  %v1746 = vadd.f32 %v728, %v1745
  %v1747 = vpop.f32.mrb[0].mxu0
  %v1748 = vpop.f32.mrb[0].mxu0
  %v1749 = vadd.f32 %v733, %v1748
  %v1750 = vpop.f32.mrb[0].mxu0
  %1751 = vmatprep.mubr.bf16.mxu0 0
  %1752 = vmatmul.mubr.bf16.gmra.mrb[0].mxu0 %v838
  %v1753 = vpop.f32.mrb[0].mxu0
  %v1754 = vadd.f32 %v738, %v1753
  %v1755 = vpop.f32.mrb[0].mxu0
  %v1756 = vpop.f32.mrb[0].mxu0
  %v1757 = vadd.f32 %v743, %v1756
  %v1758 = vpop.f32.mrb[0].mxu0
  %1759 = vmatprep.mubr.bf16.mxu0 0
  %1760 = vmatmul.mubr.bf16.gmra.mrb[0].mxu0 %v841
  %v1761 = vpop.f32.mrb[0].mxu0
  %v1762 = vadd.f32 %v748, %v1761
  %v1763 = vpop.f32.mrb[0].mxu0
  %v1764 = vpop.f32.mrb[0].mxu0
  %v1765 = vadd.f32 %v753, %v1764
  %v1766 = vpop.f32.mrb[0].mxu0
  %1767 = vdwg.mxu0
  %v1768 = vmax.f32 %v1330, %v1446
  %v1769 = vmax.f32 %v1331, %v1449
  %v1770 = vmax.f32 %v1332, %v1454
  %v1771 = vmax.f32 %v1333, %v1457
  %v1772 = vmax.f32 %v1334, %v1462
  %v1773 = vmax.f32 %v1335, %v1465
  %v1774 = vmax.f32 %v1336, %v1470
  %v1775 = vmax.f32 %v1337, %v1473
  %v1776 = vmax.f32 %v1338, %v1478
  %v1777 = vmax.f32 %v1339, %v1481
  %v1778 = vmax.f32 %v1340, %v1486
  %v1779 = vmax.f32 %v1341, %v1489
  %v1780 = vmax.f32 %v1342, %v1494
  %v1781 = vmax.f32 %v1343, %v1497
  %v1782 = vmax.f32 %v1344, %v1502
  %v1783 = vmax.f32 %v1345, %v1505
  %v1784 = vmax.f32 %v1346, %v1576
  %v1785 = vmax.f32 %v1347, %v1579
  %v1786 = vmax.f32 %v1348, %v1584
  %v1787 = vmax.f32 %v1349, %v1587
  %v1788 = vmax.f32 %v1350, %v1592
  %v1789 = vmax.f32 %v1351, %v1595
  %v1790 = vmax.f32 %v1352, %v1600
  %v1791 = vmax.f32 %v1353, %v1603
  %v1792 = vmax.f32 %v1354, %v1608
  %v1793 = vmax.f32 %v1355, %v1611
  %v1794 = vmax.f32 %v1356, %v1616
  %v1795 = vmax.f32 %v1357, %v1619
  %v1796 = vmax.f32 %v1358, %v1624
  %v1797 = vmax.f32 %v1359, %v1627
  %v1798 = vmax.f32 %v1360, %v1632
  %v1799 = vmax.f32 %v1361, %v1635
  %v1800 = vmax.f32 %v1362, %v1706
  %v1801 = vmax.f32 %v1363, %v1709
  %v1802 = vmax.f32 %v1364, %v1714
  %v1803 = vmax.f32 %v1365, %v1717
  %v1804 = vmax.f32 %v1366, %v1722
  %v1805 = vmax.f32 %v1367, %v1725
  %v1806 = vmax.f32 %v1368, %v1730
  %v1807 = vmax.f32 %v1369, %v1733
  %v1808 = vmax.f32 %v1370, %v1738
  %v1809 = vmax.f32 %v1371, %v1741
  %v1810 = vmax.f32 %v1372, %v1746
  %v1811 = vmax.f32 %v1373, %v1749
  %v1812 = vmax.f32 %v1374, %v1754
  %v1813 = vmax.f32 %v1375, %v1757
  %v1814 = vmax.f32 %v1376, %v1762
  %v1815 = vmax.f32 %v1377, %v1765
  %s1816 = scalar_lea.vmem %s0, 96
  %v1817 = vld [vmem:[%s1816] sm:$0xf]
  %v1818 = vld [vmem:[%s1816 + $0x4] sm:$0xf]
  %v1819 = vld [vmem:[%s1816 + $0x8] sm:$0xf]
  %v1820 = vld [vmem:[%s1816 + $0xc] sm:$0xf]
  %v1821 = vld [vmem:[%s1816 + $0x10] sm:$0xf]
  %v1822 = vld [vmem:[%s1816 + $0x14] sm:$0xf]
  %v1823 = vld [vmem:[%s1816 + $0x18] sm:$0xf]
  %v1824 = vld [vmem:[%s1816 + $0x1c] sm:$0xf]
  %v1833 = vunpack.c.l.b16 %v1817
  %v1834 = vunpack.c.l.b16 %v1818
  %v1835 = vunpack.c.l.b16 %v1819
  %v1836 = vunpack.c.l.b16 %v1820
  %v1837 = vunpack.c.l.b16 %v1821
  %v1838 = vunpack.c.l.b16 %v1822
  %v1839 = vunpack.c.l.b16 %v1823
  %v1840 = vunpack.c.l.b16 %v1824
  %v1841 = vpack.c.b16 %v1834, %v1833
  %v1842 = vpack.c.b16 %v1836, %v1835
  %v1843 = vpack.c.b16 %v1838, %v1837
  %v1844 = vpack.c.b16 %v1840, %v1839
  %1849 = vmatprep.subr.bf16.mxu0 0
  %1850 = vmatpush1.bf16.msra.mxu0 %v1841
  %1851 = vmatprep.subr.bf16.mxu0 0
  %1852 = vmatpush1.bf16.msra.mxu0 %v1842
  %1853 = vmatprep.subr.bf16.mxu0 0
  %1854 = vmatpush1.bf16.msra.mxu0 %v1843
  %1855 = vmatprep.subr.bf16.mxu0 0
  %1856 = vmatpush1.bf16.msra.mxu0 %v1844
  %1857 = vmatprep.subr.bf16.mxu0 0
  %1858 = vmatpush1.bf16.msra.mxu0 0
  %1859 = vmatprep.subr.bf16.mxu0 0
  %1860 = vmatpush1.bf16.msra.mxu0 0
  %1861 = vmatprep.subr.bf16.mxu0 0
  %1862 = vmatpush1.bf16.msra.mxu0 0
  %1863 = vmatprep.subr.bf16.mxu0 0
  %1864 = vmatpush1.bf16.msra.mxu0 0
  %1865 = vmatprep.subr.bf16.mxu0 0
  %1866 = vmatpush1.bf16.msra.mxu0 0
  %1867 = vmatprep.subr.bf16.mxu0 0
  %1868 = vmatpush1.bf16.msra.mxu0 0
  %1869 = vmatprep.subr.bf16.mxu0 0
  %1870 = vmatpush1.bf16.msra.mxu0 0
  %1871 = vmatprep.subr.bf16.mxu0 0
  %1872 = vmatpush1.bf16.msra.mxu0 0
  %1873 = vmatprep.subr.bf16.mxu0 0
  %1874 = vmatpush1.bf16.msra.mxu0 0
  %1875 = vmatprep.subr.bf16.mxu0 0
  %1876 = vmatpush1.bf16.msra.mxu0 0
  %1877 = vmatprep.subr.bf16.mxu0 0
  %1878 = vmatpush1.bf16.msra.mxu0 0
  %1879 = vmatprep.subr.bf16.mxu0 0
  %1880 = vmatpush1.bf16.msra.mxu0 0
  %1881 = vmatprep.mubr.bf16.mxu0 0
  %1882 = vmatmul.mubr.bf16.gmra.mrb[0].mxu0 %v272
  %v1883 = vpop.f32.mrb[0].mxu0
  %v1884 = vadd.f32 %v129, %v1883
  %v1885 = vpop.f32.mrb[0].mxu0
  %v1886 = vpop.f32.mrb[0].mxu0
  %v1887 = vadd.f32 %v134, %v1886
  %v1888 = vpop.f32.mrb[0].mxu0
  %1889 = vmatprep.mubr.bf16.mxu0 0
  %1890 = vmatmul.mubr.bf16.gmra.mrb[0].mxu0 %v275
  %v1891 = vpop.f32.mrb[0].mxu0
  %v1892 = vadd.f32 %v139, %v1891
  %v1893 = vpop.f32.mrb[0].mxu0
  %v1894 = vpop.f32.mrb[0].mxu0
  %v1895 = vadd.f32 %v144, %v1894
  %v1896 = vpop.f32.mrb[0].mxu0
  %1897 = vmatprep.mubr.bf16.mxu0 0
  %1898 = vmatmul.mubr.bf16.gmra.mrb[0].mxu0 %v278
  %v1899 = vpop.f32.mrb[0].mxu0
  %v1900 = vadd.f32 %v149, %v1899
  %v1901 = vpop.f32.mrb[0].mxu0
  %v1902 = vpop.f32.mrb[0].mxu0
  %v1903 = vadd.f32 %v154, %v1902
  %v1904 = vpop.f32.mrb[0].mxu0
  %1905 = vmatprep.mubr.bf16.mxu0 0
  %1906 = vmatmul.mubr.bf16.gmra.mrb[0].mxu0 %v281
  %v1907 = vpop.f32.mrb[0].mxu0
  %v1908 = vadd.f32 %v159, %v1907
  %v1909 = vpop.f32.mrb[0].mxu0
  %v1910 = vpop.f32.mrb[0].mxu0
  %v1911 = vadd.f32 %v164, %v1910
  %v1912 = vpop.f32.mrb[0].mxu0
  %1913 = vmatprep.mubr.bf16.mxu0 0
  %1914 = vmatmul.mubr.bf16.gmra.mrb[0].mxu0 %v284
  %v1915 = vpop.f32.mrb[0].mxu0
  %v1916 = vadd.f32 %v169, %v1915
  %v1917 = vpop.f32.mrb[0].mxu0
  %v1918 = vpop.f32.mrb[0].mxu0
  %v1919 = vadd.f32 %v174, %v1918
  %v1920 = vpop.f32.mrb[0].mxu0
  %1921 = vmatprep.mubr.bf16.mxu0 0
  %1922 = vmatmul.mubr.bf16.gmra.mrb[0].mxu0 %v287
  %v1923 = vpop.f32.mrb[0].mxu0
  %v1924 = vadd.f32 %v179, %v1923
  %v1925 = vpop.f32.mrb[0].mxu0
  %v1926 = vpop.f32.mrb[0].mxu0
  %v1927 = vadd.f32 %v184, %v1926
  %v1928 = vpop.f32.mrb[0].mxu0
  %1929 = vmatprep.mubr.bf16.mxu0 0
  %1930 = vmatmul.mubr.bf16.gmra.mrb[0].mxu0 %v290
  %v1931 = vpop.f32.mrb[0].mxu0
  %v1932 = vadd.f32 %v189, %v1931
  %v1933 = vpop.f32.mrb[0].mxu0
  %v1934 = vpop.f32.mrb[0].mxu0
  %v1935 = vadd.f32 %v194, %v1934
  %v1936 = vpop.f32.mrb[0].mxu0
  %1937 = vmatprep.mubr.bf16.mxu0 0
  %1938 = vmatmul.mubr.bf16.gmra.mrb[0].mxu0 %v293
  %v1939 = vpop.f32.mrb[0].mxu0
  %v1940 = vadd.f32 %v199, %v1939
  %v1941 = vpop.f32.mrb[0].mxu0
  %v1942 = vpop.f32.mrb[0].mxu0
  %v1943 = vadd.f32 %v204, %v1942
  %v1944 = vpop.f32.mrb[0].mxu0
  %1945 = vdwg.mxu0
  %s1946 = scalar_lea.vmem %s0, 224
  %v1947 = vld [vmem:[%s1946] sm:$0xf]
  %v1948 = vld [vmem:[%s1946 + $0x4] sm:$0xf]
  %v1949 = vld [vmem:[%s1946 + $0x8] sm:$0xf]
  %v1950 = vld [vmem:[%s1946 + $0xc] sm:$0xf]
  %v1951 = vld [vmem:[%s1946 + $0x10] sm:$0xf]
  %v1952 = vld [vmem:[%s1946 + $0x14] sm:$0xf]
  %v1953 = vld [vmem:[%s1946 + $0x18] sm:$0xf]
  %v1954 = vld [vmem:[%s1946 + $0x1c] sm:$0xf]
  %v1963 = vunpack.c.l.b16 %v1947
  %v1964 = vunpack.c.l.b16 %v1948
  %v1965 = vunpack.c.l.b16 %v1949
  %v1966 = vunpack.c.l.b16 %v1950
  %v1967 = vunpack.c.l.b16 %v1951
  %v1968 = vunpack.c.l.b16 %v1952
  %v1969 = vunpack.c.l.b16 %v1953
  %v1970 = vunpack.c.l.b16 %v1954
  %v1971 = vpack.c.b16 %v1964, %v1963
  %v1972 = vpack.c.b16 %v1966, %v1965
  %v1973 = vpack.c.b16 %v1968, %v1967
  %v1974 = vpack.c.b16 %v1970, %v1969
  %1979 = vmatprep.subr.bf16.mxu0 0
  %1980 = vmatpush1.bf16.msra.mxu0 %v1971
  %1981 = vmatprep.subr.bf16.mxu0 0
  %1982 = vmatpush1.bf16.msra.mxu0 %v1972
  %1983 = vmatprep.subr.bf16.mxu0 0
  %1984 = vmatpush1.bf16.msra.mxu0 %v1973
  %1985 = vmatprep.subr.bf16.mxu0 0
  %1986 = vmatpush1.bf16.msra.mxu0 %v1974
  %1987 = vmatprep.subr.bf16.mxu0 0
  %1988 = vmatpush1.bf16.msra.mxu0 0
  %1989 = vmatprep.subr.bf16.mxu0 0
  %1990 = vmatpush1.bf16.msra.mxu0 0
  %1991 = vmatprep.subr.bf16.mxu0 0
  %1992 = vmatpush1.bf16.msra.mxu0 0
  %1993 = vmatprep.subr.bf16.mxu0 0
  %1994 = vmatpush1.bf16.msra.mxu0 0
  %1995 = vmatprep.subr.bf16.mxu0 0
  %1996 = vmatpush1.bf16.msra.mxu0 0
  %1997 = vmatprep.subr.bf16.mxu0 0
  %1998 = vmatpush1.bf16.msra.mxu0 0
  %1999 = vmatprep.subr.bf16.mxu0 0
  %2000 = vmatpush1.bf16.msra.mxu0 0
  %2001 = vmatprep.subr.bf16.mxu0 0
  %2002 = vmatpush1.bf16.msra.mxu0 0
  %2003 = vmatprep.subr.bf16.mxu0 0
  %2004 = vmatpush1.bf16.msra.mxu0 0
  %2005 = vmatprep.subr.bf16.mxu0 0
  %2006 = vmatpush1.bf16.msra.mxu0 0
  %2007 = vmatprep.subr.bf16.mxu0 0
  %2008 = vmatpush1.bf16.msra.mxu0 0
  %2009 = vmatprep.subr.bf16.mxu0 0
  %2010 = vmatpush1.bf16.msra.mxu0 0
  %2011 = vmatprep.mubr.bf16.mxu0 0
  %2012 = vmatmul.mubr.bf16.gmra.mrb[0].mxu0 %v546
  %v2013 = vpop.f32.mrb[0].mxu0
  %v2014 = vadd.f32 %v404, %v2013
  %v2015 = vpop.f32.mrb[0].mxu0
  %v2016 = vpop.f32.mrb[0].mxu0
  %v2017 = vadd.f32 %v409, %v2016
  %v2018 = vpop.f32.mrb[0].mxu0
  %2019 = vmatprep.mubr.bf16.mxu0 0
  %2020 = vmatmul.mubr.bf16.gmra.mrb[0].mxu0 %v549
  %v2021 = vpop.f32.mrb[0].mxu0
  %v2022 = vadd.f32 %v414, %v2021
  %v2023 = vpop.f32.mrb[0].mxu0
  %v2024 = vpop.f32.mrb[0].mxu0
  %v2025 = vadd.f32 %v419, %v2024
  %v2026 = vpop.f32.mrb[0].mxu0
  %2027 = vmatprep.mubr.bf16.mxu0 0
  %2028 = vmatmul.mubr.bf16.gmra.mrb[0].mxu0 %v552
  %v2029 = vpop.f32.mrb[0].mxu0
  %v2030 = vadd.f32 %v424, %v2029
  %v2031 = vpop.f32.mrb[0].mxu0
  %v2032 = vpop.f32.mrb[0].mxu0
  %v2033 = vadd.f32 %v429, %v2032
  %v2034 = vpop.f32.mrb[0].mxu0
  %2035 = vmatprep.mubr.bf16.mxu0 0
  %2036 = vmatmul.mubr.bf16.gmra.mrb[0].mxu0 %v555
  %v2037 = vpop.f32.mrb[0].mxu0
  %v2038 = vadd.f32 %v434, %v2037
  %v2039 = vpop.f32.mrb[0].mxu0
  %v2040 = vpop.f32.mrb[0].mxu0
  %v2041 = vadd.f32 %v439, %v2040
  %v2042 = vpop.f32.mrb[0].mxu0
  %2043 = vmatprep.mubr.bf16.mxu0 0
  %2044 = vmatmul.mubr.bf16.gmra.mrb[0].mxu0 %v558
  %v2045 = vpop.f32.mrb[0].mxu0
  %v2046 = vadd.f32 %v444, %v2045
  %v2047 = vpop.f32.mrb[0].mxu0
  %v2048 = vpop.f32.mrb[0].mxu0
  %v2049 = vadd.f32 %v449, %v2048
  %v2050 = vpop.f32.mrb[0].mxu0
  %2051 = vmatprep.mubr.bf16.mxu0 0
  %2052 = vmatmul.mubr.bf16.gmra.mrb[0].mxu0 %v561
  %v2053 = vpop.f32.mrb[0].mxu0
  %v2054 = vadd.f32 %v454, %v2053
  %v2055 = vpop.f32.mrb[0].mxu0
  %v2056 = vpop.f32.mrb[0].mxu0
  %v2057 = vadd.f32 %v459, %v2056
  %v2058 = vpop.f32.mrb[0].mxu0
  %2059 = vmatprep.mubr.bf16.mxu0 0
  %2060 = vmatmul.mubr.bf16.gmra.mrb[0].mxu0 %v564
  %v2061 = vpop.f32.mrb[0].mxu0
  %v2062 = vadd.f32 %v464, %v2061
  %v2063 = vpop.f32.mrb[0].mxu0
  %v2064 = vpop.f32.mrb[0].mxu0
  %v2065 = vadd.f32 %v469, %v2064
  %v2066 = vpop.f32.mrb[0].mxu0
  %2067 = vmatprep.mubr.bf16.mxu0 0
  %2068 = vmatmul.mubr.bf16.gmra.mrb[0].mxu0 %v567
  %v2069 = vpop.f32.mrb[0].mxu0
  %v2070 = vadd.f32 %v474, %v2069
  %v2071 = vpop.f32.mrb[0].mxu0
  %v2072 = vpop.f32.mrb[0].mxu0
  %v2073 = vadd.f32 %v479, %v2072
  %v2074 = vpop.f32.mrb[0].mxu0
  %2075 = vdwg.mxu0
  %s2076 = scalar_lea.vmem %s0, 352
  %v2077 = vld [vmem:[%s2076] sm:$0xf]
  %v2078 = vld [vmem:[%s2076 + $0x4] sm:$0xf]
  %v2079 = vld [vmem:[%s2076 + $0x8] sm:$0xf]
  %v2080 = vld [vmem:[%s2076 + $0xc] sm:$0xf]
  %v2081 = vld [vmem:[%s2076 + $0x10] sm:$0xf]
  %v2082 = vld [vmem:[%s2076 + $0x14] sm:$0xf]
  %v2083 = vld [vmem:[%s2076 + $0x18] sm:$0xf]
  %v2084 = vld [vmem:[%s2076 + $0x1c] sm:$0xf]
  %v2093 = vunpack.c.l.b16 %v2077
  %v2094 = vunpack.c.l.b16 %v2078
  %v2095 = vunpack.c.l.b16 %v2079
  %v2096 = vunpack.c.l.b16 %v2080
  %v2097 = vunpack.c.l.b16 %v2081
  %v2098 = vunpack.c.l.b16 %v2082
  %v2099 = vunpack.c.l.b16 %v2083
  %v2100 = vunpack.c.l.b16 %v2084
  %v2101 = vpack.c.b16 %v2094, %v2093
  %v2102 = vpack.c.b16 %v2096, %v2095
  %v2103 = vpack.c.b16 %v2098, %v2097
  %v2104 = vpack.c.b16 %v2100, %v2099
  %2109 = vmatprep.subr.bf16.mxu0 0
  %2110 = vmatpush1.bf16.msra.mxu0 %v2101
  %2111 = vmatprep.subr.bf16.mxu0 0
  %2112 = vmatpush1.bf16.msra.mxu0 %v2102
  %2113 = vmatprep.subr.bf16.mxu0 0
  %2114 = vmatpush1.bf16.msra.mxu0 %v2103
  %2115 = vmatprep.subr.bf16.mxu0 0
  %2116 = vmatpush1.bf16.msra.mxu0 %v2104
  %2117 = vmatprep.subr.bf16.mxu0 0
  %2118 = vmatpush1.bf16.msra.mxu0 0
  %2119 = vmatprep.subr.bf16.mxu0 0
  %2120 = vmatpush1.bf16.msra.mxu0 0
  %2121 = vmatprep.subr.bf16.mxu0 0
  %2122 = vmatpush1.bf16.msra.mxu0 0
  %2123 = vmatprep.subr.bf16.mxu0 0
  %2124 = vmatpush1.bf16.msra.mxu0 0
  %2125 = vmatprep.subr.bf16.mxu0 0
  %2126 = vmatpush1.bf16.msra.mxu0 0
  %2127 = vmatprep.subr.bf16.mxu0 0
  %2128 = vmatpush1.bf16.msra.mxu0 0
  %2129 = vmatprep.subr.bf16.mxu0 0
  %2130 = vmatpush1.bf16.msra.mxu0 0
  %2131 = vmatprep.subr.bf16.mxu0 0
  %2132 = vmatpush1.bf16.msra.mxu0 0
  %2133 = vmatprep.subr.bf16.mxu0 0
  %2134 = vmatpush1.bf16.msra.mxu0 0
  %2135 = vmatprep.subr.bf16.mxu0 0
  %2136 = vmatpush1.bf16.msra.mxu0 0
  %2137 = vmatprep.subr.bf16.mxu0 0
  %2138 = vmatpush1.bf16.msra.mxu0 0
  %2139 = vmatprep.subr.bf16.mxu0 0
  %2140 = vmatpush1.bf16.msra.mxu0 0
  %2141 = vmatprep.mubr.bf16.mxu0 0
  %2142 = vmatmul.mubr.bf16.gmra.mrb[0].mxu0 %v820
  %v2143 = vpop.f32.mrb[0].mxu0
  %v2144 = vadd.f32 %v678, %v2143
  %v2145 = vpop.f32.mrb[0].mxu0
  %v2146 = vpop.f32.mrb[0].mxu0
  %v2147 = vadd.f32 %v683, %v2146
  %v2148 = vpop.f32.mrb[0].mxu0
  %2149 = vmatprep.mubr.bf16.mxu0 0
  %2150 = vmatmul.mubr.bf16.gmra.mrb[0].mxu0 %v823
  %v2151 = vpop.f32.mrb[0].mxu0
  %v2152 = vadd.f32 %v688, %v2151
  %v2153 = vpop.f32.mrb[0].mxu0
  %v2154 = vpop.f32.mrb[0].mxu0
  %v2155 = vadd.f32 %v693, %v2154
  %v2156 = vpop.f32.mrb[0].mxu0
  %2157 = vmatprep.mubr.bf16.mxu0 0
  %2158 = vmatmul.mubr.bf16.gmra.mrb[0].mxu0 %v826
  %v2159 = vpop.f32.mrb[0].mxu0
  %v2160 = vadd.f32 %v698, %v2159
  %v2161 = vpop.f32.mrb[0].mxu0
  %v2162 = vpop.f32.mrb[0].mxu0
  %v2163 = vadd.f32 %v703, %v2162
  %v2164 = vpop.f32.mrb[0].mxu0
  %2165 = vmatprep.mubr.bf16.mxu0 0
  %2166 = vmatmul.mubr.bf16.gmra.mrb[0].mxu0 %v829
  %v2167 = vpop.f32.mrb[0].mxu0
  %v2168 = vadd.f32 %v708, %v2167
  %v2169 = vpop.f32.mrb[0].mxu0
  %v2170 = vpop.f32.mrb[0].mxu0
  %v2171 = vadd.f32 %v713, %v2170
  %v2172 = vpop.f32.mrb[0].mxu0
  %2173 = vmatprep.mubr.bf16.mxu0 0
  %2174 = vmatmul.mubr.bf16.gmra.mrb[0].mxu0 %v832
  %v2175 = vpop.f32.mrb[0].mxu0
  %v2176 = vadd.f32 %v718, %v2175
  %v2177 = vpop.f32.mrb[0].mxu0
  %v2178 = vpop.f32.mrb[0].mxu0
  %v2179 = vadd.f32 %v723, %v2178
  %v2180 = vpop.f32.mrb[0].mxu0
  %2181 = vmatprep.mubr.bf16.mxu0 0
  %2182 = vmatmul.mubr.bf16.gmra.mrb[0].mxu0 %v835
  %v2183 = vpop.f32.mrb[0].mxu0
  %v2184 = vadd.f32 %v728, %v2183
  %v2185 = vpop.f32.mrb[0].mxu0
  %v2186 = vpop.f32.mrb[0].mxu0
  %v2187 = vadd.f32 %v733, %v2186
  %v2188 = vpop.f32.mrb[0].mxu0
  %2189 = vmatprep.mubr.bf16.mxu0 0
  %2190 = vmatmul.mubr.bf16.gmra.mrb[0].mxu0 %v838
  %v2191 = vpop.f32.mrb[0].mxu0
  %v2192 = vadd.f32 %v738, %v2191
  %v2193 = vpop.f32.mrb[0].mxu0
  %v2194 = vpop.f32.mrb[0].mxu0
  %v2195 = vadd.f32 %v743, %v2194
  %v2196 = vpop.f32.mrb[0].mxu0
  %2197 = vmatprep.mubr.bf16.mxu0 0
  %2198 = vmatmul.mubr.bf16.gmra.mrb[0].mxu0 %v841
  %v2199 = vpop.f32.mrb[0].mxu0
  %v2200 = vadd.f32 %v748, %v2199
  %v2201 = vpop.f32.mrb[0].mxu0
  %v2202 = vpop.f32.mrb[0].mxu0
  %v2203 = vadd.f32 %v753, %v2202
  %v2204 = vpop.f32.mrb[0].mxu0
  %2205 = vdwg.mxu0
  %v2206 = vmax.f32 %v1768, %v1884
  %v2207 = vmax.f32 %v1769, %v1887
  %v2208 = vmax.f32 %v1770, %v1892
  %v2209 = vmax.f32 %v1771, %v1895
  %v2210 = vmax.f32 %v1772, %v1900
  %v2211 = vmax.f32 %v1773, %v1903
  %v2212 = vmax.f32 %v1774, %v1908
  %v2213 = vmax.f32 %v1775, %v1911
  %v2214 = vmax.f32 %v1776, %v1916
  %v2215 = vmax.f32 %v1777, %v1919
  %v2216 = vmax.f32 %v1778, %v1924
  %v2217 = vmax.f32 %v1779, %v1927
  %v2218 = vmax.f32 %v1780, %v1932
  %v2219 = vmax.f32 %v1781, %v1935
  %v2220 = vmax.f32 %v1782, %v1940
  %v2221 = vmax.f32 %v1783, %v1943
  %v2222 = vmax.f32 %v1784, %v2014
  %v2223 = vmax.f32 %v1785, %v2017
  %v2224 = vmax.f32 %v1786, %v2022
  %v2225 = vmax.f32 %v1787, %v2025
  %v2226 = vmax.f32 %v1788, %v2030
  %v2227 = vmax.f32 %v1789, %v2033
  %v2228 = vmax.f32 %v1790, %v2038
  %v2229 = vmax.f32 %v1791, %v2041
  %v2230 = vmax.f32 %v1792, %v2046
  %v2231 = vmax.f32 %v1793, %v2049
  %v2232 = vmax.f32 %v1794, %v2054
  %v2233 = vmax.f32 %v1795, %v2057
  %v2234 = vmax.f32 %v1796, %v2062
  %v2235 = vmax.f32 %v1797, %v2065
  %v2236 = vmax.f32 %v1798, %v2070
  %v2237 = vmax.f32 %v1799, %v2073
  %v2238 = vmax.f32 %v1800, %v2144
  %v2239 = vmax.f32 %v1801, %v2147
  %v2240 = vmax.f32 %v1802, %v2152
  %v2241 = vmax.f32 %v1803, %v2155
  %v2242 = vmax.f32 %v1804, %v2160
  %v2243 = vmax.f32 %v1805, %v2163
  %v2244 = vmax.f32 %v1806, %v2168
  %v2245 = vmax.f32 %v1807, %v2171
  %v2246 = vmax.f32 %v1808, %v2176
  %v2247 = vmax.f32 %v1809, %v2179
  %v2248 = vmax.f32 %v1810, %v2184
  %v2249 = vmax.f32 %v1811, %v2187
  %v2250 = vmax.f32 %v1812, %v2192
  %v2251 = vmax.f32 %v1813, %v2195
  %v2252 = vmax.f32 %v1814, %v2200
  %v2253 = vmax.f32 %v1815, %v2203
  %v2254 = vmax.f32 %v2206, 0.0
  %v2255 = vmax.f32 %v2207, 0.0
  %v2256 = vmax.f32 %v2208, 0.0
  %v2257 = vmax.f32 %v2209, 0.0
  %v2258 = vmax.f32 %v2210, 0.0
  %v2259 = vmax.f32 %v2211, 0.0
  %v2260 = vmax.f32 %v2212, 0.0
  %v2261 = vmax.f32 %v2213, 0.0
  %v2262 = vmax.f32 %v2214, 0.0
  %v2263 = vmax.f32 %v2215, 0.0
  %v2264 = vmax.f32 %v2216, 0.0
  %v2265 = vmax.f32 %v2217, 0.0
  %v2266 = vmax.f32 %v2218, 0.0
  %v2267 = vmax.f32 %v2219, 0.0
  %v2268 = vmax.f32 %v2220, 0.0
  %v2269 = vmax.f32 %v2221, 0.0
  %v2270 = vpack.c.bf16 %v2255, %v2254
  %v2271 = vpack.c.bf16 %v2257, %v2256
  %v2272 = vpack.c.bf16 %v2259, %v2258
  %v2273 = vpack.c.bf16 %v2261, %v2260
  %v2274 = vpack.c.bf16 %v2263, %v2262
  %v2275 = vpack.c.bf16 %v2265, %v2264
  %v2276 = vpack.c.bf16 %v2267, %v2266
  %v2277 = vpack.c.bf16 %v2269, %v2268
  %v2286 = vunpack.c.l.b16 %v2270
  %v2287 = vunpack.c.h.b16 %v2270
  %v2288 = vunpack.c.l.b16 %v2271
  %v2289 = vunpack.c.h.b16 %v2271
  %v2290 = vunpack.c.l.b16 %v2272
  %v2291 = vunpack.c.h.b16 %v2272
  %v2292 = vunpack.c.l.b16 %v2273
  %v2293 = vunpack.c.h.b16 %v2273
  %v2294 = vunpack.c.l.b16 %v2274
  %v2295 = vunpack.c.h.b16 %v2274
  %v2296 = vunpack.c.l.b16 %v2275
  %v2297 = vunpack.c.h.b16 %v2275
  %v2298 = vunpack.c.l.b16 %v2276
  %v2299 = vunpack.c.h.b16 %v2276
  %v2300 = vunpack.c.l.b16 %v2277
  %v2301 = vunpack.c.h.b16 %v2277
  %v2302 = vpack.c.b16 %v2286, %v2286
  %v2303 = vpack.c.b16 %v2287, %v2287
  %v2304 = vpack.c.b16 %v2288, %v2288
  %v2305 = vpack.c.b16 %v2289, %v2289
  %v2306 = vpack.c.b16 %v2290, %v2290
  %v2307 = vpack.c.b16 %v2291, %v2291
  %v2308 = vpack.c.b16 %v2292, %v2292
  %v2309 = vpack.c.b16 %v2293, %v2293
  %v2310 = vpack.c.b16 %v2294, %v2294
  %v2311 = vpack.c.b16 %v2295, %v2295
  %v2312 = vpack.c.b16 %v2296, %v2296
  %v2313 = vpack.c.b16 %v2297, %v2297
  %v2314 = vpack.c.b16 %v2298, %v2298
  %v2315 = vpack.c.b16 %v2299, %v2299
  %v2316 = vpack.c.b16 %v2300, %v2300
  %v2317 = vpack.c.b16 %v2301, %v2301
  %vm2334 = vcmask 125952
  %2335 = vst.msk [vmem:[%s4] sm:$0xf] %vm2334, %v2302
  %2336 = vst.msk [vmem:[%s4 + $0x4] sm:$0xf] %vm2334, %v2303
  %2337 = vst.msk [vmem:[%s4 + $0x8] sm:$0xf] %vm2334, %v2304
  %2338 = vst.msk [vmem:[%s4 + $0xc] sm:$0xf] %vm2334, %v2305
  %2339 = vst.msk [vmem:[%s4 + $0x10] sm:$0xf] %vm2334, %v2306
  %2340 = vst.msk [vmem:[%s4 + $0x14] sm:$0xf] %vm2334, %v2307
  %2341 = vst.msk [vmem:[%s4 + $0x18] sm:$0xf] %vm2334, %v2308
  %2342 = vst.msk [vmem:[%s4 + $0x1c] sm:$0xf] %vm2334, %v2309
  %2343 = vst.msk [vmem:[%s4 + $0x20] sm:$0xf] %vm2334, %v2310
  %2344 = vst.msk [vmem:[%s4 + $0x24] sm:$0xf] %vm2334, %v2311
  %2345 = vst.msk [vmem:[%s4 + $0x28] sm:$0xf] %vm2334, %v2312
  %2346 = vst.msk [vmem:[%s4 + $0x2c] sm:$0xf] %vm2334, %v2313
  %2347 = vst.msk [vmem:[%s4 + $0x30] sm:$0xf] %vm2334, %v2314
  %2348 = vst.msk [vmem:[%s4 + $0x34] sm:$0xf] %vm2334, %v2315
  %2349 = vst.msk [vmem:[%s4 + $0x38] sm:$0xf] %vm2334, %v2316
  %2350 = vst.msk [vmem:[%s4 + $0x3c] sm:$0xf] %vm2334, %v2317
  %v2351 = vmax.f32 %v2222, 0.0
  %v2352 = vmax.f32 %v2223, 0.0
  %v2353 = vmax.f32 %v2224, 0.0
  %v2354 = vmax.f32 %v2225, 0.0
  %v2355 = vmax.f32 %v2226, 0.0
  %v2356 = vmax.f32 %v2227, 0.0
  %v2357 = vmax.f32 %v2228, 0.0
  %v2358 = vmax.f32 %v2229, 0.0
  %v2359 = vmax.f32 %v2230, 0.0
  %v2360 = vmax.f32 %v2231, 0.0
  %v2361 = vmax.f32 %v2232, 0.0
  %v2362 = vmax.f32 %v2233, 0.0
  %v2363 = vmax.f32 %v2234, 0.0
  %v2364 = vmax.f32 %v2235, 0.0
  %v2365 = vmax.f32 %v2236, 0.0
  %v2366 = vmax.f32 %v2237, 0.0
  %v2367 = vpack.c.bf16 %v2352, %v2351
  %v2368 = vpack.c.bf16 %v2354, %v2353
  %v2369 = vpack.c.bf16 %v2356, %v2355
  %v2370 = vpack.c.bf16 %v2358, %v2357
  %v2371 = vpack.c.bf16 %v2360, %v2359
  %v2372 = vpack.c.bf16 %v2362, %v2361
  %v2373 = vpack.c.bf16 %v2364, %v2363
  %v2374 = vpack.c.bf16 %v2366, %v2365
  %v2383 = vunpack.c.l.b16 %v2367
  %v2384 = vunpack.c.h.b16 %v2367
  %v2385 = vunpack.c.l.b16 %v2368
  %v2386 = vunpack.c.h.b16 %v2368
  %v2387 = vunpack.c.l.b16 %v2369
  %v2388 = vunpack.c.h.b16 %v2369
  %v2389 = vunpack.c.l.b16 %v2370
  %v2390 = vunpack.c.h.b16 %v2370
  %v2391 = vunpack.c.l.b16 %v2371
  %v2392 = vunpack.c.h.b16 %v2371
  %v2393 = vunpack.c.l.b16 %v2372
  %v2394 = vunpack.c.h.b16 %v2372
  %v2395 = vunpack.c.l.b16 %v2373
  %v2396 = vunpack.c.h.b16 %v2373
  %v2397 = vunpack.c.l.b16 %v2374
  %v2398 = vunpack.c.h.b16 %v2374
  %v2399 = vpack.c.b16 %v2383, %v2383
  %v2400 = vpack.c.b16 %v2384, %v2384
  %v2401 = vpack.c.b16 %v2385, %v2385
  %v2402 = vpack.c.b16 %v2386, %v2386
  %v2403 = vpack.c.b16 %v2387, %v2387
  %v2404 = vpack.c.b16 %v2388, %v2388
  %v2405 = vpack.c.b16 %v2389, %v2389
  %v2406 = vpack.c.b16 %v2390, %v2390
  %v2407 = vpack.c.b16 %v2391, %v2391
  %v2408 = vpack.c.b16 %v2392, %v2392
  %v2409 = vpack.c.b16 %v2393, %v2393
  %v2410 = vpack.c.b16 %v2394, %v2394
  %v2411 = vpack.c.b16 %v2395, %v2395
  %v2412 = vpack.c.b16 %v2396, %v2396
  %v2413 = vpack.c.b16 %v2397, %v2397
  %v2414 = vpack.c.b16 %v2398, %v2398
  %s2431 = scalar_lea.vmem %s4, 64
  %2432 = vst.msk [vmem:[%s2431] sm:$0xf] %vm2334, %v2399
  %2433 = vst.msk [vmem:[%s2431 + $0x4] sm:$0xf] %vm2334, %v2400
  %2434 = vst.msk [vmem:[%s2431 + $0x8] sm:$0xf] %vm2334, %v2401
  %2435 = vst.msk [vmem:[%s2431 + $0xc] sm:$0xf] %vm2334, %v2402
  %2436 = vst.msk [vmem:[%s2431 + $0x10] sm:$0xf] %vm2334, %v2403
  %2437 = vst.msk [vmem:[%s2431 + $0x14] sm:$0xf] %vm2334, %v2404
  %2438 = vst.msk [vmem:[%s2431 + $0x18] sm:$0xf] %vm2334, %v2405
  %2439 = vst.msk [vmem:[%s2431 + $0x1c] sm:$0xf] %vm2334, %v2406
  %2440 = vst.msk [vmem:[%s2431 + $0x20] sm:$0xf] %vm2334, %v2407
  %2441 = vst.msk [vmem:[%s2431 + $0x24] sm:$0xf] %vm2334, %v2408
  %2442 = vst.msk [vmem:[%s2431 + $0x28] sm:$0xf] %vm2334, %v2409
  %2443 = vst.msk [vmem:[%s2431 + $0x2c] sm:$0xf] %vm2334, %v2410
  %2444 = vst.msk [vmem:[%s2431 + $0x30] sm:$0xf] %vm2334, %v2411
  %2445 = vst.msk [vmem:[%s2431 + $0x34] sm:$0xf] %vm2334, %v2412
  %2446 = vst.msk [vmem:[%s2431 + $0x38] sm:$0xf] %vm2334, %v2413
  %2447 = vst.msk [vmem:[%s2431 + $0x3c] sm:$0xf] %vm2334, %v2414
  %v2448 = vmax.f32 %v2238, 0.0
  %v2449 = vmax.f32 %v2239, 0.0
  %v2450 = vmax.f32 %v2240, 0.0
  %v2451 = vmax.f32 %v2241, 0.0
  %v2452 = vmax.f32 %v2242, 0.0
  %v2453 = vmax.f32 %v2243, 0.0
  %v2454 = vmax.f32 %v2244, 0.0
  %v2455 = vmax.f32 %v2245, 0.0
  %v2456 = vmax.f32 %v2246, 0.0
  %v2457 = vmax.f32 %v2247, 0.0
  %v2458 = vmax.f32 %v2248, 0.0
  %v2459 = vmax.f32 %v2249, 0.0
  %v2460 = vmax.f32 %v2250, 0.0
  %v2461 = vmax.f32 %v2251, 0.0
  %v2462 = vmax.f32 %v2252, 0.0
  %v2463 = vmax.f32 %v2253, 0.0
  %v2464 = vpack.c.bf16 %v2449, %v2448
  %v2465 = vpack.c.bf16 %v2451, %v2450
  %v2466 = vpack.c.bf16 %v2453, %v2452
  %v2467 = vpack.c.bf16 %v2455, %v2454
  %v2468 = vpack.c.bf16 %v2457, %v2456
  %v2469 = vpack.c.bf16 %v2459, %v2458
  %v2470 = vpack.c.bf16 %v2461, %v2460
  %v2471 = vpack.c.bf16 %v2463, %v2462
  %v2480 = vunpack.c.l.b16 %v2464
  %v2481 = vunpack.c.h.b16 %v2464
  %v2482 = vunpack.c.l.b16 %v2465
  %v2483 = vunpack.c.h.b16 %v2465
  %v2484 = vunpack.c.l.b16 %v2466
  %v2485 = vunpack.c.h.b16 %v2466
  %v2486 = vunpack.c.l.b16 %v2467
  %v2487 = vunpack.c.h.b16 %v2467
  %v2488 = vunpack.c.l.b16 %v2468
  %v2489 = vunpack.c.h.b16 %v2468
  %v2490 = vunpack.c.l.b16 %v2469
  %v2491 = vunpack.c.h.b16 %v2469
  %v2492 = vunpack.c.l.b16 %v2470
  %v2493 = vunpack.c.h.b16 %v2470
  %v2494 = vunpack.c.l.b16 %v2471
  %v2495 = vunpack.c.h.b16 %v2471
  %v2496 = vpack.c.b16 %v2480, %v2480
  %v2497 = vpack.c.b16 %v2481, %v2481
  %v2498 = vpack.c.b16 %v2482, %v2482
  %v2499 = vpack.c.b16 %v2483, %v2483
  %v2500 = vpack.c.b16 %v2484, %v2484
  %v2501 = vpack.c.b16 %v2485, %v2485
  %v2502 = vpack.c.b16 %v2486, %v2486
  %v2503 = vpack.c.b16 %v2487, %v2487
  %v2504 = vpack.c.b16 %v2488, %v2488
  %v2505 = vpack.c.b16 %v2489, %v2489
  %v2506 = vpack.c.b16 %v2490, %v2490
  %v2507 = vpack.c.b16 %v2491, %v2491
  %v2508 = vpack.c.b16 %v2492, %v2492
  %v2509 = vpack.c.b16 %v2493, %v2493
  %v2510 = vpack.c.b16 %v2494, %v2494
  %v2511 = vpack.c.b16 %v2495, %v2495
  %s2528 = scalar_lea.vmem %s4, 128
  %2529 = vst.msk [vmem:[%s2528] sm:$0xf] %vm2334, %v2496
  %2530 = vst.msk [vmem:[%s2528 + $0x4] sm:$0xf] %vm2334, %v2497
  %2531 = vst.msk [vmem:[%s2528 + $0x8] sm:$0xf] %vm2334, %v2498
  %2532 = vst.msk [vmem:[%s2528 + $0xc] sm:$0xf] %vm2334, %v2499
  %2533 = vst.msk [vmem:[%s2528 + $0x10] sm:$0xf] %vm2334, %v2500
  %2534 = vst.msk [vmem:[%s2528 + $0x14] sm:$0xf] %vm2334, %v2501
  %2535 = vst.msk [vmem:[%s2528 + $0x18] sm:$0xf] %vm2334, %v2502
  %2536 = vst.msk [vmem:[%s2528 + $0x1c] sm:$0xf] %vm2334, %v2503
  %2537 = vst.msk [vmem:[%s2528 + $0x20] sm:$0xf] %vm2334, %v2504
  %2538 = vst.msk [vmem:[%s2528 + $0x24] sm:$0xf] %vm2334, %v2505
  %2539 = vst.msk [vmem:[%s2528 + $0x28] sm:$0xf] %vm2334, %v2506
  %2540 = vst.msk [vmem:[%s2528 + $0x2c] sm:$0xf] %vm2334, %v2507
  %2541 = vst.msk [vmem:[%s2528 + $0x30] sm:$0xf] %vm2334, %v2508
  %2542 = vst.msk [vmem:[%s2528 + $0x34] sm:$0xf] %vm2334, %v2509
  %2543 = vst.msk [vmem:[%s2528 + $0x38] sm:$0xf] %vm2334, %v2510
  %2544 = vst.msk [vmem:[%s2528 + $0x3c] sm:$0xf] %vm2334, %v2511
  // Predicated region
  $region18: #{cen_cnn_forward.7} parent=0 // pred_check
    _
  $region19: #{cen_cnn_forward.7} parent=0 // pred_check_branch
    %2546 = sbr.rel (0) target = $region21
  $region20: #{cen_cnn_forward.7} parent=0 // pred_region
    _
  $region21: #{cen_cnn_forward.7} parent=0 // pred_fallthru
    _
  // Predicated region
  $region22: #{cen_cnn_forward.7} parent=0 // pred_check
    _
  $region23: #{cen_cnn_forward.7} parent=0 // pred_check_branch
    %2548 = sbr.rel (0) target = $region25
  $region24: #{cen_cnn_forward.7} parent=0 // pred_region
    _
  $region25: #{cen_cnn_forward.7} parent=0 // pred_fallthru
    _

// kernel: cen_cnn_forward.9
$region0: #{cen_cnn_forward.9}
  #allocation0 [shape = 'u32[]', space=smem, size = 0x4, offset = 0x4, fixed_abs, tag = 'smem constant byte address 0x4 - core index']
  #allocation1 [shape = 'u32[144,128]{1,0:T(1,128)}', space=vmem, size = 0x12000, scoped, tag = 'internal scratch']
  %s0 = inlined_call_operand.vmem [shape: f32[2,256], index: 0, kind: input, shape index: {}]
  %s1 = inlined_call_operand.vmem [shape: f32[256,128], index: 1, kind: input, shape index: {}]
  %s2 = inlined_call_operand.vmem [shape: f32[1,128], index: 2, kind: input, shape index: {}]
  %s3 = inlined_call_operand.vmem [shape: f32[128,4], index: 3, kind: input, shape index: {}]
  %s4 = inlined_call_operand.vmem [shape: f32[1,4], index: 4, kind: input, shape index: {}]
  %s5 = inlined_call_operand.hbm [shape: f32[2,4], index: 5, kind: output, shape index: {}]
  %s6 = sld [smem:[#allocation0]]
  $region30: #{cen_cnn_forward.9} parent=0
    _
  %s8 = ssub.s32 1, %s6
  %s9 = scalar_select 0, %s8, %s6
  $region1: #{cen_cnn_forward.9} parent=0
    #allocation2 [shape = 'u8[1024]{0}', space=vmem, size = 0x400, scoped, tag = 'output window, operand 0, single buffered']
    #allocation3 [shape = 's32[1]{0}', space=sflag, size = 0x4, scoped, tag = 'scoped memory for cen_cnn_forward.9']
    %10 = vsyncpa [#allocation3], 0
    // Predicated region
    $region2: #{cen_cnn_forward.9} parent=1 // pred_check
      _
    $region3: #{cen_cnn_forward.9} parent=1 // pred_check_branch
      %12 = sbr.rel (0) target = $region5
    $region4: #{cen_cnn_forward.9} parent=1 // pred_region
      _
    $region5: #{cen_cnn_forward.9} parent=1 // pred_fallthru
      _
    // Predicated region
    $region6: #{cen_cnn_forward.9} parent=1 // pred_check
      _
    $region7: #{cen_cnn_forward.9} parent=1 // pred_check_branch
      %14 = sbr.rel (0) target = $region9
    $region8: #{cen_cnn_forward.9} parent=1 // pred_region
      _
    $region9: #{cen_cnn_forward.9} parent=1 // pred_fallthru
      _
    // Predicated region
    $region10: #{cen_cnn_forward.9} parent=1 // pred_check
      _
    $region11: #{cen_cnn_forward.9} parent=1 // pred_check_branch
      %16 = sbr.rel (0) target = $region13
    $region12: #{cen_cnn_forward.9} parent=1 // pred_region
      _
    $region13: #{cen_cnn_forward.9} parent=1 // pred_fallthru
      _
    // Predicated region
    $region14: #{cen_cnn_forward.9} parent=1 // pred_check
      _
    $region15: #{cen_cnn_forward.9} parent=1 // pred_check_branch
      %18 = sbr.rel (0) target = $region17
    $region16: #{cen_cnn_forward.9} parent=1 // pred_region
      _
    $region17: #{cen_cnn_forward.9} parent=1 // pred_fallthru
      _
    // Predicated region
    $region18: #{cen_cnn_forward.9} parent=1 // pred_check
      _
    $region19: #{cen_cnn_forward.9} parent=1 // pred_check_branch
      %20 = sbr.rel (0) target = $region21
    $region20: #{cen_cnn_forward.9} parent=1 // pred_region
      _
    $region21: #{cen_cnn_forward.9} parent=1 // pred_fallthru
      _
    %v21 = vld [vmem:[%s0] sm:$0xf]
    %v22 = vld [vmem:[%s1] sm:$0xff]
    %v23 = vld [vmem:[%s1 + $0x8] sm:$0xff]
    %v24 = vld [vmem:[%s1 + $0x10] sm:$0xff]
    %v25 = vld [vmem:[%s1 + $0x18] sm:$0xff]
    %v26 = vld [vmem:[%s1 + $0x20] sm:$0xff]
    %v27 = vld [vmem:[%s1 + $0x28] sm:$0xff]
    %v28 = vld [vmem:[%s1 + $0x30] sm:$0xff]
    %v29 = vld [vmem:[%s1 + $0x38] sm:$0xff]
    %v30 = vld [vmem:[%s1 + $0x40] sm:$0xff]
    %v31 = vld [vmem:[%s1 + $0x48] sm:$0xff]
    %v32 = vld [vmem:[%s1 + $0x50] sm:$0xff]
    %v33 = vld [vmem:[%s1 + $0x58] sm:$0xff]
    %v34 = vld [vmem:[%s1 + $0x60] sm:$0xff]
    %v35 = vld [vmem:[%s1 + $0x68] sm:$0xff]
    %v36 = vld [vmem:[%s1 + $0x70] sm:$0xff]
    %v37 = vld [vmem:[%s1 + $0x78] sm:$0xff]
    %v38 = vld [vmem:[%s1 + $0x80] sm:$0xff]
    %v39 = vld [vmem:[%s1 + $0x88] sm:$0xff]
    %v40 = vld [vmem:[%s1 + $0x90] sm:$0xff]
    %v41 = vld [vmem:[%s1 + $0x98] sm:$0xff]
    %v42 = vld [vmem:[%s1 + $0xa0] sm:$0xff]
    %v43 = vld [vmem:[%s1 + $0xa8] sm:$0xff]
    %v44 = vld [vmem:[%s1 + $0xb0] sm:$0xff]
    %v45 = vld [vmem:[%s1 + $0xb8] sm:$0xff]
    %v46 = vld [vmem:[%s1 + $0xc0] sm:$0xff]
    %v47 = vld [vmem:[%s1 + $0xc8] sm:$0xff]
    %v48 = vld [vmem:[%s1 + $0xd0] sm:$0xff]
    %v49 = vld [vmem:[%s1 + $0xd8] sm:$0xff]
    %v50 = vld [vmem:[%s1 + $0xe0] sm:$0xff]
    %v51 = vld [vmem:[%s1 + $0xe8] sm:$0xff]
    %v52 = vld [vmem:[%s1 + $0xf0] sm:$0xff]
    %v53 = vld [vmem:[%s1 + $0xf8] sm:$0xff]
    %v54 = vld [vmem:[%s2] sm:$0x1]
    %v56 = vlaneseq
    %v57 = vshrl.u32 %v56, 7
    %v58 = vsub.s32 0, %v57
    %v59 = vrot.slane %v54, %v58
    %v63 = vunpack.c.l.s4 1983009808
    %v64 = vunpack.c.0.s8 %v63
    %v65 = vlaneseq
    %v66 = vshrl.u32 %v65, 7
    %v67 = vsub.s32 %v64, %v66
    %v68 = vrot.slane %v21, %v67
    %v69 = vcombine.high %v68, %v68
    %72 = vmatprep.subr.mxu0 0.0
    %73 = vmatpush1.msra.mxu0 %v22
    %74 = vmatprep.subr.mxu0 0.0
    %75 = vmatpush1.msra.mxu0 %v23
    %76 = vmatprep.subr.mxu0 0.0
    %77 = vmatpush1.msra.mxu0 %v24
    %78 = vmatprep.subr.mxu0 0.0
    %79 = vmatpush1.msra.mxu0 %v25
    %80 = vmatprep.subr.mxu0 0.0
    %81 = vmatpush1.msra.mxu0 %v26
    %82 = vmatprep.subr.mxu0 0.0
    %83 = vmatpush1.msra.mxu0 %v27
    %84 = vmatprep.subr.mxu0 0.0
    %85 = vmatpush1.msra.mxu0 %v28
    %86 = vmatprep.subr.mxu0 0.0
    %87 = vmatpush1.msra.mxu0 %v29
    %88 = vmatprep.subr.mxu0 0.0
    %89 = vmatpush1.msra.mxu0 %v30
    %90 = vmatprep.subr.mxu0 0.0
    %91 = vmatpush1.msra.mxu0 %v31
    %92 = vmatprep.subr.mxu0 0.0
    %93 = vmatpush1.msra.mxu0 %v32
    %94 = vmatprep.subr.mxu0 0.0
    %95 = vmatpush1.msra.mxu0 %v33
    %96 = vmatprep.subr.mxu0 0.0
    %97 = vmatpush1.msra.mxu0 %v34
    %98 = vmatprep.subr.mxu0 0.0
    %99 = vmatpush1.msra.mxu0 %v35
    %100 = vmatprep.subr.mxu0 0.0
    %101 = vmatpush1.msra.mxu0 %v36
    %102 = vmatprep.subr.mxu0 0.0
    %103 = vmatpush1.msra.mxu0 %v37
    %104 = vmatprep.subr.mxu0 0.0
    %105 = vmatpush1.msra.mxu0 %v38
    %106 = vmatprep.subr.mxu0 0.0
    %107 = vmatpush1.msra.mxu0 %v39
    %108 = vmatprep.subr.mxu0 0.0
    %109 = vmatpush1.msra.mxu0 %v40
    %110 = vmatprep.subr.mxu0 0.0
    %111 = vmatpush1.msra.mxu0 %v41
    %112 = vmatprep.subr.mxu0 0.0
    %113 = vmatpush1.msra.mxu0 %v42
    %114 = vmatprep.subr.mxu0 0.0
    %115 = vmatpush1.msra.mxu0 %v43
    %116 = vmatprep.subr.mxu0 0.0
    %117 = vmatpush1.msra.mxu0 %v44
    %118 = vmatprep.subr.mxu0 0.0
    %119 = vmatpush1.msra.mxu0 %v45
    %120 = vmatprep.subr.mxu0 0.0
    %121 = vmatpush1.msra.mxu0 %v46
    %122 = vmatprep.subr.mxu0 0.0
    %123 = vmatpush1.msra.mxu0 %v47
    %124 = vmatprep.subr.mxu0 0.0
    %125 = vmatpush1.msra.mxu0 %v48
    %126 = vmatprep.subr.mxu0 0.0
    %127 = vmatpush1.msra.mxu0 %v49
    %128 = vmatprep.subr.mxu0 0.0
    %129 = vmatpush1.msra.mxu0 %v50
    %130 = vmatprep.subr.mxu0 0.0
    %131 = vmatpush1.msra.mxu0 %v51
    %132 = vmatprep.subr.mxu0 0.0
    %133 = vmatpush1.msra.mxu0 %v52
    %134 = vmatprep.subr.mxu0 0.0
    %135 = vmatpush1.msra.mxu0 %v53
    %136 = vmatprep.mubr.f32.mxu0 %v69
    %137 = vmatmul.mubr.f32.gmra.mrb[0].mxu0 %v68
    %v138 = vpop.f32.mrb[0].mxu0
    %v139 = vadd.f32 %v59, %v138
    %v140 = vpop.f32.mrb[0].mxu0
    %141 = vdwg.mxu0
    %v142 = vmax.f32 %v139, 0.0
    %v143 = vld [vmem:[%s3] sm:$0xff]
    %v144 = vld [vmem:[%s3 + $0x8] sm:$0xff]
    %v145 = vld [vmem:[%s3 + $0x10] sm:$0xff]
    %v146 = vld [vmem:[%s3 + $0x18] sm:$0xff]
    %v147 = vld [vmem:[%s3 + $0x20] sm:$0xff]
    %v148 = vld [vmem:[%s3 + $0x28] sm:$0xff]
    %v149 = vld [vmem:[%s3 + $0x30] sm:$0xff]
    %v150 = vld [vmem:[%s3 + $0x38] sm:$0xff]
    %v151 = vld [vmem:[%s3 + $0x40] sm:$0xff]
    %v152 = vld [vmem:[%s3 + $0x48] sm:$0xff]
    %v153 = vld [vmem:[%s3 + $0x50] sm:$0xff]
    %v154 = vld [vmem:[%s3 + $0x58] sm:$0xff]
    %v155 = vld [vmem:[%s3 + $0x60] sm:$0xff]
    %v156 = vld [vmem:[%s3 + $0x68] sm:$0xff]
    %v157 = vld [vmem:[%s3 + $0x70] sm:$0xff]
    %v158 = vld [vmem:[%s3 + $0x78] sm:$0xff]
    %v159 = vld [vmem:[%s4] sm:$0x1]
    %v161 = vlaneseq
    %v162 = vshrl.u32 %v161, 7
    %v163 = vsub.s32 0, %v162
    %v164 = vrot.slane %v159, %v163
    %166 = vmatprep.subr.mxu0 0.0
    %167 = vmatpush1.msra.mxu0 %v143
    %168 = vmatprep.subr.mxu0 0.0
    %169 = vmatpush1.msra.mxu0 %v144
    %170 = vmatprep.subr.mxu0 0.0
    %171 = vmatpush1.msra.mxu0 %v145
    %172 = vmatprep.subr.mxu0 0.0
    %173 = vmatpush1.msra.mxu0 %v146
    %174 = vmatprep.subr.mxu0 0.0
    %175 = vmatpush1.msra.mxu0 %v147
    %176 = vmatprep.subr.mxu0 0.0
    %177 = vmatpush1.msra.mxu0 %v148
    %178 = vmatprep.subr.mxu0 0.0
    %179 = vmatpush1.msra.mxu0 %v149
    %180 = vmatprep.subr.mxu0 0.0
    %181 = vmatpush1.msra.mxu0 %v150
    %182 = vmatprep.subr.mxu0 0.0
    %183 = vmatpush1.msra.mxu0 %v151
    %184 = vmatprep.subr.mxu0 0.0
    %185 = vmatpush1.msra.mxu0 %v152
    %186 = vmatprep.subr.mxu0 0.0
    %187 = vmatpush1.msra.mxu0 %v153
    %188 = vmatprep.subr.mxu0 0.0
    %189 = vmatpush1.msra.mxu0 %v154
    %190 = vmatprep.subr.mxu0 0.0
    %191 = vmatpush1.msra.mxu0 %v155
    %192 = vmatprep.subr.mxu0 0.0
    %193 = vmatpush1.msra.mxu0 %v156
    %194 = vmatprep.subr.mxu0 0.0
    %195 = vmatpush1.msra.mxu0 %v157
    %196 = vmatprep.subr.mxu0 0.0
    %197 = vmatpush1.msra.mxu0 %v158
    %198 = vmatprep.subr.mxu0 0.0
    %199 = vmatpush1.msra.mxu0 0.0
    %200 = vmatprep.subr.mxu0 0.0
    %201 = vmatpush1.msra.mxu0 0.0
    %202 = vmatprep.subr.mxu0 0.0
    %203 = vmatpush1.msra.mxu0 0.0
    %204 = vmatprep.subr.mxu0 0.0
    %205 = vmatpush1.msra.mxu0 0.0
    %206 = vmatprep.subr.mxu0 0.0
    %207 = vmatpush1.msra.mxu0 0.0
    %208 = vmatprep.subr.mxu0 0.0
    %209 = vmatpush1.msra.mxu0 0.0
    %210 = vmatprep.subr.mxu0 0.0
    %211 = vmatpush1.msra.mxu0 0.0
    %212 = vmatprep.subr.mxu0 0.0
    %213 = vmatpush1.msra.mxu0 0.0
    %214 = vmatprep.subr.mxu0 0.0
    %215 = vmatpush1.msra.mxu0 0.0
    %216 = vmatprep.subr.mxu0 0.0
    %217 = vmatpush1.msra.mxu0 0.0
    %218 = vmatprep.subr.mxu0 0.0
    %219 = vmatpush1.msra.mxu0 0.0
    %220 = vmatprep.subr.mxu0 0.0
    %221 = vmatpush1.msra.mxu0 0.0
    %222 = vmatprep.subr.mxu0 0.0
    %223 = vmatpush1.msra.mxu0 0.0
    %224 = vmatprep.subr.mxu0 0.0
    %225 = vmatpush1.msra.mxu0 0.0
    %226 = vmatprep.subr.mxu0 0.0
    %227 = vmatpush1.msra.mxu0 0.0
    %228 = vmatprep.subr.mxu0 0.0
    %229 = vmatpush1.msra.mxu0 0.0
    %230 = vmatprep.mubr.f32.mxu0 0.0
    %231 = vmatmul.mubr.f32.gmra.mrb[0].mxu0 %v142
    %v232 = vpop.f32.mrb[0].mxu0
    %v233 = vadd.f32 %v164, %v232
    %v234 = vpop.f32.mrb[0].mxu0
    %235 = vdwg.mxu0
    %vm236 = vcmask 25600
    %v237 = vsel %vm236, %v233, -inf
    %238 = vmax.xlane.f32.xlu0 %v237
    %v239 = vpop.xlane.xlu0 %238
    %v240 = vsub.f32 %v233, %v239
    %v241 = vmul.f32 %v240, 1.442695
    %v242 = vpow.pop %v241
    %v243 = vsel %vm236, %v242, 0.0
    %244 = vadd.xlane.f32.xlu0 %v243
    %v245 = vpop.xlane.xlu0 %244
    %v246 = vrcp.pop %v245
    %v247 = vmul.f32 %v242, %v246
    %248 = vst.msk [vmem:[#allocation2] sm:$0x3] %vm236, %v247
    // Predicated region
    $region22: #{cen_cnn_forward.9} parent=1 // pred_check
      _
    $region23: #{cen_cnn_forward.9} parent=1 // pred_check_branch
      %250 = sbr.rel (0) target = $region25
    $region24: #{cen_cnn_forward.9} parent=1 // pred_region
      %s252 = ssub.s32 32, 32
      %253 = vsyncadd [#allocation3], %s252
      %s255 = sshll.u32 [#allocation2], 4
      %s256 = int_to_ptr.vmem [resolvable:$true] %s255
      %258 = dma.vmem_to_hbm [thread:$0]  %s256, 32, %s5, [#allocation3]
    $region25: #{cen_cnn_forward.9} parent=1 // pred_fallthru
      _
    // Predicated region
    $region26: #{cen_cnn_forward.9} parent=1 // pred_check
      _
    $region27: #{cen_cnn_forward.9} parent=1 // pred_check_branch
      %260 = sbr.rel (0) target = $region29
    $region28: #{cen_cnn_forward.9} parent=1 // pred_region
      %261 = dma.done [#allocation3], 32
    $region29: #{cen_cnn_forward.9} parent=1 // pred_fallthru
      _
    %262 = vsyncpa [#allocation3], 1

</llo_original>
